<compile_context>
chip_gen: v5e
topology: v5e:2x2
jax: 0.10.0
libtpu: 0.0.40
codegen_flags: <defaults>
</compile_context>

<pallas_src>
import functools

import jax
import jax.numpy as jnp
from jax.experimental import pallas as pl
from jax.experimental.pallas import tpu as pltpu


def _layernorm(v, w, b, eps=1e-5):
    mu = jnp.mean(v, axis=-1, keepdims=True)
    var = jnp.mean((v - mu) ** 2, axis=-1, keepdims=True)
    return (v - mu) * jax.lax.rsqrt(var + eps) * w + b


def transformer_layer_kernel(
    x_ref,
    ln1w_ref, ln1b_ref,
    wqkv_ref, wo_ref,
    ln2w_ref, ln2b_ref,
    w12_ref, w3_ref,
    o_ref,
    attn_sc,                      # VMEM scratch: (Bt*N, D) bf16 attention slab
    *, num_heads,
):
    Bt, N, D = x_ref.shape
    hd = D // num_heads
    R = Bt * N

    # Flatten the batch block so projection / GLU matmuls see M = Bt*N rows.
    x = x_ref[...].reshape(R, D).astype(jnp.float32)

    # ---- token branch: x + W_O(Attn(LN(x))) ----
    ln1 = _layernorm(x, ln1w_ref[0], ln1b_ref[0])                       # f32 VPU
    # Fused QKV matmul (1/sqrt(hd) already folded into the Wq columns).
    qkv = jnp.dot(ln1.astype(jnp.bfloat16), wqkv_ref[...],
                  preferred_element_type=jnp.float32)                   # (R, 3D)
    qkv = qkv.astype(jnp.bfloat16)          # single bf16 cast of q/k/v
    q3 = qkv[:, :D].reshape(Bt, N, D)       # leading-dim reshapes: layout-trivial
    k3 = qkv[:, D:2 * D].reshape(Bt, N, D)
    v3 = qkv[:, 2 * D:].reshape(Bt, N, D)

    # Static loop over heads (H small); per-head temporaries die each iteration,
    # only the bf16 attention slab is carried.
    for h in range(num_heads):
        lo = h * hd
        hi = lo + hd
        qh = q3[:, :, lo:hi]                                            # (Bt, N, hd) bf16
        kh = k3[:, :, lo:hi]
        vh = v3[:, :, lo:hi]
        # Batched over the batch-block dim: scores (Bt, N, N), f32 accumulation.
        s = jax.lax.dot_general(qh, kh, (((2,), (2,)), ((0,), (0,))),
                                preferred_element_type=jnp.float32)
        s = s - jnp.max(s, axis=-1, keepdims=True)
        p = jnp.exp(s)                                                  # EUP
        denom = jnp.sum(p, axis=-1, keepdims=True)                      # f32 sum
        oh = jax.lax.dot_general(p.astype(jnp.bfloat16), vh,
                                 (((2,), (1,)), ((0,), (0,))),
                                 preferred_element_type=jnp.float32)    # (Bt, N, hd)
        # Deferred softmax normalization: Bt*N*hd multiplies instead of Bt*N*N.
        oh = oh * pl.reciprocal(denom, approx=True)
        attn_sc[:, lo:hi] = oh.reshape(R, hd).astype(jnp.bfloat16)

    # One wide O-projection (contraction K = D) replaces H skinny K = hd matmuls.
    attn_proj = jnp.dot(attn_sc[...], wo_ref[...],
                        preferred_element_type=jnp.float32)             # (R, D)
    x1 = x + attn_proj

    # ---- channel branch: x1 + W3( silu(x1 W1) * (x1 W2) ) ----
    ln2 = _layernorm(x1, ln2w_ref[0], ln2b_ref[0])
    ug = jnp.dot(ln2.astype(jnp.bfloat16), w12_ref[...],
                 preferred_element_type=jnp.float32)                    # (R, 2M)
    Mdim = w3_ref.shape[0]
    u = ug[:, :Mdim]
    g = ug[:, Mdim:]
    hmid = jax.nn.silu(u) * g                                           # f32 VPU/EUP
    mlp = jnp.dot(hmid.astype(jnp.bfloat16), w3_ref[...],
                  preferred_element_type=jnp.float32)

    o_ref[...] = (x1 + mlp).reshape(Bt, N, D).astype(o_ref.dtype)


def _device_info():
    """(num_tensorcores_per_chip, vmem_capacity_bytes) — generation aware."""
    try:
        kind = jax.devices()[0].device_kind.lower()
    except Exception:  # pragma: no cover - e.g. interpret mode
        kind = ""
    is_v7 = ("v7" in kind) or ("tpu7" in kind) or ("7x" in kind)
    two_tc = is_v7 or ("v4" in kind) or ("v5p" in kind)
    vmem_cap = (64 if is_v7 else 128) * 1024 * 1024
    return (2 if two_tc else 1), vmem_cap


def _estimate_vmem_bytes(block_b, N, D, M, H):
    """Rough VMEM footprint for one grid step (bytes)."""
    R = block_b * N
    bf2, f4 = 2, 4
    weights = (D * 3 * D + D * D + D * 2 * M + M * D) * bf2 + 4 * D * f4  # single-buffered
    io = 2 * 2 * (R * D * f4)                   # x / o blocks, double buffered
    scratch = R * D * bf2                       # attention slab
    inter = (R * 3 * D * (f4 + bf2)             # qkv f32 + bf16 copy
             + 3 * R * D * f4                   # x, attn_proj, x1
             + 2 * block_b * N * N * f4         # s + p for one head (loop-local)
             + R * 2 * M * f4 + R * M * f4      # ug, hmid
             + R * D * f4)                      # mlp
    return weights + io + scratch + inter


def _pick_block_b(B, N, D, M, H, num_tc, vmem_budget):
    """Largest divisor of B whose VMEM estimate fits the budget.

    On 2-TC chips keep >= 2 grid steps (when B allows) so both cores get work;
    on single-TC v5e/v6e prefer the biggest slab (fewer grid steps, bigger
    matmul M-dim). Cap R at ~2048 rows so the (Bt, N, N) scores stay bounded.
    """
    best = 1
    for d in range(1, B + 1):
        if B % d != 0:
            continue
        if num_tc > 1 and B >= 2 and B // d < 2:
            continue
        if d * N > 2048:
            continue
        if _estimate_vmem_bytes(d, N, D, M, H) <= vmem_budget:
            best = d
    return best


def prepare_params(params, num_heads):
    """One-time weight preparation (fusion + bf16 cast + scale folding).

    Hoisted out of the per-call wrapper so repeated layer calls don't rewrite
    weights through HBM every time.
    """
    D = params["wq"].shape[0]
    hd = D // num_heads
    scale = 1.0 / (hd ** 0.5)
    wqkv = jnp.concatenate(
        [params["wq"] * scale, params["wk"], params["wv"]], axis=1
    ).astype(jnp.bfloat16)
    w12 = jnp.concatenate([params["w1"], params["w2"]], axis=1).astype(jnp.bfloat16)
    return {
        "ln1_w": params["ln1_w"].astype(jnp.float32),
        "ln1_b": params["ln1_b"].astype(jnp.float32),
        "wqkv": wqkv,
        "wo": params["wo"].astype(jnp.bfloat16),
        "ln2_w": params["ln2_w"].astype(jnp.float32),
        "ln2_b": params["ln2_b"].astype(jnp.float32),
        "w12": w12,
        "w3": params["w3"].astype(jnp.bfloat16),
    }


def transformer_layer(x, prepped, num_heads, block_b=None):
    B, N, D = x.shape
    M = prepped["w3"].shape[0]
    hd = D // num_heads

    num_tc, vmem_cap = _device_info()
    vmem_limit = int(0.75 * vmem_cap)           # ~96 MiB on v5e/v6e, ~48 MiB on v7x
    if block_b is None:
        block_b = _pick_block_b(B, N, D, M, num_heads, num_tc, vmem_limit)
    assert B % block_b == 0

    # Grid-constant weights: full-array VMEM residency (single copy, no
    # per-step double-buffering) — halves weight VMEM vs. blocked specs.
    wspec = pl.BlockSpec(memory_space=pltpu.MemorySpace.VMEM)
    kernel = functools.partial(transformer_layer_kernel, num_heads=num_heads)

    flops = (2 * B * N * D * (3 * D)            # fused QKV
             + 4 * B * num_heads * N * N * hd   # scores + PV
             + 2 * B * N * D * D                # O projection
             + 2 * B * N * D * (2 * M)          # fused W1|W2
             + 2 * B * N * M * D)               # W3
    transcendentals = B * num_heads * N * N + 2 * B * N * M
    bytes_accessed = (2 * B * N * D * 4
                      + (D * 3 * D + D * D + D * 2 * M + M * D) * 2
                      + 4 * D * 4)
    cost = pl.CostEstimate(flops=flops, transcendentals=transcendentals,
                           bytes_accessed=bytes_accessed)

    return pl.pallas_call(
        kernel,
        out_shape=jax.ShapeDtypeStruct((B, N, D), x.dtype),
        grid_spec=pltpu.PrefetchScalarGridSpec(
            num_scalar_prefetch=0,
            grid=(B // block_b,),
            in_specs=[
                pl.BlockSpec((block_b, N, D), lambda b: (b, 0, 0)),  # x
                wspec, wspec,                                        # ln1 w, b  (f32)
                wspec,                                               # fused Wqkv (bf16)
                wspec,                                               # Wo (bf16)
                wspec, wspec,                                        # ln2 w, b  (f32)
                wspec,                                               # fused W1|W2 (bf16)
                wspec,                                               # W3 (bf16)
            ],
            out_specs=pl.BlockSpec((block_b, N, D), lambda b: (b, 0, 0)),
            scratch_shapes=[pltpu.VMEM((block_b * N, D), jnp.bfloat16)],
        ),
        compiler_params=pltpu.CompilerParams(
            dimension_semantics=("parallel",),
            vmem_limit_bytes=vmem_limit,
        ),
        cost_estimate=cost,
    )(
        x,
        prepped["ln1_w"], prepped["ln1_b"],
        prepped["wqkv"], prepped["wo"],
        prepped["ln2_w"], prepped["ln2_b"],
        prepped["w12"], prepped["w3"],
    )


def transformer_layer_ref(x, params, num_heads):
    """Plain-JAX f32 reference with identical semantics (for validation)."""
    B, N, D = x.shape
    hd = D // num_heads
    scale = 1.0 / (hd ** 0.5)

    ln1 = _layernorm(x, params["ln1_w"][0], params["ln1_b"][0])
    q = ln1 @ params["wq"]
    k = ln1 @ params["wk"]
    v = ln1 @ params["wv"]
    q = q.reshape(B, N, num_heads, hd)
    k = k.reshape(B, N, num_heads, hd)
    v = v.reshape(B, N, num_heads, hd)
    s = jnp.einsum("bnhd,bmhd->bhnm", q, k) * scale
    p = jax.nn.softmax(s, axis=-1)
    attn = jnp.einsum("bhnm,bmhd->bnhd", p, v).reshape(B, N, D)
    x1 = x + attn @ params["wo"]

    ln2 = _layernorm(x1, params["ln2_w"][0], params["ln2_b"][0])
    glu = jax.nn.silu(ln2 @ params["w1"]) * (ln2 @ params["w2"])
    return x1 + glu @ params["w3"]


def init_params(key, D, M):
    ks = jax.random.split(key, 7)
    s = 0.02
    return {
        "ln1_w": jnp.ones((1, D), jnp.float32),
        "ln1_b": jnp.zeros((1, D), jnp.float32),
        "wq": s * jax.random.normal(ks[0], (D, D), jnp.float32),
        "wk": s * jax.random.normal(ks[1], (D, D), jnp.float32),
        "wv": s * jax.random.normal(ks[2], (D, D), jnp.float32),
        "wo": s * jax.random.normal(ks[3], (D, D), jnp.float32),
        "ln2_w": jnp.ones((1, D), jnp.float32),
        "ln2_b": jnp.zeros((1, D), jnp.float32),
        "w1": s * jax.random.normal(ks[4], (D, M), jnp.float32),
        "w2": s * jax.random.normal(ks[5], (D, M), jnp.float32),
        "w3": s * jax.random.normal(ks[6], (M, D), jnp.float32),
    }


if __name__ == "__main__":
    # Lane-dense toy config: D and head_dim are multiples of 128 so per-head
    # slices and the output store stay on 128-lane boundaries.
    B, N, D, H, M = 2, 64, 256, 2, 512   # batch, tokens, hidden, heads, mid_dim

    key = jax.random.PRNGKey(0)
    kx, kp = jax.random.split(key)
    x = jax.random.normal(kx, (B, N, D), jnp.float32)
    params = init_params(kp, D, M)
    prepped = prepare_params(params, num_heads=H)   # one-time weight prep

    out = transformer_layer(x, prepped, num_heads=H)
    out = jax.block_until_ready(out)

    ref = transformer_layer_ref(x, params, num_heads=H)
    assert out.shape == (B, N, D)
    # bf16 MXU operands/weights + approx reciprocal vs the pure-f32 reference.
    err = float(jnp.max(jnp.abs(out - ref)))
    assert err < 1e-2, f"mismatch vs reference: {err}"

    print("KERNEL_OK")
</pallas_src>

<mosaic_0001>
module attributes {stable_mosaic.version = 11 : i64} {
  func.func @transformer_layer_kernel(%arg0: i32, %arg1: memref<2x64x256xf32, #tpu.memory_space<vmem>>, %arg2: memref<1x256xf32, #tpu.memory_space<vmem>>, %arg3: memref<1x256xf32, #tpu.memory_space<vmem>>, %arg4: memref<256x768xbf16, #tpu.memory_space<vmem>>, %arg5: memref<256x256xbf16, #tpu.memory_space<vmem>>, %arg6: memref<1x256xf32, #tpu.memory_space<vmem>>, %arg7: memref<1x256xf32, #tpu.memory_space<vmem>>, %arg8: memref<256x1024xbf16, #tpu.memory_space<vmem>>, %arg9: memref<512x256xbf16, #tpu.memory_space<vmem>>, %arg10: memref<2x64x256xf32, #tpu.memory_space<vmem>>, %arg11: memref<128x256xbf16, #tpu.memory_space<vmem>>) attributes {dimension_semantics = [#tpu.dimension_semantics<parallel>], iteration_bounds = array<i64: 1>, scalar_prefetch = 0 : i64, scratch_operands = 1 : i64, tpu.core_type = #tpu.core_type<tc>, window_params = [{transform_indices = @transform_0, window_bounds = array<i64: 2, 64, 256>}, {pipeline_mode = #tpu.pipeline_mode<synchronous>, transform_indices = @transform_1, window_bounds = array<i64: 1, 256>}, {pipeline_mode = #tpu.pipeline_mode<synchronous>, transform_indices = @transform_2, window_bounds = array<i64: 1, 256>}, {pipeline_mode = #tpu.pipeline_mode<synchronous>, transform_indices = @transform_3, window_bounds = array<i64: 256, 768>}, {pipeline_mode = #tpu.pipeline_mode<synchronous>, transform_indices = @transform_4, window_bounds = array<i64: 256, 256>}, {pipeline_mode = #tpu.pipeline_mode<synchronous>, transform_indices = @transform_5, window_bounds = array<i64: 1, 256>}, {pipeline_mode = #tpu.pipeline_mode<synchronous>, transform_indices = @transform_6, window_bounds = array<i64: 1, 256>}, {pipeline_mode = #tpu.pipeline_mode<synchronous>, transform_indices = @transform_7, window_bounds = array<i64: 256, 1024>}, {pipeline_mode = #tpu.pipeline_mode<synchronous>, transform_indices = @transform_8, window_bounds = array<i64: 512, 256>}, {transform_indices = @transform_9, window_bounds = array<i64: 2, 64, 256>}]} {
    %c0 = arith.constant 0 : index
    %c0_0 = arith.constant 0 : index
    %c0_1 = arith.constant 0 : index
    %0 = vector.load %arg1[%c0, %c0_0, %c0_1] : memref<2x64x256xf32, #tpu.memory_space<vmem>>, vector<2x64x256xf32>
    %1 = vector.shape_cast %0 : vector<2x64x256xf32> to vector<128x256xf32>
    %c0_2 = arith.constant 0 : index
    %c0_3 = arith.constant 0 : index
    %2 = vector.load %arg2[%c0_2, %c0_3] : memref<1x256xf32, #tpu.memory_space<vmem>>, vector<1x256xf32>
    %3 = vector.shape_cast %2 : vector<1x256xf32> to vector<256xf32>
    %c0_4 = arith.constant 0 : index
    %c0_5 = arith.constant 0 : index
    %4 = vector.load %arg3[%c0_4, %c0_5] : memref<1x256xf32, #tpu.memory_space<vmem>>, vector<1x256xf32>
    %5 = vector.shape_cast %4 : vector<1x256xf32> to vector<256xf32>
    %cst = arith.constant dense<0.000000e+00> : vector<128xf32>
    %6 = vector.multi_reduction <add>, %1, %cst [1] : vector<128x256xf32> to vector<128xf32>
    %7 = vector.shape_cast %6 : vector<128xf32> to vector<128x1xf32>
    %cst_6 = arith.constant 2.560000e+02 : f32
    %8 = vector.broadcast %cst_6 : f32 to vector<128x1xf32>
    %9 = arith.divf %7, %8 : vector<128x1xf32>
    %10 = vector.broadcast %9 : vector<128x1xf32> to vector<128x256xf32>
    %11 = arith.subf %1, %10 : vector<128x256xf32>
    %12 = arith.mulf %11, %11 : vector<128x256xf32>
    %cst_7 = arith.constant dense<0.000000e+00> : vector<128xf32>
    %13 = vector.multi_reduction <add>, %12, %cst_7 [1] : vector<128x256xf32> to vector<128xf32>
    %14 = vector.shape_cast %13 : vector<128xf32> to vector<128x1xf32>
    %cst_8 = arith.constant 2.560000e+02 : f32
    %15 = vector.broadcast %cst_8 : f32 to vector<128x1xf32>
    %16 = arith.divf %14, %15 : vector<128x1xf32>
    %17 = vector.broadcast %9 : vector<128x1xf32> to vector<128x256xf32>
    %18 = arith.subf %1, %17 : vector<128x256xf32>
    %cst_9 = arith.constant 9.99999974E-6 : f32
    %19 = vector.broadcast %cst_9 : f32 to vector<128x1xf32>
    %20 = arith.addf %16, %19 : vector<128x1xf32>
    %21 = math.rsqrt %20 : vector<128x1xf32>
    %22 = vector.broadcast %21 : vector<128x1xf32> to vector<128x256xf32>
    %23 = arith.mulf %18, %22 : vector<128x256xf32>
    %24 = vector.shape_cast %3 : vector<256xf32> to vector<1x256xf32>
    %25 = vector.broadcast %24 : vector<1x256xf32> to vector<128x256xf32>
    %26 = arith.mulf %23, %25 : vector<128x256xf32>
    %27 = vector.shape_cast %5 : vector<256xf32> to vector<1x256xf32>
    %28 = vector.broadcast %27 : vector<1x256xf32> to vector<128x256xf32>
    %29 = arith.addf %26, %28 : vector<128x256xf32>
    %30 = arith.truncf %29 : vector<128x256xf32> to vector<128x256xbf16>
    %c0_10 = arith.constant 0 : index
    %c0_11 = arith.constant 0 : index
    %31 = vector.load %arg4[%c0_10, %c0_11] : memref<256x768xbf16, #tpu.memory_space<vmem>>, vector<256x768xbf16>
    %cst_12 = arith.constant dense<0.000000e+00> : vector<128x768xf32>
    %32 = tpu.matmul %30, %31, %cst_12 {dimension_numbers = #tpu.dot_dimension_numbers<[1], [0], [0], [1], [0, 0, 1, 1], [], []>} : vector<128x256xbf16>, vector<256x768xbf16>, vector<128x768xf32> -> vector<128x768xf32>
    %33 = arith.truncf %32 : vector<128x768xf32> to vector<128x768xbf16>
    %34 = vector.extract_strided_slice %33 {offsets = [0, 0], sizes = [128, 256], strides = [1, 1]} : vector<128x768xbf16> to vector<128x256xbf16>
    %35 = vector.shape_cast %34 : vector<128x256xbf16> to vector<2x64x256xbf16>
    %36 = vector.extract_strided_slice %33 {offsets = [0, 256], sizes = [128, 256], strides = [1, 1]} : vector<128x768xbf16> to vector<128x256xbf16>
    %37 = vector.shape_cast %36 : vector<128x256xbf16> to vector<2x64x256xbf16>
    %38 = vector.extract_strided_slice %33 {offsets = [0, 512], sizes = [128, 256], strides = [1, 1]} : vector<128x768xbf16> to vector<128x256xbf16>
    %39 = vector.shape_cast %38 : vector<128x256xbf16> to vector<2x64x256xbf16>
    %40 = vector.extract_strided_slice %35 {offsets = [0, 0, 0], sizes = [2, 64, 128], strides = [1, 1, 1]} : vector<2x64x256xbf16> to vector<2x64x128xbf16>
    %41 = vector.extract_strided_slice %37 {offsets = [0, 0, 0], sizes = [2, 64, 128], strides = [1, 1, 1]} : vector<2x64x256xbf16> to vector<2x64x128xbf16>
    %42 = vector.extract_strided_slice %39 {offsets = [0, 0, 0], sizes = [2, 64, 128], strides = [1, 1, 1]} : vector<2x64x256xbf16> to vector<2x64x128xbf16>
    %cst_13 = arith.constant dense<0.000000e+00> : vector<2x64x64xf32>
    %43 = tpu.matmul %40, %41, %cst_13 {dimension_numbers = #tpu.dot_dimension_numbers<[2], [2], [1], [1], [0, 0, 0, 1, 1, 1], [0], [0]>} : vector<2x64x128xbf16>, vector<2x64x128xbf16>, vector<2x64x64xf32> -> vector<2x64x64xf32>
    %cst_14 = arith.constant dense<0xFF800000> : vector<2x64xf32>
    %44 = vector.multi_reduction <maximumf>, %43, %cst_14 [2] : vector<2x64x64xf32> to vector<2x64xf32>
    %45 = vector.shape_cast %44 : vector<2x64xf32> to vector<2x64x1xf32>
    %46 = vector.broadcast %45 : vector<2x64x1xf32> to vector<2x64x64xf32>
    %47 = arith.subf %43, %46 : vector<2x64x64xf32>
    %48 = math.exp %47 : vector<2x64x64xf32>
    %cst_15 = arith.constant dense<0.000000e+00> : vector<2x64xf32>
    %49 = vector.multi_reduction <add>, %48, %cst_15 [2] : vector<2x64x64xf32> to vector<2x64xf32>
    %50 = vector.shape_cast %49 : vector<2x64xf32> to vector<2x64x1xf32>
    %51 = arith.truncf %48 : vector<2x64x64xf32> to vector<2x64x64xbf16>
    %cst_16 = arith.constant dense<0.000000e+00> : vector<2x64x128xf32>
    %52 = tpu.matmul %51, %42, %cst_16 {dimension_numbers = #tpu.dot_dimension_numbers<[2], [1], [1], [2], [0, 0, 0, 1, 1, 2], [0], [0]>} : vector<2x64x64xbf16>, vector<2x64x128xbf16>, vector<2x64x128xf32> -> vector<2x64x128xf32>
    %53 = tpu.reciprocal %50 {approx = true} : vector<2x64x1xf32> -> vector<2x64x1xf32>
    %54 = vector.broadcast %53 : vector<2x64x1xf32> to vector<2x64x128xf32>
    %55 = arith.mulf %52, %54 : vector<2x64x128xf32>
    %56 = vector.shape_cast %55 : vector<2x64x128xf32> to vector<128x128xf32>
    %57 = arith.truncf %56 : vector<128x128xf32> to vector<128x128xbf16>
    %c0_17 = arith.constant 0 : index
    %c0_18 = arith.constant 0 : index
    %58 = vector.load %arg11[%c0_17, %c0_18] : memref<128x256xbf16, #tpu.memory_space<vmem>>, vector<128x128xbf16>
    tpu.vector_store %arg11[%c0_17, %c0_18], %57 {strides = array<i32>} : memref<128x256xbf16, #tpu.memory_space<vmem>>, vector<128x128xbf16>,
    %59 = vector.extract_strided_slice %35 {offsets = [0, 0, 128], sizes = [2, 64, 128], strides = [1, 1, 1]} : vector<2x64x256xbf16> to vector<2x64x128xbf16>
    %60 = vector.extract_strided_slice %37 {offsets = [0, 0, 128], sizes = [2, 64, 128], strides = [1, 1, 1]} : vector<2x64x256xbf16> to vector<2x64x128xbf16>
    %61 = vector.extract_strided_slice %39 {offsets = [0, 0, 128], sizes = [2, 64, 128], strides = [1, 1, 1]} : vector<2x64x256xbf16> to vector<2x64x128xbf16>
    %cst_19 = arith.constant dense<0.000000e+00> : vector<2x64x64xf32>
    %62 = tpu.matmul %59, %60, %cst_19 {dimension_numbers = #tpu.dot_dimension_numbers<[2], [2], [1], [1], [0, 0, 0, 1, 1, 1], [0], [0]>} : vector<2x64x128xbf16>, vector<2x64x128xbf16>, vector<2x64x64xf32> -> vector<2x64x64xf32>
    %cst_20 = arith.constant dense<0xFF800000> : vector<2x64xf32>
    %63 = vector.multi_reduction <maximumf>, %62, %cst_20 [2] : vector<2x64x64xf32> to vector<2x64xf32>
    %64 = vector.shape_cast %63 : vector<2x64xf32> to vector<2x64x1xf32>
    %65 = vector.broadcast %64 : vector<2x64x1xf32> to vector<2x64x64xf32>
    %66 = arith.subf %62, %65 : vector<2x64x64xf32>
    %67 = math.exp %66 : vector<2x64x64xf32>
    %cst_21 = arith.constant dense<0.000000e+00> : vector<2x64xf32>
    %68 = vector.multi_reduction <add>, %67, %cst_21 [2] : vector<2x64x64xf32> to vector<2x64xf32>
    %69 = vector.shape_cast %68 : vector<2x64xf32> to vector<2x64x1xf32>
    %70 = arith.truncf %67 : vector<2x64x64xf32> to vector<2x64x64xbf16>
    %cst_22 = arith.constant dense<0.000000e+00> : vector<2x64x128xf32>
    %71 = tpu.matmul %70, %61, %cst_22 {dimension_numbers = #tpu.dot_dimension_numbers<[2], [1], [1], [2], [0, 0, 0, 1, 1, 2], [0], [0]>} : vector<2x64x64xbf16>, vector<2x64x128xbf16>, vector<2x64x128xf32> -> vector<2x64x128xf32>
    %72 = tpu.reciprocal %69 {approx = true} : vector<2x64x1xf32> -> vector<2x64x1xf32>
    %73 = vector.broadcast %72 : vector<2x64x1xf32> to vector<2x64x128xf32>
    %74 = arith.mulf %71, %73 : vector<2x64x128xf32>
    %75 = vector.shape_cast %74 : vector<2x64x128xf32> to vector<128x128xf32>
    %76 = arith.truncf %75 : vector<128x128xf32> to vector<128x128xbf16>
    %c0_23 = arith.constant 0 : index
    %c128 = arith.constant 128 : index
    %77 = vector.load %arg11[%c0_23, %c128] : memref<128x256xbf16, #tpu.memory_space<vmem>>, vector<128x128xbf16>
    tpu.vector_store %arg11[%c0_23, %c128], %76 {strides = array<i32>} : memref<128x256xbf16, #tpu.memory_space<vmem>>, vector<128x128xbf16>,
    %c0_24 = arith.constant 0 : index
    %c0_25 = arith.constant 0 : index
    %78 = vector.load %arg11[%c0_24, %c0_25] : memref<128x256xbf16, #tpu.memory_space<vmem>>, vector<128x256xbf16>
    %c0_26 = arith.constant 0 : index
    %c0_27 = arith.constant 0 : index
    %79 = vector.load %arg5[%c0_26, %c0_27] : memref<256x256xbf16, #tpu.memory_space<vmem>>, vector<256x256xbf16>
    %cst_28 = arith.constant dense<0.000000e+00> : vector<128x256xf32>
    %80 = tpu.matmul %78, %79, %cst_28 {dimension_numbers = #tpu.dot_dimension_numbers<[1], [0], [0], [1], [0, 0, 1, 1], [], []>} : vector<128x256xbf16>, vector<256x256xbf16>, vector<128x256xf32> -> vector<128x256xf32>
    %81 = arith.addf %1, %80 : vector<128x256xf32>
    %c0_29 = arith.constant 0 : index
    %c0_30 = arith.constant 0 : index
    %82 = vector.load %arg6[%c0_29, %c0_30] : memref<1x256xf32, #tpu.memory_space<vmem>>, vector<1x256xf32>
    %83 = vector.shape_cast %82 : vector<1x256xf32> to vector<256xf32>
    %c0_31 = arith.constant 0 : index
    %c0_32 = arith.constant 0 : index
    %84 = vector.load %arg7[%c0_31, %c0_32] : memref<1x256xf32, #tpu.memory_space<vmem>>, vector<1x256xf32>
    %85 = vector.shape_cast %84 : vector<1x256xf32> to vector<256xf32>
    %cst_33 = arith.constant dense<0.000000e+00> : vector<128xf32>
    %86 = vector.multi_reduction <add>, %81, %cst_33 [1] : vector<128x256xf32> to vector<128xf32>
    %87 = vector.shape_cast %86 : vector<128xf32> to vector<128x1xf32>
    %cst_34 = arith.constant 2.560000e+02 : f32
    %88 = vector.broadcast %cst_34 : f32 to vector<128x1xf32>
    %89 = arith.divf %87, %88 : vector<128x1xf32>
    %90 = vector.broadcast %89 : vector<128x1xf32> to vector<128x256xf32>
    %91 = arith.subf %81, %90 : vector<128x256xf32>
    %92 = arith.mulf %91, %91 : vector<128x256xf32>
    %cst_35 = arith.constant dense<0.000000e+00> : vector<128xf32>
    %93 = vector.multi_reduction <add>, %92, %cst_35 [1] : vector<128x256xf32> to vector<128xf32>
    %94 = vector.shape_cast %93 : vector<128xf32> to vector<128x1xf32>
    %cst_36 = arith.constant 2.560000e+02 : f32
    %95 = vector.broadcast %cst_36 : f32 to vector<128x1xf32>
    %96 = arith.divf %94, %95 : vector<128x1xf32>
    %97 = vector.broadcast %89 : vector<128x1xf32> to vector<128x256xf32>
    %98 = arith.subf %81, %97 : vector<128x256xf32>
    %cst_37 = arith.constant 9.99999974E-6 : f32
    %99 = vector.broadcast %cst_37 : f32 to vector<128x1xf32>
    %100 = arith.addf %96, %99 : vector<128x1xf32>
    %101 = math.rsqrt %100 : vector<128x1xf32>
    %102 = vector.broadcast %101 : vector<128x1xf32> to vector<128x256xf32>
    %103 = arith.mulf %98, %102 : vector<128x256xf32>
    %104 = vector.shape_cast %83 : vector<256xf32> to vector<1x256xf32>
    %105 = vector.broadcast %104 : vector<1x256xf32> to vector<128x256xf32>
    %106 = arith.mulf %103, %105 : vector<128x256xf32>
    %107 = vector.shape_cast %85 : vector<256xf32> to vector<1x256xf32>
    %108 = vector.broadcast %107 : vector<1x256xf32> to vector<128x256xf32>
    %109 = arith.addf %106, %108 : vector<128x256xf32>
    %110 = arith.truncf %109 : vector<128x256xf32> to vector<128x256xbf16>
    %c0_38 = arith.constant 0 : index
    %c0_39 = arith.constant 0 : index
    %111 = vector.load %arg8[%c0_38, %c0_39] : memref<256x1024xbf16, #tpu.memory_space<vmem>>, vector<256x1024xbf16>
    %cst_40 = arith.constant dense<0.000000e+00> : vector<128x1024xf32>
    %112 = tpu.matmul %110, %111, %cst_40 {dimension_numbers = #tpu.dot_dimension_numbers<[1], [0], [0], [1], [0, 0, 1, 1], [], []>} : vector<128x256xbf16>, vector<256x1024xbf16>, vector<128x1024xf32> -> vector<128x1024xf32>
    %113 = vector.extract_strided_slice %112 {offsets = [0, 0], sizes = [128, 512], strides = [1, 1]} : vector<128x1024xf32> to vector<128x512xf32>
    %114 = vector.extract_strided_slice %112 {offsets = [0, 512], sizes = [128, 512], strides = [1, 1]} : vector<128x1024xf32> to vector<128x512xf32>
    %115 = arith.negf %113 : vector<128x512xf32>
    %116 = math.exp %115 : vector<128x512xf32>
    %cst_41 = arith.constant 1.000000e+00 : f32
    %117 = vector.broadcast %cst_41 : f32 to vector<128x512xf32>
    %118 = arith.addf %117, %116 : vector<128x512xf32>
    %119 = arith.divf %117, %118 : vector<128x512xf32>
    %120 = arith.mulf %113, %119 : vector<128x512xf32>
    %121 = arith.mulf %120, %114 : vector<128x512xf32>
    %122 = arith.truncf %121 : vector<128x512xf32> to vector<128x512xbf16>
    %c0_42 = arith.constant 0 : index
    %c0_43 = arith.constant 0 : index
    %123 = vector.load %arg9[%c0_42, %c0_43] : memref<512x256xbf16, #tpu.memory_space<vmem>>, vector<512x256xbf16>
    %cst_44 = arith.constant dense<0.000000e+00> : vector<128x256xf32>
    %124 = tpu.matmul %122, %123, %cst_44 {dimension_numbers = #tpu.dot_dimension_numbers<[1], [0], [0], [1], [0, 0, 1, 1], [], []>} : vector<128x512xbf16>, vector<512x256xbf16>, vector<128x256xf32> -> vector<128x256xf32>
    %125 = arith.addf %81, %124 : vector<128x256xf32>
    %126 = vector.shape_cast %125 : vector<128x256xf32> to vector<2x64x256xf32>
    %c0_45 = arith.constant 0 : index
    %c0_46 = arith.constant 0 : index
    %c0_47 = arith.constant 0 : index
    %127 = vector.load %arg10[%c0_45, %c0_46, %c0_47] : memref<2x64x256xf32, #tpu.memory_space<vmem>>, vector<2x64x256xf32>
    tpu.vector_store %arg10[%c0_45, %c0_46, %c0_47], %126 {strides = array<i32>} : memref<2x64x256xf32, #tpu.memory_space<vmem>>, vector<2x64x256xf32>,
    return
  }
  func.func @transform_0(%arg0: i32) -> (i32, i32, i32) {
    %c0_i32 = arith.constant 0 : i32
    %c0_i32_0 = arith.constant 0 : i32
    %c0_i32_1 = arith.constant 0 : i32
    return %arg0, %c0_i32, %c0_i32_0 : i32, i32, i32
  }
  func.func @transform_1(%arg0: i32) -> (i32, i32) {
    %c0_i32 = arith.constant 0 : i32
    %c0_i32_0 = arith.constant 0 : i32
    %c0_i32_1 = arith.constant 0 : i32
    return %c0_i32, %c0_i32_0 : i32, i32
  }
  func.func @transform_2(%arg0: i32) -> (i32, i32) {
    %c0_i32 = arith.constant 0 : i32
    %c0_i32_0 = arith.constant 0 : i32
    %c0_i32_1 = arith.constant 0 : i32
    return %c0_i32, %c0_i32_0 : i32, i32
  }
  func.func @transform_3(%arg0: i32) -> (i32, i32) {
    %c0_i32 = arith.constant 0 : i32
    %c0_i32_0 = arith.constant 0 : i32
    %c0_i32_1 = arith.constant 0 : i32
    return %c0_i32, %c0_i32_0 : i32, i32
  }
  func.func @transform_4(%arg0: i32) -> (i32, i32) {
    %c0_i32 = arith.constant 0 : i32
    %c0_i32_0 = arith.constant 0 : i32
    %c0_i32_1 = arith.constant 0 : i32
    return %c0_i32, %c0_i32_0 : i32, i32
  }
  func.func @transform_5(%arg0: i32) -> (i32, i32) {
    %c0_i32 = arith.constant 0 : i32
    %c0_i32_0 = arith.constant 0 : i32
    %c0_i32_1 = arith.constant 0 : i32
    return %c0_i32, %c0_i32_0 : i32, i32
  }
  func.func @transform_6(%arg0: i32) -> (i32, i32) {
    %c0_i32 = arith.constant 0 : i32
    %c0_i32_0 = arith.constant 0 : i32
    %c0_i32_1 = arith.constant 0 : i32
    return %c0_i32, %c0_i32_0 : i32, i32
  }
  func.func @transform_7(%arg0: i32) -> (i32, i32) {
    %c0_i32 = arith.constant 0 : i32
    %c0_i32_0 = arith.constant 0 : i32
    %c0_i32_1 = arith.constant 0 : i32
    return %c0_i32, %c0_i32_0 : i32, i32
  }
  func.func @transform_8(%arg0: i32) -> (i32, i32) {
    %c0_i32 = arith.constant 0 : i32
    %c0_i32_0 = arith.constant 0 : i32
    %c0_i32_1 = arith.constant 0 : i32
    return %c0_i32, %c0_i32_0 : i32, i32
  }
  func.func @transform_9(%arg0: i32) -> (i32, i32, i32) {
    %c0_i32 = arith.constant 0 : i32
    %c0_i32_0 = arith.constant 0 : i32
    %c0_i32_1 = arith.constant 0 : i32
    return %arg0, %c0_i32, %c0_i32_0 : i32, i32, i32
  }
}

</mosaic_0001>

<llo_original>
// kernel: tpu_custom_call.1
$region0: #{tpu_custom_call.1}
  #allocation0 [shape = 'u32[]', space=smem, size = 0x4, offset = 0x4, fixed_abs, tag = 'smem constant byte address 0x4 - core index']
  #allocation1 [shape = 'u32[72,128]{1,0:T(1,128)}', space=vmem, size = 0x9000, scoped, tag = 'internal scratch']
  #allocation2 [shape = 'bf16[128,256]{1,0:T(8,128)(2,1)}', space=vmem, size = 0x10000, scoped, tag = 'scratch operand']
  %s0 = inlined_call_operand.hbm [shape: f32[2,64,256], index: 0, kind: input, shape index: {}]
  %s1 = inlined_call_operand.hbm [shape: f32[1,256], index: 1, kind: input, shape index: {}]
  %s2 = inlined_call_operand.hbm [shape: f32[1,256], index: 2, kind: input, shape index: {}]
  %s3 = inlined_call_operand.hbm [shape: bf16[256,768], index: 3, kind: input, shape index: {}]
  %s4 = inlined_call_operand.hbm [shape: bf16[256,256], index: 4, kind: input, shape index: {}]
  %s5 = inlined_call_operand.vmem [shape: f32[1,256], index: 5, kind: input, shape index: {}]
  %s6 = inlined_call_operand.vmem [shape: f32[1,256], index: 6, kind: input, shape index: {}]
  %s7 = inlined_call_operand.hbm [shape: bf16[256,1024], index: 7, kind: input, shape index: {}]
  %s8 = inlined_call_operand.hbm [shape: bf16[512,256], index: 8, kind: input, shape index: {}]
  %s9 = inlined_call_operand.hbm [shape: f32[2,64,256], index: 9, kind: output, shape index: {}]
  %s10 = sld [smem:[#allocation0]]
  $region74: #{tpu_custom_call.1} parent=0
    _
  %s12 = ssub.s32 1, %s10
  %s13 = scalar_select 0, %s12, %s10
  $region1: #{tpu_custom_call.1} parent=0
    #allocation3 [shape = 'u8[131072]{0}', space=vmem, size = 0x20000, scoped, tag = 'input window, operand 0, single buffered']
    #allocation4 [shape = 's32[1]{0}', space=sflag, size = 0x4, scoped, tag = 'scoped memory for tpu_custom_call.1']
    #allocation5 [shape = 's32[1]{0}', space=sflag, size = 0x4, scoped, tag = 'scoped memory for tpu_custom_call.1']
    #allocation6 [shape = 'u8[1024]{0}', space=vmem, size = 0x400, scoped, tag = 'input window, operand 1, single buffered']
    #allocation7 [shape = 's32[1]{0}', space=sflag, size = 0x4, scoped, tag = 'scoped memory for tpu_custom_call.1']
    #allocation8 [shape = 'u8[1024]{0}', space=vmem, size = 0x400, scoped, tag = 'input window, operand 2, single buffered']
    #allocation9 [shape = 'u8[393216]{0}', space=vmem, size = 0x60000, scoped, tag = 'input window, operand 3, single buffered']
    #allocation10 [shape = 's32[1]{0}', space=sflag, size = 0x4, scoped, tag = 'scoped memory for tpu_custom_call.1']
    #allocation11 [shape = 'u8[131072]{0}', space=vmem, size = 0x20000, scoped, tag = 'input window, operand 4, single buffered']
    #allocation12 [shape = 'u8[524288]{0}', space=vmem, size = 0x80000, scoped, tag = 'input window, operand 7, single buffered']
    #allocation13 [shape = 's32[1]{0}', space=sflag, size = 0x4, scoped, tag = 'scoped memory for tpu_custom_call.1']
    #allocation14 [shape = 'u8[262144]{0}', space=vmem, size = 0x40000, scoped, tag = 'input window, operand 8, single buffered']
    #allocation15 [shape = 'u8[131072]{0}', space=vmem, size = 0x20000, scoped, tag = 'output window, operand 0, single buffered']
    %14 = vsyncpa [#allocation4], 0
    %15 = vsyncpa [#allocation7], 0
    %16 = vsyncpa [#allocation10], 0
    %17 = vsyncpa [#allocation13], 0
    %18 = vsyncpa [#allocation5], 0
    // Predicated region
    $region2: #{tpu_custom_call.1} parent=1 // pred_check
      _
    $region3: #{tpu_custom_call.1} parent=1 // pred_check_branch
      %20 = sbr.rel (0) target = $region5
    $region4: #{tpu_custom_call.1} parent=1 // pred_region
      %22 = vsyncadd [#allocation4], 0
      %s23 = sshll.u32 %s0, 4
      %s24 = int_to_ptr.hbm [resolvable:$true] %s23
      %s25 = sshll.u32 [#allocation3], 4
      %s26 = int_to_ptr.vmem [resolvable:$true] %s25
      %31 = dma.hbm_to_vmem [thread:$0]  %s24, 4096, %s26, [#allocation4], 256, 256, 16
    $region5: #{tpu_custom_call.1} parent=1 // pred_fallthru
      _
    // Predicated region
    $region6: #{tpu_custom_call.1} parent=1 // pred_check
      _
    $region7: #{tpu_custom_call.1} parent=1 // pred_check_branch
      %33 = sbr.rel (0) target = $region9
    $region8: #{tpu_custom_call.1} parent=1 // pred_region
      %35 = vsyncadd [#allocation7], 0
      %s37 = sshll.u32 %s1, 4
      %s38 = int_to_ptr.hbm [resolvable:$true] %s37
      %s39 = sshll.u32 [#allocation6], 4
      %s40 = int_to_ptr.vmem [resolvable:$true] %s39
      %42 = dma.hbm_to_vmem [thread:$0]  %s38, 32, %s40, [#allocation7]
    $region9: #{tpu_custom_call.1} parent=1 // pred_fallthru
      _
    // Predicated region
    $region10: #{tpu_custom_call.1} parent=1 // pred_check
      _
    $region11: #{tpu_custom_call.1} parent=1 // pred_check_branch
      %44 = sbr.rel (0) target = $region13
    $region12: #{tpu_custom_call.1} parent=1 // pred_region
      %46 = vsyncadd [#allocation7], 0
      %s48 = sshll.u32 %s2, 4
      %s49 = int_to_ptr.hbm [resolvable:$true] %s48
      %s50 = sshll.u32 [#allocation8], 4
      %s51 = int_to_ptr.vmem [resolvable:$true] %s50
      %53 = dma.hbm_to_vmem [thread:$0]  %s49, 32, %s51, [#allocation7]
    $region13: #{tpu_custom_call.1} parent=1 // pred_fallthru
      _
    // Predicated region
    $region14: #{tpu_custom_call.1} parent=1 // pred_check
      _
    $region15: #{tpu_custom_call.1} parent=1 // pred_check_branch
      %55 = sbr.rel (0) target = $region17
    $region16: #{tpu_custom_call.1} parent=1 // pred_region
      %57 = vsyncadd [#allocation10], 0
      %s58 = sshll.u32 %s3, 4
      %s59 = int_to_ptr.hbm [resolvable:$true] %s58
      %s60 = sshll.u32 [#allocation9], 4
      %s61 = int_to_ptr.vmem [resolvable:$true] %s60
      %66 = dma.hbm_to_vmem [thread:$0]  %s59, 12288, %s61, [#allocation10], 384, 384, 24
    $region17: #{tpu_custom_call.1} parent=1 // pred_fallthru
      _
    // Predicated region
    $region18: #{tpu_custom_call.1} parent=1 // pred_check
      _
    $region19: #{tpu_custom_call.1} parent=1 // pred_check_branch
      %68 = sbr.rel (0) target = $region21
    $region20: #{tpu_custom_call.1} parent=1 // pred_region
      %70 = vsyncadd [#allocation10], 0
      %s71 = sshll.u32 %s4, 4
      %s72 = int_to_ptr.hbm [resolvable:$true] %s71
      %s73 = sshll.u32 [#allocation11], 4
      %s74 = int_to_ptr.vmem [resolvable:$true] %s73
      %79 = dma.hbm_to_vmem [thread:$0]  %s72, 4096, %s74, [#allocation10], 128, 128, 8
    $region21: #{tpu_custom_call.1} parent=1 // pred_fallthru
      _
    // Predicated region
    $region22: #{tpu_custom_call.1} parent=1 // pred_check
      _
    $region23: #{tpu_custom_call.1} parent=1 // pred_check_branch
      %81 = sbr.rel (0) target = $region25
    $region24: #{tpu_custom_call.1} parent=1 // pred_region
      _
    $region25: #{tpu_custom_call.1} parent=1 // pred_fallthru
      _
    // Predicated region
    $region26: #{tpu_custom_call.1} parent=1 // pred_check
      _
    $region27: #{tpu_custom_call.1} parent=1 // pred_check_branch
      %83 = sbr.rel (0) target = $region29
    $region28: #{tpu_custom_call.1} parent=1 // pred_region
      _
    $region29: #{tpu_custom_call.1} parent=1 // pred_fallthru
      _
    // Predicated region
    $region30: #{tpu_custom_call.1} parent=1 // pred_check
      _
    $region31: #{tpu_custom_call.1} parent=1 // pred_check_branch
      %85 = sbr.rel (0) target = $region33
    $region32: #{tpu_custom_call.1} parent=1 // pred_region
      %87 = vsyncadd [#allocation13], 0
      %s88 = sshll.u32 %s7, 4
      %s89 = int_to_ptr.hbm [resolvable:$true] %s88
      %s90 = sshll.u32 [#allocation12], 4
      %s91 = int_to_ptr.vmem [resolvable:$true] %s90
      %96 = dma.hbm_to_vmem [thread:$0]  %s89, 16384, %s91, [#allocation13], 512, 512, 32
    $region33: #{tpu_custom_call.1} parent=1 // pred_fallthru
      _
    // Predicated region
    $region34: #{tpu_custom_call.1} parent=1 // pred_check
      _
    $region35: #{tpu_custom_call.1} parent=1 // pred_check_branch
      %98 = sbr.rel (0) target = $region37
    $region36: #{tpu_custom_call.1} parent=1 // pred_region
      %100 = vsyncadd [#allocation13], 0
      %s101 = sshll.u32 %s8, 4
      %s102 = int_to_ptr.hbm [resolvable:$true] %s101
      %s103 = sshll.u32 [#allocation14], 4
      %s104 = int_to_ptr.vmem [resolvable:$true] %s103
      %109 = dma.hbm_to_vmem [thread:$0]  %s102, 8192, %s104, [#allocation13], 128, 128, 8
    $region37: #{tpu_custom_call.1} parent=1 // pred_fallthru
      _
    // Predicated region
    $region38: #{tpu_custom_call.1} parent=1 // pred_check
      _
    $region39: #{tpu_custom_call.1} parent=1 // pred_check_branch
      %111 = sbr.rel (0) target = $region41
    $region40: #{tpu_custom_call.1} parent=1 // pred_region
      %113 = dma.done [#allocation4], 4096
    $region41: #{tpu_custom_call.1} parent=1 // pred_fallthru
      _
    // Predicated region
    $region42: #{tpu_custom_call.1} parent=1 // pred_check
      _
    $region43: #{tpu_custom_call.1} parent=1 // pred_check_branch
      %115 = sbr.rel (0) target = $region45
    $region44: #{tpu_custom_call.1} parent=1 // pred_region
      %117 = dma.done [#allocation7], 32
    $region45: #{tpu_custom_call.1} parent=1 // pred_fallthru
      _
    // Predicated region
    $region46: #{tpu_custom_call.1} parent=1 // pred_check
      _
    $region47: #{tpu_custom_call.1} parent=1 // pred_check_branch
      %119 = sbr.rel (0) target = $region49
    $region48: #{tpu_custom_call.1} parent=1 // pred_region
      %121 = dma.done [#allocation7], 32
    $region49: #{tpu_custom_call.1} parent=1 // pred_fallthru
      _
    // Predicated region
    $region50: #{tpu_custom_call.1} parent=1 // pred_check
      _
    $region51: #{tpu_custom_call.1} parent=1 // pred_check_branch
      %123 = sbr.rel (0) target = $region53
    $region52: #{tpu_custom_call.1} parent=1 // pred_region
      %125 = dma.done [#allocation10], 12288
    $region53: #{tpu_custom_call.1} parent=1 // pred_fallthru
      _
    // Predicated region
    $region54: #{tpu_custom_call.1} parent=1 // pred_check
      _
    $region55: #{tpu_custom_call.1} parent=1 // pred_check_branch
      %127 = sbr.rel (0) target = $region57
    $region56: #{tpu_custom_call.1} parent=1 // pred_region
      %129 = dma.done [#allocation10], 4096
    $region57: #{tpu_custom_call.1} parent=1 // pred_fallthru
      _
    // Predicated region
    $region58: #{tpu_custom_call.1} parent=1 // pred_check
      _
    $region59: #{tpu_custom_call.1} parent=1 // pred_check_branch
      %131 = sbr.rel (0) target = $region61
    $region60: #{tpu_custom_call.1} parent=1 // pred_region
      %133 = dma.done [#allocation13], 16384
    $region61: #{tpu_custom_call.1} parent=1 // pred_fallthru
      _
    // Predicated region
    $region62: #{tpu_custom_call.1} parent=1 // pred_check
      _
    $region63: #{tpu_custom_call.1} parent=1 // pred_check_branch
      %135 = sbr.rel (0) target = $region65
    $region64: #{tpu_custom_call.1} parent=1 // pred_region
      %137 = dma.done [#allocation13], 8192
    $region65: #{tpu_custom_call.1} parent=1 // pred_fallthru
      _
    %v139 = vld [vmem:[#allocation3] sm:$0xff]
    %v140 = vld [vmem:[#allocation3 + $0x8] sm:$0xff]
    %v141 = vld [vmem:[#allocation3 + $0x10] sm:$0xff]
    %v142 = vld [vmem:[#allocation3 + $0x18] sm:$0xff]
    %v143 = vld [vmem:[#allocation3 + $0x20] sm:$0xff]
    %v144 = vld [vmem:[#allocation3 + $0x28] sm:$0xff]
    %v145 = vld [vmem:[#allocation3 + $0x30] sm:$0xff]
    %v146 = vld [vmem:[#allocation3 + $0x38] sm:$0xff]
    %v147 = vld [vmem:[#allocation3 + $0x40] sm:$0xff]
    %v148 = vld [vmem:[#allocation3 + $0x48] sm:$0xff]
    %v149 = vld [vmem:[#allocation3 + $0x50] sm:$0xff]
    %v150 = vld [vmem:[#allocation3 + $0x58] sm:$0xff]
    %v151 = vld [vmem:[#allocation3 + $0x60] sm:$0xff]
    %v152 = vld [vmem:[#allocation3 + $0x68] sm:$0xff]
    %v153 = vld [vmem:[#allocation3 + $0x70] sm:$0xff]
    %v154 = vld [vmem:[#allocation3 + $0x78] sm:$0xff]
    %v155 = vld [vmem:[#allocation3 + $0x80] sm:$0xff]
    %v156 = vld [vmem:[#allocation3 + $0x88] sm:$0xff]
    %v157 = vld [vmem:[#allocation3 + $0x90] sm:$0xff]
    %v158 = vld [vmem:[#allocation3 + $0x98] sm:$0xff]
    %v159 = vld [vmem:[#allocation3 + $0xa0] sm:$0xff]
    %v160 = vld [vmem:[#allocation3 + $0xa8] sm:$0xff]
    %v161 = vld [vmem:[#allocation3 + $0xb0] sm:$0xff]
    %v162 = vld [vmem:[#allocation3 + $0xb8] sm:$0xff]
    %v163 = vld [vmem:[#allocation3 + $0xc0] sm:$0xff]
    %v164 = vld [vmem:[#allocation3 + $0xc8] sm:$0xff]
    %v165 = vld [vmem:[#allocation3 + $0xd0] sm:$0xff]
    %v166 = vld [vmem:[#allocation3 + $0xd8] sm:$0xff]
    %v167 = vld [vmem:[#allocation3 + $0xe0] sm:$0xff]
    %v168 = vld [vmem:[#allocation3 + $0xe8] sm:$0xff]
    %v169 = vld [vmem:[#allocation3 + $0xf0] sm:$0xff]
    %v170 = vld [vmem:[#allocation3 + $0xf8] sm:$0xff]
    %v171 = vld [vmem:[#allocation6] sm:$0x3]
    %v172 = vld [vmem:[#allocation8] sm:$0x3]
    %v173 = vadd.f32 %v139, %v140
    %174 = vadd.xlane.f32.xlu0 %v173
    %v175 = vpop.xlane.xlu0 %174
    %v176 = vadd.f32 %v141, %v142
    %177 = vadd.xlane.f32.xlu0 %v176
    %v178 = vpop.xlane.xlu0 %177
    %v179 = vadd.f32 %v143, %v144
    %180 = vadd.xlane.f32.xlu0 %v179
    %v181 = vpop.xlane.xlu0 %180
    %v182 = vadd.f32 %v145, %v146
    %183 = vadd.xlane.f32.xlu0 %v182
    %v184 = vpop.xlane.xlu0 %183
    %v185 = vadd.f32 %v147, %v148
    %186 = vadd.xlane.f32.xlu0 %v185
    %v187 = vpop.xlane.xlu0 %186
    %v188 = vadd.f32 %v149, %v150
    %189 = vadd.xlane.f32.xlu0 %v188
    %v190 = vpop.xlane.xlu0 %189
    %v191 = vadd.f32 %v151, %v152
    %192 = vadd.xlane.f32.xlu0 %v191
    %v193 = vpop.xlane.xlu0 %192
    %v194 = vadd.f32 %v153, %v154
    %195 = vadd.xlane.f32.xlu0 %v194
    %v196 = vpop.xlane.xlu0 %195
    %v197 = vadd.f32 %v155, %v156
    %198 = vadd.xlane.f32.xlu0 %v197
    %v199 = vpop.xlane.xlu0 %198
    %v200 = vadd.f32 %v157, %v158
    %201 = vadd.xlane.f32.xlu0 %v200
    %v202 = vpop.xlane.xlu0 %201
    %v203 = vadd.f32 %v159, %v160
    %204 = vadd.xlane.f32.xlu0 %v203
    %v205 = vpop.xlane.xlu0 %204
    %v206 = vadd.f32 %v161, %v162
    %207 = vadd.xlane.f32.xlu0 %v206
    %v208 = vpop.xlane.xlu0 %207
    %v209 = vadd.f32 %v163, %v164
    %210 = vadd.xlane.f32.xlu0 %v209
    %v211 = vpop.xlane.xlu0 %210
    %v212 = vadd.f32 %v165, %v166
    %213 = vadd.xlane.f32.xlu0 %v212
    %v214 = vpop.xlane.xlu0 %213
    %v215 = vadd.f32 %v167, %v168
    %216 = vadd.xlane.f32.xlu0 %v215
    %v217 = vpop.xlane.xlu0 %216
    %v218 = vadd.f32 %v169, %v170
    %219 = vadd.xlane.f32.xlu0 %v218
    %v220 = vpop.xlane.xlu0 %219
    %v221 = vrcp.pop 256.0
    %v222 = vmul.f32 256.0, %v221
    %v223 = vsub.f32 1.0, %v222
    %v224 = vmul.f32 %v221, %v223
    %v225 = vadd.f32 %v221, %v224
    %vm226 = vweird.f32 %v221
    %v227 = vsel %vm226, %v221, %v225
    %v228 = vmul.f32 %v175, %v227
    %v229 = vmul.f32 %v178, %v227
    %v230 = vmul.f32 %v181, %v227
    %v231 = vmul.f32 %v184, %v227
    %v232 = vmul.f32 %v187, %v227
    %v233 = vmul.f32 %v190, %v227
    %v234 = vmul.f32 %v193, %v227
    %v235 = vmul.f32 %v196, %v227
    %v236 = vmul.f32 %v199, %v227
    %v237 = vmul.f32 %v202, %v227
    %v238 = vmul.f32 %v205, %v227
    %v239 = vmul.f32 %v208, %v227
    %v240 = vmul.f32 %v211, %v227
    %v241 = vmul.f32 %v214, %v227
    %v242 = vmul.f32 %v217, %v227
    %v243 = vmul.f32 %v220, %v227
    %v244 = vsub.f32 %v139, %v228
    %v245 = vsub.f32 %v140, %v228
    %v246 = vsub.f32 %v141, %v229
    %v247 = vsub.f32 %v142, %v229
    %v248 = vsub.f32 %v143, %v230
    %v249 = vsub.f32 %v144, %v230
    %v250 = vsub.f32 %v145, %v231
    %v251 = vsub.f32 %v146, %v231
    %v252 = vsub.f32 %v147, %v232
    %v253 = vsub.f32 %v148, %v232
    %v254 = vsub.f32 %v149, %v233
    %v255 = vsub.f32 %v150, %v233
    %v256 = vsub.f32 %v151, %v234
    %v257 = vsub.f32 %v152, %v234
    %v258 = vsub.f32 %v153, %v235
    %v259 = vsub.f32 %v154, %v235
    %v260 = vsub.f32 %v155, %v236
    %v261 = vsub.f32 %v156, %v236
    %v262 = vsub.f32 %v157, %v237
    %v263 = vsub.f32 %v158, %v237
    %v264 = vsub.f32 %v159, %v238
    %v265 = vsub.f32 %v160, %v238
    %v266 = vsub.f32 %v161, %v239
    %v267 = vsub.f32 %v162, %v239
    %v268 = vsub.f32 %v163, %v240
    %v269 = vsub.f32 %v164, %v240
    %v270 = vsub.f32 %v165, %v241
    %v271 = vsub.f32 %v166, %v241
    %v272 = vsub.f32 %v167, %v242
    %v273 = vsub.f32 %v168, %v242
    %v274 = vsub.f32 %v169, %v243
    %v275 = vsub.f32 %v170, %v243
    %v276 = vmul.f32 %v244, %v244
    %v277 = vmul.f32 %v245, %v245
    %v278 = vmul.f32 %v246, %v246
    %v279 = vmul.f32 %v247, %v247
    %v280 = vmul.f32 %v248, %v248
    %v281 = vmul.f32 %v249, %v249
    %v282 = vmul.f32 %v250, %v250
    %v283 = vmul.f32 %v251, %v251
    %v284 = vmul.f32 %v252, %v252
    %v285 = vmul.f32 %v253, %v253
    %v286 = vmul.f32 %v254, %v254
    %v287 = vmul.f32 %v255, %v255
    %v288 = vmul.f32 %v256, %v256
    %v289 = vmul.f32 %v257, %v257
    %v290 = vmul.f32 %v258, %v258
    %v291 = vmul.f32 %v259, %v259
    %v292 = vmul.f32 %v260, %v260
    %v293 = vmul.f32 %v261, %v261
    %v294 = vmul.f32 %v262, %v262
    %v295 = vmul.f32 %v263, %v263
    %v296 = vmul.f32 %v264, %v264
    %v297 = vmul.f32 %v265, %v265
    %v298 = vmul.f32 %v266, %v266
    %v299 = vmul.f32 %v267, %v267
    %v300 = vmul.f32 %v268, %v268
    %v301 = vmul.f32 %v269, %v269
    %v302 = vmul.f32 %v270, %v270
    %v303 = vmul.f32 %v271, %v271
    %v304 = vmul.f32 %v272, %v272
    %v305 = vmul.f32 %v273, %v273
    %v306 = vmul.f32 %v274, %v274
    %v307 = vmul.f32 %v275, %v275
    %v308 = vadd.f32 %v276, %v277
    %309 = vadd.xlane.f32.xlu0 %v308
    %v310 = vpop.xlane.xlu0 %309
    %v311 = vadd.f32 %v278, %v279
    %312 = vadd.xlane.f32.xlu0 %v311
    %v313 = vpop.xlane.xlu0 %312
    %v314 = vadd.f32 %v280, %v281
    %315 = vadd.xlane.f32.xlu0 %v314
    %v316 = vpop.xlane.xlu0 %315
    %v317 = vadd.f32 %v282, %v283
    %318 = vadd.xlane.f32.xlu0 %v317
    %v319 = vpop.xlane.xlu0 %318
    %v320 = vadd.f32 %v284, %v285
    %321 = vadd.xlane.f32.xlu0 %v320
    %v322 = vpop.xlane.xlu0 %321
    %v323 = vadd.f32 %v286, %v287
    %324 = vadd.xlane.f32.xlu0 %v323
    %v325 = vpop.xlane.xlu0 %324
    %v326 = vadd.f32 %v288, %v289
    %327 = vadd.xlane.f32.xlu0 %v326
    %v328 = vpop.xlane.xlu0 %327
    %v329 = vadd.f32 %v290, %v291
    %330 = vadd.xlane.f32.xlu0 %v329
    %v331 = vpop.xlane.xlu0 %330
    %v332 = vadd.f32 %v292, %v293
    %333 = vadd.xlane.f32.xlu0 %v332
    %v334 = vpop.xlane.xlu0 %333
    %v335 = vadd.f32 %v294, %v295
    %336 = vadd.xlane.f32.xlu0 %v335
    %v337 = vpop.xlane.xlu0 %336
    %v338 = vadd.f32 %v296, %v297
    %339 = vadd.xlane.f32.xlu0 %v338
    %v340 = vpop.xlane.xlu0 %339
    %v341 = vadd.f32 %v298, %v299
    %342 = vadd.xlane.f32.xlu0 %v341
    %v343 = vpop.xlane.xlu0 %342
    %v344 = vadd.f32 %v300, %v301
    %345 = vadd.xlane.f32.xlu0 %v344
    %v346 = vpop.xlane.xlu0 %345
    %v347 = vadd.f32 %v302, %v303
    %348 = vadd.xlane.f32.xlu0 %v347
    %v349 = vpop.xlane.xlu0 %348
    %v350 = vadd.f32 %v304, %v305
    %351 = vadd.xlane.f32.xlu0 %v350
    %v352 = vpop.xlane.xlu0 %351
    %v353 = vadd.f32 %v306, %v307
    %354 = vadd.xlane.f32.xlu0 %v353
    %v355 = vpop.xlane.xlu0 %354
    %v356 = vmul.f32 %v310, %v227
    %v357 = vmul.f32 %v313, %v227
    %v358 = vmul.f32 %v316, %v227
    %v359 = vmul.f32 %v319, %v227
    %v360 = vmul.f32 %v322, %v227
    %v361 = vmul.f32 %v325, %v227
    %v362 = vmul.f32 %v328, %v227
    %v363 = vmul.f32 %v331, %v227
    %v364 = vmul.f32 %v334, %v227
    %v365 = vmul.f32 %v337, %v227
    %v366 = vmul.f32 %v340, %v227
    %v367 = vmul.f32 %v343, %v227
    %v368 = vmul.f32 %v346, %v227
    %v369 = vmul.f32 %v349, %v227
    %v370 = vmul.f32 %v352, %v227
    %v371 = vmul.f32 %v355, %v227
    %v372 = vadd.f32 %v356, 1e-05
    %v373 = vadd.f32 %v357, 1e-05
    %v374 = vadd.f32 %v358, 1e-05
    %v375 = vadd.f32 %v359, 1e-05
    %v376 = vadd.f32 %v360, 1e-05
    %v377 = vadd.f32 %v361, 1e-05
    %v378 = vadd.f32 %v362, 1e-05
    %v379 = vadd.f32 %v363, 1e-05
    %v380 = vadd.f32 %v364, 1e-05
    %v381 = vadd.f32 %v365, 1e-05
    %v382 = vadd.f32 %v366, 1e-05
    %v383 = vadd.f32 %v367, 1e-05
    %v384 = vadd.f32 %v368, 1e-05
    %v385 = vadd.f32 %v369, 1e-05
    %v386 = vadd.f32 %v370, 1e-05
    %v387 = vadd.f32 %v371, 1e-05
    %v388 = vrsqrt.pop %v372
    %v389 = vmul.f32 %v388, %v372
    %v390 = vmul.f32 %v389, %v388
    %v391 = vmul.f32 0.5, %v390
    %v392 = vsub.f32 1.5, %v391
    %v393 = vmul.f32 %v388, %v392
    %vm394 = vweird.f32 %v372
    %vm395 = vweird.f32 %v388
    %vm396 = vmor %vm394, %vm395
    %v397 = vsel %vm396, %v388, %v393
    %v398 = vrsqrt.pop %v373
    %v399 = vmul.f32 %v398, %v373
    %v400 = vmul.f32 %v399, %v398
    %v401 = vmul.f32 0.5, %v400
    %v402 = vsub.f32 1.5, %v401
    %v403 = vmul.f32 %v398, %v402
    %vm404 = vweird.f32 %v373
    %vm405 = vweird.f32 %v398
    %vm406 = vmor %vm404, %vm405
    %v407 = vsel %vm406, %v398, %v403
    %v408 = vrsqrt.pop %v374
    %v409 = vmul.f32 %v408, %v374
    %v410 = vmul.f32 %v409, %v408
    %v411 = vmul.f32 0.5, %v410
    %v412 = vsub.f32 1.5, %v411
    %v413 = vmul.f32 %v408, %v412
    %vm414 = vweird.f32 %v374
    %vm415 = vweird.f32 %v408
    %vm416 = vmor %vm414, %vm415
    %v417 = vsel %vm416, %v408, %v413
    %v418 = vrsqrt.pop %v375
    %v419 = vmul.f32 %v418, %v375
    %v420 = vmul.f32 %v419, %v418
    %v421 = vmul.f32 0.5, %v420
    %v422 = vsub.f32 1.5, %v421
    %v423 = vmul.f32 %v418, %v422
    %vm424 = vweird.f32 %v375
    %vm425 = vweird.f32 %v418
    %vm426 = vmor %vm424, %vm425
    %v427 = vsel %vm426, %v418, %v423
    %v428 = vrsqrt.pop %v376
    %v429 = vmul.f32 %v428, %v376
    %v430 = vmul.f32 %v429, %v428
    %v431 = vmul.f32 0.5, %v430
    %v432 = vsub.f32 1.5, %v431
    %v433 = vmul.f32 %v428, %v432
    %vm434 = vweird.f32 %v376
    %vm435 = vweird.f32 %v428
    %vm436 = vmor %vm434, %vm435
    %v437 = vsel %vm436, %v428, %v433
    %v438 = vrsqrt.pop %v377
    %v439 = vmul.f32 %v438, %v377
    %v440 = vmul.f32 %v439, %v438
    %v441 = vmul.f32 0.5, %v440
    %v442 = vsub.f32 1.5, %v441
    %v443 = vmul.f32 %v438, %v442
    %vm444 = vweird.f32 %v377
    %vm445 = vweird.f32 %v438
    %vm446 = vmor %vm444, %vm445
    %v447 = vsel %vm446, %v438, %v443
    %v448 = vrsqrt.pop %v378
    %v449 = vmul.f32 %v448, %v378
    %v450 = vmul.f32 %v449, %v448
    %v451 = vmul.f32 0.5, %v450
    %v452 = vsub.f32 1.5, %v451
    %v453 = vmul.f32 %v448, %v452
    %vm454 = vweird.f32 %v378
    %vm455 = vweird.f32 %v448
    %vm456 = vmor %vm454, %vm455
    %v457 = vsel %vm456, %v448, %v453
    %v458 = vrsqrt.pop %v379
    %v459 = vmul.f32 %v458, %v379
    %v460 = vmul.f32 %v459, %v458
    %v461 = vmul.f32 0.5, %v460
    %v462 = vsub.f32 1.5, %v461
    %v463 = vmul.f32 %v458, %v462
    %vm464 = vweird.f32 %v379
    %vm465 = vweird.f32 %v458
    %vm466 = vmor %vm464, %vm465
    %v467 = vsel %vm466, %v458, %v463
    %v468 = vrsqrt.pop %v380
    %v469 = vmul.f32 %v468, %v380
    %v470 = vmul.f32 %v469, %v468
    %v471 = vmul.f32 0.5, %v470
    %v472 = vsub.f32 1.5, %v471
    %v473 = vmul.f32 %v468, %v472
    %vm474 = vweird.f32 %v380
    %vm475 = vweird.f32 %v468
    %vm476 = vmor %vm474, %vm475
    %v477 = vsel %vm476, %v468, %v473
    %v478 = vrsqrt.pop %v381
    %v479 = vmul.f32 %v478, %v381
    %v480 = vmul.f32 %v479, %v478
    %v481 = vmul.f32 0.5, %v480
    %v482 = vsub.f32 1.5, %v481
    %v483 = vmul.f32 %v478, %v482
    %vm484 = vweird.f32 %v381
    %vm485 = vweird.f32 %v478
    %vm486 = vmor %vm484, %vm485
    %v487 = vsel %vm486, %v478, %v483
    %v488 = vrsqrt.pop %v382
    %v489 = vmul.f32 %v488, %v382
    %v490 = vmul.f32 %v489, %v488
    %v491 = vmul.f32 0.5, %v490
    %v492 = vsub.f32 1.5, %v491
    %v493 = vmul.f32 %v488, %v492
    %vm494 = vweird.f32 %v382
    %vm495 = vweird.f32 %v488
    %vm496 = vmor %vm494, %vm495
    %v497 = vsel %vm496, %v488, %v493
    %v498 = vrsqrt.pop %v383
    %v499 = vmul.f32 %v498, %v383
    %v500 = vmul.f32 %v499, %v498
    %v501 = vmul.f32 0.5, %v500
    %v502 = vsub.f32 1.5, %v501
    %v503 = vmul.f32 %v498, %v502
    %vm504 = vweird.f32 %v383
    %vm505 = vweird.f32 %v498
    %vm506 = vmor %vm504, %vm505
    %v507 = vsel %vm506, %v498, %v503
    %v508 = vrsqrt.pop %v384
    %v509 = vmul.f32 %v508, %v384
    %v510 = vmul.f32 %v509, %v508
    %v511 = vmul.f32 0.5, %v510
    %v512 = vsub.f32 1.5, %v511
    %v513 = vmul.f32 %v508, %v512
    %vm514 = vweird.f32 %v384
    %vm515 = vweird.f32 %v508
    %vm516 = vmor %vm514, %vm515
    %v517 = vsel %vm516, %v508, %v513
    %v518 = vrsqrt.pop %v385
    %v519 = vmul.f32 %v518, %v385
    %v520 = vmul.f32 %v519, %v518
    %v521 = vmul.f32 0.5, %v520
    %v522 = vsub.f32 1.5, %v521
    %v523 = vmul.f32 %v518, %v522
    %vm524 = vweird.f32 %v385
    %vm525 = vweird.f32 %v518
    %vm526 = vmor %vm524, %vm525
    %v527 = vsel %vm526, %v518, %v523
    %v528 = vrsqrt.pop %v386
    %v529 = vmul.f32 %v528, %v386
    %v530 = vmul.f32 %v529, %v528
    %v531 = vmul.f32 0.5, %v530
    %v532 = vsub.f32 1.5, %v531
    %v533 = vmul.f32 %v528, %v532
    %vm534 = vweird.f32 %v386
    %vm535 = vweird.f32 %v528
    %vm536 = vmor %vm534, %vm535
    %v537 = vsel %vm536, %v528, %v533
    %v538 = vrsqrt.pop %v387
    %v539 = vmul.f32 %v538, %v387
    %v540 = vmul.f32 %v539, %v538
    %v541 = vmul.f32 0.5, %v540
    %v542 = vsub.f32 1.5, %v541
    %v543 = vmul.f32 %v538, %v542
    %vm544 = vweird.f32 %v387
    %vm545 = vweird.f32 %v538
    %vm546 = vmor %vm544, %vm545
    %v547 = vsel %vm546, %v538, %v543
    %v548 = vmul.f32 %v244, %v397
    %v549 = vmul.f32 %v245, %v397
    %v550 = vmul.f32 %v246, %v407
    %v551 = vmul.f32 %v247, %v407
    %v552 = vmul.f32 %v248, %v417
    %v553 = vmul.f32 %v249, %v417
    %v554 = vmul.f32 %v250, %v427
    %v555 = vmul.f32 %v251, %v427
    %v556 = vmul.f32 %v252, %v437
    %v557 = vmul.f32 %v253, %v437
    %v558 = vmul.f32 %v254, %v447
    %v559 = vmul.f32 %v255, %v447
    %v560 = vmul.f32 %v256, %v457
    %v561 = vmul.f32 %v257, %v457
    %v562 = vmul.f32 %v258, %v467
    %v563 = vmul.f32 %v259, %v467
    %v564 = vmul.f32 %v260, %v477
    %v565 = vmul.f32 %v261, %v477
    %v566 = vmul.f32 %v262, %v487
    %v567 = vmul.f32 %v263, %v487
    %v568 = vmul.f32 %v264, %v497
    %v569 = vmul.f32 %v265, %v497
    %v570 = vmul.f32 %v266, %v507
    %v571 = vmul.f32 %v267, %v507
    %v572 = vmul.f32 %v268, %v517
    %v573 = vmul.f32 %v269, %v517
    %v574 = vmul.f32 %v270, %v527
    %v575 = vmul.f32 %v271, %v527
    %v576 = vmul.f32 %v272, %v537
    %v577 = vmul.f32 %v273, %v537
    %v578 = vmul.f32 %v274, %v547
    %v579 = vmul.f32 %v275, %v547
    %v581 = vperm.slane %v171, 0
    %v582 = vperm.slane %v171, 1
    %v585 = vmul.f32 %v548, %v581
    %v586 = vmul.f32 %v549, %v582
    %v587 = vmul.f32 %v550, %v581
    %v588 = vmul.f32 %v551, %v582
    %v589 = vmul.f32 %v552, %v581
    %v590 = vmul.f32 %v553, %v582
    %v591 = vmul.f32 %v554, %v581
    %v592 = vmul.f32 %v555, %v582
    %v593 = vmul.f32 %v556, %v581
    %v594 = vmul.f32 %v557, %v582
    %v595 = vmul.f32 %v558, %v581
    %v596 = vmul.f32 %v559, %v582
    %v597 = vmul.f32 %v560, %v581
    %v598 = vmul.f32 %v561, %v582
    %v599 = vmul.f32 %v562, %v581
    %v600 = vmul.f32 %v563, %v582
    %v601 = vmul.f32 %v564, %v581
    %v602 = vmul.f32 %v565, %v582
    %v603 = vmul.f32 %v566, %v581
    %v604 = vmul.f32 %v567, %v582
    %v605 = vmul.f32 %v568, %v581
    %v606 = vmul.f32 %v569, %v582
    %v607 = vmul.f32 %v570, %v581
    %v608 = vmul.f32 %v571, %v582
    %v609 = vmul.f32 %v572, %v581
    %v610 = vmul.f32 %v573, %v582
    %v611 = vmul.f32 %v574, %v581
    %v612 = vmul.f32 %v575, %v582
    %v613 = vmul.f32 %v576, %v581
    %v614 = vmul.f32 %v577, %v582
    %v615 = vmul.f32 %v578, %v581
    %v616 = vmul.f32 %v579, %v582
    %v618 = vperm.slane %v172, 0
    %v619 = vperm.slane %v172, 1
    %v622 = vadd.f32 %v585, %v618
    %v623 = vadd.f32 %v586, %v619
    %v624 = vadd.f32 %v587, %v618
    %v625 = vadd.f32 %v588, %v619
    %v626 = vadd.f32 %v589, %v618
    %v627 = vadd.f32 %v590, %v619
    %v628 = vadd.f32 %v591, %v618
    %v629 = vadd.f32 %v592, %v619
    %v630 = vadd.f32 %v593, %v618
    %v631 = vadd.f32 %v594, %v619
    %v632 = vadd.f32 %v595, %v618
    %v633 = vadd.f32 %v596, %v619
    %v634 = vadd.f32 %v597, %v618
    %v635 = vadd.f32 %v598, %v619
    %v636 = vadd.f32 %v599, %v618
    %v637 = vadd.f32 %v600, %v619
    %v638 = vadd.f32 %v601, %v618
    %v639 = vadd.f32 %v602, %v619
    %v640 = vadd.f32 %v603, %v618
    %v641 = vadd.f32 %v604, %v619
    %v642 = vadd.f32 %v605, %v618
    %v643 = vadd.f32 %v606, %v619
    %v644 = vadd.f32 %v607, %v618
    %v645 = vadd.f32 %v608, %v619
    %v646 = vadd.f32 %v609, %v618
    %v647 = vadd.f32 %v610, %v619
    %v648 = vadd.f32 %v611, %v618
    %v649 = vadd.f32 %v612, %v619
    %v650 = vadd.f32 %v613, %v618
    %v651 = vadd.f32 %v614, %v619
    %v652 = vadd.f32 %v615, %v618
    %v653 = vadd.f32 %v616, %v619
    %v654 = vpack.c.bf16 %v624, %v622
    %v655 = vpack.c.bf16 %v625, %v623
    %v656 = vpack.c.bf16 %v628, %v626
    %v657 = vpack.c.bf16 %v629, %v627
    %v658 = vpack.c.bf16 %v632, %v630
    %v659 = vpack.c.bf16 %v633, %v631
    %v660 = vpack.c.bf16 %v636, %v634
    %v661 = vpack.c.bf16 %v637, %v635
    %v662 = vpack.c.bf16 %v640, %v638
    %v663 = vpack.c.bf16 %v641, %v639
    %v664 = vpack.c.bf16 %v644, %v642
    %v665 = vpack.c.bf16 %v645, %v643
    %v666 = vpack.c.bf16 %v648, %v646
    %v667 = vpack.c.bf16 %v649, %v647
    %v668 = vpack.c.bf16 %v652, %v650
    %v669 = vpack.c.bf16 %v653, %v651
    %v670 = vld [vmem:[#allocation9] sm:$0xff]
    %v671 = vld [vmem:[#allocation9 + $0x8] sm:$0xff]
    %v672 = vld [vmem:[#allocation9 + $0x10] sm:$0xff]
    %v673 = vld [vmem:[#allocation9 + $0x18] sm:$0xff]
    %v674 = vld [vmem:[#allocation9 + $0x20] sm:$0xff]
    %v675 = vld [vmem:[#allocation9 + $0x28] sm:$0xff]
    %v676 = vld [vmem:[#allocation9 + $0x30] sm:$0xff]
    %v677 = vld [vmem:[#allocation9 + $0x38] sm:$0xff]
    %v678 = vld [vmem:[#allocation9 + $0x40] sm:$0xff]
    %v679 = vld [vmem:[#allocation9 + $0x48] sm:$0xff]
    %v680 = vld [vmem:[#allocation9 + $0x50] sm:$0xff]
    %v681 = vld [vmem:[#allocation9 + $0x58] sm:$0xff]
    %v682 = vld [vmem:[#allocation9 + $0x60] sm:$0xff]
    %v683 = vld [vmem:[#allocation9 + $0x68] sm:$0xff]
    %v684 = vld [vmem:[#allocation9 + $0x70] sm:$0xff]
    %v685 = vld [vmem:[#allocation9 + $0x78] sm:$0xff]
    %v686 = vld [vmem:[#allocation9 + $0x80] sm:$0xff]
    %v687 = vld [vmem:[#allocation9 + $0x88] sm:$0xff]
    %v688 = vld [vmem:[#allocation9 + $0x90] sm:$0xff]
    %v689 = vld [vmem:[#allocation9 + $0x98] sm:$0xff]
    %v690 = vld [vmem:[#allocation9 + $0xa0] sm:$0xff]
    %v691 = vld [vmem:[#allocation9 + $0xa8] sm:$0xff]
    %v692 = vld [vmem:[#allocation9 + $0xb0] sm:$0xff]
    %v693 = vld [vmem:[#allocation9 + $0xb8] sm:$0xff]
    %v694 = vld [vmem:[#allocation9 + $0xc0] sm:$0xff]
    %v695 = vld [vmem:[#allocation9 + $0xc8] sm:$0xff]
    %v696 = vld [vmem:[#allocation9 + $0xd0] sm:$0xff]
    %v697 = vld [vmem:[#allocation9 + $0xd8] sm:$0xff]
    %v698 = vld [vmem:[#allocation9 + $0xe0] sm:$0xff]
    %v699 = vld [vmem:[#allocation9 + $0xe8] sm:$0xff]
    %v700 = vld [vmem:[#allocation9 + $0xf0] sm:$0xff]
    %v701 = vld [vmem:[#allocation9 + $0xf8] sm:$0xff]
    %v702 = vld [vmem:[#allocation9 + $0x100] sm:$0xff]
    %v703 = vld [vmem:[#allocation9 + $0x108] sm:$0xff]
    %v704 = vld [vmem:[#allocation9 + $0x110] sm:$0xff]
    %v705 = vld [vmem:[#allocation9 + $0x118] sm:$0xff]
    %v706 = vld [vmem:[#allocation9 + $0x120] sm:$0xff]
    %v707 = vld [vmem:[#allocation9 + $0x128] sm:$0xff]
    %v708 = vld [vmem:[#allocation9 + $0x130] sm:$0xff]
    %v709 = vld [vmem:[#allocation9 + $0x138] sm:$0xff]
    %v710 = vld [vmem:[#allocation9 + $0x140] sm:$0xff]
    %v711 = vld [vmem:[#allocation9 + $0x148] sm:$0xff]
    %v712 = vld [vmem:[#allocation9 + $0x150] sm:$0xff]
    %v713 = vld [vmem:[#allocation9 + $0x158] sm:$0xff]
    %v714 = vld [vmem:[#allocation9 + $0x160] sm:$0xff]
    %v715 = vld [vmem:[#allocation9 + $0x168] sm:$0xff]
    %v716 = vld [vmem:[#allocation9 + $0x170] sm:$0xff]
    %v717 = vld [vmem:[#allocation9 + $0x178] sm:$0xff]
    %v718 = vld [vmem:[#allocation9 + $0x180] sm:$0xff]
    %v719 = vld [vmem:[#allocation9 + $0x188] sm:$0xff]
    %v720 = vld [vmem:[#allocation9 + $0x190] sm:$0xff]
    %v721 = vld [vmem:[#allocation9 + $0x198] sm:$0xff]
    %v722 = vld [vmem:[#allocation9 + $0x1a0] sm:$0xff]
    %v723 = vld [vmem:[#allocation9 + $0x1a8] sm:$0xff]
    %v724 = vld [vmem:[#allocation9 + $0x1b0] sm:$0xff]
    %v725 = vld [vmem:[#allocation9 + $0x1b8] sm:$0xff]
    %v726 = vld [vmem:[#allocation9 + $0x1c0] sm:$0xff]
    %v727 = vld [vmem:[#allocation9 + $0x1c8] sm:$0xff]
    %v728 = vld [vmem:[#allocation9 + $0x1d0] sm:$0xff]
    %v729 = vld [vmem:[#allocation9 + $0x1d8] sm:$0xff]
    %v730 = vld [vmem:[#allocation9 + $0x1e0] sm:$0xff]
    %v731 = vld [vmem:[#allocation9 + $0x1e8] sm:$0xff]
    %v732 = vld [vmem:[#allocation9 + $0x1f0] sm:$0xff]
    %v733 = vld [vmem:[#allocation9 + $0x1f8] sm:$0xff]
    %v734 = vld [vmem:[#allocation9 + $0x200] sm:$0xff]
    %v735 = vld [vmem:[#allocation9 + $0x208] sm:$0xff]
    %v736 = vld [vmem:[#allocation9 + $0x210] sm:$0xff]
    %v737 = vld [vmem:[#allocation9 + $0x218] sm:$0xff]
    %v738 = vld [vmem:[#allocation9 + $0x220] sm:$0xff]
    %v739 = vld [vmem:[#allocation9 + $0x228] sm:$0xff]
    %v740 = vld [vmem:[#allocation9 + $0x230] sm:$0xff]
    %v741 = vld [vmem:[#allocation9 + $0x238] sm:$0xff]
    %v742 = vld [vmem:[#allocation9 + $0x240] sm:$0xff]
    %v743 = vld [vmem:[#allocation9 + $0x248] sm:$0xff]
    %v744 = vld [vmem:[#allocation9 + $0x250] sm:$0xff]
    %v745 = vld [vmem:[#allocation9 + $0x258] sm:$0xff]
    %v746 = vld [vmem:[#allocation9 + $0x260] sm:$0xff]
    %v747 = vld [vmem:[#allocation9 + $0x268] sm:$0xff]
    %v748 = vld [vmem:[#allocation9 + $0x270] sm:$0xff]
    %v749 = vld [vmem:[#allocation9 + $0x278] sm:$0xff]
    %v750 = vld [vmem:[#allocation9 + $0x280] sm:$0xff]
    %v751 = vld [vmem:[#allocation9 + $0x288] sm:$0xff]
    %v752 = vld [vmem:[#allocation9 + $0x290] sm:$0xff]
    %v753 = vld [vmem:[#allocation9 + $0x298] sm:$0xff]
    %v754 = vld [vmem:[#allocation9 + $0x2a0] sm:$0xff]
    %v755 = vld [vmem:[#allocation9 + $0x2a8] sm:$0xff]
    %v756 = vld [vmem:[#allocation9 + $0x2b0] sm:$0xff]
    %v757 = vld [vmem:[#allocation9 + $0x2b8] sm:$0xff]
    %v758 = vld [vmem:[#allocation9 + $0x2c0] sm:$0xff]
    %v759 = vld [vmem:[#allocation9 + $0x2c8] sm:$0xff]
    %v760 = vld [vmem:[#allocation9 + $0x2d0] sm:$0xff]
    %v761 = vld [vmem:[#allocation9 + $0x2d8] sm:$0xff]
    %v762 = vld [vmem:[#allocation9 + $0x2e0] sm:$0xff]
    %v763 = vld [vmem:[#allocation9 + $0x2e8] sm:$0xff]
    %v764 = vld [vmem:[#allocation9 + $0x2f0] sm:$0xff]
    %v765 = vld [vmem:[#allocation9 + $0x2f8] sm:$0xff]
    %v862 = vunpack.c.l.b16 %v670
    %v863 = vunpack.c.h.b16 %v670
    %v864 = vunpack.c.l.b16 %v671
    %v865 = vunpack.c.h.b16 %v671
    %v866 = vunpack.c.l.b16 %v672
    %v867 = vunpack.c.h.b16 %v672
    %v868 = vunpack.c.l.b16 %v673
    %v869 = vunpack.c.h.b16 %v673
    %v870 = vunpack.c.l.b16 %v674
    %v871 = vunpack.c.h.b16 %v674
    %v872 = vunpack.c.l.b16 %v675
    %v873 = vunpack.c.h.b16 %v675
    %v874 = vunpack.c.l.b16 %v676
    %v875 = vunpack.c.h.b16 %v676
    %v876 = vunpack.c.l.b16 %v677
    %v877 = vunpack.c.h.b16 %v677
    %v878 = vunpack.c.l.b16 %v678
    %v879 = vunpack.c.h.b16 %v678
    %v880 = vunpack.c.l.b16 %v679
    %v881 = vunpack.c.h.b16 %v679
    %v882 = vunpack.c.l.b16 %v680
    %v883 = vunpack.c.h.b16 %v680
    %v884 = vunpack.c.l.b16 %v681
    %v885 = vunpack.c.h.b16 %v681
    %v886 = vunpack.c.l.b16 %v682
    %v887 = vunpack.c.h.b16 %v682
    %v888 = vunpack.c.l.b16 %v683
    %v889 = vunpack.c.h.b16 %v683
    %v890 = vunpack.c.l.b16 %v684
    %v891 = vunpack.c.h.b16 %v684
    %v892 = vunpack.c.l.b16 %v685
    %v893 = vunpack.c.h.b16 %v685
    %v894 = vunpack.c.l.b16 %v686
    %v895 = vunpack.c.h.b16 %v686
    %v896 = vunpack.c.l.b16 %v687
    %v897 = vunpack.c.h.b16 %v687
    %v898 = vunpack.c.l.b16 %v688
    %v899 = vunpack.c.h.b16 %v688
    %v900 = vunpack.c.l.b16 %v689
    %v901 = vunpack.c.h.b16 %v689
    %v902 = vunpack.c.l.b16 %v690
    %v903 = vunpack.c.h.b16 %v690
    %v904 = vunpack.c.l.b16 %v691
    %v905 = vunpack.c.h.b16 %v691
    %v906 = vunpack.c.l.b16 %v692
    %v907 = vunpack.c.h.b16 %v692
    %v908 = vunpack.c.l.b16 %v693
    %v909 = vunpack.c.h.b16 %v693
    %v910 = vunpack.c.l.b16 %v694
    %v911 = vunpack.c.h.b16 %v694
    %v912 = vunpack.c.l.b16 %v695
    %v913 = vunpack.c.h.b16 %v695
    %v914 = vunpack.c.l.b16 %v696
    %v915 = vunpack.c.h.b16 %v696
    %v916 = vunpack.c.l.b16 %v697
    %v917 = vunpack.c.h.b16 %v697
    %v918 = vunpack.c.l.b16 %v698
    %v919 = vunpack.c.h.b16 %v698
    %v920 = vunpack.c.l.b16 %v699
    %v921 = vunpack.c.h.b16 %v699
    %v922 = vunpack.c.l.b16 %v700
    %v923 = vunpack.c.h.b16 %v700
    %v924 = vunpack.c.l.b16 %v701
    %v925 = vunpack.c.h.b16 %v701
    %v926 = vunpack.c.l.b16 %v702
    %v927 = vunpack.c.h.b16 %v702
    %v928 = vunpack.c.l.b16 %v703
    %v929 = vunpack.c.h.b16 %v703
    %v930 = vunpack.c.l.b16 %v704
    %v931 = vunpack.c.h.b16 %v704
    %v932 = vunpack.c.l.b16 %v705
    %v933 = vunpack.c.h.b16 %v705
    %v934 = vunpack.c.l.b16 %v706
    %v935 = vunpack.c.h.b16 %v706
    %v936 = vunpack.c.l.b16 %v707
    %v937 = vunpack.c.h.b16 %v707
    %v938 = vunpack.c.l.b16 %v708
    %v939 = vunpack.c.h.b16 %v708
    %v940 = vunpack.c.l.b16 %v709
    %v941 = vunpack.c.h.b16 %v709
    %v942 = vunpack.c.l.b16 %v710
    %v943 = vunpack.c.h.b16 %v710
    %v944 = vunpack.c.l.b16 %v711
    %v945 = vunpack.c.h.b16 %v711
    %v946 = vunpack.c.l.b16 %v712
    %v947 = vunpack.c.h.b16 %v712
    %v948 = vunpack.c.l.b16 %v713
    %v949 = vunpack.c.h.b16 %v713
    %v950 = vunpack.c.l.b16 %v714
    %v951 = vunpack.c.h.b16 %v714
    %v952 = vunpack.c.l.b16 %v715
    %v953 = vunpack.c.h.b16 %v715
    %v954 = vunpack.c.l.b16 %v716
    %v955 = vunpack.c.h.b16 %v716
    %v956 = vunpack.c.l.b16 %v717
    %v957 = vunpack.c.h.b16 %v717
    %v958 = vunpack.c.l.b16 %v718
    %v959 = vunpack.c.h.b16 %v718
    %v960 = vunpack.c.l.b16 %v719
    %v961 = vunpack.c.h.b16 %v719
    %v962 = vunpack.c.l.b16 %v720
    %v963 = vunpack.c.h.b16 %v720
    %v964 = vunpack.c.l.b16 %v721
    %v965 = vunpack.c.h.b16 %v721
    %v966 = vunpack.c.l.b16 %v722
    %v967 = vunpack.c.h.b16 %v722
    %v968 = vunpack.c.l.b16 %v723
    %v969 = vunpack.c.h.b16 %v723
    %v970 = vunpack.c.l.b16 %v724
    %v971 = vunpack.c.h.b16 %v724
    %v972 = vunpack.c.l.b16 %v725
    %v973 = vunpack.c.h.b16 %v725
    %v974 = vunpack.c.l.b16 %v726
    %v975 = vunpack.c.h.b16 %v726
    %v976 = vunpack.c.l.b16 %v727
    %v977 = vunpack.c.h.b16 %v727
    %v978 = vunpack.c.l.b16 %v728
    %v979 = vunpack.c.h.b16 %v728
    %v980 = vunpack.c.l.b16 %v729
    %v981 = vunpack.c.h.b16 %v729
    %v982 = vunpack.c.l.b16 %v730
    %v983 = vunpack.c.h.b16 %v730
    %v984 = vunpack.c.l.b16 %v731
    %v985 = vunpack.c.h.b16 %v731
    %v986 = vunpack.c.l.b16 %v732
    %v987 = vunpack.c.h.b16 %v732
    %v988 = vunpack.c.l.b16 %v733
    %v989 = vunpack.c.h.b16 %v733
    %v990 = vunpack.c.l.b16 %v734
    %v991 = vunpack.c.h.b16 %v734
    %v992 = vunpack.c.l.b16 %v735
    %v993 = vunpack.c.h.b16 %v735
    %v994 = vunpack.c.l.b16 %v736
    %v995 = vunpack.c.h.b16 %v736
    %v996 = vunpack.c.l.b16 %v737
    %v997 = vunpack.c.h.b16 %v737
    %v998 = vunpack.c.l.b16 %v738
    %v999 = vunpack.c.h.b16 %v738
    %v1000 = vunpack.c.l.b16 %v739
    %v1001 = vunpack.c.h.b16 %v739
    %v1002 = vunpack.c.l.b16 %v740
    %v1003 = vunpack.c.h.b16 %v740
    %v1004 = vunpack.c.l.b16 %v741
    %v1005 = vunpack.c.h.b16 %v741
    %v1006 = vunpack.c.l.b16 %v742
    %v1007 = vunpack.c.h.b16 %v742
    %v1008 = vunpack.c.l.b16 %v743
    %v1009 = vunpack.c.h.b16 %v743
    %v1010 = vunpack.c.l.b16 %v744
    %v1011 = vunpack.c.h.b16 %v744
    %v1012 = vunpack.c.l.b16 %v745
    %v1013 = vunpack.c.h.b16 %v745
    %v1014 = vunpack.c.l.b16 %v746
    %v1015 = vunpack.c.h.b16 %v746
    %v1016 = vunpack.c.l.b16 %v747
    %v1017 = vunpack.c.h.b16 %v747
    %v1018 = vunpack.c.l.b16 %v748
    %v1019 = vunpack.c.h.b16 %v748
    %v1020 = vunpack.c.l.b16 %v749
    %v1021 = vunpack.c.h.b16 %v749
    %v1022 = vunpack.c.l.b16 %v750
    %v1023 = vunpack.c.h.b16 %v750
    %v1024 = vunpack.c.l.b16 %v751
    %v1025 = vunpack.c.h.b16 %v751
    %v1026 = vunpack.c.l.b16 %v752
    %v1027 = vunpack.c.h.b16 %v752
    %v1028 = vunpack.c.l.b16 %v753
    %v1029 = vunpack.c.h.b16 %v753
    %v1030 = vunpack.c.l.b16 %v754
    %v1031 = vunpack.c.h.b16 %v754
    %v1032 = vunpack.c.l.b16 %v755
    %v1033 = vunpack.c.h.b16 %v755
    %v1034 = vunpack.c.l.b16 %v756
    %v1035 = vunpack.c.h.b16 %v756
    %v1036 = vunpack.c.l.b16 %v757
    %v1037 = vunpack.c.h.b16 %v757
    %v1038 = vunpack.c.l.b16 %v758
    %v1039 = vunpack.c.h.b16 %v758
    %v1040 = vunpack.c.l.b16 %v759
    %v1041 = vunpack.c.h.b16 %v759
    %v1042 = vunpack.c.l.b16 %v760
    %v1043 = vunpack.c.h.b16 %v760
    %v1044 = vunpack.c.l.b16 %v761
    %v1045 = vunpack.c.h.b16 %v761
    %v1046 = vunpack.c.l.b16 %v762
    %v1047 = vunpack.c.h.b16 %v762
    %v1048 = vunpack.c.l.b16 %v763
    %v1049 = vunpack.c.h.b16 %v763
    %v1050 = vunpack.c.l.b16 %v764
    %v1051 = vunpack.c.h.b16 %v764
    %v1052 = vunpack.c.l.b16 %v765
    %v1053 = vunpack.c.h.b16 %v765
    %v1054 = vpack.c.b16 %v868, %v862
    %v1055 = vpack.c.b16 %v869, %v863
    %v1056 = vpack.c.b16 %v870, %v864
    %v1057 = vpack.c.b16 %v871, %v865
    %v1058 = vpack.c.b16 %v872, %v866
    %v1059 = vpack.c.b16 %v873, %v867
    %v1060 = vpack.c.b16 %v880, %v874
    %v1061 = vpack.c.b16 %v881, %v875
    %v1062 = vpack.c.b16 %v882, %v876
    %v1063 = vpack.c.b16 %v883, %v877
    %v1064 = vpack.c.b16 %v884, %v878
    %v1065 = vpack.c.b16 %v885, %v879
    %v1066 = vpack.c.b16 %v892, %v886
    %v1067 = vpack.c.b16 %v893, %v887
    %v1068 = vpack.c.b16 %v894, %v888
    %v1069 = vpack.c.b16 %v895, %v889
    %v1070 = vpack.c.b16 %v896, %v890
    %v1071 = vpack.c.b16 %v897, %v891
    %v1072 = vpack.c.b16 %v904, %v898
    %v1073 = vpack.c.b16 %v905, %v899
    %v1074 = vpack.c.b16 %v906, %v900
    %v1075 = vpack.c.b16 %v907, %v901
    %v1076 = vpack.c.b16 %v908, %v902
    %v1077 = vpack.c.b16 %v909, %v903
    %v1078 = vpack.c.b16 %v916, %v910
    %v1079 = vpack.c.b16 %v917, %v911
    %v1080 = vpack.c.b16 %v918, %v912
    %v1081 = vpack.c.b16 %v919, %v913
    %v1082 = vpack.c.b16 %v920, %v914
    %v1083 = vpack.c.b16 %v921, %v915
    %v1084 = vpack.c.b16 %v928, %v922
    %v1085 = vpack.c.b16 %v929, %v923
    %v1086 = vpack.c.b16 %v930, %v924
    %v1087 = vpack.c.b16 %v931, %v925
    %v1088 = vpack.c.b16 %v932, %v926
    %v1089 = vpack.c.b16 %v933, %v927
    %v1090 = vpack.c.b16 %v940, %v934
    %v1091 = vpack.c.b16 %v941, %v935
    %v1092 = vpack.c.b16 %v942, %v936
    %v1093 = vpack.c.b16 %v943, %v937
    %v1094 = vpack.c.b16 %v944, %v938
    %v1095 = vpack.c.b16 %v945, %v939
    %v1096 = vpack.c.b16 %v952, %v946
    %v1097 = vpack.c.b16 %v953, %v947
    %v1098 = vpack.c.b16 %v954, %v948
    %v1099 = vpack.c.b16 %v955, %v949
    %v1100 = vpack.c.b16 %v956, %v950
    %v1101 = vpack.c.b16 %v957, %v951
    %v1102 = vpack.c.b16 %v964, %v958
    %v1103 = vpack.c.b16 %v965, %v959
    %v1104 = vpack.c.b16 %v966, %v960
    %v1105 = vpack.c.b16 %v967, %v961
    %v1106 = vpack.c.b16 %v968, %v962
    %v1107 = vpack.c.b16 %v969, %v963
    %v1108 = vpack.c.b16 %v976, %v970
    %v1109 = vpack.c.b16 %v977, %v971
    %v1110 = vpack.c.b16 %v978, %v972
    %v1111 = vpack.c.b16 %v979, %v973
    %v1112 = vpack.c.b16 %v980, %v974
    %v1113 = vpack.c.b16 %v981, %v975
    %v1114 = vpack.c.b16 %v988, %v982
    %v1115 = vpack.c.b16 %v989, %v983
    %v1116 = vpack.c.b16 %v990, %v984
    %v1117 = vpack.c.b16 %v991, %v985
    %v1118 = vpack.c.b16 %v992, %v986
    %v1119 = vpack.c.b16 %v993, %v987
    %v1120 = vpack.c.b16 %v1000, %v994
    %v1121 = vpack.c.b16 %v1001, %v995
    %v1122 = vpack.c.b16 %v1002, %v996
    %v1123 = vpack.c.b16 %v1003, %v997
    %v1124 = vpack.c.b16 %v1004, %v998
    %v1125 = vpack.c.b16 %v1005, %v999
    %v1126 = vpack.c.b16 %v1012, %v1006
    %v1127 = vpack.c.b16 %v1013, %v1007
    %v1128 = vpack.c.b16 %v1014, %v1008
    %v1129 = vpack.c.b16 %v1015, %v1009
    %v1130 = vpack.c.b16 %v1016, %v1010
    %v1131 = vpack.c.b16 %v1017, %v1011
    %v1132 = vpack.c.b16 %v1024, %v1018
    %v1133 = vpack.c.b16 %v1025, %v1019
    %v1134 = vpack.c.b16 %v1026, %v1020
    %v1135 = vpack.c.b16 %v1027, %v1021
    %v1136 = vpack.c.b16 %v1028, %v1022
    %v1137 = vpack.c.b16 %v1029, %v1023
    %v1138 = vpack.c.b16 %v1036, %v1030
    %v1139 = vpack.c.b16 %v1037, %v1031
    %v1140 = vpack.c.b16 %v1038, %v1032
    %v1141 = vpack.c.b16 %v1039, %v1033
    %v1142 = vpack.c.b16 %v1040, %v1034
    %v1143 = vpack.c.b16 %v1041, %v1035
    %v1144 = vpack.c.b16 %v1048, %v1042
    %v1145 = vpack.c.b16 %v1049, %v1043
    %v1146 = vpack.c.b16 %v1050, %v1044
    %v1147 = vpack.c.b16 %v1051, %v1045
    %v1148 = vpack.c.b16 %v1052, %v1046
    %v1149 = vpack.c.b16 %v1053, %v1047
    %1246 = vmatpush.bf16.msra.mxu0 %v1096
    %1247 = vmatpush.bf16.msra.mxu0 %v1090
    %1248 = vmatpush.bf16.msra.mxu0 %v1084
    %1249 = vmatpush.bf16.msra.mxu0 %v1078
    %1250 = vmatpush.bf16.msra.mxu0 %v1072
    %1251 = vmatpush.bf16.msra.mxu0 %v1066
    %1252 = vmatpush.bf16.msra.mxu0 %v1060
    %1253 = vmatpush.bf16.msra.mxu0 %v1054
    %1254 = vmatmul.bf16.gmra.mxu0 %v654
    %v1255 = vpop.f32.mrf.mxu0
    %v1256 = vadd.f32 0.0, %v1255
    %v1257 = vpop.f32.mrf.mxu0
    %v1258 = vadd.f32 0.0, %v1257
    %1259 = vmatmul.bf16.gmra.mxu0 %v656
    %v1260 = vpop.f32.mrf.mxu0
    %v1261 = vadd.f32 0.0, %v1260
    %v1262 = vpop.f32.mrf.mxu0
    %v1263 = vadd.f32 0.0, %v1262
    %1264 = vmatmul.bf16.gmra.mxu0 %v658
    %v1265 = vpop.f32.mrf.mxu0
    %v1266 = vadd.f32 0.0, %v1265
    %v1267 = vpop.f32.mrf.mxu0
    %v1268 = vadd.f32 0.0, %v1267
    %1269 = vmatmul.bf16.gmra.mxu0 %v660
    %v1270 = vpop.f32.mrf.mxu0
    %v1271 = vadd.f32 0.0, %v1270
    %v1272 = vpop.f32.mrf.mxu0
    %v1273 = vadd.f32 0.0, %v1272
    %1274 = vmatmul.bf16.gmra.mxu0 %v662
    %v1275 = vpop.f32.mrf.mxu0
    %v1276 = vadd.f32 0.0, %v1275
    %v1277 = vpop.f32.mrf.mxu0
    %v1278 = vadd.f32 0.0, %v1277
    %1279 = vmatmul.bf16.gmra.mxu0 %v664
    %v1280 = vpop.f32.mrf.mxu0
    %v1281 = vadd.f32 0.0, %v1280
    %v1282 = vpop.f32.mrf.mxu0
    %v1283 = vadd.f32 0.0, %v1282
    %1284 = vmatmul.bf16.gmra.mxu0 %v666
    %v1285 = vpop.f32.mrf.mxu0
    %v1286 = vadd.f32 0.0, %v1285
    %v1287 = vpop.f32.mrf.mxu0
    %v1288 = vadd.f32 0.0, %v1287
    %1289 = vmatmul.bf16.gmra.mxu0 %v668
    %v1290 = vpop.f32.mrf.mxu0
    %v1291 = vadd.f32 0.0, %v1290
    %v1292 = vpop.f32.mrf.mxu0
    %v1293 = vadd.f32 0.0, %v1292
    %1294 = vdwg.mxu0
    %1295 = vmatpush.bf16.msra.mxu0 %v1144
    %1296 = vmatpush.bf16.msra.mxu0 %v1138
    %1297 = vmatpush.bf16.msra.mxu0 %v1132
    %1298 = vmatpush.bf16.msra.mxu0 %v1126
    %1299 = vmatpush.bf16.msra.mxu0 %v1120
    %1300 = vmatpush.bf16.msra.mxu0 %v1114
    %1301 = vmatpush.bf16.msra.mxu0 %v1108
    %1302 = vmatpush.bf16.msra.mxu0 %v1102
    %1303 = vmatmul.bf16.gmra.mxu0 %v655
    %v1304 = vpop.f32.mrf.mxu0
    %v1305 = vadd.f32 %v1256, %v1304
    %v1306 = vpop.f32.mrf.mxu0
    %v1307 = vadd.f32 %v1258, %v1306
    %1308 = vmatmul.bf16.gmra.mxu0 %v657
    %v1309 = vpop.f32.mrf.mxu0
    %v1310 = vadd.f32 %v1261, %v1309
    %v1311 = vpop.f32.mrf.mxu0
    %v1312 = vadd.f32 %v1263, %v1311
    %1313 = vmatmul.bf16.gmra.mxu0 %v659
    %v1314 = vpop.f32.mrf.mxu0
    %v1315 = vadd.f32 %v1266, %v1314
    %v1316 = vpop.f32.mrf.mxu0
    %v1317 = vadd.f32 %v1268, %v1316
    %1318 = vmatmul.bf16.gmra.mxu0 %v661
    %v1319 = vpop.f32.mrf.mxu0
    %v1320 = vadd.f32 %v1271, %v1319
    %v1321 = vpop.f32.mrf.mxu0
    %v1322 = vadd.f32 %v1273, %v1321
    %1323 = vmatmul.bf16.gmra.mxu0 %v663
    %v1324 = vpop.f32.mrf.mxu0
    %v1325 = vadd.f32 %v1276, %v1324
    %v1326 = vpop.f32.mrf.mxu0
    %v1327 = vadd.f32 %v1278, %v1326
    %1328 = vmatmul.bf16.gmra.mxu0 %v665
    %v1329 = vpop.f32.mrf.mxu0
    %v1330 = vadd.f32 %v1281, %v1329
    %v1331 = vpop.f32.mrf.mxu0
    %v1332 = vadd.f32 %v1283, %v1331
    %1333 = vmatmul.bf16.gmra.mxu0 %v667
    %v1334 = vpop.f32.mrf.mxu0
    %v1335 = vadd.f32 %v1286, %v1334
    %v1336 = vpop.f32.mrf.mxu0
    %v1337 = vadd.f32 %v1288, %v1336
    %1338 = vmatmul.bf16.gmra.mxu0 %v669
    %v1339 = vpop.f32.mrf.mxu0
    %v1340 = vadd.f32 %v1291, %v1339
    %v1341 = vpop.f32.mrf.mxu0
    %v1342 = vadd.f32 %v1293, %v1341
    %1343 = vdwg.mxu0
    %1344 = vmatpush.bf16.msra.mxu0 %v1097
    %1345 = vmatpush.bf16.msra.mxu0 %v1091
    %1346 = vmatpush.bf16.msra.mxu0 %v1085
    %1347 = vmatpush.bf16.msra.mxu0 %v1079
    %1348 = vmatpush.bf16.msra.mxu0 %v1073
    %1349 = vmatpush.bf16.msra.mxu0 %v1067
    %1350 = vmatpush.bf16.msra.mxu0 %v1061
    %1351 = vmatpush.bf16.msra.mxu0 %v1055
    %1352 = vmatmul.bf16.gmra.mxu0 %v654
    %v1353 = vpop.f32.mrf.mxu0
    %v1354 = vadd.f32 0.0, %v1353
    %v1355 = vpop.f32.mrf.mxu0
    %v1356 = vadd.f32 0.0, %v1355
    %1357 = vmatmul.bf16.gmra.mxu0 %v656
    %v1358 = vpop.f32.mrf.mxu0
    %v1359 = vadd.f32 0.0, %v1358
    %v1360 = vpop.f32.mrf.mxu0
    %v1361 = vadd.f32 0.0, %v1360
    %1362 = vmatmul.bf16.gmra.mxu0 %v658
    %v1363 = vpop.f32.mrf.mxu0
    %v1364 = vadd.f32 0.0, %v1363
    %v1365 = vpop.f32.mrf.mxu0
    %v1366 = vadd.f32 0.0, %v1365
    %1367 = vmatmul.bf16.gmra.mxu0 %v660
    %v1368 = vpop.f32.mrf.mxu0
    %v1369 = vadd.f32 0.0, %v1368
    %v1370 = vpop.f32.mrf.mxu0
    %v1371 = vadd.f32 0.0, %v1370
    %1372 = vmatmul.bf16.gmra.mxu0 %v662
    %v1373 = vpop.f32.mrf.mxu0
    %v1374 = vadd.f32 0.0, %v1373
    %v1375 = vpop.f32.mrf.mxu0
    %v1376 = vadd.f32 0.0, %v1375
    %1377 = vmatmul.bf16.gmra.mxu0 %v664
    %v1378 = vpop.f32.mrf.mxu0
    %v1379 = vadd.f32 0.0, %v1378
    %v1380 = vpop.f32.mrf.mxu0
    %v1381 = vadd.f32 0.0, %v1380
    %1382 = vmatmul.bf16.gmra.mxu0 %v666
    %v1383 = vpop.f32.mrf.mxu0
    %v1384 = vadd.f32 0.0, %v1383
    %v1385 = vpop.f32.mrf.mxu0
    %v1386 = vadd.f32 0.0, %v1385
    %1387 = vmatmul.bf16.gmra.mxu0 %v668
    %v1388 = vpop.f32.mrf.mxu0
    %v1389 = vadd.f32 0.0, %v1388
    %v1390 = vpop.f32.mrf.mxu0
    %v1391 = vadd.f32 0.0, %v1390
    %1392 = vdwg.mxu0
    %1393 = vmatpush.bf16.msra.mxu0 %v1145
    %1394 = vmatpush.bf16.msra.mxu0 %v1139
    %1395 = vmatpush.bf16.msra.mxu0 %v1133
    %1396 = vmatpush.bf16.msra.mxu0 %v1127
    %1397 = vmatpush.bf16.msra.mxu0 %v1121
    %1398 = vmatpush.bf16.msra.mxu0 %v1115
    %1399 = vmatpush.bf16.msra.mxu0 %v1109
    %1400 = vmatpush.bf16.msra.mxu0 %v1103
    %1401 = vmatmul.bf16.gmra.mxu0 %v655
    %v1402 = vpop.f32.mrf.mxu0
    %v1403 = vadd.f32 %v1354, %v1402
    %v1404 = vpop.f32.mrf.mxu0
    %v1405 = vadd.f32 %v1356, %v1404
    %1406 = vmatmul.bf16.gmra.mxu0 %v657
    %v1407 = vpop.f32.mrf.mxu0
    %v1408 = vadd.f32 %v1359, %v1407
    %v1409 = vpop.f32.mrf.mxu0
    %v1410 = vadd.f32 %v1361, %v1409
    %1411 = vmatmul.bf16.gmra.mxu0 %v659
    %v1412 = vpop.f32.mrf.mxu0
    %v1413 = vadd.f32 %v1364, %v1412
    %v1414 = vpop.f32.mrf.mxu0
    %v1415 = vadd.f32 %v1366, %v1414
    %1416 = vmatmul.bf16.gmra.mxu0 %v661
    %v1417 = vpop.f32.mrf.mxu0
    %v1418 = vadd.f32 %v1369, %v1417
    %v1419 = vpop.f32.mrf.mxu0
    %v1420 = vadd.f32 %v1371, %v1419
    %1421 = vmatmul.bf16.gmra.mxu0 %v663
    %v1422 = vpop.f32.mrf.mxu0
    %v1423 = vadd.f32 %v1374, %v1422
    %v1424 = vpop.f32.mrf.mxu0
    %v1425 = vadd.f32 %v1376, %v1424
    %1426 = vmatmul.bf16.gmra.mxu0 %v665
    %v1427 = vpop.f32.mrf.mxu0
    %v1428 = vadd.f32 %v1379, %v1427
    %v1429 = vpop.f32.mrf.mxu0
    %v1430 = vadd.f32 %v1381, %v1429
    %1431 = vmatmul.bf16.gmra.mxu0 %v667
    %v1432 = vpop.f32.mrf.mxu0
    %v1433 = vadd.f32 %v1384, %v1432
    %v1434 = vpop.f32.mrf.mxu0
    %v1435 = vadd.f32 %v1386, %v1434
    %1436 = vmatmul.bf16.gmra.mxu0 %v669
    %v1437 = vpop.f32.mrf.mxu0
    %v1438 = vadd.f32 %v1389, %v1437
    %v1439 = vpop.f32.mrf.mxu0
    %v1440 = vadd.f32 %v1391, %v1439
    %1441 = vdwg.mxu0
    %1442 = vmatpush.bf16.msra.mxu0 %v1098
    %1443 = vmatpush.bf16.msra.mxu0 %v1092
    %1444 = vmatpush.bf16.msra.mxu0 %v1086
    %1445 = vmatpush.bf16.msra.mxu0 %v1080
    %1446 = vmatpush.bf16.msra.mxu0 %v1074
    %1447 = vmatpush.bf16.msra.mxu0 %v1068
    %1448 = vmatpush.bf16.msra.mxu0 %v1062
    %1449 = vmatpush.bf16.msra.mxu0 %v1056
    %1450 = vmatmul.bf16.gmra.mxu0 %v654
    %v1451 = vpop.f32.mrf.mxu0
    %v1452 = vadd.f32 0.0, %v1451
    %v1453 = vpop.f32.mrf.mxu0
    %v1454 = vadd.f32 0.0, %v1453
    %1455 = vmatmul.bf16.gmra.mxu0 %v656
    %v1456 = vpop.f32.mrf.mxu0
    %v1457 = vadd.f32 0.0, %v1456
    %v1458 = vpop.f32.mrf.mxu0
    %v1459 = vadd.f32 0.0, %v1458
    %1460 = vmatmul.bf16.gmra.mxu0 %v658
    %v1461 = vpop.f32.mrf.mxu0
    %v1462 = vadd.f32 0.0, %v1461
    %v1463 = vpop.f32.mrf.mxu0
    %v1464 = vadd.f32 0.0, %v1463
    %1465 = vmatmul.bf16.gmra.mxu0 %v660
    %v1466 = vpop.f32.mrf.mxu0
    %v1467 = vadd.f32 0.0, %v1466
    %v1468 = vpop.f32.mrf.mxu0
    %v1469 = vadd.f32 0.0, %v1468
    %1470 = vmatmul.bf16.gmra.mxu0 %v662
    %v1471 = vpop.f32.mrf.mxu0
    %v1472 = vadd.f32 0.0, %v1471
    %v1473 = vpop.f32.mrf.mxu0
    %v1474 = vadd.f32 0.0, %v1473
    %1475 = vmatmul.bf16.gmra.mxu0 %v664
    %v1476 = vpop.f32.mrf.mxu0
    %v1477 = vadd.f32 0.0, %v1476
    %v1478 = vpop.f32.mrf.mxu0
    %v1479 = vadd.f32 0.0, %v1478
    %1480 = vmatmul.bf16.gmra.mxu0 %v666
    %v1481 = vpop.f32.mrf.mxu0
    %v1482 = vadd.f32 0.0, %v1481
    %v1483 = vpop.f32.mrf.mxu0
    %v1484 = vadd.f32 0.0, %v1483
    %1485 = vmatmul.bf16.gmra.mxu0 %v668
    %v1486 = vpop.f32.mrf.mxu0
    %v1487 = vadd.f32 0.0, %v1486
    %v1488 = vpop.f32.mrf.mxu0
    %v1489 = vadd.f32 0.0, %v1488
    %1490 = vdwg.mxu0
    %1491 = vmatpush.bf16.msra.mxu0 %v1146
    %1492 = vmatpush.bf16.msra.mxu0 %v1140
    %1493 = vmatpush.bf16.msra.mxu0 %v1134
    %1494 = vmatpush.bf16.msra.mxu0 %v1128
    %1495 = vmatpush.bf16.msra.mxu0 %v1122
    %1496 = vmatpush.bf16.msra.mxu0 %v1116
    %1497 = vmatpush.bf16.msra.mxu0 %v1110
    %1498 = vmatpush.bf16.msra.mxu0 %v1104
    %1499 = vmatmul.bf16.gmra.mxu0 %v655
    %v1500 = vpop.f32.mrf.mxu0
    %v1501 = vadd.f32 %v1452, %v1500
    %v1502 = vpop.f32.mrf.mxu0
    %v1503 = vadd.f32 %v1454, %v1502
    %1504 = vmatmul.bf16.gmra.mxu0 %v657
    %v1505 = vpop.f32.mrf.mxu0
    %v1506 = vadd.f32 %v1457, %v1505
    %v1507 = vpop.f32.mrf.mxu0
    %v1508 = vadd.f32 %v1459, %v1507
    %1509 = vmatmul.bf16.gmra.mxu0 %v659
    %v1510 = vpop.f32.mrf.mxu0
    %v1511 = vadd.f32 %v1462, %v1510
    %v1512 = vpop.f32.mrf.mxu0
    %v1513 = vadd.f32 %v1464, %v1512
    %1514 = vmatmul.bf16.gmra.mxu0 %v661
    %v1515 = vpop.f32.mrf.mxu0
    %v1516 = vadd.f32 %v1467, %v1515
    %v1517 = vpop.f32.mrf.mxu0
    %v1518 = vadd.f32 %v1469, %v1517
    %1519 = vmatmul.bf16.gmra.mxu0 %v663
    %v1520 = vpop.f32.mrf.mxu0
    %v1521 = vadd.f32 %v1472, %v1520
    %v1522 = vpop.f32.mrf.mxu0
    %v1523 = vadd.f32 %v1474, %v1522
    %1524 = vmatmul.bf16.gmra.mxu0 %v665
    %v1525 = vpop.f32.mrf.mxu0
    %v1526 = vadd.f32 %v1477, %v1525
    %v1527 = vpop.f32.mrf.mxu0
    %v1528 = vadd.f32 %v1479, %v1527
    %1529 = vmatmul.bf16.gmra.mxu0 %v667
    %v1530 = vpop.f32.mrf.mxu0
    %v1531 = vadd.f32 %v1482, %v1530
    %v1532 = vpop.f32.mrf.mxu0
    %v1533 = vadd.f32 %v1484, %v1532
    %1534 = vmatmul.bf16.gmra.mxu0 %v669
    %v1535 = vpop.f32.mrf.mxu0
    %v1536 = vadd.f32 %v1487, %v1535
    %v1537 = vpop.f32.mrf.mxu0
    %v1538 = vadd.f32 %v1489, %v1537
    %1539 = vdwg.mxu0
    %1540 = vmatpush.bf16.msra.mxu0 %v1099
    %1541 = vmatpush.bf16.msra.mxu0 %v1093
    %1542 = vmatpush.bf16.msra.mxu0 %v1087
    %1543 = vmatpush.bf16.msra.mxu0 %v1081
    %1544 = vmatpush.bf16.msra.mxu0 %v1075
    %1545 = vmatpush.bf16.msra.mxu0 %v1069
    %1546 = vmatpush.bf16.msra.mxu0 %v1063
    %1547 = vmatpush.bf16.msra.mxu0 %v1057
    %1548 = vmatmul.bf16.gmra.mxu0 %v654
    %v1549 = vpop.f32.mrf.mxu0
    %v1550 = vadd.f32 0.0, %v1549
    %v1551 = vpop.f32.mrf.mxu0
    %v1552 = vadd.f32 0.0, %v1551
    %1553 = vmatmul.bf16.gmra.mxu0 %v656
    %v1554 = vpop.f32.mrf.mxu0
    %v1555 = vadd.f32 0.0, %v1554
    %v1556 = vpop.f32.mrf.mxu0
    %v1557 = vadd.f32 0.0, %v1556
    %1558 = vmatmul.bf16.gmra.mxu0 %v658
    %v1559 = vpop.f32.mrf.mxu0
    %v1560 = vadd.f32 0.0, %v1559
    %v1561 = vpop.f32.mrf.mxu0
    %v1562 = vadd.f32 0.0, %v1561
    %1563 = vmatmul.bf16.gmra.mxu0 %v660
    %v1564 = vpop.f32.mrf.mxu0
    %v1565 = vadd.f32 0.0, %v1564
    %v1566 = vpop.f32.mrf.mxu0
    %v1567 = vadd.f32 0.0, %v1566
    %1568 = vmatmul.bf16.gmra.mxu0 %v662
    %v1569 = vpop.f32.mrf.mxu0
    %v1570 = vadd.f32 0.0, %v1569
    %v1571 = vpop.f32.mrf.mxu0
    %v1572 = vadd.f32 0.0, %v1571
    %1573 = vmatmul.bf16.gmra.mxu0 %v664
    %v1574 = vpop.f32.mrf.mxu0
    %v1575 = vadd.f32 0.0, %v1574
    %v1576 = vpop.f32.mrf.mxu0
    %v1577 = vadd.f32 0.0, %v1576
    %1578 = vmatmul.bf16.gmra.mxu0 %v666
    %v1579 = vpop.f32.mrf.mxu0
    %v1580 = vadd.f32 0.0, %v1579
    %v1581 = vpop.f32.mrf.mxu0
    %v1582 = vadd.f32 0.0, %v1581
    %1583 = vmatmul.bf16.gmra.mxu0 %v668
    %v1584 = vpop.f32.mrf.mxu0
    %v1585 = vadd.f32 0.0, %v1584
    %v1586 = vpop.f32.mrf.mxu0
    %v1587 = vadd.f32 0.0, %v1586
    %1588 = vdwg.mxu0
    %1589 = vmatpush.bf16.msra.mxu0 %v1147
    %1590 = vmatpush.bf16.msra.mxu0 %v1141
    %1591 = vmatpush.bf16.msra.mxu0 %v1135
    %1592 = vmatpush.bf16.msra.mxu0 %v1129
    %1593 = vmatpush.bf16.msra.mxu0 %v1123
    %1594 = vmatpush.bf16.msra.mxu0 %v1117
    %1595 = vmatpush.bf16.msra.mxu0 %v1111
    %1596 = vmatpush.bf16.msra.mxu0 %v1105
    %1597 = vmatmul.bf16.gmra.mxu0 %v655
    %v1598 = vpop.f32.mrf.mxu0
    %v1599 = vadd.f32 %v1550, %v1598
    %v1600 = vpop.f32.mrf.mxu0
    %v1601 = vadd.f32 %v1552, %v1600
    %1602 = vmatmul.bf16.gmra.mxu0 %v657
    %v1603 = vpop.f32.mrf.mxu0
    %v1604 = vadd.f32 %v1555, %v1603
    %v1605 = vpop.f32.mrf.mxu0
    %v1606 = vadd.f32 %v1557, %v1605
    %1607 = vmatmul.bf16.gmra.mxu0 %v659
    %v1608 = vpop.f32.mrf.mxu0
    %v1609 = vadd.f32 %v1560, %v1608
    %v1610 = vpop.f32.mrf.mxu0
    %v1611 = vadd.f32 %v1562, %v1610
    %1612 = vmatmul.bf16.gmra.mxu0 %v661
    %v1613 = vpop.f32.mrf.mxu0
    %v1614 = vadd.f32 %v1565, %v1613
    %v1615 = vpop.f32.mrf.mxu0
    %v1616 = vadd.f32 %v1567, %v1615
    %1617 = vmatmul.bf16.gmra.mxu0 %v663
    %v1618 = vpop.f32.mrf.mxu0
    %v1619 = vadd.f32 %v1570, %v1618
    %v1620 = vpop.f32.mrf.mxu0
    %v1621 = vadd.f32 %v1572, %v1620
    %1622 = vmatmul.bf16.gmra.mxu0 %v665
    %v1623 = vpop.f32.mrf.mxu0
    %v1624 = vadd.f32 %v1575, %v1623
    %v1625 = vpop.f32.mrf.mxu0
    %v1626 = vadd.f32 %v1577, %v1625
    %1627 = vmatmul.bf16.gmra.mxu0 %v667
    %v1628 = vpop.f32.mrf.mxu0
    %v1629 = vadd.f32 %v1580, %v1628
    %v1630 = vpop.f32.mrf.mxu0
    %v1631 = vadd.f32 %v1582, %v1630
    %1632 = vmatmul.bf16.gmra.mxu0 %v669
    %v1633 = vpop.f32.mrf.mxu0
    %v1634 = vadd.f32 %v1585, %v1633
    %v1635 = vpop.f32.mrf.mxu0
    %v1636 = vadd.f32 %v1587, %v1635
    %1637 = vdwg.mxu0
    %1638 = vmatpush.bf16.msra.mxu0 %v1100
    %1639 = vmatpush.bf16.msra.mxu0 %v1094
    %1640 = vmatpush.bf16.msra.mxu0 %v1088
    %1641 = vmatpush.bf16.msra.mxu0 %v1082
    %1642 = vmatpush.bf16.msra.mxu0 %v1076
    %1643 = vmatpush.bf16.msra.mxu0 %v1070
    %1644 = vmatpush.bf16.msra.mxu0 %v1064
    %1645 = vmatpush.bf16.msra.mxu0 %v1058
    %1646 = vmatmul.bf16.gmra.mxu0 %v654
    %v1647 = vpop.f32.mrf.mxu0
    %v1648 = vadd.f32 0.0, %v1647
    %v1649 = vpop.f32.mrf.mxu0
    %v1650 = vadd.f32 0.0, %v1649
    %1651 = vmatmul.bf16.gmra.mxu0 %v656
    %v1652 = vpop.f32.mrf.mxu0
    %v1653 = vadd.f32 0.0, %v1652
    %v1654 = vpop.f32.mrf.mxu0
    %v1655 = vadd.f32 0.0, %v1654
    %1656 = vmatmul.bf16.gmra.mxu0 %v658
    %v1657 = vpop.f32.mrf.mxu0
    %v1658 = vadd.f32 0.0, %v1657
    %v1659 = vpop.f32.mrf.mxu0
    %v1660 = vadd.f32 0.0, %v1659
    %1661 = vmatmul.bf16.gmra.mxu0 %v660
    %v1662 = vpop.f32.mrf.mxu0
    %v1663 = vadd.f32 0.0, %v1662
    %v1664 = vpop.f32.mrf.mxu0
    %v1665 = vadd.f32 0.0, %v1664
    %1666 = vmatmul.bf16.gmra.mxu0 %v662
    %v1667 = vpop.f32.mrf.mxu0
    %v1668 = vadd.f32 0.0, %v1667
    %v1669 = vpop.f32.mrf.mxu0
    %v1670 = vadd.f32 0.0, %v1669
    %1671 = vmatmul.bf16.gmra.mxu0 %v664
    %v1672 = vpop.f32.mrf.mxu0
    %v1673 = vadd.f32 0.0, %v1672
    %v1674 = vpop.f32.mrf.mxu0
    %v1675 = vadd.f32 0.0, %v1674
    %1676 = vmatmul.bf16.gmra.mxu0 %v666
    %v1677 = vpop.f32.mrf.mxu0
    %v1678 = vadd.f32 0.0, %v1677
    %v1679 = vpop.f32.mrf.mxu0
    %v1680 = vadd.f32 0.0, %v1679
    %1681 = vmatmul.bf16.gmra.mxu0 %v668
    %v1682 = vpop.f32.mrf.mxu0
    %v1683 = vadd.f32 0.0, %v1682
    %v1684 = vpop.f32.mrf.mxu0
    %v1685 = vadd.f32 0.0, %v1684
    %1686 = vdwg.mxu0
    %1687 = vmatpush.bf16.msra.mxu0 %v1148
    %1688 = vmatpush.bf16.msra.mxu0 %v1142
    %1689 = vmatpush.bf16.msra.mxu0 %v1136
    %1690 = vmatpush.bf16.msra.mxu0 %v1130
    %1691 = vmatpush.bf16.msra.mxu0 %v1124
    %1692 = vmatpush.bf16.msra.mxu0 %v1118
    %1693 = vmatpush.bf16.msra.mxu0 %v1112
    %1694 = vmatpush.bf16.msra.mxu0 %v1106
    %1695 = vmatmul.bf16.gmra.mxu0 %v655
    %v1696 = vpop.f32.mrf.mxu0
    %v1697 = vadd.f32 %v1648, %v1696
    %v1698 = vpop.f32.mrf.mxu0
    %v1699 = vadd.f32 %v1650, %v1698
    %1700 = vmatmul.bf16.gmra.mxu0 %v657
    %v1701 = vpop.f32.mrf.mxu0
    %v1702 = vadd.f32 %v1653, %v1701
    %v1703 = vpop.f32.mrf.mxu0
    %v1704 = vadd.f32 %v1655, %v1703
    %1705 = vmatmul.bf16.gmra.mxu0 %v659
    %v1706 = vpop.f32.mrf.mxu0
    %v1707 = vadd.f32 %v1658, %v1706
    %v1708 = vpop.f32.mrf.mxu0
    %v1709 = vadd.f32 %v1660, %v1708
    %1710 = vmatmul.bf16.gmra.mxu0 %v661
    %v1711 = vpop.f32.mrf.mxu0
    %v1712 = vadd.f32 %v1663, %v1711
    %v1713 = vpop.f32.mrf.mxu0
    %v1714 = vadd.f32 %v1665, %v1713
    %1715 = vmatmul.bf16.gmra.mxu0 %v663
    %v1716 = vpop.f32.mrf.mxu0
    %v1717 = vadd.f32 %v1668, %v1716
    %v1718 = vpop.f32.mrf.mxu0
    %v1719 = vadd.f32 %v1670, %v1718
    %1720 = vmatmul.bf16.gmra.mxu0 %v665
    %v1721 = vpop.f32.mrf.mxu0
    %v1722 = vadd.f32 %v1673, %v1721
    %v1723 = vpop.f32.mrf.mxu0
    %v1724 = vadd.f32 %v1675, %v1723
    %1725 = vmatmul.bf16.gmra.mxu0 %v667
    %v1726 = vpop.f32.mrf.mxu0
    %v1727 = vadd.f32 %v1678, %v1726
    %v1728 = vpop.f32.mrf.mxu0
    %v1729 = vadd.f32 %v1680, %v1728
    %1730 = vmatmul.bf16.gmra.mxu0 %v669
    %v1731 = vpop.f32.mrf.mxu0
    %v1732 = vadd.f32 %v1683, %v1731
    %v1733 = vpop.f32.mrf.mxu0
    %v1734 = vadd.f32 %v1685, %v1733
    %1735 = vdwg.mxu0
    %1736 = vmatpush.bf16.msra.mxu0 %v1101
    %1737 = vmatpush.bf16.msra.mxu0 %v1095
    %1738 = vmatpush.bf16.msra.mxu0 %v1089
    %1739 = vmatpush.bf16.msra.mxu0 %v1083
    %1740 = vmatpush.bf16.msra.mxu0 %v1077
    %1741 = vmatpush.bf16.msra.mxu0 %v1071
    %1742 = vmatpush.bf16.msra.mxu0 %v1065
    %1743 = vmatpush.bf16.msra.mxu0 %v1059
    %1744 = vmatmul.bf16.gmra.mxu0 %v654
    %v1745 = vpop.f32.mrf.mxu0
    %v1746 = vadd.f32 0.0, %v1745
    %v1747 = vpop.f32.mrf.mxu0
    %v1748 = vadd.f32 0.0, %v1747
    %1749 = vmatmul.bf16.gmra.mxu0 %v656
    %v1750 = vpop.f32.mrf.mxu0
    %v1751 = vadd.f32 0.0, %v1750
    %v1752 = vpop.f32.mrf.mxu0
    %v1753 = vadd.f32 0.0, %v1752
    %1754 = vmatmul.bf16.gmra.mxu0 %v658
    %v1755 = vpop.f32.mrf.mxu0
    %v1756 = vadd.f32 0.0, %v1755
    %v1757 = vpop.f32.mrf.mxu0
    %v1758 = vadd.f32 0.0, %v1757
    %1759 = vmatmul.bf16.gmra.mxu0 %v660
    %v1760 = vpop.f32.mrf.mxu0
    %v1761 = vadd.f32 0.0, %v1760
    %v1762 = vpop.f32.mrf.mxu0
    %v1763 = vadd.f32 0.0, %v1762
    %1764 = vmatmul.bf16.gmra.mxu0 %v662
    %v1765 = vpop.f32.mrf.mxu0
    %v1766 = vadd.f32 0.0, %v1765
    %v1767 = vpop.f32.mrf.mxu0
    %v1768 = vadd.f32 0.0, %v1767
    %1769 = vmatmul.bf16.gmra.mxu0 %v664
    %v1770 = vpop.f32.mrf.mxu0
    %v1771 = vadd.f32 0.0, %v1770
    %v1772 = vpop.f32.mrf.mxu0
    %v1773 = vadd.f32 0.0, %v1772
    %1774 = vmatmul.bf16.gmra.mxu0 %v666
    %v1775 = vpop.f32.mrf.mxu0
    %v1776 = vadd.f32 0.0, %v1775
    %v1777 = vpop.f32.mrf.mxu0
    %v1778 = vadd.f32 0.0, %v1777
    %1779 = vmatmul.bf16.gmra.mxu0 %v668
    %v1780 = vpop.f32.mrf.mxu0
    %v1781 = vadd.f32 0.0, %v1780
    %v1782 = vpop.f32.mrf.mxu0
    %v1783 = vadd.f32 0.0, %v1782
    %1784 = vdwg.mxu0
    %1785 = vmatpush.bf16.msra.mxu0 %v1149
    %1786 = vmatpush.bf16.msra.mxu0 %v1143
    %1787 = vmatpush.bf16.msra.mxu0 %v1137
    %1788 = vmatpush.bf16.msra.mxu0 %v1131
    %1789 = vmatpush.bf16.msra.mxu0 %v1125
    %1790 = vmatpush.bf16.msra.mxu0 %v1119
    %1791 = vmatpush.bf16.msra.mxu0 %v1113
    %1792 = vmatpush.bf16.msra.mxu0 %v1107
    %1793 = vmatmul.bf16.gmra.mxu0 %v655
    %v1794 = vpop.f32.mrf.mxu0
    %v1795 = vadd.f32 %v1746, %v1794
    %v1796 = vpop.f32.mrf.mxu0
    %v1797 = vadd.f32 %v1748, %v1796
    %1798 = vmatmul.bf16.gmra.mxu0 %v657
    %v1799 = vpop.f32.mrf.mxu0
    %v1800 = vadd.f32 %v1751, %v1799
    %v1801 = vpop.f32.mrf.mxu0
    %v1802 = vadd.f32 %v1753, %v1801
    %1803 = vmatmul.bf16.gmra.mxu0 %v659
    %v1804 = vpop.f32.mrf.mxu0
    %v1805 = vadd.f32 %v1756, %v1804
    %v1806 = vpop.f32.mrf.mxu0
    %v1807 = vadd.f32 %v1758, %v1806
    %1808 = vmatmul.bf16.gmra.mxu0 %v661
    %v1809 = vpop.f32.mrf.mxu0
    %v1810 = vadd.f32 %v1761, %v1809
    %v1811 = vpop.f32.mrf.mxu0
    %v1812 = vadd.f32 %v1763, %v1811
    %1813 = vmatmul.bf16.gmra.mxu0 %v663
    %v1814 = vpop.f32.mrf.mxu0
    %v1815 = vadd.f32 %v1766, %v1814
    %v1816 = vpop.f32.mrf.mxu0
    %v1817 = vadd.f32 %v1768, %v1816
    %1818 = vmatmul.bf16.gmra.mxu0 %v665
    %v1819 = vpop.f32.mrf.mxu0
    %v1820 = vadd.f32 %v1771, %v1819
    %v1821 = vpop.f32.mrf.mxu0
    %v1822 = vadd.f32 %v1773, %v1821
    %1823 = vmatmul.bf16.gmra.mxu0 %v667
    %v1824 = vpop.f32.mrf.mxu0
    %v1825 = vadd.f32 %v1776, %v1824
    %v1826 = vpop.f32.mrf.mxu0
    %v1827 = vadd.f32 %v1778, %v1826
    %1828 = vmatmul.bf16.gmra.mxu0 %v669
    %v1829 = vpop.f32.mrf.mxu0
    %v1830 = vadd.f32 %v1781, %v1829
    %v1831 = vpop.f32.mrf.mxu0
    %v1832 = vadd.f32 %v1783, %v1831
    %1833 = vdwg.mxu0
    %v1834 = vpack.c.bf16 %v1403, %v1305
    %v1835 = vpack.c.bf16 %v1599, %v1501
    %v1836 = vpack.c.bf16 %v1795, %v1697
    %v1837 = vpack.c.bf16 %v1405, %v1307
    %v1838 = vpack.c.bf16 %v1601, %v1503
    %v1839 = vpack.c.bf16 %v1797, %v1699
    %v1840 = vpack.c.bf16 %v1408, %v1310
    %v1841 = vpack.c.bf16 %v1604, %v1506
    %v1842 = vpack.c.bf16 %v1800, %v1702
    %v1843 = vpack.c.bf16 %v1410, %v1312
    %v1844 = vpack.c.bf16 %v1606, %v1508
    %v1845 = vpack.c.bf16 %v1802, %v1704
    %v1846 = vpack.c.bf16 %v1413, %v1315
    %v1847 = vpack.c.bf16 %v1609, %v1511
    %v1848 = vpack.c.bf16 %v1805, %v1707
    %v1849 = vpack.c.bf16 %v1415, %v1317
    %v1850 = vpack.c.bf16 %v1611, %v1513
    %v1851 = vpack.c.bf16 %v1807, %v1709
    %v1852 = vpack.c.bf16 %v1418, %v1320
    %v1853 = vpack.c.bf16 %v1614, %v1516
    %v1854 = vpack.c.bf16 %v1810, %v1712
    %v1855 = vpack.c.bf16 %v1420, %v1322
    %v1856 = vpack.c.bf16 %v1616, %v1518
    %v1857 = vpack.c.bf16 %v1812, %v1714
    %v1858 = vpack.c.bf16 %v1423, %v1325
    %v1859 = vpack.c.bf16 %v1619, %v1521
    %v1860 = vpack.c.bf16 %v1815, %v1717
    %v1861 = vpack.c.bf16 %v1425, %v1327
    %v1862 = vpack.c.bf16 %v1621, %v1523
    %v1863 = vpack.c.bf16 %v1817, %v1719
    %v1864 = vpack.c.bf16 %v1428, %v1330
    %v1865 = vpack.c.bf16 %v1624, %v1526
    %v1866 = vpack.c.bf16 %v1820, %v1722
    %v1867 = vpack.c.bf16 %v1430, %v1332
    %v1868 = vpack.c.bf16 %v1626, %v1528
    %v1869 = vpack.c.bf16 %v1822, %v1724
    %v1870 = vpack.c.bf16 %v1433, %v1335
    %v1871 = vpack.c.bf16 %v1629, %v1531
    %v1872 = vpack.c.bf16 %v1825, %v1727
    %v1873 = vpack.c.bf16 %v1435, %v1337
    %v1874 = vpack.c.bf16 %v1631, %v1533
    %v1875 = vpack.c.bf16 %v1827, %v1729
    %v1876 = vpack.c.bf16 %v1438, %v1340
    %v1877 = vpack.c.bf16 %v1634, %v1536
    %v1878 = vpack.c.bf16 %v1830, %v1732
    %v1879 = vpack.c.bf16 %v1440, %v1342
    %v1880 = vpack.c.bf16 %v1636, %v1538
    %v1881 = vpack.c.bf16 %v1832, %v1734
    %v1890 = vunpack.c.l.b16 %v1834
    %v1891 = vunpack.c.l.b16 %v1837
    %v1892 = vunpack.c.l.b16 %v1840
    %v1893 = vunpack.c.l.b16 %v1843
    %v1894 = vunpack.c.l.b16 %v1846
    %v1895 = vunpack.c.l.b16 %v1849
    %v1896 = vunpack.c.l.b16 %v1852
    %v1897 = vunpack.c.l.b16 %v1855
    %v1898 = vpack.c.b16 %v1891, %v1890
    %v1899 = vpack.c.b16 %v1893, %v1892
    %v1900 = vpack.c.b16 %v1895, %v1894
    %v1901 = vpack.c.b16 %v1897, %v1896
    %v1914 = vunpack.c.l.b16 %v1835
    %v1915 = vunpack.c.l.b16 %v1838
    %v1916 = vunpack.c.l.b16 %v1841
    %v1917 = vunpack.c.l.b16 %v1844
    %v1918 = vunpack.c.l.b16 %v1847
    %v1919 = vunpack.c.l.b16 %v1850
    %v1920 = vunpack.c.l.b16 %v1853
    %v1921 = vunpack.c.l.b16 %v1856
    %v1922 = vpack.c.b16 %v1915, %v1914
    %v1923 = vpack.c.b16 %v1917, %v1916
    %v1924 = vpack.c.b16 %v1919, %v1918
    %v1925 = vpack.c.b16 %v1921, %v1920
    %1930 = vmatpush.bf16.xpose.msra.mxu0 0
    %1931 = vmatpush.bf16.xpose.msra.mxu0 0
    %1932 = vmatpush.bf16.xpose.msra.mxu0 0
    %1933 = vmatpush.bf16.xpose.msra.mxu0 0
    %1934 = vmatpush.bf16.xpose.msra.mxu0 %v1925
    %1935 = vmatpush.bf16.xpose.msra.mxu0 %v1924
    %1936 = vmatpush.bf16.xpose.msra.mxu0 %v1923
    %1937 = vmatpush.bf16.xpose.msra.mxu0 %v1922
    %1938 = vmatmul.bf16.gmra.mxu0 %v1898
    %v1939 = vpop.f32.mrf.mxu0
    %v1940 = vadd.f32 0.0, %v1939
    %v1941 = vpop.f32.mrf.mxu0
    %v1942 = vadd.f32 0.0, %v1941
    %1943 = vmatmul.bf16.gmra.mxu0 %v1899
    %v1944 = vpop.f32.mrf.mxu0
    %v1945 = vadd.f32 0.0, %v1944
    %v1946 = vpop.f32.mrf.mxu0
    %v1947 = vadd.f32 0.0, %v1946
    %1948 = vmatmul.bf16.gmra.mxu0 %v1900
    %v1949 = vpop.f32.mrf.mxu0
    %v1950 = vadd.f32 0.0, %v1949
    %v1951 = vpop.f32.mrf.mxu0
    %v1952 = vadd.f32 0.0, %v1951
    %1953 = vmatmul.bf16.gmra.mxu0 %v1901
    %v1954 = vpop.f32.mrf.mxu0
    %v1955 = vadd.f32 0.0, %v1954
    %v1956 = vpop.f32.mrf.mxu0
    %v1957 = vadd.f32 0.0, %v1956
    %1958 = vdwg.mxu0
    %v1967 = vunpack.c.l.b16 %v1858
    %v1968 = vunpack.c.l.b16 %v1861
    %v1969 = vunpack.c.l.b16 %v1864
    %v1970 = vunpack.c.l.b16 %v1867
    %v1971 = vunpack.c.l.b16 %v1870
    %v1972 = vunpack.c.l.b16 %v1873
    %v1973 = vunpack.c.l.b16 %v1876
    %v1974 = vunpack.c.l.b16 %v1879
    %v1975 = vpack.c.b16 %v1968, %v1967
    %v1976 = vpack.c.b16 %v1970, %v1969
    %v1977 = vpack.c.b16 %v1972, %v1971
    %v1978 = vpack.c.b16 %v1974, %v1973
    %v1991 = vunpack.c.l.b16 %v1859
    %v1992 = vunpack.c.l.b16 %v1862
    %v1993 = vunpack.c.l.b16 %v1865
    %v1994 = vunpack.c.l.b16 %v1868
    %v1995 = vunpack.c.l.b16 %v1871
    %v1996 = vunpack.c.l.b16 %v1874
    %v1997 = vunpack.c.l.b16 %v1877
    %v1998 = vunpack.c.l.b16 %v1880
    %v1999 = vpack.c.b16 %v1992, %v1991
    %v2000 = vpack.c.b16 %v1994, %v1993
    %v2001 = vpack.c.b16 %v1996, %v1995
    %v2002 = vpack.c.b16 %v1998, %v1997
    %2007 = vmatpush.bf16.xpose.msra.mxu0 0
    %2008 = vmatpush.bf16.xpose.msra.mxu0 0
    %2009 = vmatpush.bf16.xpose.msra.mxu0 0
    %2010 = vmatpush.bf16.xpose.msra.mxu0 0
    %2011 = vmatpush.bf16.xpose.msra.mxu0 %v2002
    %2012 = vmatpush.bf16.xpose.msra.mxu0 %v2001
    %2013 = vmatpush.bf16.xpose.msra.mxu0 %v2000
    %2014 = vmatpush.bf16.xpose.msra.mxu0 %v1999
    %2015 = vmatmul.bf16.gmra.mxu0 %v1975
    %v2016 = vpop.f32.mrf.mxu0
    %v2017 = vadd.f32 0.0, %v2016
    %v2018 = vpop.f32.mrf.mxu0
    %v2019 = vadd.f32 0.0, %v2018
    %2020 = vmatmul.bf16.gmra.mxu0 %v1976
    %v2021 = vpop.f32.mrf.mxu0
    %v2022 = vadd.f32 0.0, %v2021
    %v2023 = vpop.f32.mrf.mxu0
    %v2024 = vadd.f32 0.0, %v2023
    %2025 = vmatmul.bf16.gmra.mxu0 %v1977
    %v2026 = vpop.f32.mrf.mxu0
    %v2027 = vadd.f32 0.0, %v2026
    %v2028 = vpop.f32.mrf.mxu0
    %v2029 = vadd.f32 0.0, %v2028
    %2030 = vmatmul.bf16.gmra.mxu0 %v1978
    %v2031 = vpop.f32.mrf.mxu0
    %v2032 = vadd.f32 0.0, %v2031
    %v2033 = vpop.f32.mrf.mxu0
    %v2034 = vadd.f32 0.0, %v2033
    %2035 = vdwg.mxu0
    %vm2036 = vcmask 523264
    %v2037 = vsel %vm2036, %v1940, -inf
    %2038 = vmax.xlane.f32.xlu0 %v2037
    %v2039 = vpop.xlane.xlu0 %2038
    %v2040 = vsel %vm2036, %v1942, -inf
    %2041 = vmax.xlane.f32.xlu0 %v2040
    %v2042 = vpop.xlane.xlu0 %2041
    %v2043 = vsel %vm2036, %v1945, -inf
    %2044 = vmax.xlane.f32.xlu0 %v2043
    %v2045 = vpop.xlane.xlu0 %2044
    %v2046 = vsel %vm2036, %v1947, -inf
    %2047 = vmax.xlane.f32.xlu0 %v2046
    %v2048 = vpop.xlane.xlu0 %2047
    %v2049 = vsel %vm2036, %v1950, -inf
    %2050 = vmax.xlane.f32.xlu0 %v2049
    %v2051 = vpop.xlane.xlu0 %2050
    %v2052 = vsel %vm2036, %v1952, -inf
    %2053 = vmax.xlane.f32.xlu0 %v2052
    %v2054 = vpop.xlane.xlu0 %2053
    %v2055 = vsel %vm2036, %v1955, -inf
    %2056 = vmax.xlane.f32.xlu0 %v2055
    %v2057 = vpop.xlane.xlu0 %2056
    %v2058 = vsel %vm2036, %v1957, -inf
    %2059 = vmax.xlane.f32.xlu0 %v2058
    %v2060 = vpop.xlane.xlu0 %2059
    %v2061 = vsel %vm2036, %v2017, -inf
    %2062 = vmax.xlane.f32.xlu0 %v2061
    %v2063 = vpop.xlane.xlu0 %2062
    %v2064 = vsel %vm2036, %v2019, -inf
    %2065 = vmax.xlane.f32.xlu0 %v2064
    %v2066 = vpop.xlane.xlu0 %2065
    %v2067 = vsel %vm2036, %v2022, -inf
    %2068 = vmax.xlane.f32.xlu0 %v2067
    %v2069 = vpop.xlane.xlu0 %2068
    %v2070 = vsel %vm2036, %v2024, -inf
    %2071 = vmax.xlane.f32.xlu0 %v2070
    %v2072 = vpop.xlane.xlu0 %2071
    %v2073 = vsel %vm2036, %v2027, -inf
    %2074 = vmax.xlane.f32.xlu0 %v2073
    %v2075 = vpop.xlane.xlu0 %2074
    %v2076 = vsel %vm2036, %v2029, -inf
    %2077 = vmax.xlane.f32.xlu0 %v2076
    %v2078 = vpop.xlane.xlu0 %2077
    %v2079 = vsel %vm2036, %v2032, -inf
    %2080 = vmax.xlane.f32.xlu0 %v2079
    %v2081 = vpop.xlane.xlu0 %2080
    %v2082 = vsel %vm2036, %v2034, -inf
    %2083 = vmax.xlane.f32.xlu0 %v2082
    %v2084 = vpop.xlane.xlu0 %2083
    %v2085 = vsub.f32 %v1940, %v2039
    %v2086 = vsub.f32 %v1942, %v2042
    %v2087 = vsub.f32 %v1945, %v2045
    %v2088 = vsub.f32 %v1947, %v2048
    %v2089 = vsub.f32 %v1950, %v2051
    %v2090 = vsub.f32 %v1952, %v2054
    %v2091 = vsub.f32 %v1955, %v2057
    %v2092 = vsub.f32 %v1957, %v2060
    %v2093 = vsub.f32 %v2017, %v2063
    %v2094 = vsub.f32 %v2019, %v2066
    %v2095 = vsub.f32 %v2022, %v2069
    %v2096 = vsub.f32 %v2024, %v2072
    %v2097 = vsub.f32 %v2027, %v2075
    %v2098 = vsub.f32 %v2029, %v2078
    %v2099 = vsub.f32 %v2032, %v2081
    %v2100 = vsub.f32 %v2034, %v2084
    %v2101 = vmul.f32 %v2085, 1.442695
    %v2102 = vpow.pop %v2101
    %v2103 = vmul.f32 %v2086, 1.442695
    %v2104 = vpow.pop %v2103
    %v2105 = vmul.f32 %v2087, 1.442695
    %v2106 = vpow.pop %v2105
    %v2107 = vmul.f32 %v2088, 1.442695
    %v2108 = vpow.pop %v2107
    %v2109 = vmul.f32 %v2089, 1.442695
    %v2110 = vpow.pop %v2109
    %v2111 = vmul.f32 %v2090, 1.442695
    %v2112 = vpow.pop %v2111
    %v2113 = vmul.f32 %v2091, 1.442695
    %v2114 = vpow.pop %v2113
    %v2115 = vmul.f32 %v2092, 1.442695
    %v2116 = vpow.pop %v2115
    %v2117 = vmul.f32 %v2093, 1.442695
    %v2118 = vpow.pop %v2117
    %v2119 = vmul.f32 %v2094, 1.442695
    %v2120 = vpow.pop %v2119
    %v2121 = vmul.f32 %v2095, 1.442695
    %v2122 = vpow.pop %v2121
    %v2123 = vmul.f32 %v2096, 1.442695
    %v2124 = vpow.pop %v2123
    %v2125 = vmul.f32 %v2097, 1.442695
    %v2126 = vpow.pop %v2125
    %v2127 = vmul.f32 %v2098, 1.442695
    %v2128 = vpow.pop %v2127
    %v2129 = vmul.f32 %v2099, 1.442695
    %v2130 = vpow.pop %v2129
    %v2131 = vmul.f32 %v2100, 1.442695
    %v2132 = vpow.pop %v2131
    %v2133 = vsel %vm2036, %v2102, 0.0
    %2134 = vadd.xlane.f32.xlu0 %v2133
    %v2135 = vpop.xlane.xlu0 %2134
    %v2136 = vsel %vm2036, %v2104, 0.0
    %2137 = vadd.xlane.f32.xlu0 %v2136
    %v2138 = vpop.xlane.xlu0 %2137
    %v2139 = vsel %vm2036, %v2106, 0.0
    %2140 = vadd.xlane.f32.xlu0 %v2139
    %v2141 = vpop.xlane.xlu0 %2140
    %v2142 = vsel %vm2036, %v2108, 0.0
    %2143 = vadd.xlane.f32.xlu0 %v2142
    %v2144 = vpop.xlane.xlu0 %2143
    %v2145 = vsel %vm2036, %v2110, 0.0
    %2146 = vadd.xlane.f32.xlu0 %v2145
    %v2147 = vpop.xlane.xlu0 %2146
    %v2148 = vsel %vm2036, %v2112, 0.0
    %2149 = vadd.xlane.f32.xlu0 %v2148
    %v2150 = vpop.xlane.xlu0 %2149
    %v2151 = vsel %vm2036, %v2114, 0.0
    %2152 = vadd.xlane.f32.xlu0 %v2151
    %v2153 = vpop.xlane.xlu0 %2152
    %v2154 = vsel %vm2036, %v2116, 0.0
    %2155 = vadd.xlane.f32.xlu0 %v2154
    %v2156 = vpop.xlane.xlu0 %2155
    %v2157 = vsel %vm2036, %v2118, 0.0
    %2158 = vadd.xlane.f32.xlu0 %v2157
    %v2159 = vpop.xlane.xlu0 %2158
    %v2160 = vsel %vm2036, %v2120, 0.0
    %2161 = vadd.xlane.f32.xlu0 %v2160
    %v2162 = vpop.xlane.xlu0 %2161
    %v2163 = vsel %vm2036, %v2122, 0.0
    %2164 = vadd.xlane.f32.xlu0 %v2163
    %v2165 = vpop.xlane.xlu0 %2164
    %v2166 = vsel %vm2036, %v2124, 0.0
    %2167 = vadd.xlane.f32.xlu0 %v2166
    %v2168 = vpop.xlane.xlu0 %2167
    %v2169 = vsel %vm2036, %v2126, 0.0
    %2170 = vadd.xlane.f32.xlu0 %v2169
    %v2171 = vpop.xlane.xlu0 %2170
    %v2172 = vsel %vm2036, %v2128, 0.0
    %2173 = vadd.xlane.f32.xlu0 %v2172
    %v2174 = vpop.xlane.xlu0 %2173
    %v2175 = vsel %vm2036, %v2130, 0.0
    %2176 = vadd.xlane.f32.xlu0 %v2175
    %v2177 = vpop.xlane.xlu0 %2176
    %v2178 = vsel %vm2036, %v2132, 0.0
    %2179 = vadd.xlane.f32.xlu0 %v2178
    %v2180 = vpop.xlane.xlu0 %2179
    %v2181 = vpack.c.bf16 %v2102, %v2102
    %v2182 = vpack.c.bf16 %v2104, %v2104
    %v2183 = vpack.c.bf16 %v2106, %v2106
    %v2184 = vpack.c.bf16 %v2108, %v2108
    %v2185 = vpack.c.bf16 %v2110, %v2110
    %v2186 = vpack.c.bf16 %v2112, %v2112
    %v2187 = vpack.c.bf16 %v2114, %v2114
    %v2188 = vpack.c.bf16 %v2116, %v2116
    %v2189 = vpack.c.bf16 %v2118, %v2118
    %v2190 = vpack.c.bf16 %v2120, %v2120
    %v2191 = vpack.c.bf16 %v2122, %v2122
    %v2192 = vpack.c.bf16 %v2124, %v2124
    %v2193 = vpack.c.bf16 %v2126, %v2126
    %v2194 = vpack.c.bf16 %v2128, %v2128
    %v2195 = vpack.c.bf16 %v2130, %v2130
    %v2196 = vpack.c.bf16 %v2132, %v2132
    %v2205 = vunpack.c.l.b16 %v2181
    %v2206 = vunpack.c.l.b16 %v2182
    %v2207 = vunpack.c.l.b16 %v2183
    %v2208 = vunpack.c.l.b16 %v2184
    %v2209 = vunpack.c.l.b16 %v2185
    %v2210 = vunpack.c.l.b16 %v2186
    %v2211 = vunpack.c.l.b16 %v2187
    %v2212 = vunpack.c.l.b16 %v2188
    %v2213 = vpack.c.b16 %v2206, %v2205
    %v2214 = vpack.c.b16 %v2208, %v2207
    %v2215 = vpack.c.b16 %v2210, %v2209
    %v2216 = vpack.c.b16 %v2212, %v2211
    %v2225 = vunpack.c.l.b16 %v1836
    %v2226 = vunpack.c.l.b16 %v1839
    %v2227 = vunpack.c.l.b16 %v1842
    %v2228 = vunpack.c.l.b16 %v1845
    %v2229 = vunpack.c.l.b16 %v1848
    %v2230 = vunpack.c.l.b16 %v1851
    %v2231 = vunpack.c.l.b16 %v1854
    %v2232 = vunpack.c.l.b16 %v1857
    %v2233 = vpack.c.b16 %v2226, %v2225
    %v2234 = vpack.c.b16 %v2228, %v2227
    %v2235 = vpack.c.b16 %v2230, %v2229
    %v2236 = vpack.c.b16 %v2232, %v2231
    %v2242 = vsel %vm2036, %v2213, 0
    %v2245 = vsel %vm2036, %v2214, 0
    %v2248 = vsel %vm2036, %v2215, 0
    %v2251 = vsel %vm2036, %v2216, 0
    %2253 = vmatpush.bf16.msra.mxu0 0
    %2254 = vmatpush.bf16.msra.mxu0 0
    %2255 = vmatpush.bf16.msra.mxu0 0
    %2256 = vmatpush.bf16.msra.mxu0 0
    %2257 = vmatpush.bf16.msra.mxu0 %v2236
    %2258 = vmatpush.bf16.msra.mxu0 %v2235
    %2259 = vmatpush.bf16.msra.mxu0 %v2234
    %2260 = vmatpush.bf16.msra.mxu0 %v2233
    %2261 = vmatmul.bf16.gmra.mxu0 %v2242
    %v2262 = vpop.f32.mrf.mxu0
    %v2263 = vadd.f32 0.0, %v2262
    %v2264 = vpop.f32.mrf.mxu0
    %v2265 = vadd.f32 0.0, %v2264
    %2266 = vmatmul.bf16.gmra.mxu0 %v2245
    %v2267 = vpop.f32.mrf.mxu0
    %v2268 = vadd.f32 0.0, %v2267
    %v2269 = vpop.f32.mrf.mxu0
    %v2270 = vadd.f32 0.0, %v2269
    %2271 = vmatmul.bf16.gmra.mxu0 %v2248
    %v2272 = vpop.f32.mrf.mxu0
    %v2273 = vadd.f32 0.0, %v2272
    %v2274 = vpop.f32.mrf.mxu0
    %v2275 = vadd.f32 0.0, %v2274
    %2276 = vmatmul.bf16.gmra.mxu0 %v2251
    %v2277 = vpop.f32.mrf.mxu0
    %v2278 = vadd.f32 0.0, %v2277
    %v2279 = vpop.f32.mrf.mxu0
    %v2280 = vadd.f32 0.0, %v2279
    %2281 = vdwg.mxu0
    %v2290 = vunpack.c.l.b16 %v2189
    %v2291 = vunpack.c.l.b16 %v2190
    %v2292 = vunpack.c.l.b16 %v2191
    %v2293 = vunpack.c.l.b16 %v2192
    %v2294 = vunpack.c.l.b16 %v2193
    %v2295 = vunpack.c.l.b16 %v2194
    %v2296 = vunpack.c.l.b16 %v2195
    %v2297 = vunpack.c.l.b16 %v2196
    %v2298 = vpack.c.b16 %v2291, %v2290
    %v2299 = vpack.c.b16 %v2293, %v2292
    %v2300 = vpack.c.b16 %v2295, %v2294
    %v2301 = vpack.c.b16 %v2297, %v2296
    %v2310 = vunpack.c.l.b16 %v1860
    %v2311 = vunpack.c.l.b16 %v1863
    %v2312 = vunpack.c.l.b16 %v1866
    %v2313 = vunpack.c.l.b16 %v1869
    %v2314 = vunpack.c.l.b16 %v1872
    %v2315 = vunpack.c.l.b16 %v1875
    %v2316 = vunpack.c.l.b16 %v1878
    %v2317 = vunpack.c.l.b16 %v1881
    %v2318 = vpack.c.b16 %v2311, %v2310
    %v2319 = vpack.c.b16 %v2313, %v2312
    %v2320 = vpack.c.b16 %v2315, %v2314
    %v2321 = vpack.c.b16 %v2317, %v2316
    %v2327 = vsel %vm2036, %v2298, 0
    %v2330 = vsel %vm2036, %v2299, 0
    %v2333 = vsel %vm2036, %v2300, 0
    %v2336 = vsel %vm2036, %v2301, 0
    %2338 = vmatpush.bf16.msra.mxu0 0
    %2339 = vmatpush.bf16.msra.mxu0 0
    %2340 = vmatpush.bf16.msra.mxu0 0
    %2341 = vmatpush.bf16.msra.mxu0 0
    %2342 = vmatpush.bf16.msra.mxu0 %v2321
    %2343 = vmatpush.bf16.msra.mxu0 %v2320
    %2344 = vmatpush.bf16.msra.mxu0 %v2319
    %2345 = vmatpush.bf16.msra.mxu0 %v2318
    %2346 = vmatmul.bf16.gmra.mxu0 %v2327
    %v2347 = vpop.f32.mrf.mxu0
    %v2348 = vadd.f32 0.0, %v2347
    %v2349 = vpop.f32.mrf.mxu0
    %v2350 = vadd.f32 0.0, %v2349
    %2351 = vmatmul.bf16.gmra.mxu0 %v2330
    %v2352 = vpop.f32.mrf.mxu0
    %v2353 = vadd.f32 0.0, %v2352
    %v2354 = vpop.f32.mrf.mxu0
    %v2355 = vadd.f32 0.0, %v2354
    %2356 = vmatmul.bf16.gmra.mxu0 %v2333
    %v2357 = vpop.f32.mrf.mxu0
    %v2358 = vadd.f32 0.0, %v2357
    %v2359 = vpop.f32.mrf.mxu0
    %v2360 = vadd.f32 0.0, %v2359
    %2361 = vmatmul.bf16.gmra.mxu0 %v2336
    %v2362 = vpop.f32.mrf.mxu0
    %v2363 = vadd.f32 0.0, %v2362
    %v2364 = vpop.f32.mrf.mxu0
    %v2365 = vadd.f32 0.0, %v2364
    %2366 = vdwg.mxu0
    %v2367 = vrcp.pop %v2135
    %v2368 = vrcp.pop %v2138
    %v2369 = vrcp.pop %v2141
    %v2370 = vrcp.pop %v2144
    %v2371 = vrcp.pop %v2147
    %v2372 = vrcp.pop %v2150
    %v2373 = vrcp.pop %v2153
    %v2374 = vrcp.pop %v2156
    %v2375 = vrcp.pop %v2159
    %v2376 = vrcp.pop %v2162
    %v2377 = vrcp.pop %v2165
    %v2378 = vrcp.pop %v2168
    %v2379 = vrcp.pop %v2171
    %v2380 = vrcp.pop %v2174
    %v2381 = vrcp.pop %v2177
    %v2382 = vrcp.pop %v2180
    %v2383 = vmul.f32 %v2263, %v2367
    %v2384 = vmul.f32 %v2265, %v2368
    %v2385 = vmul.f32 %v2268, %v2369
    %v2386 = vmul.f32 %v2270, %v2370
    %v2387 = vmul.f32 %v2273, %v2371
    %v2388 = vmul.f32 %v2275, %v2372
    %v2389 = vmul.f32 %v2278, %v2373
    %v2390 = vmul.f32 %v2280, %v2374
    %v2391 = vmul.f32 %v2348, %v2375
    %v2392 = vmul.f32 %v2350, %v2376
    %v2393 = vmul.f32 %v2353, %v2377
    %v2394 = vmul.f32 %v2355, %v2378
    %v2395 = vmul.f32 %v2358, %v2379
    %v2396 = vmul.f32 %v2360, %v2380
    %v2397 = vmul.f32 %v2363, %v2381
    %v2398 = vmul.f32 %v2365, %v2382
    %v2399 = vpack.c.bf16 %v2383, %v2383
    %v2400 = vpack.c.bf16 %v2384, %v2384
    %v2401 = vpack.c.bf16 %v2385, %v2385
    %v2402 = vpack.c.bf16 %v2386, %v2386
    %v2403 = vpack.c.bf16 %v2387, %v2387
    %v2404 = vpack.c.bf16 %v2388, %v2388
    %v2405 = vpack.c.bf16 %v2389, %v2389
    %v2406 = vpack.c.bf16 %v2390, %v2390
    %v2407 = vpack.c.bf16 %v2391, %v2391
    %v2408 = vpack.c.bf16 %v2392, %v2392
    %v2409 = vpack.c.bf16 %v2393, %v2393
    %v2410 = vpack.c.bf16 %v2394, %v2394
    %v2411 = vpack.c.bf16 %v2395, %v2395
    %v2412 = vpack.c.bf16 %v2396, %v2396
    %v2413 = vpack.c.bf16 %v2397, %v2397
    %v2414 = vpack.c.bf16 %v2398, %v2398
    %2415 = vst [vmem:[#allocation2] sm:$0xf] %v2399
    %2416 = vst [vmem:[#allocation2 + $0x8] sm:$0xf] %v2400
    %2417 = vst [vmem:[#allocation2 + $0x10] sm:$0xf] %v2401
    %2418 = vst [vmem:[#allocation2 + $0x18] sm:$0xf] %v2402
    %2419 = vst [vmem:[#allocation2 + $0x20] sm:$0xf] %v2403
    %2420 = vst [vmem:[#allocation2 + $0x28] sm:$0xf] %v2404
    %2421 = vst [vmem:[#allocation2 + $0x30] sm:$0xf] %v2405
    %2422 = vst [vmem:[#allocation2 + $0x38] sm:$0xf] %v2406
    %2423 = vst [vmem:[#allocation2 + $0x40] sm:$0xf] %v2407
    %2424 = vst [vmem:[#allocation2 + $0x48] sm:$0xf] %v2408
    %2425 = vst [vmem:[#allocation2 + $0x50] sm:$0xf] %v2409
    %2426 = vst [vmem:[#allocation2 + $0x58] sm:$0xf] %v2410
    %2427 = vst [vmem:[#allocation2 + $0x60] sm:$0xf] %v2411
    %2428 = vst [vmem:[#allocation2 + $0x68] sm:$0xf] %v2412
    %2429 = vst [vmem:[#allocation2 + $0x70] sm:$0xf] %v2413
    %2430 = vst [vmem:[#allocation2 + $0x78] sm:$0xf] %v2414
    %v2431 = vrot.slane %v1834, 4
    %v2432 = vrot.slane %v1837, 4
    %v2433 = vrot.slane %v1840, 4
    %v2434 = vrot.slane %v1843, 4
    %v2435 = vrot.slane %v1846, 4
    %v2436 = vrot.slane %v1849, 4
    %v2437 = vrot.slane %v1852, 4
    %v2438 = vrot.slane %v1855, 4
    %v2439 = vrot.slane %v1835, 4
    %v2440 = vrot.slane %v1838, 4
    %v2441 = vrot.slane %v1841, 4
    %v2442 = vrot.slane %v1844, 4
    %v2443 = vrot.slane %v1847, 4
    %v2444 = vrot.slane %v1850, 4
    %v2445 = vrot.slane %v1853, 4
    %v2446 = vrot.slane %v1856, 4
    %v2447 = vunpack.c.l.b16 %v2431
    %v2448 = vunpack.c.l.b16 %v2432
    %v2449 = vunpack.c.l.b16 %v2433
    %v2450 = vunpack.c.l.b16 %v2434
    %v2451 = vunpack.c.l.b16 %v2435
    %v2452 = vunpack.c.l.b16 %v2436
    %v2453 = vunpack.c.l.b16 %v2437
    %v2454 = vunpack.c.l.b16 %v2438
    %v2455 = vpack.c.b16 %v2448, %v2447
    %v2456 = vpack.c.b16 %v2450, %v2449
    %v2457 = vpack.c.b16 %v2452, %v2451
    %v2458 = vpack.c.b16 %v2454, %v2453
    %v2463 = vunpack.c.l.b16 %v2439
    %v2464 = vunpack.c.l.b16 %v2440
    %v2465 = vunpack.c.l.b16 %v2441
    %v2466 = vunpack.c.l.b16 %v2442
    %v2467 = vunpack.c.l.b16 %v2443
    %v2468 = vunpack.c.l.b16 %v2444
    %v2469 = vunpack.c.l.b16 %v2445
    %v2470 = vunpack.c.l.b16 %v2446
    %v2471 = vpack.c.b16 %v2464, %v2463
    %v2472 = vpack.c.b16 %v2466, %v2465
    %v2473 = vpack.c.b16 %v2468, %v2467
    %v2474 = vpack.c.b16 %v2470, %v2469
    %2479 = vmatpush.bf16.xpose.msra.mxu0 0
    %2480 = vmatpush.bf16.xpose.msra.mxu0 0
    %2481 = vmatpush.bf16.xpose.msra.mxu0 0
    %2482 = vmatpush.bf16.xpose.msra.mxu0 0
    %2483 = vmatpush.bf16.xpose.msra.mxu0 %v2474
    %2484 = vmatpush.bf16.xpose.msra.mxu0 %v2473
    %2485 = vmatpush.bf16.xpose.msra.mxu0 %v2472
    %2486 = vmatpush.bf16.xpose.msra.mxu0 %v2471
    %2487 = vmatmul.bf16.gmra.mxu0 %v2455
    %v2488 = vpop.f32.mrf.mxu0
    %v2489 = vadd.f32 0.0, %v2488
    %v2490 = vpop.f32.mrf.mxu0
    %v2491 = vadd.f32 0.0, %v2490
    %2492 = vmatmul.bf16.gmra.mxu0 %v2456
    %v2493 = vpop.f32.mrf.mxu0
    %v2494 = vadd.f32 0.0, %v2493
    %v2495 = vpop.f32.mrf.mxu0
    %v2496 = vadd.f32 0.0, %v2495
    %2497 = vmatmul.bf16.gmra.mxu0 %v2457
    %v2498 = vpop.f32.mrf.mxu0
    %v2499 = vadd.f32 0.0, %v2498
    %v2500 = vpop.f32.mrf.mxu0
    %v2501 = vadd.f32 0.0, %v2500
    %2502 = vmatmul.bf16.gmra.mxu0 %v2458
    %v2503 = vpop.f32.mrf.mxu0
    %v2504 = vadd.f32 0.0, %v2503
    %v2505 = vpop.f32.mrf.mxu0
    %v2506 = vadd.f32 0.0, %v2505
    %2507 = vdwg.mxu0
    %v2508 = vrot.slane %v1858, 4
    %v2509 = vrot.slane %v1861, 4
    %v2510 = vrot.slane %v1864, 4
    %v2511 = vrot.slane %v1867, 4
    %v2512 = vrot.slane %v1870, 4
    %v2513 = vrot.slane %v1873, 4
    %v2514 = vrot.slane %v1876, 4
    %v2515 = vrot.slane %v1879, 4
    %v2516 = vrot.slane %v1859, 4
    %v2517 = vrot.slane %v1862, 4
    %v2518 = vrot.slane %v1865, 4
    %v2519 = vrot.slane %v1868, 4
    %v2520 = vrot.slane %v1871, 4
    %v2521 = vrot.slane %v1874, 4
    %v2522 = vrot.slane %v1877, 4
    %v2523 = vrot.slane %v1880, 4
    %v2524 = vunpack.c.l.b16 %v2508
    %v2525 = vunpack.c.l.b16 %v2509
    %v2526 = vunpack.c.l.b16 %v2510
    %v2527 = vunpack.c.l.b16 %v2511
    %v2528 = vunpack.c.l.b16 %v2512
    %v2529 = vunpack.c.l.b16 %v2513
    %v2530 = vunpack.c.l.b16 %v2514
    %v2531 = vunpack.c.l.b16 %v2515
    %v2532 = vpack.c.b16 %v2525, %v2524
    %v2533 = vpack.c.b16 %v2527, %v2526
    %v2534 = vpack.c.b16 %v2529, %v2528
    %v2535 = vpack.c.b16 %v2531, %v2530
    %v2540 = vunpack.c.l.b16 %v2516
    %v2541 = vunpack.c.l.b16 %v2517
    %v2542 = vunpack.c.l.b16 %v2518
    %v2543 = vunpack.c.l.b16 %v2519
    %v2544 = vunpack.c.l.b16 %v2520
    %v2545 = vunpack.c.l.b16 %v2521
    %v2546 = vunpack.c.l.b16 %v2522
    %v2547 = vunpack.c.l.b16 %v2523
    %v2548 = vpack.c.b16 %v2541, %v2540
    %v2549 = vpack.c.b16 %v2543, %v2542
    %v2550 = vpack.c.b16 %v2545, %v2544
    %v2551 = vpack.c.b16 %v2547, %v2546
    %2556 = vmatpush.bf16.xpose.msra.mxu0 0
    %2557 = vmatpush.bf16.xpose.msra.mxu0 0
    %2558 = vmatpush.bf16.xpose.msra.mxu0 0
    %2559 = vmatpush.bf16.xpose.msra.mxu0 0
    %2560 = vmatpush.bf16.xpose.msra.mxu0 %v2551
    %2561 = vmatpush.bf16.xpose.msra.mxu0 %v2550
    %2562 = vmatpush.bf16.xpose.msra.mxu0 %v2549
    %2563 = vmatpush.bf16.xpose.msra.mxu0 %v2548
    %2564 = vmatmul.bf16.gmra.mxu0 %v2532
    %v2565 = vpop.f32.mrf.mxu0
    %v2566 = vadd.f32 0.0, %v2565
    %v2567 = vpop.f32.mrf.mxu0
    %v2568 = vadd.f32 0.0, %v2567
    %2569 = vmatmul.bf16.gmra.mxu0 %v2533
    %v2570 = vpop.f32.mrf.mxu0
    %v2571 = vadd.f32 0.0, %v2570
    %v2572 = vpop.f32.mrf.mxu0
    %v2573 = vadd.f32 0.0, %v2572
    %2574 = vmatmul.bf16.gmra.mxu0 %v2534
    %v2575 = vpop.f32.mrf.mxu0
    %v2576 = vadd.f32 0.0, %v2575
    %v2577 = vpop.f32.mrf.mxu0
    %v2578 = vadd.f32 0.0, %v2577
    %2579 = vmatmul.bf16.gmra.mxu0 %v2535
    %v2580 = vpop.f32.mrf.mxu0
    %v2581 = vadd.f32 0.0, %v2580
    %v2582 = vpop.f32.mrf.mxu0
    %v2583 = vadd.f32 0.0, %v2582
    %2584 = vdwg.mxu0
    %v2585 = vsel %vm2036, %v2489, -inf
    %2586 = vmax.xlane.f32.xlu0 %v2585
    %v2587 = vpop.xlane.xlu0 %2586
    %v2588 = vsel %vm2036, %v2491, -inf
    %2589 = vmax.xlane.f32.xlu0 %v2588
    %v2590 = vpop.xlane.xlu0 %2589
    %v2591 = vsel %vm2036, %v2494, -inf
    %2592 = vmax.xlane.f32.xlu0 %v2591
    %v2593 = vpop.xlane.xlu0 %2592
    %v2594 = vsel %vm2036, %v2496, -inf
    %2595 = vmax.xlane.f32.xlu0 %v2594
    %v2596 = vpop.xlane.xlu0 %2595
    %v2597 = vsel %vm2036, %v2499, -inf
    %2598 = vmax.xlane.f32.xlu0 %v2597
    %v2599 = vpop.xlane.xlu0 %2598
    %v2600 = vsel %vm2036, %v2501, -inf
    %2601 = vmax.xlane.f32.xlu0 %v2600
    %v2602 = vpop.xlane.xlu0 %2601
    %v2603 = vsel %vm2036, %v2504, -inf
    %2604 = vmax.xlane.f32.xlu0 %v2603
    %v2605 = vpop.xlane.xlu0 %2604
    %v2606 = vsel %vm2036, %v2506, -inf
    %2607 = vmax.xlane.f32.xlu0 %v2606
    %v2608 = vpop.xlane.xlu0 %2607
    %v2609 = vsel %vm2036, %v2566, -inf
    %2610 = vmax.xlane.f32.xlu0 %v2609
    %v2611 = vpop.xlane.xlu0 %2610
    %v2612 = vsel %vm2036, %v2568, -inf
    %2613 = vmax.xlane.f32.xlu0 %v2612
    %v2614 = vpop.xlane.xlu0 %2613
    %v2615 = vsel %vm2036, %v2571, -inf
    %2616 = vmax.xlane.f32.xlu0 %v2615
    %v2617 = vpop.xlane.xlu0 %2616
    %v2618 = vsel %vm2036, %v2573, -inf
    %2619 = vmax.xlane.f32.xlu0 %v2618
    %v2620 = vpop.xlane.xlu0 %2619
    %v2621 = vsel %vm2036, %v2576, -inf
    %2622 = vmax.xlane.f32.xlu0 %v2621
    %v2623 = vpop.xlane.xlu0 %2622
    %v2624 = vsel %vm2036, %v2578, -inf
    %2625 = vmax.xlane.f32.xlu0 %v2624
    %v2626 = vpop.xlane.xlu0 %2625
    %v2627 = vsel %vm2036, %v2581, -inf
    %2628 = vmax.xlane.f32.xlu0 %v2627
    %v2629 = vpop.xlane.xlu0 %2628
    %v2630 = vsel %vm2036, %v2583, -inf
    %2631 = vmax.xlane.f32.xlu0 %v2630
    %v2632 = vpop.xlane.xlu0 %2631
    %v2633 = vsub.f32 %v2489, %v2587
    %v2634 = vsub.f32 %v2491, %v2590
    %v2635 = vsub.f32 %v2494, %v2593
    %v2636 = vsub.f32 %v2496, %v2596
    %v2637 = vsub.f32 %v2499, %v2599
    %v2638 = vsub.f32 %v2501, %v2602
    %v2639 = vsub.f32 %v2504, %v2605
    %v2640 = vsub.f32 %v2506, %v2608
    %v2641 = vsub.f32 %v2566, %v2611
    %v2642 = vsub.f32 %v2568, %v2614
    %v2643 = vsub.f32 %v2571, %v2617
    %v2644 = vsub.f32 %v2573, %v2620
    %v2645 = vsub.f32 %v2576, %v2623
    %v2646 = vsub.f32 %v2578, %v2626
    %v2647 = vsub.f32 %v2581, %v2629
    %v2648 = vsub.f32 %v2583, %v2632
    %v2649 = vmul.f32 %v2633, 1.442695
    %v2650 = vpow.pop %v2649
    %v2651 = vmul.f32 %v2634, 1.442695
    %v2652 = vpow.pop %v2651
    %v2653 = vmul.f32 %v2635, 1.442695
    %v2654 = vpow.pop %v2653
    %v2655 = vmul.f32 %v2636, 1.442695
    %v2656 = vpow.pop %v2655
    %v2657 = vmul.f32 %v2637, 1.442695
    %v2658 = vpow.pop %v2657
    %v2659 = vmul.f32 %v2638, 1.442695
    %v2660 = vpow.pop %v2659
    %v2661 = vmul.f32 %v2639, 1.442695
    %v2662 = vpow.pop %v2661
    %v2663 = vmul.f32 %v2640, 1.442695
    %v2664 = vpow.pop %v2663
    %v2665 = vmul.f32 %v2641, 1.442695
    %v2666 = vpow.pop %v2665
    %v2667 = vmul.f32 %v2642, 1.442695
    %v2668 = vpow.pop %v2667
    %v2669 = vmul.f32 %v2643, 1.442695
    %v2670 = vpow.pop %v2669
    %v2671 = vmul.f32 %v2644, 1.442695
    %v2672 = vpow.pop %v2671
    %v2673 = vmul.f32 %v2645, 1.442695
    %v2674 = vpow.pop %v2673
    %v2675 = vmul.f32 %v2646, 1.442695
    %v2676 = vpow.pop %v2675
    %v2677 = vmul.f32 %v2647, 1.442695
    %v2678 = vpow.pop %v2677
    %v2679 = vmul.f32 %v2648, 1.442695
    %v2680 = vpow.pop %v2679
    %v2681 = vsel %vm2036, %v2650, 0.0
    %2682 = vadd.xlane.f32.xlu0 %v2681
    %v2683 = vpop.xlane.xlu0 %2682
    %v2684 = vsel %vm2036, %v2652, 0.0
    %2685 = vadd.xlane.f32.xlu0 %v2684
    %v2686 = vpop.xlane.xlu0 %2685
    %v2687 = vsel %vm2036, %v2654, 0.0
    %2688 = vadd.xlane.f32.xlu0 %v2687
    %v2689 = vpop.xlane.xlu0 %2688
    %v2690 = vsel %vm2036, %v2656, 0.0
    %2691 = vadd.xlane.f32.xlu0 %v2690
    %v2692 = vpop.xlane.xlu0 %2691
    %v2693 = vsel %vm2036, %v2658, 0.0
    %2694 = vadd.xlane.f32.xlu0 %v2693
    %v2695 = vpop.xlane.xlu0 %2694
    %v2696 = vsel %vm2036, %v2660, 0.0
    %2697 = vadd.xlane.f32.xlu0 %v2696
    %v2698 = vpop.xlane.xlu0 %2697
    %v2699 = vsel %vm2036, %v2662, 0.0
    %2700 = vadd.xlane.f32.xlu0 %v2699
    %v2701 = vpop.xlane.xlu0 %2700
    %v2702 = vsel %vm2036, %v2664, 0.0
    %2703 = vadd.xlane.f32.xlu0 %v2702
    %v2704 = vpop.xlane.xlu0 %2703
    %v2705 = vsel %vm2036, %v2666, 0.0
    %2706 = vadd.xlane.f32.xlu0 %v2705
    %v2707 = vpop.xlane.xlu0 %2706
    %v2708 = vsel %vm2036, %v2668, 0.0
    %2709 = vadd.xlane.f32.xlu0 %v2708
    %v2710 = vpop.xlane.xlu0 %2709
    %v2711 = vsel %vm2036, %v2670, 0.0
    %2712 = vadd.xlane.f32.xlu0 %v2711
    %v2713 = vpop.xlane.xlu0 %2712
    %v2714 = vsel %vm2036, %v2672, 0.0
    %2715 = vadd.xlane.f32.xlu0 %v2714
    %v2716 = vpop.xlane.xlu0 %2715
    %v2717 = vsel %vm2036, %v2674, 0.0
    %2718 = vadd.xlane.f32.xlu0 %v2717
    %v2719 = vpop.xlane.xlu0 %2718
    %v2720 = vsel %vm2036, %v2676, 0.0
    %2721 = vadd.xlane.f32.xlu0 %v2720
    %v2722 = vpop.xlane.xlu0 %2721
    %v2723 = vsel %vm2036, %v2678, 0.0
    %2724 = vadd.xlane.f32.xlu0 %v2723
    %v2725 = vpop.xlane.xlu0 %2724
    %v2726 = vsel %vm2036, %v2680, 0.0
    %2727 = vadd.xlane.f32.xlu0 %v2726
    %v2728 = vpop.xlane.xlu0 %2727
    %v2729 = vpack.c.bf16 %v2650, %v2650
    %v2730 = vpack.c.bf16 %v2652, %v2652
    %v2731 = vpack.c.bf16 %v2654, %v2654
    %v2732 = vpack.c.bf16 %v2656, %v2656
    %v2733 = vpack.c.bf16 %v2658, %v2658
    %v2734 = vpack.c.bf16 %v2660, %v2660
    %v2735 = vpack.c.bf16 %v2662, %v2662
    %v2736 = vpack.c.bf16 %v2664, %v2664
    %v2737 = vpack.c.bf16 %v2666, %v2666
    %v2738 = vpack.c.bf16 %v2668, %v2668
    %v2739 = vpack.c.bf16 %v2670, %v2670
    %v2740 = vpack.c.bf16 %v2672, %v2672
    %v2741 = vpack.c.bf16 %v2674, %v2674
    %v2742 = vpack.c.bf16 %v2676, %v2676
    %v2743 = vpack.c.bf16 %v2678, %v2678
    %v2744 = vpack.c.bf16 %v2680, %v2680
    %v2745 = vrot.slane %v1836, 4
    %v2746 = vrot.slane %v1839, 4
    %v2747 = vrot.slane %v1842, 4
    %v2748 = vrot.slane %v1845, 4
    %v2749 = vrot.slane %v1848, 4
    %v2750 = vrot.slane %v1851, 4
    %v2751 = vrot.slane %v1854, 4
    %v2752 = vrot.slane %v1857, 4
    %v2761 = vunpack.c.l.b16 %v2729
    %v2762 = vunpack.c.l.b16 %v2730
    %v2763 = vunpack.c.l.b16 %v2731
    %v2764 = vunpack.c.l.b16 %v2732
    %v2765 = vunpack.c.l.b16 %v2733
    %v2766 = vunpack.c.l.b16 %v2734
    %v2767 = vunpack.c.l.b16 %v2735
    %v2768 = vunpack.c.l.b16 %v2736
    %v2769 = vpack.c.b16 %v2762, %v2761
    %v2770 = vpack.c.b16 %v2764, %v2763
    %v2771 = vpack.c.b16 %v2766, %v2765
    %v2772 = vpack.c.b16 %v2768, %v2767
    %v2773 = vunpack.c.l.b16 %v2745
    %v2774 = vunpack.c.l.b16 %v2746
    %v2775 = vunpack.c.l.b16 %v2747
    %v2776 = vunpack.c.l.b16 %v2748
    %v2777 = vunpack.c.l.b16 %v2749
    %v2778 = vunpack.c.l.b16 %v2750
    %v2779 = vunpack.c.l.b16 %v2751
    %v2780 = vunpack.c.l.b16 %v2752
    %v2781 = vpack.c.b16 %v2774, %v2773
    %v2782 = vpack.c.b16 %v2776, %v2775
    %v2783 = vpack.c.b16 %v2778, %v2777
    %v2784 = vpack.c.b16 %v2780, %v2779
    %v2790 = vsel %vm2036, %v2769, 0
    %v2793 = vsel %vm2036, %v2770, 0
    %v2796 = vsel %vm2036, %v2771, 0
    %v2799 = vsel %vm2036, %v2772, 0
    %2801 = vmatpush.bf16.msra.mxu0 0
    %2802 = vmatpush.bf16.msra.mxu0 0
    %2803 = vmatpush.bf16.msra.mxu0 0
    %2804 = vmatpush.bf16.msra.mxu0 0
    %2805 = vmatpush.bf16.msra.mxu0 %v2784
    %2806 = vmatpush.bf16.msra.mxu0 %v2783
    %2807 = vmatpush.bf16.msra.mxu0 %v2782
    %2808 = vmatpush.bf16.msra.mxu0 %v2781
    %2809 = vmatmul.bf16.gmra.mxu0 %v2790
    %v2810 = vpop.f32.mrf.mxu0
    %v2811 = vadd.f32 0.0, %v2810
    %v2812 = vpop.f32.mrf.mxu0
    %v2813 = vadd.f32 0.0, %v2812
    %2814 = vmatmul.bf16.gmra.mxu0 %v2793
    %v2815 = vpop.f32.mrf.mxu0
    %v2816 = vadd.f32 0.0, %v2815
    %v2817 = vpop.f32.mrf.mxu0
    %v2818 = vadd.f32 0.0, %v2817
    %2819 = vmatmul.bf16.gmra.mxu0 %v2796
    %v2820 = vpop.f32.mrf.mxu0
    %v2821 = vadd.f32 0.0, %v2820
    %v2822 = vpop.f32.mrf.mxu0
    %v2823 = vadd.f32 0.0, %v2822
    %2824 = vmatmul.bf16.gmra.mxu0 %v2799
    %v2825 = vpop.f32.mrf.mxu0
    %v2826 = vadd.f32 0.0, %v2825
    %v2827 = vpop.f32.mrf.mxu0
    %v2828 = vadd.f32 0.0, %v2827
    %2829 = vdwg.mxu0
    %v2830 = vrot.slane %v1860, 4
    %v2831 = vrot.slane %v1863, 4
    %v2832 = vrot.slane %v1866, 4
    %v2833 = vrot.slane %v1869, 4
    %v2834 = vrot.slane %v1872, 4
    %v2835 = vrot.slane %v1875, 4
    %v2836 = vrot.slane %v1878, 4
    %v2837 = vrot.slane %v1881, 4
    %v2846 = vunpack.c.l.b16 %v2737
    %v2847 = vunpack.c.l.b16 %v2738
    %v2848 = vunpack.c.l.b16 %v2739
    %v2849 = vunpack.c.l.b16 %v2740
    %v2850 = vunpack.c.l.b16 %v2741
    %v2851 = vunpack.c.l.b16 %v2742
    %v2852 = vunpack.c.l.b16 %v2743
    %v2853 = vunpack.c.l.b16 %v2744
    %v2854 = vpack.c.b16 %v2847, %v2846
    %v2855 = vpack.c.b16 %v2849, %v2848
    %v2856 = vpack.c.b16 %v2851, %v2850
    %v2857 = vpack.c.b16 %v2853, %v2852
    %v2858 = vunpack.c.l.b16 %v2830
    %v2859 = vunpack.c.l.b16 %v2831
    %v2860 = vunpack.c.l.b16 %v2832
    %v2861 = vunpack.c.l.b16 %v2833
    %v2862 = vunpack.c.l.b16 %v2834
    %v2863 = vunpack.c.l.b16 %v2835
    %v2864 = vunpack.c.l.b16 %v2836
    %v2865 = vunpack.c.l.b16 %v2837
    %v2866 = vpack.c.b16 %v2859, %v2858
    %v2867 = vpack.c.b16 %v2861, %v2860
    %v2868 = vpack.c.b16 %v2863, %v2862
    %v2869 = vpack.c.b16 %v2865, %v2864
    %v2875 = vsel %vm2036, %v2854, 0
    %v2878 = vsel %vm2036, %v2855, 0
    %v2881 = vsel %vm2036, %v2856, 0
    %v2884 = vsel %vm2036, %v2857, 0
    %2886 = vmatpush.bf16.msra.mxu0 0
    %2887 = vmatpush.bf16.msra.mxu0 0
    %2888 = vmatpush.bf16.msra.mxu0 0
    %2889 = vmatpush.bf16.msra.mxu0 0
    %2890 = vmatpush.bf16.msra.mxu0 %v2869
    %2891 = vmatpush.bf16.msra.mxu0 %v2868
    %2892 = vmatpush.bf16.msra.mxu0 %v2867
    %2893 = vmatpush.bf16.msra.mxu0 %v2866
    %2894 = vmatmul.bf16.gmra.mxu0 %v2875
    %v2895 = vpop.f32.mrf.mxu0
    %v2896 = vadd.f32 0.0, %v2895
    %v2897 = vpop.f32.mrf.mxu0
    %v2898 = vadd.f32 0.0, %v2897
    %2899 = vmatmul.bf16.gmra.mxu0 %v2878
    %v2900 = vpop.f32.mrf.mxu0
    %v2901 = vadd.f32 0.0, %v2900
    %v2902 = vpop.f32.mrf.mxu0
    %v2903 = vadd.f32 0.0, %v2902
    %2904 = vmatmul.bf16.gmra.mxu0 %v2881
    %v2905 = vpop.f32.mrf.mxu0
    %v2906 = vadd.f32 0.0, %v2905
    %v2907 = vpop.f32.mrf.mxu0
    %v2908 = vadd.f32 0.0, %v2907
    %2909 = vmatmul.bf16.gmra.mxu0 %v2884
    %v2910 = vpop.f32.mrf.mxu0
    %v2911 = vadd.f32 0.0, %v2910
    %v2912 = vpop.f32.mrf.mxu0
    %v2913 = vadd.f32 0.0, %v2912
    %2914 = vdwg.mxu0
    %v2915 = vrcp.pop %v2683
    %v2916 = vrcp.pop %v2686
    %v2917 = vrcp.pop %v2689
    %v2918 = vrcp.pop %v2692
    %v2919 = vrcp.pop %v2695
    %v2920 = vrcp.pop %v2698
    %v2921 = vrcp.pop %v2701
    %v2922 = vrcp.pop %v2704
    %v2923 = vrcp.pop %v2707
    %v2924 = vrcp.pop %v2710
    %v2925 = vrcp.pop %v2713
    %v2926 = vrcp.pop %v2716
    %v2927 = vrcp.pop %v2719
    %v2928 = vrcp.pop %v2722
    %v2929 = vrcp.pop %v2725
    %v2930 = vrcp.pop %v2728
    %v2931 = vmul.f32 %v2811, %v2915
    %v2932 = vmul.f32 %v2813, %v2916
    %v2933 = vmul.f32 %v2816, %v2917
    %v2934 = vmul.f32 %v2818, %v2918
    %v2935 = vmul.f32 %v2821, %v2919
    %v2936 = vmul.f32 %v2823, %v2920
    %v2937 = vmul.f32 %v2826, %v2921
    %v2938 = vmul.f32 %v2828, %v2922
    %v2939 = vmul.f32 %v2896, %v2923
    %v2940 = vmul.f32 %v2898, %v2924
    %v2941 = vmul.f32 %v2901, %v2925
    %v2942 = vmul.f32 %v2903, %v2926
    %v2943 = vmul.f32 %v2906, %v2927
    %v2944 = vmul.f32 %v2908, %v2928
    %v2945 = vmul.f32 %v2911, %v2929
    %v2946 = vmul.f32 %v2913, %v2930
    %v2947 = vpack.c.bf16 %v2931, %v2931
    %v2948 = vpack.c.bf16 %v2932, %v2932
    %v2949 = vpack.c.bf16 %v2933, %v2933
    %v2950 = vpack.c.bf16 %v2934, %v2934
    %v2951 = vpack.c.bf16 %v2935, %v2935
    %v2952 = vpack.c.bf16 %v2936, %v2936
    %v2953 = vpack.c.bf16 %v2937, %v2937
    %v2954 = vpack.c.bf16 %v2938, %v2938
    %v2955 = vpack.c.bf16 %v2939, %v2939
    %v2956 = vpack.c.bf16 %v2940, %v2940
    %v2957 = vpack.c.bf16 %v2941, %v2941
    %v2958 = vpack.c.bf16 %v2942, %v2942
    %v2959 = vpack.c.bf16 %v2943, %v2943
    %v2960 = vpack.c.bf16 %v2944, %v2944
    %v2961 = vpack.c.bf16 %v2945, %v2945
    %v2962 = vpack.c.bf16 %v2946, %v2946
    %2963 = vst [vmem:[#allocation2 + $0x4] sm:$0xf] %v2947
    %2964 = vst [vmem:[#allocation2 + $0xc] sm:$0xf] %v2948
    %2965 = vst [vmem:[#allocation2 + $0x14] sm:$0xf] %v2949
    %2966 = vst [vmem:[#allocation2 + $0x1c] sm:$0xf] %v2950
    %2967 = vst [vmem:[#allocation2 + $0x24] sm:$0xf] %v2951
    %2968 = vst [vmem:[#allocation2 + $0x2c] sm:$0xf] %v2952
    %2969 = vst [vmem:[#allocation2 + $0x34] sm:$0xf] %v2953
    %2970 = vst [vmem:[#allocation2 + $0x3c] sm:$0xf] %v2954
    %2971 = vst [vmem:[#allocation2 + $0x44] sm:$0xf] %v2955
    %2972 = vst [vmem:[#allocation2 + $0x4c] sm:$0xf] %v2956
    %2973 = vst [vmem:[#allocation2 + $0x54] sm:$0xf] %v2957
    %2974 = vst [vmem:[#allocation2 + $0x5c] sm:$0xf] %v2958
    %2975 = vst [vmem:[#allocation2 + $0x64] sm:$0xf] %v2959
    %2976 = vst [vmem:[#allocation2 + $0x6c] sm:$0xf] %v2960
    %2977 = vst [vmem:[#allocation2 + $0x74] sm:$0xf] %v2961
    %2978 = vst [vmem:[#allocation2 + $0x7c] sm:$0xf] %v2962
    %v2979 = vld [vmem:[#allocation2] sm:$0xff]
    %v2980 = vld [vmem:[#allocation2 + $0x8] sm:$0xff]
    %v2981 = vld [vmem:[#allocation2 + $0x10] sm:$0xff]
    %v2982 = vld [vmem:[#allocation2 + $0x18] sm:$0xff]
    %v2983 = vld [vmem:[#allocation2 + $0x20] sm:$0xff]
    %v2984 = vld [vmem:[#allocation2 + $0x28] sm:$0xff]
    %v2985 = vld [vmem:[#allocation2 + $0x30] sm:$0xff]
    %v2986 = vld [vmem:[#allocation2 + $0x38] sm:$0xff]
    %v2987 = vld [vmem:[#allocation2 + $0x40] sm:$0xff]
    %v2988 = vld [vmem:[#allocation2 + $0x48] sm:$0xff]
    %v2989 = vld [vmem:[#allocation2 + $0x50] sm:$0xff]
    %v2990 = vld [vmem:[#allocation2 + $0x58] sm:$0xff]
    %v2991 = vld [vmem:[#allocation2 + $0x60] sm:$0xff]
    %v2992 = vld [vmem:[#allocation2 + $0x68] sm:$0xff]
    %v2993 = vld [vmem:[#allocation2 + $0x70] sm:$0xff]
    %v2994 = vld [vmem:[#allocation2 + $0x78] sm:$0xff]
    %v2995 = vld [vmem:[#allocation11] sm:$0xff]
    %v2996 = vld [vmem:[#allocation11 + $0x8] sm:$0xff]
    %v2997 = vld [vmem:[#allocation11 + $0x10] sm:$0xff]
    %v2998 = vld [vmem:[#allocation11 + $0x18] sm:$0xff]
    %v2999 = vld [vmem:[#allocation11 + $0x20] sm:$0xff]
    %v3000 = vld [vmem:[#allocation11 + $0x28] sm:$0xff]
    %v3001 = vld [vmem:[#allocation11 + $0x30] sm:$0xff]
    %v3002 = vld [vmem:[#allocation11 + $0x38] sm:$0xff]
    %v3003 = vld [vmem:[#allocation11 + $0x40] sm:$0xff]
    %v3004 = vld [vmem:[#allocation11 + $0x48] sm:$0xff]
    %v3005 = vld [vmem:[#allocation11 + $0x50] sm:$0xff]
    %v3006 = vld [vmem:[#allocation11 + $0x58] sm:$0xff]
    %v3007 = vld [vmem:[#allocation11 + $0x60] sm:$0xff]
    %v3008 = vld [vmem:[#allocation11 + $0x68] sm:$0xff]
    %v3009 = vld [vmem:[#allocation11 + $0x70] sm:$0xff]
    %v3010 = vld [vmem:[#allocation11 + $0x78] sm:$0xff]
    %v3011 = vld [vmem:[#allocation11 + $0x80] sm:$0xff]
    %v3012 = vld [vmem:[#allocation11 + $0x88] sm:$0xff]
    %v3013 = vld [vmem:[#allocation11 + $0x90] sm:$0xff]
    %v3014 = vld [vmem:[#allocation11 + $0x98] sm:$0xff]
    %v3015 = vld [vmem:[#allocation11 + $0xa0] sm:$0xff]
    %v3016 = vld [vmem:[#allocation11 + $0xa8] sm:$0xff]
    %v3017 = vld [vmem:[#allocation11 + $0xb0] sm:$0xff]
    %v3018 = vld [vmem:[#allocation11 + $0xb8] sm:$0xff]
    %v3019 = vld [vmem:[#allocation11 + $0xc0] sm:$0xff]
    %v3020 = vld [vmem:[#allocation11 + $0xc8] sm:$0xff]
    %v3021 = vld [vmem:[#allocation11 + $0xd0] sm:$0xff]
    %v3022 = vld [vmem:[#allocation11 + $0xd8] sm:$0xff]
    %v3023 = vld [vmem:[#allocation11 + $0xe0] sm:$0xff]
    %v3024 = vld [vmem:[#allocation11 + $0xe8] sm:$0xff]
    %v3025 = vld [vmem:[#allocation11 + $0xf0] sm:$0xff]
    %v3026 = vld [vmem:[#allocation11 + $0xf8] sm:$0xff]
    %v3043 = vunpack.c.l.b16 %v2979
    %v3044 = vunpack.c.h.b16 %v2979
    %v3045 = vunpack.c.l.b16 %v2980
    %v3046 = vunpack.c.h.b16 %v2980
    %v3047 = vunpack.c.l.b16 %v2981
    %v3048 = vunpack.c.h.b16 %v2981
    %v3049 = vunpack.c.l.b16 %v2982
    %v3050 = vunpack.c.h.b16 %v2982
    %v3051 = vunpack.c.l.b16 %v2983
    %v3052 = vunpack.c.h.b16 %v2983
    %v3053 = vunpack.c.l.b16 %v2984
    %v3054 = vunpack.c.h.b16 %v2984
    %v3055 = vunpack.c.l.b16 %v2985
    %v3056 = vunpack.c.h.b16 %v2985
    %v3057 = vunpack.c.l.b16 %v2986
    %v3058 = vunpack.c.h.b16 %v2986
    %v3059 = vunpack.c.l.b16 %v2987
    %v3060 = vunpack.c.h.b16 %v2987
    %v3061 = vunpack.c.l.b16 %v2988
    %v3062 = vunpack.c.h.b16 %v2988
    %v3063 = vunpack.c.l.b16 %v2989
    %v3064 = vunpack.c.h.b16 %v2989
    %v3065 = vunpack.c.l.b16 %v2990
    %v3066 = vunpack.c.h.b16 %v2990
    %v3067 = vunpack.c.l.b16 %v2991
    %v3068 = vunpack.c.h.b16 %v2991
    %v3069 = vunpack.c.l.b16 %v2992
    %v3070 = vunpack.c.h.b16 %v2992
    %v3071 = vunpack.c.l.b16 %v2993
    %v3072 = vunpack.c.h.b16 %v2993
    %v3073 = vunpack.c.l.b16 %v2994
    %v3074 = vunpack.c.h.b16 %v2994
    %v3075 = vpack.c.b16 %v3045, %v3043
    %v3076 = vpack.c.b16 %v3046, %v3044
    %v3077 = vpack.c.b16 %v3049, %v3047
    %v3078 = vpack.c.b16 %v3050, %v3048
    %v3079 = vpack.c.b16 %v3053, %v3051
    %v3080 = vpack.c.b16 %v3054, %v3052
    %v3081 = vpack.c.b16 %v3057, %v3055
    %v3082 = vpack.c.b16 %v3058, %v3056
    %v3083 = vpack.c.b16 %v3061, %v3059
    %v3084 = vpack.c.b16 %v3062, %v3060
    %v3085 = vpack.c.b16 %v3065, %v3063
    %v3086 = vpack.c.b16 %v3066, %v3064
    %v3087 = vpack.c.b16 %v3069, %v3067
    %v3088 = vpack.c.b16 %v3070, %v3068
    %v3089 = vpack.c.b16 %v3073, %v3071
    %v3090 = vpack.c.b16 %v3074, %v3072
    %v3139 = vunpack.c.l.b16 %v2995
    %v3140 = vunpack.c.h.b16 %v2995
    %v3141 = vunpack.c.l.b16 %v2996
    %v3142 = vunpack.c.h.b16 %v2996
    %v3143 = vunpack.c.l.b16 %v2997
    %v3144 = vunpack.c.h.b16 %v2997
    %v3145 = vunpack.c.l.b16 %v2998
    %v3146 = vunpack.c.h.b16 %v2998
    %v3147 = vunpack.c.l.b16 %v2999
    %v3148 = vunpack.c.h.b16 %v2999
    %v3149 = vunpack.c.l.b16 %v3000
    %v3150 = vunpack.c.h.b16 %v3000
    %v3151 = vunpack.c.l.b16 %v3001
    %v3152 = vunpack.c.h.b16 %v3001
    %v3153 = vunpack.c.l.b16 %v3002
    %v3154 = vunpack.c.h.b16 %v3002
    %v3155 = vunpack.c.l.b16 %v3003
    %v3156 = vunpack.c.h.b16 %v3003
    %v3157 = vunpack.c.l.b16 %v3004
    %v3158 = vunpack.c.h.b16 %v3004
    %v3159 = vunpack.c.l.b16 %v3005
    %v3160 = vunpack.c.h.b16 %v3005
    %v3161 = vunpack.c.l.b16 %v3006
    %v3162 = vunpack.c.h.b16 %v3006
    %v3163 = vunpack.c.l.b16 %v3007
    %v3164 = vunpack.c.h.b16 %v3007
    %v3165 = vunpack.c.l.b16 %v3008
    %v3166 = vunpack.c.h.b16 %v3008
    %v3167 = vunpack.c.l.b16 %v3009
    %v3168 = vunpack.c.h.b16 %v3009
    %v3169 = vunpack.c.l.b16 %v3010
    %v3170 = vunpack.c.h.b16 %v3010
    %v3171 = vunpack.c.l.b16 %v3011
    %v3172 = vunpack.c.h.b16 %v3011
    %v3173 = vunpack.c.l.b16 %v3012
    %v3174 = vunpack.c.h.b16 %v3012
    %v3175 = vunpack.c.l.b16 %v3013
    %v3176 = vunpack.c.h.b16 %v3013
    %v3177 = vunpack.c.l.b16 %v3014
    %v3178 = vunpack.c.h.b16 %v3014
    %v3179 = vunpack.c.l.b16 %v3015
    %v3180 = vunpack.c.h.b16 %v3015
    %v3181 = vunpack.c.l.b16 %v3016
    %v3182 = vunpack.c.h.b16 %v3016
    %v3183 = vunpack.c.l.b16 %v3017
    %v3184 = vunpack.c.h.b16 %v3017
    %v3185 = vunpack.c.l.b16 %v3018
    %v3186 = vunpack.c.h.b16 %v3018
    %v3187 = vunpack.c.l.b16 %v3019
    %v3188 = vunpack.c.h.b16 %v3019
    %v3189 = vunpack.c.l.b16 %v3020
    %v3190 = vunpack.c.h.b16 %v3020
    %v3191 = vunpack.c.l.b16 %v3021
    %v3192 = vunpack.c.h.b16 %v3021
    %v3193 = vunpack.c.l.b16 %v3022
    %v3194 = vunpack.c.h.b16 %v3022
    %v3195 = vunpack.c.l.b16 %v3023
    %v3196 = vunpack.c.h.b16 %v3023
    %v3197 = vunpack.c.l.b16 %v3024
    %v3198 = vunpack.c.h.b16 %v3024
    %v3199 = vunpack.c.l.b16 %v3025
    %v3200 = vunpack.c.h.b16 %v3025
    %v3201 = vunpack.c.l.b16 %v3026
    %v3202 = vunpack.c.h.b16 %v3026
    %v3203 = vpack.c.b16 %v3141, %v3139
    %v3204 = vpack.c.b16 %v3142, %v3140
    %v3205 = vpack.c.b16 %v3145, %v3143
    %v3206 = vpack.c.b16 %v3146, %v3144
    %v3207 = vpack.c.b16 %v3149, %v3147
    %v3208 = vpack.c.b16 %v3150, %v3148
    %v3209 = vpack.c.b16 %v3153, %v3151
    %v3210 = vpack.c.b16 %v3154, %v3152
    %v3211 = vpack.c.b16 %v3157, %v3155
    %v3212 = vpack.c.b16 %v3158, %v3156
    %v3213 = vpack.c.b16 %v3161, %v3159
    %v3214 = vpack.c.b16 %v3162, %v3160
    %v3215 = vpack.c.b16 %v3165, %v3163
    %v3216 = vpack.c.b16 %v3166, %v3164
    %v3217 = vpack.c.b16 %v3169, %v3167
    %v3218 = vpack.c.b16 %v3170, %v3168
    %v3219 = vpack.c.b16 %v3173, %v3171
    %v3220 = vpack.c.b16 %v3174, %v3172
    %v3221 = vpack.c.b16 %v3177, %v3175
    %v3222 = vpack.c.b16 %v3178, %v3176
    %v3223 = vpack.c.b16 %v3181, %v3179
    %v3224 = vpack.c.b16 %v3182, %v3180
    %v3225 = vpack.c.b16 %v3185, %v3183
    %v3226 = vpack.c.b16 %v3186, %v3184
    %v3227 = vpack.c.b16 %v3189, %v3187
    %v3228 = vpack.c.b16 %v3190, %v3188
    %v3229 = vpack.c.b16 %v3193, %v3191
    %v3230 = vpack.c.b16 %v3194, %v3192
    %v3231 = vpack.c.b16 %v3197, %v3195
    %v3232 = vpack.c.b16 %v3198, %v3196
    %v3233 = vpack.c.b16 %v3201, %v3199
    %v3234 = vpack.c.b16 %v3202, %v3200
    %3267 = vmatpush.bf16.msra.mxu0 %v3217
    %3268 = vmatpush.bf16.msra.mxu0 %v3215
    %3269 = vmatpush.bf16.msra.mxu0 %v3213
    %3270 = vmatpush.bf16.msra.mxu0 %v3211
    %3271 = vmatpush.bf16.msra.mxu0 %v3209
    %3272 = vmatpush.bf16.msra.mxu0 %v3207
    %3273 = vmatpush.bf16.msra.mxu0 %v3205
    %3274 = vmatpush.bf16.msra.mxu0 %v3203
    %3275 = vmatmul.bf16.gmra.mxu0 %v3075
    %v3276 = vpop.f32.mrf.mxu0
    %v3277 = vadd.f32 0.0, %v3276
    %v3278 = vpop.f32.mrf.mxu0
    %v3279 = vadd.f32 0.0, %v3278
    %3280 = vmatmul.bf16.gmra.mxu0 %v3077
    %v3281 = vpop.f32.mrf.mxu0
    %v3282 = vadd.f32 0.0, %v3281
    %v3283 = vpop.f32.mrf.mxu0
    %v3284 = vadd.f32 0.0, %v3283
    %3285 = vmatmul.bf16.gmra.mxu0 %v3079
    %v3286 = vpop.f32.mrf.mxu0
    %v3287 = vadd.f32 0.0, %v3286
    %v3288 = vpop.f32.mrf.mxu0
    %v3289 = vadd.f32 0.0, %v3288
    %3290 = vmatmul.bf16.gmra.mxu0 %v3081
    %v3291 = vpop.f32.mrf.mxu0
    %v3292 = vadd.f32 0.0, %v3291
    %v3293 = vpop.f32.mrf.mxu0
    %v3294 = vadd.f32 0.0, %v3293
    %3295 = vmatmul.bf16.gmra.mxu0 %v3083
    %v3296 = vpop.f32.mrf.mxu0
    %v3297 = vadd.f32 0.0, %v3296
    %v3298 = vpop.f32.mrf.mxu0
    %v3299 = vadd.f32 0.0, %v3298
    %3300 = vmatmul.bf16.gmra.mxu0 %v3085
    %v3301 = vpop.f32.mrf.mxu0
    %v3302 = vadd.f32 0.0, %v3301
    %v3303 = vpop.f32.mrf.mxu0
    %v3304 = vadd.f32 0.0, %v3303
    %3305 = vmatmul.bf16.gmra.mxu0 %v3087
    %v3306 = vpop.f32.mrf.mxu0
    %v3307 = vadd.f32 0.0, %v3306
    %v3308 = vpop.f32.mrf.mxu0
    %v3309 = vadd.f32 0.0, %v3308
    %3310 = vmatmul.bf16.gmra.mxu0 %v3089
    %v3311 = vpop.f32.mrf.mxu0
    %v3312 = vadd.f32 0.0, %v3311
    %v3313 = vpop.f32.mrf.mxu0
    %v3314 = vadd.f32 0.0, %v3313
    %3315 = vdwg.mxu0
    %3316 = vmatpush.bf16.msra.mxu0 %v3233
    %3317 = vmatpush.bf16.msra.mxu0 %v3231
    %3318 = vmatpush.bf16.msra.mxu0 %v3229
    %3319 = vmatpush.bf16.msra.mxu0 %v3227
    %3320 = vmatpush.bf16.msra.mxu0 %v3225
    %3321 = vmatpush.bf16.msra.mxu0 %v3223
    %3322 = vmatpush.bf16.msra.mxu0 %v3221
    %3323 = vmatpush.bf16.msra.mxu0 %v3219
    %3324 = vmatmul.bf16.gmra.mxu0 %v3076
    %v3325 = vpop.f32.mrf.mxu0
    %v3326 = vadd.f32 %v3277, %v3325
    %v3327 = vpop.f32.mrf.mxu0
    %v3328 = vadd.f32 %v3279, %v3327
    %3329 = vmatmul.bf16.gmra.mxu0 %v3078
    %v3330 = vpop.f32.mrf.mxu0
    %v3331 = vadd.f32 %v3282, %v3330
    %v3332 = vpop.f32.mrf.mxu0
    %v3333 = vadd.f32 %v3284, %v3332
    %3334 = vmatmul.bf16.gmra.mxu0 %v3080
    %v3335 = vpop.f32.mrf.mxu0
    %v3336 = vadd.f32 %v3287, %v3335
    %v3337 = vpop.f32.mrf.mxu0
    %v3338 = vadd.f32 %v3289, %v3337
    %3339 = vmatmul.bf16.gmra.mxu0 %v3082
    %v3340 = vpop.f32.mrf.mxu0
    %v3341 = vadd.f32 %v3292, %v3340
    %v3342 = vpop.f32.mrf.mxu0
    %v3343 = vadd.f32 %v3294, %v3342
    %3344 = vmatmul.bf16.gmra.mxu0 %v3084
    %v3345 = vpop.f32.mrf.mxu0
    %v3346 = vadd.f32 %v3297, %v3345
    %v3347 = vpop.f32.mrf.mxu0
    %v3348 = vadd.f32 %v3299, %v3347
    %3349 = vmatmul.bf16.gmra.mxu0 %v3086
    %v3350 = vpop.f32.mrf.mxu0
    %v3351 = vadd.f32 %v3302, %v3350
    %v3352 = vpop.f32.mrf.mxu0
    %v3353 = vadd.f32 %v3304, %v3352
    %3354 = vmatmul.bf16.gmra.mxu0 %v3088
    %v3355 = vpop.f32.mrf.mxu0
    %v3356 = vadd.f32 %v3307, %v3355
    %v3357 = vpop.f32.mrf.mxu0
    %v3358 = vadd.f32 %v3309, %v3357
    %3359 = vmatmul.bf16.gmra.mxu0 %v3090
    %v3360 = vpop.f32.mrf.mxu0
    %v3361 = vadd.f32 %v3312, %v3360
    %v3362 = vpop.f32.mrf.mxu0
    %v3363 = vadd.f32 %v3314, %v3362
    %3364 = vdwg.mxu0
    %3365 = vmatpush.bf16.msra.mxu0 %v3218
    %3366 = vmatpush.bf16.msra.mxu0 %v3216
    %3367 = vmatpush.bf16.msra.mxu0 %v3214
    %3368 = vmatpush.bf16.msra.mxu0 %v3212
    %3369 = vmatpush.bf16.msra.mxu0 %v3210
    %3370 = vmatpush.bf16.msra.mxu0 %v3208
    %3371 = vmatpush.bf16.msra.mxu0 %v3206
    %3372 = vmatpush.bf16.msra.mxu0 %v3204
    %3373 = vmatmul.bf16.gmra.mxu0 %v3075
    %v3374 = vpop.f32.mrf.mxu0
    %v3375 = vadd.f32 0.0, %v3374
    %v3376 = vpop.f32.mrf.mxu0
    %v3377 = vadd.f32 0.0, %v3376
    %3378 = vmatmul.bf16.gmra.mxu0 %v3077
    %v3379 = vpop.f32.mrf.mxu0
    %v3380 = vadd.f32 0.0, %v3379
    %v3381 = vpop.f32.mrf.mxu0
    %v3382 = vadd.f32 0.0, %v3381
    %3383 = vmatmul.bf16.gmra.mxu0 %v3079
    %v3384 = vpop.f32.mrf.mxu0
    %v3385 = vadd.f32 0.0, %v3384
    %v3386 = vpop.f32.mrf.mxu0
    %v3387 = vadd.f32 0.0, %v3386
    %3388 = vmatmul.bf16.gmra.mxu0 %v3081
    %v3389 = vpop.f32.mrf.mxu0
    %v3390 = vadd.f32 0.0, %v3389
    %v3391 = vpop.f32.mrf.mxu0
    %v3392 = vadd.f32 0.0, %v3391
    %3393 = vmatmul.bf16.gmra.mxu0 %v3083
    %v3394 = vpop.f32.mrf.mxu0
    %v3395 = vadd.f32 0.0, %v3394
    %v3396 = vpop.f32.mrf.mxu0
    %v3397 = vadd.f32 0.0, %v3396
    %3398 = vmatmul.bf16.gmra.mxu0 %v3085
    %v3399 = vpop.f32.mrf.mxu0
    %v3400 = vadd.f32 0.0, %v3399
    %v3401 = vpop.f32.mrf.mxu0
    %v3402 = vadd.f32 0.0, %v3401
    %3403 = vmatmul.bf16.gmra.mxu0 %v3087
    %v3404 = vpop.f32.mrf.mxu0
    %v3405 = vadd.f32 0.0, %v3404
    %v3406 = vpop.f32.mrf.mxu0
    %v3407 = vadd.f32 0.0, %v3406
    %3408 = vmatmul.bf16.gmra.mxu0 %v3089
    %v3409 = vpop.f32.mrf.mxu0
    %v3410 = vadd.f32 0.0, %v3409
    %v3411 = vpop.f32.mrf.mxu0
    %v3412 = vadd.f32 0.0, %v3411
    %3413 = vdwg.mxu0
    %3414 = vmatpush.bf16.msra.mxu0 %v3234
    %3415 = vmatpush.bf16.msra.mxu0 %v3232
    %3416 = vmatpush.bf16.msra.mxu0 %v3230
    %3417 = vmatpush.bf16.msra.mxu0 %v3228
    %3418 = vmatpush.bf16.msra.mxu0 %v3226
    %3419 = vmatpush.bf16.msra.mxu0 %v3224
    %3420 = vmatpush.bf16.msra.mxu0 %v3222
    %3421 = vmatpush.bf16.msra.mxu0 %v3220
    %3422 = vmatmul.bf16.gmra.mxu0 %v3076
    %v3423 = vpop.f32.mrf.mxu0
    %v3424 = vadd.f32 %v3375, %v3423
    %v3425 = vpop.f32.mrf.mxu0
    %v3426 = vadd.f32 %v3377, %v3425
    %3427 = vmatmul.bf16.gmra.mxu0 %v3078
    %v3428 = vpop.f32.mrf.mxu0
    %v3429 = vadd.f32 %v3380, %v3428
    %v3430 = vpop.f32.mrf.mxu0
    %v3431 = vadd.f32 %v3382, %v3430
    %3432 = vmatmul.bf16.gmra.mxu0 %v3080
    %v3433 = vpop.f32.mrf.mxu0
    %v3434 = vadd.f32 %v3385, %v3433
    %v3435 = vpop.f32.mrf.mxu0
    %v3436 = vadd.f32 %v3387, %v3435
    %3437 = vmatmul.bf16.gmra.mxu0 %v3082
    %v3438 = vpop.f32.mrf.mxu0
    %v3439 = vadd.f32 %v3390, %v3438
    %v3440 = vpop.f32.mrf.mxu0
    %v3441 = vadd.f32 %v3392, %v3440
    %3442 = vmatmul.bf16.gmra.mxu0 %v3084
    %v3443 = vpop.f32.mrf.mxu0
    %v3444 = vadd.f32 %v3395, %v3443
    %v3445 = vpop.f32.mrf.mxu0
    %v3446 = vadd.f32 %v3397, %v3445
    %3447 = vmatmul.bf16.gmra.mxu0 %v3086
    %v3448 = vpop.f32.mrf.mxu0
    %v3449 = vadd.f32 %v3400, %v3448
    %v3450 = vpop.f32.mrf.mxu0
    %v3451 = vadd.f32 %v3402, %v3450
    %3452 = vmatmul.bf16.gmra.mxu0 %v3088
    %v3453 = vpop.f32.mrf.mxu0
    %v3454 = vadd.f32 %v3405, %v3453
    %v3455 = vpop.f32.mrf.mxu0
    %v3456 = vadd.f32 %v3407, %v3455
    %3457 = vmatmul.bf16.gmra.mxu0 %v3090
    %v3458 = vpop.f32.mrf.mxu0
    %v3459 = vadd.f32 %v3410, %v3458
    %v3460 = vpop.f32.mrf.mxu0
    %v3461 = vadd.f32 %v3412, %v3460
    %3462 = vdwg.mxu0
    %v3463 = vadd.f32 %v139, %v3326
    %v3464 = vadd.f32 %v140, %v3424
    %v3465 = vadd.f32 %v141, %v3328
    %v3466 = vadd.f32 %v142, %v3426
    %v3467 = vadd.f32 %v143, %v3331
    %v3468 = vadd.f32 %v144, %v3429
    %v3469 = vadd.f32 %v145, %v3333
    %v3470 = vadd.f32 %v146, %v3431
    %v3471 = vadd.f32 %v147, %v3336
    %v3472 = vadd.f32 %v148, %v3434
    %v3473 = vadd.f32 %v149, %v3338
    %v3474 = vadd.f32 %v150, %v3436
    %v3475 = vadd.f32 %v151, %v3341
    %v3476 = vadd.f32 %v152, %v3439
    %v3477 = vadd.f32 %v153, %v3343
    %v3478 = vadd.f32 %v154, %v3441
    %v3479 = vadd.f32 %v155, %v3346
    %v3480 = vadd.f32 %v156, %v3444
    %v3481 = vadd.f32 %v157, %v3348
    %v3482 = vadd.f32 %v158, %v3446
    %v3483 = vadd.f32 %v159, %v3351
    %v3484 = vadd.f32 %v160, %v3449
    %v3485 = vadd.f32 %v161, %v3353
    %v3486 = vadd.f32 %v162, %v3451
    %v3487 = vadd.f32 %v163, %v3356
    %v3488 = vadd.f32 %v164, %v3454
    %v3489 = vadd.f32 %v165, %v3358
    %v3490 = vadd.f32 %v166, %v3456
    %v3491 = vadd.f32 %v167, %v3361
    %v3492 = vadd.f32 %v168, %v3459
    %v3493 = vadd.f32 %v169, %v3363
    %v3494 = vadd.f32 %v170, %v3461
    %v3495 = vld [vmem:[%s5] sm:$0x3]
    %v3496 = vld [vmem:[%s6] sm:$0x3]
    %v3497 = vadd.f32 %v3463, %v3464
    %3498 = vadd.xlane.f32.xlu0 %v3497
    %v3499 = vpop.xlane.xlu0 %3498
    %v3500 = vadd.f32 %v3465, %v3466
    %3501 = vadd.xlane.f32.xlu0 %v3500
    %v3502 = vpop.xlane.xlu0 %3501
    %v3503 = vadd.f32 %v3467, %v3468
    %3504 = vadd.xlane.f32.xlu0 %v3503
    %v3505 = vpop.xlane.xlu0 %3504
    %v3506 = vadd.f32 %v3469, %v3470
    %3507 = vadd.xlane.f32.xlu0 %v3506
    %v3508 = vpop.xlane.xlu0 %3507
    %v3509 = vadd.f32 %v3471, %v3472
    %3510 = vadd.xlane.f32.xlu0 %v3509
    %v3511 = vpop.xlane.xlu0 %3510
    %v3512 = vadd.f32 %v3473, %v3474
    %3513 = vadd.xlane.f32.xlu0 %v3512
    %v3514 = vpop.xlane.xlu0 %3513
    %v3515 = vadd.f32 %v3475, %v3476
    %3516 = vadd.xlane.f32.xlu0 %v3515
    %v3517 = vpop.xlane.xlu0 %3516
    %v3518 = vadd.f32 %v3477, %v3478
    %3519 = vadd.xlane.f32.xlu0 %v3518
    %v3520 = vpop.xlane.xlu0 %3519
    %v3521 = vadd.f32 %v3479, %v3480
    %3522 = vadd.xlane.f32.xlu0 %v3521
    %v3523 = vpop.xlane.xlu0 %3522
    %v3524 = vadd.f32 %v3481, %v3482
    %3525 = vadd.xlane.f32.xlu0 %v3524
    %v3526 = vpop.xlane.xlu0 %3525
    %v3527 = vadd.f32 %v3483, %v3484
    %3528 = vadd.xlane.f32.xlu0 %v3527
    %v3529 = vpop.xlane.xlu0 %3528
    %v3530 = vadd.f32 %v3485, %v3486
    %3531 = vadd.xlane.f32.xlu0 %v3530
    %v3532 = vpop.xlane.xlu0 %3531
    %v3533 = vadd.f32 %v3487, %v3488
    %3534 = vadd.xlane.f32.xlu0 %v3533
    %v3535 = vpop.xlane.xlu0 %3534
    %v3536 = vadd.f32 %v3489, %v3490
    %3537 = vadd.xlane.f32.xlu0 %v3536
    %v3538 = vpop.xlane.xlu0 %3537
    %v3539 = vadd.f32 %v3491, %v3492
    %3540 = vadd.xlane.f32.xlu0 %v3539
    %v3541 = vpop.xlane.xlu0 %3540
    %v3542 = vadd.f32 %v3493, %v3494
    %3543 = vadd.xlane.f32.xlu0 %v3542
    %v3544 = vpop.xlane.xlu0 %3543
    %v3545 = vmul.f32 %v3499, %v227
    %v3546 = vmul.f32 %v3502, %v227
    %v3547 = vmul.f32 %v3505, %v227
    %v3548 = vmul.f32 %v3508, %v227
    %v3549 = vmul.f32 %v3511, %v227
    %v3550 = vmul.f32 %v3514, %v227
    %v3551 = vmul.f32 %v3517, %v227
    %v3552 = vmul.f32 %v3520, %v227
    %v3553 = vmul.f32 %v3523, %v227
    %v3554 = vmul.f32 %v3526, %v227
    %v3555 = vmul.f32 %v3529, %v227
    %v3556 = vmul.f32 %v3532, %v227
    %v3557 = vmul.f32 %v3535, %v227
    %v3558 = vmul.f32 %v3538, %v227
    %v3559 = vmul.f32 %v3541, %v227
    %v3560 = vmul.f32 %v3544, %v227
    %v3561 = vsub.f32 %v3463, %v3545
    %v3562 = vsub.f32 %v3464, %v3545
    %v3563 = vsub.f32 %v3465, %v3546
    %v3564 = vsub.f32 %v3466, %v3546
    %v3565 = vsub.f32 %v3467, %v3547
    %v3566 = vsub.f32 %v3468, %v3547
    %v3567 = vsub.f32 %v3469, %v3548
    %v3568 = vsub.f32 %v3470, %v3548
    %v3569 = vsub.f32 %v3471, %v3549
    %v3570 = vsub.f32 %v3472, %v3549
    %v3571 = vsub.f32 %v3473, %v3550
    %v3572 = vsub.f32 %v3474, %v3550
    %v3573 = vsub.f32 %v3475, %v3551
    %v3574 = vsub.f32 %v3476, %v3551
    %v3575 = vsub.f32 %v3477, %v3552
    %v3576 = vsub.f32 %v3478, %v3552
    %v3577 = vsub.f32 %v3479, %v3553
    %v3578 = vsub.f32 %v3480, %v3553
    %v3579 = vsub.f32 %v3481, %v3554
    %v3580 = vsub.f32 %v3482, %v3554
    %v3581 = vsub.f32 %v3483, %v3555
    %v3582 = vsub.f32 %v3484, %v3555
    %v3583 = vsub.f32 %v3485, %v3556
    %v3584 = vsub.f32 %v3486, %v3556
    %v3585 = vsub.f32 %v3487, %v3557
    %v3586 = vsub.f32 %v3488, %v3557
    %v3587 = vsub.f32 %v3489, %v3558
    %v3588 = vsub.f32 %v3490, %v3558
    %v3589 = vsub.f32 %v3491, %v3559
    %v3590 = vsub.f32 %v3492, %v3559
    %v3591 = vsub.f32 %v3493, %v3560
    %v3592 = vsub.f32 %v3494, %v3560
    %v3593 = vmul.f32 %v3561, %v3561
    %v3594 = vmul.f32 %v3562, %v3562
    %v3595 = vmul.f32 %v3563, %v3563
    %v3596 = vmul.f32 %v3564, %v3564
    %v3597 = vmul.f32 %v3565, %v3565
    %v3598 = vmul.f32 %v3566, %v3566
    %v3599 = vmul.f32 %v3567, %v3567
    %v3600 = vmul.f32 %v3568, %v3568
    %v3601 = vmul.f32 %v3569, %v3569
    %v3602 = vmul.f32 %v3570, %v3570
    %v3603 = vmul.f32 %v3571, %v3571
    %v3604 = vmul.f32 %v3572, %v3572
    %v3605 = vmul.f32 %v3573, %v3573
    %v3606 = vmul.f32 %v3574, %v3574
    %v3607 = vmul.f32 %v3575, %v3575
    %v3608 = vmul.f32 %v3576, %v3576
    %v3609 = vmul.f32 %v3577, %v3577
    %v3610 = vmul.f32 %v3578, %v3578
    %v3611 = vmul.f32 %v3579, %v3579
    %v3612 = vmul.f32 %v3580, %v3580
    %v3613 = vmul.f32 %v3581, %v3581
    %v3614 = vmul.f32 %v3582, %v3582
    %v3615 = vmul.f32 %v3583, %v3583
    %v3616 = vmul.f32 %v3584, %v3584
    %v3617 = vmul.f32 %v3585, %v3585
    %v3618 = vmul.f32 %v3586, %v3586
    %v3619 = vmul.f32 %v3587, %v3587
    %v3620 = vmul.f32 %v3588, %v3588
    %v3621 = vmul.f32 %v3589, %v3589
    %v3622 = vmul.f32 %v3590, %v3590
    %v3623 = vmul.f32 %v3591, %v3591
    %v3624 = vmul.f32 %v3592, %v3592
    %v3625 = vadd.f32 %v3593, %v3594
    %3626 = vadd.xlane.f32.xlu0 %v3625
    %v3627 = vpop.xlane.xlu0 %3626
    %v3628 = vadd.f32 %v3595, %v3596
    %3629 = vadd.xlane.f32.xlu0 %v3628
    %v3630 = vpop.xlane.xlu0 %3629
    %v3631 = vadd.f32 %v3597, %v3598
    %3632 = vadd.xlane.f32.xlu0 %v3631
    %v3633 = vpop.xlane.xlu0 %3632
    %v3634 = vadd.f32 %v3599, %v3600
    %3635 = vadd.xlane.f32.xlu0 %v3634
    %v3636 = vpop.xlane.xlu0 %3635
    %v3637 = vadd.f32 %v3601, %v3602
    %3638 = vadd.xlane.f32.xlu0 %v3637
    %v3639 = vpop.xlane.xlu0 %3638
    %v3640 = vadd.f32 %v3603, %v3604
    %3641 = vadd.xlane.f32.xlu0 %v3640
    %v3642 = vpop.xlane.xlu0 %3641
    %v3643 = vadd.f32 %v3605, %v3606
    %3644 = vadd.xlane.f32.xlu0 %v3643
    %v3645 = vpop.xlane.xlu0 %3644
    %v3646 = vadd.f32 %v3607, %v3608
    %3647 = vadd.xlane.f32.xlu0 %v3646
    %v3648 = vpop.xlane.xlu0 %3647
    %v3649 = vadd.f32 %v3609, %v3610
    %3650 = vadd.xlane.f32.xlu0 %v3649
    %v3651 = vpop.xlane.xlu0 %3650
    %v3652 = vadd.f32 %v3611, %v3612
    %3653 = vadd.xlane.f32.xlu0 %v3652
    %v3654 = vpop.xlane.xlu0 %3653
    %v3655 = vadd.f32 %v3613, %v3614
    %3656 = vadd.xlane.f32.xlu0 %v3655
    %v3657 = vpop.xlane.xlu0 %3656
    %v3658 = vadd.f32 %v3615, %v3616
    %3659 = vadd.xlane.f32.xlu0 %v3658
    %v3660 = vpop.xlane.xlu0 %3659
    %v3661 = vadd.f32 %v3617, %v3618
    %3662 = vadd.xlane.f32.xlu0 %v3661
    %v3663 = vpop.xlane.xlu0 %3662
    %v3664 = vadd.f32 %v3619, %v3620
    %3665 = vadd.xlane.f32.xlu0 %v3664
    %v3666 = vpop.xlane.xlu0 %3665
    %v3667 = vadd.f32 %v3621, %v3622
    %3668 = vadd.xlane.f32.xlu0 %v3667
    %v3669 = vpop.xlane.xlu0 %3668
    %v3670 = vadd.f32 %v3623, %v3624
    %3671 = vadd.xlane.f32.xlu0 %v3670
    %v3672 = vpop.xlane.xlu0 %3671
    %v3673 = vmul.f32 %v3627, %v227
    %v3674 = vmul.f32 %v3630, %v227
    %v3675 = vmul.f32 %v3633, %v227
    %v3676 = vmul.f32 %v3636, %v227
    %v3677 = vmul.f32 %v3639, %v227
    %v3678 = vmul.f32 %v3642, %v227
    %v3679 = vmul.f32 %v3645, %v227
    %v3680 = vmul.f32 %v3648, %v227
    %v3681 = vmul.f32 %v3651, %v227
    %v3682 = vmul.f32 %v3654, %v227
    %v3683 = vmul.f32 %v3657, %v227
    %v3684 = vmul.f32 %v3660, %v227
    %v3685 = vmul.f32 %v3663, %v227
    %v3686 = vmul.f32 %v3666, %v227
    %v3687 = vmul.f32 %v3669, %v227
    %v3688 = vmul.f32 %v3672, %v227
    %v3689 = vadd.f32 %v3673, 1e-05
    %v3690 = vadd.f32 %v3674, 1e-05
    %v3691 = vadd.f32 %v3675, 1e-05
    %v3692 = vadd.f32 %v3676, 1e-05
    %v3693 = vadd.f32 %v3677, 1e-05
    %v3694 = vadd.f32 %v3678, 1e-05
    %v3695 = vadd.f32 %v3679, 1e-05
    %v3696 = vadd.f32 %v3680, 1e-05
    %v3697 = vadd.f32 %v3681, 1e-05
    %v3698 = vadd.f32 %v3682, 1e-05
    %v3699 = vadd.f32 %v3683, 1e-05
    %v3700 = vadd.f32 %v3684, 1e-05
    %v3701 = vadd.f32 %v3685, 1e-05
    %v3702 = vadd.f32 %v3686, 1e-05
    %v3703 = vadd.f32 %v3687, 1e-05
    %v3704 = vadd.f32 %v3688, 1e-05
    %v3705 = vrsqrt.pop %v3689
    %v3706 = vmul.f32 %v3705, %v3689
    %v3707 = vmul.f32 %v3706, %v3705
    %v3708 = vmul.f32 0.5, %v3707
    %v3709 = vsub.f32 1.5, %v3708
    %v3710 = vmul.f32 %v3705, %v3709
    %vm3711 = vweird.f32 %v3689
    %vm3712 = vweird.f32 %v3705
    %vm3713 = vmor %vm3711, %vm3712
    %v3714 = vsel %vm3713, %v3705, %v3710
    %v3715 = vrsqrt.pop %v3690
    %v3716 = vmul.f32 %v3715, %v3690
    %v3717 = vmul.f32 %v3716, %v3715
    %v3718 = vmul.f32 0.5, %v3717
    %v3719 = vsub.f32 1.5, %v3718
    %v3720 = vmul.f32 %v3715, %v3719
    %vm3721 = vweird.f32 %v3690
    %vm3722 = vweird.f32 %v3715
    %vm3723 = vmor %vm3721, %vm3722
    %v3724 = vsel %vm3723, %v3715, %v3720
    %v3725 = vrsqrt.pop %v3691
    %v3726 = vmul.f32 %v3725, %v3691
    %v3727 = vmul.f32 %v3726, %v3725
    %v3728 = vmul.f32 0.5, %v3727
    %v3729 = vsub.f32 1.5, %v3728
    %v3730 = vmul.f32 %v3725, %v3729
    %vm3731 = vweird.f32 %v3691
    %vm3732 = vweird.f32 %v3725
    %vm3733 = vmor %vm3731, %vm3732
    %v3734 = vsel %vm3733, %v3725, %v3730
    %v3735 = vrsqrt.pop %v3692
    %v3736 = vmul.f32 %v3735, %v3692
    %v3737 = vmul.f32 %v3736, %v3735
    %v3738 = vmul.f32 0.5, %v3737
    %v3739 = vsub.f32 1.5, %v3738
    %v3740 = vmul.f32 %v3735, %v3739
    %vm3741 = vweird.f32 %v3692
    %vm3742 = vweird.f32 %v3735
    %vm3743 = vmor %vm3741, %vm3742
    %v3744 = vsel %vm3743, %v3735, %v3740
    %v3745 = vrsqrt.pop %v3693
    %v3746 = vmul.f32 %v3745, %v3693
    %v3747 = vmul.f32 %v3746, %v3745
    %v3748 = vmul.f32 0.5, %v3747
    %v3749 = vsub.f32 1.5, %v3748
    %v3750 = vmul.f32 %v3745, %v3749
    %vm3751 = vweird.f32 %v3693
    %vm3752 = vweird.f32 %v3745
    %vm3753 = vmor %vm3751, %vm3752
    %v3754 = vsel %vm3753, %v3745, %v3750
    %v3755 = vrsqrt.pop %v3694
    %v3756 = vmul.f32 %v3755, %v3694
    %v3757 = vmul.f32 %v3756, %v3755
    %v3758 = vmul.f32 0.5, %v3757
    %v3759 = vsub.f32 1.5, %v3758
    %v3760 = vmul.f32 %v3755, %v3759
    %vm3761 = vweird.f32 %v3694
    %vm3762 = vweird.f32 %v3755
    %vm3763 = vmor %vm3761, %vm3762
    %v3764 = vsel %vm3763, %v3755, %v3760
    %v3765 = vrsqrt.pop %v3695
    %v3766 = vmul.f32 %v3765, %v3695
    %v3767 = vmul.f32 %v3766, %v3765
    %v3768 = vmul.f32 0.5, %v3767
    %v3769 = vsub.f32 1.5, %v3768
    %v3770 = vmul.f32 %v3765, %v3769
    %vm3771 = vweird.f32 %v3695
    %vm3772 = vweird.f32 %v3765
    %vm3773 = vmor %vm3771, %vm3772
    %v3774 = vsel %vm3773, %v3765, %v3770
    %v3775 = vrsqrt.pop %v3696
    %v3776 = vmul.f32 %v3775, %v3696
    %v3777 = vmul.f32 %v3776, %v3775
    %v3778 = vmul.f32 0.5, %v3777
    %v3779 = vsub.f32 1.5, %v3778
    %v3780 = vmul.f32 %v3775, %v3779
    %vm3781 = vweird.f32 %v3696
    %vm3782 = vweird.f32 %v3775
    %vm3783 = vmor %vm3781, %vm3782
    %v3784 = vsel %vm3783, %v3775, %v3780
    %v3785 = vrsqrt.pop %v3697
    %v3786 = vmul.f32 %v3785, %v3697
    %v3787 = vmul.f32 %v3786, %v3785
    %v3788 = vmul.f32 0.5, %v3787
    %v3789 = vsub.f32 1.5, %v3788
    %v3790 = vmul.f32 %v3785, %v3789
    %vm3791 = vweird.f32 %v3697
    %vm3792 = vweird.f32 %v3785
    %vm3793 = vmor %vm3791, %vm3792
    %v3794 = vsel %vm3793, %v3785, %v3790
    %v3795 = vrsqrt.pop %v3698
    %v3796 = vmul.f32 %v3795, %v3698
    %v3797 = vmul.f32 %v3796, %v3795
    %v3798 = vmul.f32 0.5, %v3797
    %v3799 = vsub.f32 1.5, %v3798
    %v3800 = vmul.f32 %v3795, %v3799
    %vm3801 = vweird.f32 %v3698
    %vm3802 = vweird.f32 %v3795
    %vm3803 = vmor %vm3801, %vm3802
    %v3804 = vsel %vm3803, %v3795, %v3800
    %v3805 = vrsqrt.pop %v3699
    %v3806 = vmul.f32 %v3805, %v3699
    %v3807 = vmul.f32 %v3806, %v3805
    %v3808 = vmul.f32 0.5, %v3807
    %v3809 = vsub.f32 1.5, %v3808
    %v3810 = vmul.f32 %v3805, %v3809
    %vm3811 = vweird.f32 %v3699
    %vm3812 = vweird.f32 %v3805
    %vm3813 = vmor %vm3811, %vm3812
    %v3814 = vsel %vm3813, %v3805, %v3810
    %v3815 = vrsqrt.pop %v3700
    %v3816 = vmul.f32 %v3815, %v3700
    %v3817 = vmul.f32 %v3816, %v3815
    %v3818 = vmul.f32 0.5, %v3817
    %v3819 = vsub.f32 1.5, %v3818
    %v3820 = vmul.f32 %v3815, %v3819
    %vm3821 = vweird.f32 %v3700
    %vm3822 = vweird.f32 %v3815
    %vm3823 = vmor %vm3821, %vm3822
    %v3824 = vsel %vm3823, %v3815, %v3820
    %v3825 = vrsqrt.pop %v3701
    %v3826 = vmul.f32 %v3825, %v3701
    %v3827 = vmul.f32 %v3826, %v3825
    %v3828 = vmul.f32 0.5, %v3827
    %v3829 = vsub.f32 1.5, %v3828
    %v3830 = vmul.f32 %v3825, %v3829
    %vm3831 = vweird.f32 %v3701
    %vm3832 = vweird.f32 %v3825
    %vm3833 = vmor %vm3831, %vm3832
    %v3834 = vsel %vm3833, %v3825, %v3830
    %v3835 = vrsqrt.pop %v3702
    %v3836 = vmul.f32 %v3835, %v3702
    %v3837 = vmul.f32 %v3836, %v3835
    %v3838 = vmul.f32 0.5, %v3837
    %v3839 = vsub.f32 1.5, %v3838
    %v3840 = vmul.f32 %v3835, %v3839
    %vm3841 = vweird.f32 %v3702
    %vm3842 = vweird.f32 %v3835
    %vm3843 = vmor %vm3841, %vm3842
    %v3844 = vsel %vm3843, %v3835, %v3840
    %v3845 = vrsqrt.pop %v3703
    %v3846 = vmul.f32 %v3845, %v3703
    %v3847 = vmul.f32 %v3846, %v3845
    %v3848 = vmul.f32 0.5, %v3847
    %v3849 = vsub.f32 1.5, %v3848
    %v3850 = vmul.f32 %v3845, %v3849
    %vm3851 = vweird.f32 %v3703
    %vm3852 = vweird.f32 %v3845
    %vm3853 = vmor %vm3851, %vm3852
    %v3854 = vsel %vm3853, %v3845, %v3850
    %v3855 = vrsqrt.pop %v3704
    %v3856 = vmul.f32 %v3855, %v3704
    %v3857 = vmul.f32 %v3856, %v3855
    %v3858 = vmul.f32 0.5, %v3857
    %v3859 = vsub.f32 1.5, %v3858
    %v3860 = vmul.f32 %v3855, %v3859
    %vm3861 = vweird.f32 %v3704
    %vm3862 = vweird.f32 %v3855
    %vm3863 = vmor %vm3861, %vm3862
    %v3864 = vsel %vm3863, %v3855, %v3860
    %v3865 = vmul.f32 %v3561, %v3714
    %v3866 = vmul.f32 %v3562, %v3714
    %v3867 = vmul.f32 %v3563, %v3724
    %v3868 = vmul.f32 %v3564, %v3724
    %v3869 = vmul.f32 %v3565, %v3734
    %v3870 = vmul.f32 %v3566, %v3734
    %v3871 = vmul.f32 %v3567, %v3744
    %v3872 = vmul.f32 %v3568, %v3744
    %v3873 = vmul.f32 %v3569, %v3754
    %v3874 = vmul.f32 %v3570, %v3754
    %v3875 = vmul.f32 %v3571, %v3764
    %v3876 = vmul.f32 %v3572, %v3764
    %v3877 = vmul.f32 %v3573, %v3774
    %v3878 = vmul.f32 %v3574, %v3774
    %v3879 = vmul.f32 %v3575, %v3784
    %v3880 = vmul.f32 %v3576, %v3784
    %v3881 = vmul.f32 %v3577, %v3794
    %v3882 = vmul.f32 %v3578, %v3794
    %v3883 = vmul.f32 %v3579, %v3804
    %v3884 = vmul.f32 %v3580, %v3804
    %v3885 = vmul.f32 %v3581, %v3814
    %v3886 = vmul.f32 %v3582, %v3814
    %v3887 = vmul.f32 %v3583, %v3824
    %v3888 = vmul.f32 %v3584, %v3824
    %v3889 = vmul.f32 %v3585, %v3834
    %v3890 = vmul.f32 %v3586, %v3834
    %v3891 = vmul.f32 %v3587, %v3844
    %v3892 = vmul.f32 %v3588, %v3844
    %v3893 = vmul.f32 %v3589, %v3854
    %v3894 = vmul.f32 %v3590, %v3854
    %v3895 = vmul.f32 %v3591, %v3864
    %v3896 = vmul.f32 %v3592, %v3864
    %v3898 = vperm.slane %v3495, 0
    %v3899 = vperm.slane %v3495, 1
    %v3902 = vmul.f32 %v3865, %v3898
    %v3903 = vmul.f32 %v3866, %v3899
    %v3904 = vmul.f32 %v3867, %v3898
    %v3905 = vmul.f32 %v3868, %v3899
    %v3906 = vmul.f32 %v3869, %v3898
    %v3907 = vmul.f32 %v3870, %v3899
    %v3908 = vmul.f32 %v3871, %v3898
    %v3909 = vmul.f32 %v3872, %v3899
    %v3910 = vmul.f32 %v3873, %v3898
    %v3911 = vmul.f32 %v3874, %v3899
    %v3912 = vmul.f32 %v3875, %v3898
    %v3913 = vmul.f32 %v3876, %v3899
    %v3914 = vmul.f32 %v3877, %v3898
    %v3915 = vmul.f32 %v3878, %v3899
    %v3916 = vmul.f32 %v3879, %v3898
    %v3917 = vmul.f32 %v3880, %v3899
    %v3918 = vmul.f32 %v3881, %v3898
    %v3919 = vmul.f32 %v3882, %v3899
    %v3920 = vmul.f32 %v3883, %v3898
    %v3921 = vmul.f32 %v3884, %v3899
    %v3922 = vmul.f32 %v3885, %v3898
    %v3923 = vmul.f32 %v3886, %v3899
    %v3924 = vmul.f32 %v3887, %v3898
    %v3925 = vmul.f32 %v3888, %v3899
    %v3926 = vmul.f32 %v3889, %v3898
    %v3927 = vmul.f32 %v3890, %v3899
    %v3928 = vmul.f32 %v3891, %v3898
    %v3929 = vmul.f32 %v3892, %v3899
    %v3930 = vmul.f32 %v3893, %v3898
    %v3931 = vmul.f32 %v3894, %v3899
    %v3932 = vmul.f32 %v3895, %v3898
    %v3933 = vmul.f32 %v3896, %v3899
    %v3935 = vperm.slane %v3496, 0
    %v3936 = vperm.slane %v3496, 1
    %v3939 = vadd.f32 %v3902, %v3935
    %v3940 = vadd.f32 %v3903, %v3936
    %v3941 = vadd.f32 %v3904, %v3935
    %v3942 = vadd.f32 %v3905, %v3936
    %v3943 = vadd.f32 %v3906, %v3935
    %v3944 = vadd.f32 %v3907, %v3936
    %v3945 = vadd.f32 %v3908, %v3935
    %v3946 = vadd.f32 %v3909, %v3936
    %v3947 = vadd.f32 %v3910, %v3935
    %v3948 = vadd.f32 %v3911, %v3936
    %v3949 = vadd.f32 %v3912, %v3935
    %v3950 = vadd.f32 %v3913, %v3936
    %v3951 = vadd.f32 %v3914, %v3935
    %v3952 = vadd.f32 %v3915, %v3936
    %v3953 = vadd.f32 %v3916, %v3935
    %v3954 = vadd.f32 %v3917, %v3936
    %v3955 = vadd.f32 %v3918, %v3935
    %v3956 = vadd.f32 %v3919, %v3936
    %v3957 = vadd.f32 %v3920, %v3935
    %v3958 = vadd.f32 %v3921, %v3936
    %v3959 = vadd.f32 %v3922, %v3935
    %v3960 = vadd.f32 %v3923, %v3936
    %v3961 = vadd.f32 %v3924, %v3935
    %v3962 = vadd.f32 %v3925, %v3936
    %v3963 = vadd.f32 %v3926, %v3935
    %v3964 = vadd.f32 %v3927, %v3936
    %v3965 = vadd.f32 %v3928, %v3935
    %v3966 = vadd.f32 %v3929, %v3936
    %v3967 = vadd.f32 %v3930, %v3935
    %v3968 = vadd.f32 %v3931, %v3936
    %v3969 = vadd.f32 %v3932, %v3935
    %v3970 = vadd.f32 %v3933, %v3936
    %v3971 = vpack.c.bf16 %v3941, %v3939
    %v3972 = vpack.c.bf16 %v3942, %v3940
    %v3973 = vpack.c.bf16 %v3945, %v3943
    %v3974 = vpack.c.bf16 %v3946, %v3944
    %v3975 = vpack.c.bf16 %v3949, %v3947
    %v3976 = vpack.c.bf16 %v3950, %v3948
    %v3977 = vpack.c.bf16 %v3953, %v3951
    %v3978 = vpack.c.bf16 %v3954, %v3952
    %v3979 = vpack.c.bf16 %v3957, %v3955
    %v3980 = vpack.c.bf16 %v3958, %v3956
    %v3981 = vpack.c.bf16 %v3961, %v3959
    %v3982 = vpack.c.bf16 %v3962, %v3960
    %v3983 = vpack.c.bf16 %v3965, %v3963
    %v3984 = vpack.c.bf16 %v3966, %v3964
    %v3985 = vpack.c.bf16 %v3969, %v3967
    %v3986 = vpack.c.bf16 %v3970, %v3968
    %v3987 = vld [vmem:[#allocation12] sm:$0xff]
    %v3988 = vld [vmem:[#allocation12 + $0x8] sm:$0xff]
    %v3989 = vld [vmem:[#allocation12 + $0x10] sm:$0xff]
    %v3990 = vld [vmem:[#allocation12 + $0x18] sm:$0xff]
    %v3991 = vld [vmem:[#allocation12 + $0x20] sm:$0xff]
    %v3992 = vld [vmem:[#allocation12 + $0x28] sm:$0xff]
    %v3993 = vld [vmem:[#allocation12 + $0x30] sm:$0xff]
    %v3994 = vld [vmem:[#allocation12 + $0x38] sm:$0xff]
    %v3995 = vld [vmem:[#allocation12 + $0x40] sm:$0xff]
    %v3996 = vld [vmem:[#allocation12 + $0x48] sm:$0xff]
    %v3997 = vld [vmem:[#allocation12 + $0x50] sm:$0xff]
    %v3998 = vld [vmem:[#allocation12 + $0x58] sm:$0xff]
    %v3999 = vld [vmem:[#allocation12 + $0x60] sm:$0xff]
    %v4000 = vld [vmem:[#allocation12 + $0x68] sm:$0xff]
    %v4001 = vld [vmem:[#allocation12 + $0x70] sm:$0xff]
    %v4002 = vld [vmem:[#allocation12 + $0x78] sm:$0xff]
    %v4003 = vld [vmem:[#allocation12 + $0x80] sm:$0xff]
    %v4004 = vld [vmem:[#allocation12 + $0x88] sm:$0xff]
    %v4005 = vld [vmem:[#allocation12 + $0x90] sm:$0xff]
    %v4006 = vld [vmem:[#allocation12 + $0x98] sm:$0xff]
    %v4007 = vld [vmem:[#allocation12 + $0xa0] sm:$0xff]
    %v4008 = vld [vmem:[#allocation12 + $0xa8] sm:$0xff]
    %v4009 = vld [vmem:[#allocation12 + $0xb0] sm:$0xff]
    %v4010 = vld [vmem:[#allocation12 + $0xb8] sm:$0xff]
    %v4011 = vld [vmem:[#allocation12 + $0xc0] sm:$0xff]
    %v4012 = vld [vmem:[#allocation12 + $0xc8] sm:$0xff]
    %v4013 = vld [vmem:[#allocation12 + $0xd0] sm:$0xff]
    %v4014 = vld [vmem:[#allocation12 + $0xd8] sm:$0xff]
    %v4015 = vld [vmem:[#allocation12 + $0xe0] sm:$0xff]
    %v4016 = vld [vmem:[#allocation12 + $0xe8] sm:$0xff]
    %v4017 = vld [vmem:[#allocation12 + $0xf0] sm:$0xff]
    %v4018 = vld [vmem:[#allocation12 + $0xf8] sm:$0xff]
    %v4019 = vld [vmem:[#allocation12 + $0x100] sm:$0xff]
    %v4020 = vld [vmem:[#allocation12 + $0x108] sm:$0xff]
    %v4021 = vld [vmem:[#allocation12 + $0x110] sm:$0xff]
    %v4022 = vld [vmem:[#allocation12 + $0x118] sm:$0xff]
    %v4023 = vld [vmem:[#allocation12 + $0x120] sm:$0xff]
    %v4024 = vld [vmem:[#allocation12 + $0x128] sm:$0xff]
    %v4025 = vld [vmem:[#allocation12 + $0x130] sm:$0xff]
    %v4026 = vld [vmem:[#allocation12 + $0x138] sm:$0xff]
    %v4027 = vld [vmem:[#allocation12 + $0x140] sm:$0xff]
    %v4028 = vld [vmem:[#allocation12 + $0x148] sm:$0xff]
    %v4029 = vld [vmem:[#allocation12 + $0x150] sm:$0xff]
    %v4030 = vld [vmem:[#allocation12 + $0x158] sm:$0xff]
    %v4031 = vld [vmem:[#allocation12 + $0x160] sm:$0xff]
    %v4032 = vld [vmem:[#allocation12 + $0x168] sm:$0xff]
    %v4033 = vld [vmem:[#allocation12 + $0x170] sm:$0xff]
    %v4034 = vld [vmem:[#allocation12 + $0x178] sm:$0xff]
    %v4035 = vld [vmem:[#allocation12 + $0x180] sm:$0xff]
    %v4036 = vld [vmem:[#allocation12 + $0x188] sm:$0xff]
    %v4037 = vld [vmem:[#allocation12 + $0x190] sm:$0xff]
    %v4038 = vld [vmem:[#allocation12 + $0x198] sm:$0xff]
    %v4039 = vld [vmem:[#allocation12 + $0x1a0] sm:$0xff]
    %v4040 = vld [vmem:[#allocation12 + $0x1a8] sm:$0xff]
    %v4041 = vld [vmem:[#allocation12 + $0x1b0] sm:$0xff]
    %v4042 = vld [vmem:[#allocation12 + $0x1b8] sm:$0xff]
    %v4043 = vld [vmem:[#allocation12 + $0x1c0] sm:$0xff]
    %v4044 = vld [vmem:[#allocation12 + $0x1c8] sm:$0xff]
    %v4045 = vld [vmem:[#allocation12 + $0x1d0] sm:$0xff]
    %v4046 = vld [vmem:[#allocation12 + $0x1d8] sm:$0xff]
    %v4047 = vld [vmem:[#allocation12 + $0x1e0] sm:$0xff]
    %v4048 = vld [vmem:[#allocation12 + $0x1e8] sm:$0xff]
    %v4049 = vld [vmem:[#allocation12 + $0x1f0] sm:$0xff]
    %v4050 = vld [vmem:[#allocation12 + $0x1f8] sm:$0xff]
    %v4051 = vld [vmem:[#allocation12 + $0x200] sm:$0xff]
    %v4052 = vld [vmem:[#allocation12 + $0x208] sm:$0xff]
    %v4053 = vld [vmem:[#allocation12 + $0x210] sm:$0xff]
    %v4054 = vld [vmem:[#allocation12 + $0x218] sm:$0xff]
    %v4055 = vld [vmem:[#allocation12 + $0x220] sm:$0xff]
    %v4056 = vld [vmem:[#allocation12 + $0x228] sm:$0xff]
    %v4057 = vld [vmem:[#allocation12 + $0x230] sm:$0xff]
    %v4058 = vld [vmem:[#allocation12 + $0x238] sm:$0xff]
    %v4059 = vld [vmem:[#allocation12 + $0x240] sm:$0xff]
    %v4060 = vld [vmem:[#allocation12 + $0x248] sm:$0xff]
    %v4061 = vld [vmem:[#allocation12 + $0x250] sm:$0xff]
    %v4062 = vld [vmem:[#allocation12 + $0x258] sm:$0xff]
    %v4063 = vld [vmem:[#allocation12 + $0x260] sm:$0xff]
    %v4064 = vld [vmem:[#allocation12 + $0x268] sm:$0xff]
    %v4065 = vld [vmem:[#allocation12 + $0x270] sm:$0xff]
    %v4066 = vld [vmem:[#allocation12 + $0x278] sm:$0xff]
    %v4067 = vld [vmem:[#allocation12 + $0x280] sm:$0xff]
    %v4068 = vld [vmem:[#allocation12 + $0x288] sm:$0xff]
    %v4069 = vld [vmem:[#allocation12 + $0x290] sm:$0xff]
    %v4070 = vld [vmem:[#allocation12 + $0x298] sm:$0xff]
    %v4071 = vld [vmem:[#allocation12 + $0x2a0] sm:$0xff]
    %v4072 = vld [vmem:[#allocation12 + $0x2a8] sm:$0xff]
    %v4073 = vld [vmem:[#allocation12 + $0x2b0] sm:$0xff]
    %v4074 = vld [vmem:[#allocation12 + $0x2b8] sm:$0xff]
    %v4075 = vld [vmem:[#allocation12 + $0x2c0] sm:$0xff]
    %v4076 = vld [vmem:[#allocation12 + $0x2c8] sm:$0xff]
    %v4077 = vld [vmem:[#allocation12 + $0x2d0] sm:$0xff]
    %v4078 = vld [vmem:[#allocation12 + $0x2d8] sm:$0xff]
    %v4079 = vld [vmem:[#allocation12 + $0x2e0] sm:$0xff]
    %v4080 = vld [vmem:[#allocation12 + $0x2e8] sm:$0xff]
    %v4081 = vld [vmem:[#allocation12 + $0x2f0] sm:$0xff]
    %v4082 = vld [vmem:[#allocation12 + $0x2f8] sm:$0xff]
    %v4083 = vld [vmem:[#allocation12 + $0x300] sm:$0xff]
    %v4084 = vld [vmem:[#allocation12 + $0x308] sm:$0xff]
    %v4085 = vld [vmem:[#allocation12 + $0x310] sm:$0xff]
    %v4086 = vld [vmem:[#allocation12 + $0x318] sm:$0xff]
    %v4087 = vld [vmem:[#allocation12 + $0x320] sm:$0xff]
    %v4088 = vld [vmem:[#allocation12 + $0x328] sm:$0xff]
    %v4089 = vld [vmem:[#allocation12 + $0x330] sm:$0xff]
    %v4090 = vld [vmem:[#allocation12 + $0x338] sm:$0xff]
    %v4091 = vld [vmem:[#allocation12 + $0x340] sm:$0xff]
    %v4092 = vld [vmem:[#allocation12 + $0x348] sm:$0xff]
    %v4093 = vld [vmem:[#allocation12 + $0x350] sm:$0xff]
    %v4094 = vld [vmem:[#allocation12 + $0x358] sm:$0xff]
    %v4095 = vld [vmem:[#allocation12 + $0x360] sm:$0xff]
    %v4096 = vld [vmem:[#allocation12 + $0x368] sm:$0xff]
    %v4097 = vld [vmem:[#allocation12 + $0x370] sm:$0xff]
    %v4098 = vld [vmem:[#allocation12 + $0x378] sm:$0xff]
    %v4099 = vld [vmem:[#allocation12 + $0x380] sm:$0xff]
    %v4100 = vld [vmem:[#allocation12 + $0x388] sm:$0xff]
    %v4101 = vld [vmem:[#allocation12 + $0x390] sm:$0xff]
    %v4102 = vld [vmem:[#allocation12 + $0x398] sm:$0xff]
    %v4103 = vld [vmem:[#allocation12 + $0x3a0] sm:$0xff]
    %v4104 = vld [vmem:[#allocation12 + $0x3a8] sm:$0xff]
    %v4105 = vld [vmem:[#allocation12 + $0x3b0] sm:$0xff]
    %v4106 = vld [vmem:[#allocation12 + $0x3b8] sm:$0xff]
    %v4107 = vld [vmem:[#allocation12 + $0x3c0] sm:$0xff]
    %v4108 = vld [vmem:[#allocation12 + $0x3c8] sm:$0xff]
    %v4109 = vld [vmem:[#allocation12 + $0x3d0] sm:$0xff]
    %v4110 = vld [vmem:[#allocation12 + $0x3d8] sm:$0xff]
    %v4111 = vld [vmem:[#allocation12 + $0x3e0] sm:$0xff]
    %v4112 = vld [vmem:[#allocation12 + $0x3e8] sm:$0xff]
    %v4113 = vld [vmem:[#allocation12 + $0x3f0] sm:$0xff]
    %v4114 = vld [vmem:[#allocation12 + $0x3f8] sm:$0xff]
    %v4243 = vunpack.c.l.b16 %v3987
    %v4244 = vunpack.c.h.b16 %v3987
    %v4245 = vunpack.c.l.b16 %v3988
    %v4246 = vunpack.c.h.b16 %v3988
    %v4247 = vunpack.c.l.b16 %v3989
    %v4248 = vunpack.c.h.b16 %v3989
    %v4249 = vunpack.c.l.b16 %v3990
    %v4250 = vunpack.c.h.b16 %v3990
    %v4251 = vunpack.c.l.b16 %v3991
    %v4252 = vunpack.c.h.b16 %v3991
    %v4253 = vunpack.c.l.b16 %v3992
    %v4254 = vunpack.c.h.b16 %v3992
    %v4255 = vunpack.c.l.b16 %v3993
    %v4256 = vunpack.c.h.b16 %v3993
    %v4257 = vunpack.c.l.b16 %v3994
    %v4258 = vunpack.c.h.b16 %v3994
    %v4259 = vunpack.c.l.b16 %v3995
    %v4260 = vunpack.c.h.b16 %v3995
    %v4261 = vunpack.c.l.b16 %v3996
    %v4262 = vunpack.c.h.b16 %v3996
    %v4263 = vunpack.c.l.b16 %v3997
    %v4264 = vunpack.c.h.b16 %v3997
    %v4265 = vunpack.c.l.b16 %v3998
    %v4266 = vunpack.c.h.b16 %v3998
    %v4267 = vunpack.c.l.b16 %v3999
    %v4268 = vunpack.c.h.b16 %v3999
    %v4269 = vunpack.c.l.b16 %v4000
    %v4270 = vunpack.c.h.b16 %v4000
    %v4271 = vunpack.c.l.b16 %v4001
    %v4272 = vunpack.c.h.b16 %v4001
    %v4273 = vunpack.c.l.b16 %v4002
    %v4274 = vunpack.c.h.b16 %v4002
    %v4275 = vunpack.c.l.b16 %v4003
    %v4276 = vunpack.c.h.b16 %v4003
    %v4277 = vunpack.c.l.b16 %v4004
    %v4278 = vunpack.c.h.b16 %v4004
    %v4279 = vunpack.c.l.b16 %v4005
    %v4280 = vunpack.c.h.b16 %v4005
    %v4281 = vunpack.c.l.b16 %v4006
    %v4282 = vunpack.c.h.b16 %v4006
    %v4283 = vunpack.c.l.b16 %v4007
    %v4284 = vunpack.c.h.b16 %v4007
    %v4285 = vunpack.c.l.b16 %v4008
    %v4286 = vunpack.c.h.b16 %v4008
    %v4287 = vunpack.c.l.b16 %v4009
    %v4288 = vunpack.c.h.b16 %v4009
    %v4289 = vunpack.c.l.b16 %v4010
    %v4290 = vunpack.c.h.b16 %v4010
    %v4291 = vunpack.c.l.b16 %v4011
    %v4292 = vunpack.c.h.b16 %v4011
    %v4293 = vunpack.c.l.b16 %v4012
    %v4294 = vunpack.c.h.b16 %v4012
    %v4295 = vunpack.c.l.b16 %v4013
    %v4296 = vunpack.c.h.b16 %v4013
    %v4297 = vunpack.c.l.b16 %v4014
    %v4298 = vunpack.c.h.b16 %v4014
    %v4299 = vunpack.c.l.b16 %v4015
    %v4300 = vunpack.c.h.b16 %v4015
    %v4301 = vunpack.c.l.b16 %v4016
    %v4302 = vunpack.c.h.b16 %v4016
    %v4303 = vunpack.c.l.b16 %v4017
    %v4304 = vunpack.c.h.b16 %v4017
    %v4305 = vunpack.c.l.b16 %v4018
    %v4306 = vunpack.c.h.b16 %v4018
    %v4307 = vunpack.c.l.b16 %v4019
    %v4308 = vunpack.c.h.b16 %v4019
    %v4309 = vunpack.c.l.b16 %v4020
    %v4310 = vunpack.c.h.b16 %v4020
    %v4311 = vunpack.c.l.b16 %v4021
    %v4312 = vunpack.c.h.b16 %v4021
    %v4313 = vunpack.c.l.b16 %v4022
    %v4314 = vunpack.c.h.b16 %v4022
    %v4315 = vunpack.c.l.b16 %v4023
    %v4316 = vunpack.c.h.b16 %v4023
    %v4317 = vunpack.c.l.b16 %v4024
    %v4318 = vunpack.c.h.b16 %v4024
    %v4319 = vunpack.c.l.b16 %v4025
    %v4320 = vunpack.c.h.b16 %v4025
    %v4321 = vunpack.c.l.b16 %v4026
    %v4322 = vunpack.c.h.b16 %v4026
    %v4323 = vunpack.c.l.b16 %v4027
    %v4324 = vunpack.c.h.b16 %v4027
    %v4325 = vunpack.c.l.b16 %v4028
    %v4326 = vunpack.c.h.b16 %v4028
    %v4327 = vunpack.c.l.b16 %v4029
    %v4328 = vunpack.c.h.b16 %v4029
    %v4329 = vunpack.c.l.b16 %v4030
    %v4330 = vunpack.c.h.b16 %v4030
    %v4331 = vunpack.c.l.b16 %v4031
    %v4332 = vunpack.c.h.b16 %v4031
    %v4333 = vunpack.c.l.b16 %v4032
    %v4334 = vunpack.c.h.b16 %v4032
    %v4335 = vunpack.c.l.b16 %v4033
    %v4336 = vunpack.c.h.b16 %v4033
    %v4337 = vunpack.c.l.b16 %v4034
    %v4338 = vunpack.c.h.b16 %v4034
    %v4339 = vunpack.c.l.b16 %v4035
    %v4340 = vunpack.c.h.b16 %v4035
    %v4341 = vunpack.c.l.b16 %v4036
    %v4342 = vunpack.c.h.b16 %v4036
    %v4343 = vunpack.c.l.b16 %v4037
    %v4344 = vunpack.c.h.b16 %v4037
    %v4345 = vunpack.c.l.b16 %v4038
    %v4346 = vunpack.c.h.b16 %v4038
    %v4347 = vunpack.c.l.b16 %v4039
    %v4348 = vunpack.c.h.b16 %v4039
    %v4349 = vunpack.c.l.b16 %v4040
    %v4350 = vunpack.c.h.b16 %v4040
    %v4351 = vunpack.c.l.b16 %v4041
    %v4352 = vunpack.c.h.b16 %v4041
    %v4353 = vunpack.c.l.b16 %v4042
    %v4354 = vunpack.c.h.b16 %v4042
    %v4355 = vunpack.c.l.b16 %v4043
    %v4356 = vunpack.c.h.b16 %v4043
    %v4357 = vunpack.c.l.b16 %v4044
    %v4358 = vunpack.c.h.b16 %v4044
    %v4359 = vunpack.c.l.b16 %v4045
    %v4360 = vunpack.c.h.b16 %v4045
    %v4361 = vunpack.c.l.b16 %v4046
    %v4362 = vunpack.c.h.b16 %v4046
    %v4363 = vunpack.c.l.b16 %v4047
    %v4364 = vunpack.c.h.b16 %v4047
    %v4365 = vunpack.c.l.b16 %v4048
    %v4366 = vunpack.c.h.b16 %v4048
    %v4367 = vunpack.c.l.b16 %v4049
    %v4368 = vunpack.c.h.b16 %v4049
    %v4369 = vunpack.c.l.b16 %v4050
    %v4370 = vunpack.c.h.b16 %v4050
    %v4371 = vunpack.c.l.b16 %v4051
    %v4372 = vunpack.c.h.b16 %v4051
    %v4373 = vunpack.c.l.b16 %v4052
    %v4374 = vunpack.c.h.b16 %v4052
    %v4375 = vunpack.c.l.b16 %v4053
    %v4376 = vunpack.c.h.b16 %v4053
    %v4377 = vunpack.c.l.b16 %v4054
    %v4378 = vunpack.c.h.b16 %v4054
    %v4379 = vunpack.c.l.b16 %v4055
    %v4380 = vunpack.c.h.b16 %v4055
    %v4381 = vunpack.c.l.b16 %v4056
    %v4382 = vunpack.c.h.b16 %v4056
    %v4383 = vunpack.c.l.b16 %v4057
    %v4384 = vunpack.c.h.b16 %v4057
    %v4385 = vunpack.c.l.b16 %v4058
    %v4386 = vunpack.c.h.b16 %v4058
    %v4387 = vunpack.c.l.b16 %v4059
    %v4388 = vunpack.c.h.b16 %v4059
    %v4389 = vunpack.c.l.b16 %v4060
    %v4390 = vunpack.c.h.b16 %v4060
    %v4391 = vunpack.c.l.b16 %v4061
    %v4392 = vunpack.c.h.b16 %v4061
    %v4393 = vunpack.c.l.b16 %v4062
    %v4394 = vunpack.c.h.b16 %v4062
    %v4395 = vunpack.c.l.b16 %v4063
    %v4396 = vunpack.c.h.b16 %v4063
    %v4397 = vunpack.c.l.b16 %v4064
    %v4398 = vunpack.c.h.b16 %v4064
    %v4399 = vunpack.c.l.b16 %v4065
    %v4400 = vunpack.c.h.b16 %v4065
    %v4401 = vunpack.c.l.b16 %v4066
    %v4402 = vunpack.c.h.b16 %v4066
    %v4403 = vunpack.c.l.b16 %v4067
    %v4404 = vunpack.c.h.b16 %v4067
    %v4405 = vunpack.c.l.b16 %v4068
    %v4406 = vunpack.c.h.b16 %v4068
    %v4407 = vunpack.c.l.b16 %v4069
    %v4408 = vunpack.c.h.b16 %v4069
    %v4409 = vunpack.c.l.b16 %v4070
    %v4410 = vunpack.c.h.b16 %v4070
    %v4411 = vunpack.c.l.b16 %v4071
    %v4412 = vunpack.c.h.b16 %v4071
    %v4413 = vunpack.c.l.b16 %v4072
    %v4414 = vunpack.c.h.b16 %v4072
    %v4415 = vunpack.c.l.b16 %v4073
    %v4416 = vunpack.c.h.b16 %v4073
    %v4417 = vunpack.c.l.b16 %v4074
    %v4418 = vunpack.c.h.b16 %v4074
    %v4419 = vunpack.c.l.b16 %v4075
    %v4420 = vunpack.c.h.b16 %v4075
    %v4421 = vunpack.c.l.b16 %v4076
    %v4422 = vunpack.c.h.b16 %v4076
    %v4423 = vunpack.c.l.b16 %v4077
    %v4424 = vunpack.c.h.b16 %v4077
    %v4425 = vunpack.c.l.b16 %v4078
    %v4426 = vunpack.c.h.b16 %v4078
    %v4427 = vunpack.c.l.b16 %v4079
    %v4428 = vunpack.c.h.b16 %v4079
    %v4429 = vunpack.c.l.b16 %v4080
    %v4430 = vunpack.c.h.b16 %v4080
    %v4431 = vunpack.c.l.b16 %v4081
    %v4432 = vunpack.c.h.b16 %v4081
    %v4433 = vunpack.c.l.b16 %v4082
    %v4434 = vunpack.c.h.b16 %v4082
    %v4435 = vunpack.c.l.b16 %v4083
    %v4436 = vunpack.c.h.b16 %v4083
    %v4437 = vunpack.c.l.b16 %v4084
    %v4438 = vunpack.c.h.b16 %v4084
    %v4439 = vunpack.c.l.b16 %v4085
    %v4440 = vunpack.c.h.b16 %v4085
    %v4441 = vunpack.c.l.b16 %v4086
    %v4442 = vunpack.c.h.b16 %v4086
    %v4443 = vunpack.c.l.b16 %v4087
    %v4444 = vunpack.c.h.b16 %v4087
    %v4445 = vunpack.c.l.b16 %v4088
    %v4446 = vunpack.c.h.b16 %v4088
    %v4447 = vunpack.c.l.b16 %v4089
    %v4448 = vunpack.c.h.b16 %v4089
    %v4449 = vunpack.c.l.b16 %v4090
    %v4450 = vunpack.c.h.b16 %v4090
    %v4451 = vunpack.c.l.b16 %v4091
    %v4452 = vunpack.c.h.b16 %v4091
    %v4453 = vunpack.c.l.b16 %v4092
    %v4454 = vunpack.c.h.b16 %v4092
    %v4455 = vunpack.c.l.b16 %v4093
    %v4456 = vunpack.c.h.b16 %v4093
    %v4457 = vunpack.c.l.b16 %v4094
    %v4458 = vunpack.c.h.b16 %v4094
    %v4459 = vunpack.c.l.b16 %v4095
    %v4460 = vunpack.c.h.b16 %v4095
    %v4461 = vunpack.c.l.b16 %v4096
    %v4462 = vunpack.c.h.b16 %v4096
    %v4463 = vunpack.c.l.b16 %v4097
    %v4464 = vunpack.c.h.b16 %v4097
    %v4465 = vunpack.c.l.b16 %v4098
    %v4466 = vunpack.c.h.b16 %v4098
    %v4467 = vunpack.c.l.b16 %v4099
    %v4468 = vunpack.c.h.b16 %v4099
    %v4469 = vunpack.c.l.b16 %v4100
    %v4470 = vunpack.c.h.b16 %v4100
    %v4471 = vunpack.c.l.b16 %v4101
    %v4472 = vunpack.c.h.b16 %v4101
    %v4473 = vunpack.c.l.b16 %v4102
    %v4474 = vunpack.c.h.b16 %v4102
    %v4475 = vunpack.c.l.b16 %v4103
    %v4476 = vunpack.c.h.b16 %v4103
    %v4477 = vunpack.c.l.b16 %v4104
    %v4478 = vunpack.c.h.b16 %v4104
    %v4479 = vunpack.c.l.b16 %v4105
    %v4480 = vunpack.c.h.b16 %v4105
    %v4481 = vunpack.c.l.b16 %v4106
    %v4482 = vunpack.c.h.b16 %v4106
    %v4483 = vunpack.c.l.b16 %v4107
    %v4484 = vunpack.c.h.b16 %v4107
    %v4485 = vunpack.c.l.b16 %v4108
    %v4486 = vunpack.c.h.b16 %v4108
    %v4487 = vunpack.c.l.b16 %v4109
    %v4488 = vunpack.c.h.b16 %v4109
    %v4489 = vunpack.c.l.b16 %v4110
    %v4490 = vunpack.c.h.b16 %v4110
    %v4491 = vunpack.c.l.b16 %v4111
    %v4492 = vunpack.c.h.b16 %v4111
    %v4493 = vunpack.c.l.b16 %v4112
    %v4494 = vunpack.c.h.b16 %v4112
    %v4495 = vunpack.c.l.b16 %v4113
    %v4496 = vunpack.c.h.b16 %v4113
    %v4497 = vunpack.c.l.b16 %v4114
    %v4498 = vunpack.c.h.b16 %v4114
    %v4499 = vpack.c.b16 %v4251, %v4243
    %v4500 = vpack.c.b16 %v4252, %v4244
    %v4501 = vpack.c.b16 %v4253, %v4245
    %v4502 = vpack.c.b16 %v4254, %v4246
    %v4503 = vpack.c.b16 %v4255, %v4247
    %v4504 = vpack.c.b16 %v4256, %v4248
    %v4505 = vpack.c.b16 %v4257, %v4249
    %v4506 = vpack.c.b16 %v4258, %v4250
    %v4507 = vpack.c.b16 %v4267, %v4259
    %v4508 = vpack.c.b16 %v4268, %v4260
    %v4509 = vpack.c.b16 %v4269, %v4261
    %v4510 = vpack.c.b16 %v4270, %v4262
    %v4511 = vpack.c.b16 %v4271, %v4263
    %v4512 = vpack.c.b16 %v4272, %v4264
    %v4513 = vpack.c.b16 %v4273, %v4265
    %v4514 = vpack.c.b16 %v4274, %v4266
    %v4515 = vpack.c.b16 %v4283, %v4275
    %v4516 = vpack.c.b16 %v4284, %v4276
    %v4517 = vpack.c.b16 %v4285, %v4277
    %v4518 = vpack.c.b16 %v4286, %v4278
    %v4519 = vpack.c.b16 %v4287, %v4279
    %v4520 = vpack.c.b16 %v4288, %v4280
    %v4521 = vpack.c.b16 %v4289, %v4281
    %v4522 = vpack.c.b16 %v4290, %v4282
    %v4523 = vpack.c.b16 %v4299, %v4291
    %v4524 = vpack.c.b16 %v4300, %v4292
    %v4525 = vpack.c.b16 %v4301, %v4293
    %v4526 = vpack.c.b16 %v4302, %v4294
    %v4527 = vpack.c.b16 %v4303, %v4295
    %v4528 = vpack.c.b16 %v4304, %v4296
    %v4529 = vpack.c.b16 %v4305, %v4297
    %v4530 = vpack.c.b16 %v4306, %v4298
    %v4531 = vpack.c.b16 %v4315, %v4307
    %v4532 = vpack.c.b16 %v4316, %v4308
    %v4533 = vpack.c.b16 %v4317, %v4309
    %v4534 = vpack.c.b16 %v4318, %v4310
    %v4535 = vpack.c.b16 %v4319, %v4311
    %v4536 = vpack.c.b16 %v4320, %v4312
    %v4537 = vpack.c.b16 %v4321, %v4313
    %v4538 = vpack.c.b16 %v4322, %v4314
    %v4539 = vpack.c.b16 %v4331, %v4323
    %v4540 = vpack.c.b16 %v4332, %v4324
    %v4541 = vpack.c.b16 %v4333, %v4325
    %v4542 = vpack.c.b16 %v4334, %v4326
    %v4543 = vpack.c.b16 %v4335, %v4327
    %v4544 = vpack.c.b16 %v4336, %v4328
    %v4545 = vpack.c.b16 %v4337, %v4329
    %v4546 = vpack.c.b16 %v4338, %v4330
    %v4547 = vpack.c.b16 %v4347, %v4339
    %v4548 = vpack.c.b16 %v4348, %v4340
    %v4549 = vpack.c.b16 %v4349, %v4341
    %v4550 = vpack.c.b16 %v4350, %v4342
    %v4551 = vpack.c.b16 %v4351, %v4343
    %v4552 = vpack.c.b16 %v4352, %v4344
    %v4553 = vpack.c.b16 %v4353, %v4345
    %v4554 = vpack.c.b16 %v4354, %v4346
    %v4555 = vpack.c.b16 %v4363, %v4355
    %v4556 = vpack.c.b16 %v4364, %v4356
    %v4557 = vpack.c.b16 %v4365, %v4357
    %v4558 = vpack.c.b16 %v4366, %v4358
    %v4559 = vpack.c.b16 %v4367, %v4359
    %v4560 = vpack.c.b16 %v4368, %v4360
    %v4561 = vpack.c.b16 %v4369, %v4361
    %v4562 = vpack.c.b16 %v4370, %v4362
    %v4563 = vpack.c.b16 %v4379, %v4371
    %v4564 = vpack.c.b16 %v4380, %v4372
    %v4565 = vpack.c.b16 %v4381, %v4373
    %v4566 = vpack.c.b16 %v4382, %v4374
    %v4567 = vpack.c.b16 %v4383, %v4375
    %v4568 = vpack.c.b16 %v4384, %v4376
    %v4569 = vpack.c.b16 %v4385, %v4377
    %v4570 = vpack.c.b16 %v4386, %v4378
    %v4571 = vpack.c.b16 %v4395, %v4387
    %v4572 = vpack.c.b16 %v4396, %v4388
    %v4573 = vpack.c.b16 %v4397, %v4389
    %v4574 = vpack.c.b16 %v4398, %v4390
    %v4575 = vpack.c.b16 %v4399, %v4391
    %v4576 = vpack.c.b16 %v4400, %v4392
    %v4577 = vpack.c.b16 %v4401, %v4393
    %v4578 = vpack.c.b16 %v4402, %v4394
    %v4579 = vpack.c.b16 %v4411, %v4403
    %v4580 = vpack.c.b16 %v4412, %v4404
    %v4581 = vpack.c.b16 %v4413, %v4405
    %v4582 = vpack.c.b16 %v4414, %v4406
    %v4583 = vpack.c.b16 %v4415, %v4407
    %v4584 = vpack.c.b16 %v4416, %v4408
    %v4585 = vpack.c.b16 %v4417, %v4409
    %v4586 = vpack.c.b16 %v4418, %v4410
    %v4587 = vpack.c.b16 %v4427, %v4419
    %v4588 = vpack.c.b16 %v4428, %v4420
    %v4589 = vpack.c.b16 %v4429, %v4421
    %v4590 = vpack.c.b16 %v4430, %v4422
    %v4591 = vpack.c.b16 %v4431, %v4423
    %v4592 = vpack.c.b16 %v4432, %v4424
    %v4593 = vpack.c.b16 %v4433, %v4425
    %v4594 = vpack.c.b16 %v4434, %v4426
    %v4595 = vpack.c.b16 %v4443, %v4435
    %v4596 = vpack.c.b16 %v4444, %v4436
    %v4597 = vpack.c.b16 %v4445, %v4437
    %v4598 = vpack.c.b16 %v4446, %v4438
    %v4599 = vpack.c.b16 %v4447, %v4439
    %v4600 = vpack.c.b16 %v4448, %v4440
    %v4601 = vpack.c.b16 %v4449, %v4441
    %v4602 = vpack.c.b16 %v4450, %v4442
    %v4603 = vpack.c.b16 %v4459, %v4451
    %v4604 = vpack.c.b16 %v4460, %v4452
    %v4605 = vpack.c.b16 %v4461, %v4453
    %v4606 = vpack.c.b16 %v4462, %v4454
    %v4607 = vpack.c.b16 %v4463, %v4455
    %v4608 = vpack.c.b16 %v4464, %v4456
    %v4609 = vpack.c.b16 %v4465, %v4457
    %v4610 = vpack.c.b16 %v4466, %v4458
    %v4611 = vpack.c.b16 %v4475, %v4467
    %v4612 = vpack.c.b16 %v4476, %v4468
    %v4613 = vpack.c.b16 %v4477, %v4469
    %v4614 = vpack.c.b16 %v4478, %v4470
    %v4615 = vpack.c.b16 %v4479, %v4471
    %v4616 = vpack.c.b16 %v4480, %v4472
    %v4617 = vpack.c.b16 %v4481, %v4473
    %v4618 = vpack.c.b16 %v4482, %v4474
    %v4619 = vpack.c.b16 %v4491, %v4483
    %v4620 = vpack.c.b16 %v4492, %v4484
    %v4621 = vpack.c.b16 %v4493, %v4485
    %v4622 = vpack.c.b16 %v4494, %v4486
    %v4623 = vpack.c.b16 %v4495, %v4487
    %v4624 = vpack.c.b16 %v4496, %v4488
    %v4625 = vpack.c.b16 %v4497, %v4489
    %v4626 = vpack.c.b16 %v4498, %v4490
    %4755 = vmatpush.bf16.msra.mxu0 %v4555
    %4756 = vmatpush.bf16.msra.mxu0 %v4547
    %4757 = vmatpush.bf16.msra.mxu0 %v4539
    %4758 = vmatpush.bf16.msra.mxu0 %v4531
    %4759 = vmatpush.bf16.msra.mxu0 %v4523
    %4760 = vmatpush.bf16.msra.mxu0 %v4515
    %4761 = vmatpush.bf16.msra.mxu0 %v4507
    %4762 = vmatpush.bf16.msra.mxu0 %v4499
    %4763 = vmatmul.bf16.gmra.mxu0 %v3971
    %v4764 = vpop.f32.mrf.mxu0
    %v4765 = vadd.f32 0.0, %v4764
    %v4766 = vpop.f32.mrf.mxu0
    %v4767 = vadd.f32 0.0, %v4766
    %4768 = vmatmul.bf16.gmra.mxu0 %v3973
    %v4769 = vpop.f32.mrf.mxu0
    %v4770 = vadd.f32 0.0, %v4769
    %v4771 = vpop.f32.mrf.mxu0
    %v4772 = vadd.f32 0.0, %v4771
    %4773 = vmatmul.bf16.gmra.mxu0 %v3975
    %v4774 = vpop.f32.mrf.mxu0
    %v4775 = vadd.f32 0.0, %v4774
    %v4776 = vpop.f32.mrf.mxu0
    %v4777 = vadd.f32 0.0, %v4776
    %4778 = vmatmul.bf16.gmra.mxu0 %v3977
    %v4779 = vpop.f32.mrf.mxu0
    %v4780 = vadd.f32 0.0, %v4779
    %v4781 = vpop.f32.mrf.mxu0
    %v4782 = vadd.f32 0.0, %v4781
    %4783 = vmatmul.bf16.gmra.mxu0 %v3979
    %v4784 = vpop.f32.mrf.mxu0
    %v4785 = vadd.f32 0.0, %v4784
    %v4786 = vpop.f32.mrf.mxu0
    %v4787 = vadd.f32 0.0, %v4786
    %4788 = vmatmul.bf16.gmra.mxu0 %v3981
    %v4789 = vpop.f32.mrf.mxu0
    %v4790 = vadd.f32 0.0, %v4789
    %v4791 = vpop.f32.mrf.mxu0
    %v4792 = vadd.f32 0.0, %v4791
    %4793 = vmatmul.bf16.gmra.mxu0 %v3983
    %v4794 = vpop.f32.mrf.mxu0
    %v4795 = vadd.f32 0.0, %v4794
    %v4796 = vpop.f32.mrf.mxu0
    %v4797 = vadd.f32 0.0, %v4796
    %4798 = vmatmul.bf16.gmra.mxu0 %v3985
    %v4799 = vpop.f32.mrf.mxu0
    %v4800 = vadd.f32 0.0, %v4799
    %v4801 = vpop.f32.mrf.mxu0
    %v4802 = vadd.f32 0.0, %v4801
    %4803 = vdwg.mxu0
    %4804 = vmatpush.bf16.msra.mxu0 %v4619
    %4805 = vmatpush.bf16.msra.mxu0 %v4611
    %4806 = vmatpush.bf16.msra.mxu0 %v4603
    %4807 = vmatpush.bf16.msra.mxu0 %v4595
    %4808 = vmatpush.bf16.msra.mxu0 %v4587
    %4809 = vmatpush.bf16.msra.mxu0 %v4579
    %4810 = vmatpush.bf16.msra.mxu0 %v4571
    %4811 = vmatpush.bf16.msra.mxu0 %v4563
    %4812 = vmatmul.bf16.gmra.mxu0 %v3972
    %v4813 = vpop.f32.mrf.mxu0
    %v4814 = vadd.f32 %v4765, %v4813
    %v4815 = vpop.f32.mrf.mxu0
    %v4816 = vadd.f32 %v4767, %v4815
    %4817 = vmatmul.bf16.gmra.mxu0 %v3974
    %v4818 = vpop.f32.mrf.mxu0
    %v4819 = vadd.f32 %v4770, %v4818
    %v4820 = vpop.f32.mrf.mxu0
    %v4821 = vadd.f32 %v4772, %v4820
    %4822 = vmatmul.bf16.gmra.mxu0 %v3976
    %v4823 = vpop.f32.mrf.mxu0
    %v4824 = vadd.f32 %v4775, %v4823
    %v4825 = vpop.f32.mrf.mxu0
    %v4826 = vadd.f32 %v4777, %v4825
    %4827 = vmatmul.bf16.gmra.mxu0 %v3978
    %v4828 = vpop.f32.mrf.mxu0
    %v4829 = vadd.f32 %v4780, %v4828
    %v4830 = vpop.f32.mrf.mxu0
    %v4831 = vadd.f32 %v4782, %v4830
    %4832 = vmatmul.bf16.gmra.mxu0 %v3980
    %v4833 = vpop.f32.mrf.mxu0
    %v4834 = vadd.f32 %v4785, %v4833
    %v4835 = vpop.f32.mrf.mxu0
    %v4836 = vadd.f32 %v4787, %v4835
    %4837 = vmatmul.bf16.gmra.mxu0 %v3982
    %v4838 = vpop.f32.mrf.mxu0
    %v4839 = vadd.f32 %v4790, %v4838
    %v4840 = vpop.f32.mrf.mxu0
    %v4841 = vadd.f32 %v4792, %v4840
    %4842 = vmatmul.bf16.gmra.mxu0 %v3984
    %v4843 = vpop.f32.mrf.mxu0
    %v4844 = vadd.f32 %v4795, %v4843
    %v4845 = vpop.f32.mrf.mxu0
    %v4846 = vadd.f32 %v4797, %v4845
    %4847 = vmatmul.bf16.gmra.mxu0 %v3986
    %v4848 = vpop.f32.mrf.mxu0
    %v4849 = vadd.f32 %v4800, %v4848
    %v4850 = vpop.f32.mrf.mxu0
    %v4851 = vadd.f32 %v4802, %v4850
    %4852 = vdwg.mxu0
    %4853 = vmatpush.bf16.msra.mxu0 %v4556
    %4854 = vmatpush.bf16.msra.mxu0 %v4548
    %4855 = vmatpush.bf16.msra.mxu0 %v4540
    %4856 = vmatpush.bf16.msra.mxu0 %v4532
    %4857 = vmatpush.bf16.msra.mxu0 %v4524
    %4858 = vmatpush.bf16.msra.mxu0 %v4516
    %4859 = vmatpush.bf16.msra.mxu0 %v4508
    %4860 = vmatpush.bf16.msra.mxu0 %v4500
    %4861 = vmatmul.bf16.gmra.mxu0 %v3971
    %v4862 = vpop.f32.mrf.mxu0
    %v4863 = vadd.f32 0.0, %v4862
    %v4864 = vpop.f32.mrf.mxu0
    %v4865 = vadd.f32 0.0, %v4864
    %4866 = vmatmul.bf16.gmra.mxu0 %v3973
    %v4867 = vpop.f32.mrf.mxu0
    %v4868 = vadd.f32 0.0, %v4867
    %v4869 = vpop.f32.mrf.mxu0
    %v4870 = vadd.f32 0.0, %v4869
    %4871 = vmatmul.bf16.gmra.mxu0 %v3975
    %v4872 = vpop.f32.mrf.mxu0
    %v4873 = vadd.f32 0.0, %v4872
    %v4874 = vpop.f32.mrf.mxu0
    %v4875 = vadd.f32 0.0, %v4874
    %4876 = vmatmul.bf16.gmra.mxu0 %v3977
    %v4877 = vpop.f32.mrf.mxu0
    %v4878 = vadd.f32 0.0, %v4877
    %v4879 = vpop.f32.mrf.mxu0
    %v4880 = vadd.f32 0.0, %v4879
    %4881 = vmatmul.bf16.gmra.mxu0 %v3979
    %v4882 = vpop.f32.mrf.mxu0
    %v4883 = vadd.f32 0.0, %v4882
    %v4884 = vpop.f32.mrf.mxu0
    %v4885 = vadd.f32 0.0, %v4884
    %4886 = vmatmul.bf16.gmra.mxu0 %v3981
    %v4887 = vpop.f32.mrf.mxu0
    %v4888 = vadd.f32 0.0, %v4887
    %v4889 = vpop.f32.mrf.mxu0
    %v4890 = vadd.f32 0.0, %v4889
    %4891 = vmatmul.bf16.gmra.mxu0 %v3983
    %v4892 = vpop.f32.mrf.mxu0
    %v4893 = vadd.f32 0.0, %v4892
    %v4894 = vpop.f32.mrf.mxu0
    %v4895 = vadd.f32 0.0, %v4894
    %4896 = vmatmul.bf16.gmra.mxu0 %v3985
    %v4897 = vpop.f32.mrf.mxu0
    %v4898 = vadd.f32 0.0, %v4897
    %v4899 = vpop.f32.mrf.mxu0
    %v4900 = vadd.f32 0.0, %v4899
    %4901 = vdwg.mxu0
    %4902 = vmatpush.bf16.msra.mxu0 %v4620
    %4903 = vmatpush.bf16.msra.mxu0 %v4612
    %4904 = vmatpush.bf16.msra.mxu0 %v4604
    %4905 = vmatpush.bf16.msra.mxu0 %v4596
    %4906 = vmatpush.bf16.msra.mxu0 %v4588
    %4907 = vmatpush.bf16.msra.mxu0 %v4580
    %4908 = vmatpush.bf16.msra.mxu0 %v4572
    %4909 = vmatpush.bf16.msra.mxu0 %v4564
    %4910 = vmatmul.bf16.gmra.mxu0 %v3972
    %v4911 = vpop.f32.mrf.mxu0
    %v4912 = vadd.f32 %v4863, %v4911
    %v4913 = vpop.f32.mrf.mxu0
    %v4914 = vadd.f32 %v4865, %v4913
    %4915 = vmatmul.bf16.gmra.mxu0 %v3974
    %v4916 = vpop.f32.mrf.mxu0
    %v4917 = vadd.f32 %v4868, %v4916
    %v4918 = vpop.f32.mrf.mxu0
    %v4919 = vadd.f32 %v4870, %v4918
    %4920 = vmatmul.bf16.gmra.mxu0 %v3976
    %v4921 = vpop.f32.mrf.mxu0
    %v4922 = vadd.f32 %v4873, %v4921
    %v4923 = vpop.f32.mrf.mxu0
    %v4924 = vadd.f32 %v4875, %v4923
    %4925 = vmatmul.bf16.gmra.mxu0 %v3978
    %v4926 = vpop.f32.mrf.mxu0
    %v4927 = vadd.f32 %v4878, %v4926
    %v4928 = vpop.f32.mrf.mxu0
    %v4929 = vadd.f32 %v4880, %v4928
    %4930 = vmatmul.bf16.gmra.mxu0 %v3980
    %v4931 = vpop.f32.mrf.mxu0
    %v4932 = vadd.f32 %v4883, %v4931
    %v4933 = vpop.f32.mrf.mxu0
    %v4934 = vadd.f32 %v4885, %v4933
    %4935 = vmatmul.bf16.gmra.mxu0 %v3982
    %v4936 = vpop.f32.mrf.mxu0
    %v4937 = vadd.f32 %v4888, %v4936
    %v4938 = vpop.f32.mrf.mxu0
    %v4939 = vadd.f32 %v4890, %v4938
    %4940 = vmatmul.bf16.gmra.mxu0 %v3984
    %v4941 = vpop.f32.mrf.mxu0
    %v4942 = vadd.f32 %v4893, %v4941
    %v4943 = vpop.f32.mrf.mxu0
    %v4944 = vadd.f32 %v4895, %v4943
    %4945 = vmatmul.bf16.gmra.mxu0 %v3986
    %v4946 = vpop.f32.mrf.mxu0
    %v4947 = vadd.f32 %v4898, %v4946
    %v4948 = vpop.f32.mrf.mxu0
    %v4949 = vadd.f32 %v4900, %v4948
    %4950 = vdwg.mxu0
    %4951 = vmatpush.bf16.msra.mxu0 %v4557
    %4952 = vmatpush.bf16.msra.mxu0 %v4549
    %4953 = vmatpush.bf16.msra.mxu0 %v4541
    %4954 = vmatpush.bf16.msra.mxu0 %v4533
    %4955 = vmatpush.bf16.msra.mxu0 %v4525
    %4956 = vmatpush.bf16.msra.mxu0 %v4517
    %4957 = vmatpush.bf16.msra.mxu0 %v4509
    %4958 = vmatpush.bf16.msra.mxu0 %v4501
    %4959 = vmatmul.bf16.gmra.mxu0 %v3971
    %v4960 = vpop.f32.mrf.mxu0
    %v4961 = vadd.f32 0.0, %v4960
    %v4962 = vpop.f32.mrf.mxu0
    %v4963 = vadd.f32 0.0, %v4962
    %4964 = vmatmul.bf16.gmra.mxu0 %v3973
    %v4965 = vpop.f32.mrf.mxu0
    %v4966 = vadd.f32 0.0, %v4965
    %v4967 = vpop.f32.mrf.mxu0
    %v4968 = vadd.f32 0.0, %v4967
    %4969 = vmatmul.bf16.gmra.mxu0 %v3975
    %v4970 = vpop.f32.mrf.mxu0
    %v4971 = vadd.f32 0.0, %v4970
    %v4972 = vpop.f32.mrf.mxu0
    %v4973 = vadd.f32 0.0, %v4972
    %4974 = vmatmul.bf16.gmra.mxu0 %v3977
    %v4975 = vpop.f32.mrf.mxu0
    %v4976 = vadd.f32 0.0, %v4975
    %v4977 = vpop.f32.mrf.mxu0
    %v4978 = vadd.f32 0.0, %v4977
    %4979 = vmatmul.bf16.gmra.mxu0 %v3979
    %v4980 = vpop.f32.mrf.mxu0
    %v4981 = vadd.f32 0.0, %v4980
    %v4982 = vpop.f32.mrf.mxu0
    %v4983 = vadd.f32 0.0, %v4982
    %4984 = vmatmul.bf16.gmra.mxu0 %v3981
    %v4985 = vpop.f32.mrf.mxu0
    %v4986 = vadd.f32 0.0, %v4985
    %v4987 = vpop.f32.mrf.mxu0
    %v4988 = vadd.f32 0.0, %v4987
    %4989 = vmatmul.bf16.gmra.mxu0 %v3983
    %v4990 = vpop.f32.mrf.mxu0
    %v4991 = vadd.f32 0.0, %v4990
    %v4992 = vpop.f32.mrf.mxu0
    %v4993 = vadd.f32 0.0, %v4992
    %4994 = vmatmul.bf16.gmra.mxu0 %v3985
    %v4995 = vpop.f32.mrf.mxu0
    %v4996 = vadd.f32 0.0, %v4995
    %v4997 = vpop.f32.mrf.mxu0
    %v4998 = vadd.f32 0.0, %v4997
    %4999 = vdwg.mxu0
    %5000 = vmatpush.bf16.msra.mxu0 %v4621
    %5001 = vmatpush.bf16.msra.mxu0 %v4613
    %5002 = vmatpush.bf16.msra.mxu0 %v4605
    %5003 = vmatpush.bf16.msra.mxu0 %v4597
    %5004 = vmatpush.bf16.msra.mxu0 %v4589
    %5005 = vmatpush.bf16.msra.mxu0 %v4581
    %5006 = vmatpush.bf16.msra.mxu0 %v4573
    %5007 = vmatpush.bf16.msra.mxu0 %v4565
    %5008 = vmatmul.bf16.gmra.mxu0 %v3972
    %v5009 = vpop.f32.mrf.mxu0
    %v5010 = vadd.f32 %v4961, %v5009
    %v5011 = vpop.f32.mrf.mxu0
    %v5012 = vadd.f32 %v4963, %v5011
    %5013 = vmatmul.bf16.gmra.mxu0 %v3974
    %v5014 = vpop.f32.mrf.mxu0
    %v5015 = vadd.f32 %v4966, %v5014
    %v5016 = vpop.f32.mrf.mxu0
    %v5017 = vadd.f32 %v4968, %v5016
    %5018 = vmatmul.bf16.gmra.mxu0 %v3976
    %v5019 = vpop.f32.mrf.mxu0
    %v5020 = vadd.f32 %v4971, %v5019
    %v5021 = vpop.f32.mrf.mxu0
    %v5022 = vadd.f32 %v4973, %v5021
    %5023 = vmatmul.bf16.gmra.mxu0 %v3978
    %v5024 = vpop.f32.mrf.mxu0
    %v5025 = vadd.f32 %v4976, %v5024
    %v5026 = vpop.f32.mrf.mxu0
    %v5027 = vadd.f32 %v4978, %v5026
    %5028 = vmatmul.bf16.gmra.mxu0 %v3980
    %v5029 = vpop.f32.mrf.mxu0
    %v5030 = vadd.f32 %v4981, %v5029
    %v5031 = vpop.f32.mrf.mxu0
    %v5032 = vadd.f32 %v4983, %v5031
    %5033 = vmatmul.bf16.gmra.mxu0 %v3982
    %v5034 = vpop.f32.mrf.mxu0
    %v5035 = vadd.f32 %v4986, %v5034
    %v5036 = vpop.f32.mrf.mxu0
    %v5037 = vadd.f32 %v4988, %v5036
    %5038 = vmatmul.bf16.gmra.mxu0 %v3984
    %v5039 = vpop.f32.mrf.mxu0
    %v5040 = vadd.f32 %v4991, %v5039
    %v5041 = vpop.f32.mrf.mxu0
    %v5042 = vadd.f32 %v4993, %v5041
    %5043 = vmatmul.bf16.gmra.mxu0 %v3986
    %v5044 = vpop.f32.mrf.mxu0
    %v5045 = vadd.f32 %v4996, %v5044
    %v5046 = vpop.f32.mrf.mxu0
    %v5047 = vadd.f32 %v4998, %v5046
    %5048 = vdwg.mxu0
    %5049 = vmatpush.bf16.msra.mxu0 %v4558
    %5050 = vmatpush.bf16.msra.mxu0 %v4550
    %5051 = vmatpush.bf16.msra.mxu0 %v4542
    %5052 = vmatpush.bf16.msra.mxu0 %v4534
    %5053 = vmatpush.bf16.msra.mxu0 %v4526
    %5054 = vmatpush.bf16.msra.mxu0 %v4518
    %5055 = vmatpush.bf16.msra.mxu0 %v4510
    %5056 = vmatpush.bf16.msra.mxu0 %v4502
    %5057 = vmatmul.bf16.gmra.mxu0 %v3971
    %v5058 = vpop.f32.mrf.mxu0
    %v5059 = vadd.f32 0.0, %v5058
    %v5060 = vpop.f32.mrf.mxu0
    %v5061 = vadd.f32 0.0, %v5060
    %5062 = vmatmul.bf16.gmra.mxu0 %v3973
    %v5063 = vpop.f32.mrf.mxu0
    %v5064 = vadd.f32 0.0, %v5063
    %v5065 = vpop.f32.mrf.mxu0
    %v5066 = vadd.f32 0.0, %v5065
    %5067 = vmatmul.bf16.gmra.mxu0 %v3975
    %v5068 = vpop.f32.mrf.mxu0
    %v5069 = vadd.f32 0.0, %v5068
    %v5070 = vpop.f32.mrf.mxu0
    %v5071 = vadd.f32 0.0, %v5070
    %5072 = vmatmul.bf16.gmra.mxu0 %v3977
    %v5073 = vpop.f32.mrf.mxu0
    %v5074 = vadd.f32 0.0, %v5073
    %v5075 = vpop.f32.mrf.mxu0
    %v5076 = vadd.f32 0.0, %v5075
    %5077 = vmatmul.bf16.gmra.mxu0 %v3979
    %v5078 = vpop.f32.mrf.mxu0
    %v5079 = vadd.f32 0.0, %v5078
    %v5080 = vpop.f32.mrf.mxu0
    %v5081 = vadd.f32 0.0, %v5080
    %5082 = vmatmul.bf16.gmra.mxu0 %v3981
    %v5083 = vpop.f32.mrf.mxu0
    %v5084 = vadd.f32 0.0, %v5083
    %v5085 = vpop.f32.mrf.mxu0
    %v5086 = vadd.f32 0.0, %v5085
    %5087 = vmatmul.bf16.gmra.mxu0 %v3983
    %v5088 = vpop.f32.mrf.mxu0
    %v5089 = vadd.f32 0.0, %v5088
    %v5090 = vpop.f32.mrf.mxu0
    %v5091 = vadd.f32 0.0, %v5090
    %5092 = vmatmul.bf16.gmra.mxu0 %v3985
    %v5093 = vpop.f32.mrf.mxu0
    %v5094 = vadd.f32 0.0, %v5093
    %v5095 = vpop.f32.mrf.mxu0
    %v5096 = vadd.f32 0.0, %v5095
    %5097 = vdwg.mxu0
    %5098 = vmatpush.bf16.msra.mxu0 %v4622
    %5099 = vmatpush.bf16.msra.mxu0 %v4614
    %5100 = vmatpush.bf16.msra.mxu0 %v4606
    %5101 = vmatpush.bf16.msra.mxu0 %v4598
    %5102 = vmatpush.bf16.msra.mxu0 %v4590
    %5103 = vmatpush.bf16.msra.mxu0 %v4582
    %5104 = vmatpush.bf16.msra.mxu0 %v4574
    %5105 = vmatpush.bf16.msra.mxu0 %v4566
    %5106 = vmatmul.bf16.gmra.mxu0 %v3972
    %v5107 = vpop.f32.mrf.mxu0
    %v5108 = vadd.f32 %v5059, %v5107
    %v5109 = vpop.f32.mrf.mxu0
    %v5110 = vadd.f32 %v5061, %v5109
    %5111 = vmatmul.bf16.gmra.mxu0 %v3974
    %v5112 = vpop.f32.mrf.mxu0
    %v5113 = vadd.f32 %v5064, %v5112
    %v5114 = vpop.f32.mrf.mxu0
    %v5115 = vadd.f32 %v5066, %v5114
    %5116 = vmatmul.bf16.gmra.mxu0 %v3976
    %v5117 = vpop.f32.mrf.mxu0
    %v5118 = vadd.f32 %v5069, %v5117
    %v5119 = vpop.f32.mrf.mxu0
    %v5120 = vadd.f32 %v5071, %v5119
    %5121 = vmatmul.bf16.gmra.mxu0 %v3978
    %v5122 = vpop.f32.mrf.mxu0
    %v5123 = vadd.f32 %v5074, %v5122
    %v5124 = vpop.f32.mrf.mxu0
    %v5125 = vadd.f32 %v5076, %v5124
    %5126 = vmatmul.bf16.gmra.mxu0 %v3980
    %v5127 = vpop.f32.mrf.mxu0
    %v5128 = vadd.f32 %v5079, %v5127
    %v5129 = vpop.f32.mrf.mxu0
    %v5130 = vadd.f32 %v5081, %v5129
    %5131 = vmatmul.bf16.gmra.mxu0 %v3982
    %v5132 = vpop.f32.mrf.mxu0
    %v5133 = vadd.f32 %v5084, %v5132
    %v5134 = vpop.f32.mrf.mxu0
    %v5135 = vadd.f32 %v5086, %v5134
    %5136 = vmatmul.bf16.gmra.mxu0 %v3984
    %v5137 = vpop.f32.mrf.mxu0
    %v5138 = vadd.f32 %v5089, %v5137
    %v5139 = vpop.f32.mrf.mxu0
    %v5140 = vadd.f32 %v5091, %v5139
    %5141 = vmatmul.bf16.gmra.mxu0 %v3986
    %v5142 = vpop.f32.mrf.mxu0
    %v5143 = vadd.f32 %v5094, %v5142
    %v5144 = vpop.f32.mrf.mxu0
    %v5145 = vadd.f32 %v5096, %v5144
    %5146 = vdwg.mxu0
    %5147 = vmatpush.bf16.msra.mxu0 %v4559
    %5148 = vmatpush.bf16.msra.mxu0 %v4551
    %5149 = vmatpush.bf16.msra.mxu0 %v4543
    %5150 = vmatpush.bf16.msra.mxu0 %v4535
    %5151 = vmatpush.bf16.msra.mxu0 %v4527
    %5152 = vmatpush.bf16.msra.mxu0 %v4519
    %5153 = vmatpush.bf16.msra.mxu0 %v4511
    %5154 = vmatpush.bf16.msra.mxu0 %v4503
    %5155 = vmatmul.bf16.gmra.mxu0 %v3971
    %v5156 = vpop.f32.mrf.mxu0
    %v5157 = vadd.f32 0.0, %v5156
    %v5158 = vpop.f32.mrf.mxu0
    %v5159 = vadd.f32 0.0, %v5158
    %5160 = vmatmul.bf16.gmra.mxu0 %v3973
    %v5161 = vpop.f32.mrf.mxu0
    %v5162 = vadd.f32 0.0, %v5161
    %v5163 = vpop.f32.mrf.mxu0
    %v5164 = vadd.f32 0.0, %v5163
    %5165 = vmatmul.bf16.gmra.mxu0 %v3975
    %v5166 = vpop.f32.mrf.mxu0
    %v5167 = vadd.f32 0.0, %v5166
    %v5168 = vpop.f32.mrf.mxu0
    %v5169 = vadd.f32 0.0, %v5168
    %5170 = vmatmul.bf16.gmra.mxu0 %v3977
    %v5171 = vpop.f32.mrf.mxu0
    %v5172 = vadd.f32 0.0, %v5171
    %v5173 = vpop.f32.mrf.mxu0
    %v5174 = vadd.f32 0.0, %v5173
    %5175 = vmatmul.bf16.gmra.mxu0 %v3979
    %v5176 = vpop.f32.mrf.mxu0
    %v5177 = vadd.f32 0.0, %v5176
    %v5178 = vpop.f32.mrf.mxu0
    %v5179 = vadd.f32 0.0, %v5178
    %5180 = vmatmul.bf16.gmra.mxu0 %v3981
    %v5181 = vpop.f32.mrf.mxu0
    %v5182 = vadd.f32 0.0, %v5181
    %v5183 = vpop.f32.mrf.mxu0
    %v5184 = vadd.f32 0.0, %v5183
    %5185 = vmatmul.bf16.gmra.mxu0 %v3983
    %v5186 = vpop.f32.mrf.mxu0
    %v5187 = vadd.f32 0.0, %v5186
    %v5188 = vpop.f32.mrf.mxu0
    %v5189 = vadd.f32 0.0, %v5188
    %5190 = vmatmul.bf16.gmra.mxu0 %v3985
    %v5191 = vpop.f32.mrf.mxu0
    %v5192 = vadd.f32 0.0, %v5191
    %v5193 = vpop.f32.mrf.mxu0
    %v5194 = vadd.f32 0.0, %v5193
    %5195 = vdwg.mxu0
    %5196 = vmatpush.bf16.msra.mxu0 %v4623
    %5197 = vmatpush.bf16.msra.mxu0 %v4615
    %5198 = vmatpush.bf16.msra.mxu0 %v4607
    %5199 = vmatpush.bf16.msra.mxu0 %v4599
    %5200 = vmatpush.bf16.msra.mxu0 %v4591
    %5201 = vmatpush.bf16.msra.mxu0 %v4583
    %5202 = vmatpush.bf16.msra.mxu0 %v4575
    %5203 = vmatpush.bf16.msra.mxu0 %v4567
    %5204 = vmatmul.bf16.gmra.mxu0 %v3972
    %v5205 = vpop.f32.mrf.mxu0
    %v5206 = vadd.f32 %v5157, %v5205
    %v5207 = vpop.f32.mrf.mxu0
    %v5208 = vadd.f32 %v5159, %v5207
    %5209 = vmatmul.bf16.gmra.mxu0 %v3974
    %v5210 = vpop.f32.mrf.mxu0
    %v5211 = vadd.f32 %v5162, %v5210
    %v5212 = vpop.f32.mrf.mxu0
    %v5213 = vadd.f32 %v5164, %v5212
    %5214 = vmatmul.bf16.gmra.mxu0 %v3976
    %v5215 = vpop.f32.mrf.mxu0
    %v5216 = vadd.f32 %v5167, %v5215
    %v5217 = vpop.f32.mrf.mxu0
    %v5218 = vadd.f32 %v5169, %v5217
    %5219 = vmatmul.bf16.gmra.mxu0 %v3978
    %v5220 = vpop.f32.mrf.mxu0
    %v5221 = vadd.f32 %v5172, %v5220
    %v5222 = vpop.f32.mrf.mxu0
    %v5223 = vadd.f32 %v5174, %v5222
    %5224 = vmatmul.bf16.gmra.mxu0 %v3980
    %v5225 = vpop.f32.mrf.mxu0
    %v5226 = vadd.f32 %v5177, %v5225
    %v5227 = vpop.f32.mrf.mxu0
    %v5228 = vadd.f32 %v5179, %v5227
    %5229 = vmatmul.bf16.gmra.mxu0 %v3982
    %v5230 = vpop.f32.mrf.mxu0
    %v5231 = vadd.f32 %v5182, %v5230
    %v5232 = vpop.f32.mrf.mxu0
    %v5233 = vadd.f32 %v5184, %v5232
    %5234 = vmatmul.bf16.gmra.mxu0 %v3984
    %v5235 = vpop.f32.mrf.mxu0
    %v5236 = vadd.f32 %v5187, %v5235
    %v5237 = vpop.f32.mrf.mxu0
    %v5238 = vadd.f32 %v5189, %v5237
    %5239 = vmatmul.bf16.gmra.mxu0 %v3986
    %v5240 = vpop.f32.mrf.mxu0
    %v5241 = vadd.f32 %v5192, %v5240
    %v5242 = vpop.f32.mrf.mxu0
    %v5243 = vadd.f32 %v5194, %v5242
    %5244 = vdwg.mxu0
    %5245 = vmatpush.bf16.msra.mxu0 %v4560
    %5246 = vmatpush.bf16.msra.mxu0 %v4552
    %5247 = vmatpush.bf16.msra.mxu0 %v4544
    %5248 = vmatpush.bf16.msra.mxu0 %v4536
    %5249 = vmatpush.bf16.msra.mxu0 %v4528
    %5250 = vmatpush.bf16.msra.mxu0 %v4520
    %5251 = vmatpush.bf16.msra.mxu0 %v4512
    %5252 = vmatpush.bf16.msra.mxu0 %v4504
    %5253 = vmatmul.bf16.gmra.mxu0 %v3971
    %v5254 = vpop.f32.mrf.mxu0
    %v5255 = vadd.f32 0.0, %v5254
    %v5256 = vpop.f32.mrf.mxu0
    %v5257 = vadd.f32 0.0, %v5256
    %5258 = vmatmul.bf16.gmra.mxu0 %v3973
    %v5259 = vpop.f32.mrf.mxu0
    %v5260 = vadd.f32 0.0, %v5259
    %v5261 = vpop.f32.mrf.mxu0
    %v5262 = vadd.f32 0.0, %v5261
    %5263 = vmatmul.bf16.gmra.mxu0 %v3975
    %v5264 = vpop.f32.mrf.mxu0
    %v5265 = vadd.f32 0.0, %v5264
    %v5266 = vpop.f32.mrf.mxu0
    %v5267 = vadd.f32 0.0, %v5266
    %5268 = vmatmul.bf16.gmra.mxu0 %v3977
    %v5269 = vpop.f32.mrf.mxu0
    %v5270 = vadd.f32 0.0, %v5269
    %v5271 = vpop.f32.mrf.mxu0
    %v5272 = vadd.f32 0.0, %v5271
    %5273 = vmatmul.bf16.gmra.mxu0 %v3979
    %v5274 = vpop.f32.mrf.mxu0
    %v5275 = vadd.f32 0.0, %v5274
    %v5276 = vpop.f32.mrf.mxu0
    %v5277 = vadd.f32 0.0, %v5276
    %5278 = vmatmul.bf16.gmra.mxu0 %v3981
    %v5279 = vpop.f32.mrf.mxu0
    %v5280 = vadd.f32 0.0, %v5279
    %v5281 = vpop.f32.mrf.mxu0
    %v5282 = vadd.f32 0.0, %v5281
    %5283 = vmatmul.bf16.gmra.mxu0 %v3983
    %v5284 = vpop.f32.mrf.mxu0
    %v5285 = vadd.f32 0.0, %v5284
    %v5286 = vpop.f32.mrf.mxu0
    %v5287 = vadd.f32 0.0, %v5286
    %5288 = vmatmul.bf16.gmra.mxu0 %v3985
    %v5289 = vpop.f32.mrf.mxu0
    %v5290 = vadd.f32 0.0, %v5289
    %v5291 = vpop.f32.mrf.mxu0
    %v5292 = vadd.f32 0.0, %v5291
    %5293 = vdwg.mxu0
    %5294 = vmatpush.bf16.msra.mxu0 %v4624
    %5295 = vmatpush.bf16.msra.mxu0 %v4616
    %5296 = vmatpush.bf16.msra.mxu0 %v4608
    %5297 = vmatpush.bf16.msra.mxu0 %v4600
    %5298 = vmatpush.bf16.msra.mxu0 %v4592
    %5299 = vmatpush.bf16.msra.mxu0 %v4584
    %5300 = vmatpush.bf16.msra.mxu0 %v4576
    %5301 = vmatpush.bf16.msra.mxu0 %v4568
    %5302 = vmatmul.bf16.gmra.mxu0 %v3972
    %v5303 = vpop.f32.mrf.mxu0
    %v5304 = vadd.f32 %v5255, %v5303
    %v5305 = vpop.f32.mrf.mxu0
    %v5306 = vadd.f32 %v5257, %v5305
    %5307 = vmatmul.bf16.gmra.mxu0 %v3974
    %v5308 = vpop.f32.mrf.mxu0
    %v5309 = vadd.f32 %v5260, %v5308
    %v5310 = vpop.f32.mrf.mxu0
    %v5311 = vadd.f32 %v5262, %v5310
    %5312 = vmatmul.bf16.gmra.mxu0 %v3976
    %v5313 = vpop.f32.mrf.mxu0
    %v5314 = vadd.f32 %v5265, %v5313
    %v5315 = vpop.f32.mrf.mxu0
    %v5316 = vadd.f32 %v5267, %v5315
    %5317 = vmatmul.bf16.gmra.mxu0 %v3978
    %v5318 = vpop.f32.mrf.mxu0
    %v5319 = vadd.f32 %v5270, %v5318
    %v5320 = vpop.f32.mrf.mxu0
    %v5321 = vadd.f32 %v5272, %v5320
    %5322 = vmatmul.bf16.gmra.mxu0 %v3980
    %v5323 = vpop.f32.mrf.mxu0
    %v5324 = vadd.f32 %v5275, %v5323
    %v5325 = vpop.f32.mrf.mxu0
    %v5326 = vadd.f32 %v5277, %v5325
    %5327 = vmatmul.bf16.gmra.mxu0 %v3982
    %v5328 = vpop.f32.mrf.mxu0
    %v5329 = vadd.f32 %v5280, %v5328
    %v5330 = vpop.f32.mrf.mxu0
    %v5331 = vadd.f32 %v5282, %v5330
    %5332 = vmatmul.bf16.gmra.mxu0 %v3984
    %v5333 = vpop.f32.mrf.mxu0
    %v5334 = vadd.f32 %v5285, %v5333
    %v5335 = vpop.f32.mrf.mxu0
    %v5336 = vadd.f32 %v5287, %v5335
    %5337 = vmatmul.bf16.gmra.mxu0 %v3986
    %v5338 = vpop.f32.mrf.mxu0
    %v5339 = vadd.f32 %v5290, %v5338
    %v5340 = vpop.f32.mrf.mxu0
    %v5341 = vadd.f32 %v5292, %v5340
    %5342 = vdwg.mxu0
    %5343 = vmatpush.bf16.msra.mxu0 %v4561
    %5344 = vmatpush.bf16.msra.mxu0 %v4553
    %5345 = vmatpush.bf16.msra.mxu0 %v4545
    %5346 = vmatpush.bf16.msra.mxu0 %v4537
    %5347 = vmatpush.bf16.msra.mxu0 %v4529
    %5348 = vmatpush.bf16.msra.mxu0 %v4521
    %5349 = vmatpush.bf16.msra.mxu0 %v4513
    %5350 = vmatpush.bf16.msra.mxu0 %v4505
    %5351 = vmatmul.bf16.gmra.mxu0 %v3971
    %v5352 = vpop.f32.mrf.mxu0
    %v5353 = vadd.f32 0.0, %v5352
    %v5354 = vpop.f32.mrf.mxu0
    %v5355 = vadd.f32 0.0, %v5354
    %5356 = vmatmul.bf16.gmra.mxu0 %v3973
    %v5357 = vpop.f32.mrf.mxu0
    %v5358 = vadd.f32 0.0, %v5357
    %v5359 = vpop.f32.mrf.mxu0
    %v5360 = vadd.f32 0.0, %v5359
    %5361 = vmatmul.bf16.gmra.mxu0 %v3975
    %v5362 = vpop.f32.mrf.mxu0
    %v5363 = vadd.f32 0.0, %v5362
    %v5364 = vpop.f32.mrf.mxu0
    %v5365 = vadd.f32 0.0, %v5364
    %5366 = vmatmul.bf16.gmra.mxu0 %v3977
    %v5367 = vpop.f32.mrf.mxu0
    %v5368 = vadd.f32 0.0, %v5367
    %v5369 = vpop.f32.mrf.mxu0
    %v5370 = vadd.f32 0.0, %v5369
    %5371 = vmatmul.bf16.gmra.mxu0 %v3979
    %v5372 = vpop.f32.mrf.mxu0
    %v5373 = vadd.f32 0.0, %v5372
    %v5374 = vpop.f32.mrf.mxu0
    %v5375 = vadd.f32 0.0, %v5374
    %5376 = vmatmul.bf16.gmra.mxu0 %v3981
    %v5377 = vpop.f32.mrf.mxu0
    %v5378 = vadd.f32 0.0, %v5377
    %v5379 = vpop.f32.mrf.mxu0
    %v5380 = vadd.f32 0.0, %v5379
    %5381 = vmatmul.bf16.gmra.mxu0 %v3983
    %v5382 = vpop.f32.mrf.mxu0
    %v5383 = vadd.f32 0.0, %v5382
    %v5384 = vpop.f32.mrf.mxu0
    %v5385 = vadd.f32 0.0, %v5384
    %5386 = vmatmul.bf16.gmra.mxu0 %v3985
    %v5387 = vpop.f32.mrf.mxu0
    %v5388 = vadd.f32 0.0, %v5387
    %v5389 = vpop.f32.mrf.mxu0
    %v5390 = vadd.f32 0.0, %v5389
    %5391 = vdwg.mxu0
    %5392 = vmatpush.bf16.msra.mxu0 %v4625
    %5393 = vmatpush.bf16.msra.mxu0 %v4617
    %5394 = vmatpush.bf16.msra.mxu0 %v4609
    %5395 = vmatpush.bf16.msra.mxu0 %v4601
    %5396 = vmatpush.bf16.msra.mxu0 %v4593
    %5397 = vmatpush.bf16.msra.mxu0 %v4585
    %5398 = vmatpush.bf16.msra.mxu0 %v4577
    %5399 = vmatpush.bf16.msra.mxu0 %v4569
    %5400 = vmatmul.bf16.gmra.mxu0 %v3972
    %v5401 = vpop.f32.mrf.mxu0
    %v5402 = vadd.f32 %v5353, %v5401
    %v5403 = vpop.f32.mrf.mxu0
    %v5404 = vadd.f32 %v5355, %v5403
    %5405 = vmatmul.bf16.gmra.mxu0 %v3974
    %v5406 = vpop.f32.mrf.mxu0
    %v5407 = vadd.f32 %v5358, %v5406
    %v5408 = vpop.f32.mrf.mxu0
    %v5409 = vadd.f32 %v5360, %v5408
    %5410 = vmatmul.bf16.gmra.mxu0 %v3976
    %v5411 = vpop.f32.mrf.mxu0
    %v5412 = vadd.f32 %v5363, %v5411
    %v5413 = vpop.f32.mrf.mxu0
    %v5414 = vadd.f32 %v5365, %v5413
    %5415 = vmatmul.bf16.gmra.mxu0 %v3978
    %v5416 = vpop.f32.mrf.mxu0
    %v5417 = vadd.f32 %v5368, %v5416
    %v5418 = vpop.f32.mrf.mxu0
    %v5419 = vadd.f32 %v5370, %v5418
    %5420 = vmatmul.bf16.gmra.mxu0 %v3980
    %v5421 = vpop.f32.mrf.mxu0
    %v5422 = vadd.f32 %v5373, %v5421
    %v5423 = vpop.f32.mrf.mxu0
    %v5424 = vadd.f32 %v5375, %v5423
    %5425 = vmatmul.bf16.gmra.mxu0 %v3982
    %v5426 = vpop.f32.mrf.mxu0
    %v5427 = vadd.f32 %v5378, %v5426
    %v5428 = vpop.f32.mrf.mxu0
    %v5429 = vadd.f32 %v5380, %v5428
    %5430 = vmatmul.bf16.gmra.mxu0 %v3984
    %v5431 = vpop.f32.mrf.mxu0
    %v5432 = vadd.f32 %v5383, %v5431
    %v5433 = vpop.f32.mrf.mxu0
    %v5434 = vadd.f32 %v5385, %v5433
    %5435 = vmatmul.bf16.gmra.mxu0 %v3986
    %v5436 = vpop.f32.mrf.mxu0
    %v5437 = vadd.f32 %v5388, %v5436
    %v5438 = vpop.f32.mrf.mxu0
    %v5439 = vadd.f32 %v5390, %v5438
    %5440 = vdwg.mxu0
    %5441 = vmatpush.bf16.msra.mxu0 %v4562
    %5442 = vmatpush.bf16.msra.mxu0 %v4554
    %5443 = vmatpush.bf16.msra.mxu0 %v4546
    %5444 = vmatpush.bf16.msra.mxu0 %v4538
    %5445 = vmatpush.bf16.msra.mxu0 %v4530
    %5446 = vmatpush.bf16.msra.mxu0 %v4522
    %5447 = vmatpush.bf16.msra.mxu0 %v4514
    %5448 = vmatpush.bf16.msra.mxu0 %v4506
    %5449 = vmatmul.bf16.gmra.mxu0 %v3971
    %v5450 = vpop.f32.mrf.mxu0
    %v5451 = vadd.f32 0.0, %v5450
    %v5452 = vpop.f32.mrf.mxu0
    %v5453 = vadd.f32 0.0, %v5452
    %5454 = vmatmul.bf16.gmra.mxu0 %v3973
    %v5455 = vpop.f32.mrf.mxu0
    %v5456 = vadd.f32 0.0, %v5455
    %v5457 = vpop.f32.mrf.mxu0
    %v5458 = vadd.f32 0.0, %v5457
    %5459 = vmatmul.bf16.gmra.mxu0 %v3975
    %v5460 = vpop.f32.mrf.mxu0
    %v5461 = vadd.f32 0.0, %v5460
    %v5462 = vpop.f32.mrf.mxu0
    %v5463 = vadd.f32 0.0, %v5462
    %5464 = vmatmul.bf16.gmra.mxu0 %v3977
    %v5465 = vpop.f32.mrf.mxu0
    %v5466 = vadd.f32 0.0, %v5465
    %v5467 = vpop.f32.mrf.mxu0
    %v5468 = vadd.f32 0.0, %v5467
    %5469 = vmatmul.bf16.gmra.mxu0 %v3979
    %v5470 = vpop.f32.mrf.mxu0
    %v5471 = vadd.f32 0.0, %v5470
    %v5472 = vpop.f32.mrf.mxu0
    %v5473 = vadd.f32 0.0, %v5472
    %5474 = vmatmul.bf16.gmra.mxu0 %v3981
    %v5475 = vpop.f32.mrf.mxu0
    %v5476 = vadd.f32 0.0, %v5475
    %v5477 = vpop.f32.mrf.mxu0
    %v5478 = vadd.f32 0.0, %v5477
    %5479 = vmatmul.bf16.gmra.mxu0 %v3983
    %v5480 = vpop.f32.mrf.mxu0
    %v5481 = vadd.f32 0.0, %v5480
    %v5482 = vpop.f32.mrf.mxu0
    %v5483 = vadd.f32 0.0, %v5482
    %5484 = vmatmul.bf16.gmra.mxu0 %v3985
    %v5485 = vpop.f32.mrf.mxu0
    %v5486 = vadd.f32 0.0, %v5485
    %v5487 = vpop.f32.mrf.mxu0
    %v5488 = vadd.f32 0.0, %v5487
    %5489 = vdwg.mxu0
    %5490 = vmatpush.bf16.msra.mxu0 %v4626
    %5491 = vmatpush.bf16.msra.mxu0 %v4618
    %5492 = vmatpush.bf16.msra.mxu0 %v4610
    %5493 = vmatpush.bf16.msra.mxu0 %v4602
    %5494 = vmatpush.bf16.msra.mxu0 %v4594
    %5495 = vmatpush.bf16.msra.mxu0 %v4586
    %5496 = vmatpush.bf16.msra.mxu0 %v4578
    %5497 = vmatpush.bf16.msra.mxu0 %v4570
    %5498 = vmatmul.bf16.gmra.mxu0 %v3972
    %v5499 = vpop.f32.mrf.mxu0
    %v5500 = vadd.f32 %v5451, %v5499
    %v5501 = vpop.f32.mrf.mxu0
    %v5502 = vadd.f32 %v5453, %v5501
    %5503 = vmatmul.bf16.gmra.mxu0 %v3974
    %v5504 = vpop.f32.mrf.mxu0
    %v5505 = vadd.f32 %v5456, %v5504
    %v5506 = vpop.f32.mrf.mxu0
    %v5507 = vadd.f32 %v5458, %v5506
    %5508 = vmatmul.bf16.gmra.mxu0 %v3976
    %v5509 = vpop.f32.mrf.mxu0
    %v5510 = vadd.f32 %v5461, %v5509
    %v5511 = vpop.f32.mrf.mxu0
    %v5512 = vadd.f32 %v5463, %v5511
    %5513 = vmatmul.bf16.gmra.mxu0 %v3978
    %v5514 = vpop.f32.mrf.mxu0
    %v5515 = vadd.f32 %v5466, %v5514
    %v5516 = vpop.f32.mrf.mxu0
    %v5517 = vadd.f32 %v5468, %v5516
    %5518 = vmatmul.bf16.gmra.mxu0 %v3980
    %v5519 = vpop.f32.mrf.mxu0
    %v5520 = vadd.f32 %v5471, %v5519
    %v5521 = vpop.f32.mrf.mxu0
    %v5522 = vadd.f32 %v5473, %v5521
    %5523 = vmatmul.bf16.gmra.mxu0 %v3982
    %v5524 = vpop.f32.mrf.mxu0
    %v5525 = vadd.f32 %v5476, %v5524
    %v5526 = vpop.f32.mrf.mxu0
    %v5527 = vadd.f32 %v5478, %v5526
    %5528 = vmatmul.bf16.gmra.mxu0 %v3984
    %v5529 = vpop.f32.mrf.mxu0
    %v5530 = vadd.f32 %v5481, %v5529
    %v5531 = vpop.f32.mrf.mxu0
    %v5532 = vadd.f32 %v5483, %v5531
    %5533 = vmatmul.bf16.gmra.mxu0 %v3986
    %v5534 = vpop.f32.mrf.mxu0
    %v5535 = vadd.f32 %v5486, %v5534
    %v5536 = vpop.f32.mrf.mxu0
    %v5537 = vadd.f32 %v5488, %v5536
    %5538 = vdwg.mxu0
    %v5539 = vxor.u32 %v4814, 2147483648
    %v5540 = vxor.u32 %v4912, 2147483648
    %v5541 = vxor.u32 %v5010, 2147483648
    %v5542 = vxor.u32 %v5108, 2147483648
    %v5543 = vxor.u32 %v4816, 2147483648
    %v5544 = vxor.u32 %v4914, 2147483648
    %v5545 = vxor.u32 %v5012, 2147483648
    %v5546 = vxor.u32 %v5110, 2147483648
    %v5547 = vxor.u32 %v4819, 2147483648
    %v5548 = vxor.u32 %v4917, 2147483648
    %v5549 = vxor.u32 %v5015, 2147483648
    %v5550 = vxor.u32 %v5113, 2147483648
    %v5551 = vxor.u32 %v4821, 2147483648
    %v5552 = vxor.u32 %v4919, 2147483648
    %v5553 = vxor.u32 %v5017, 2147483648
    %v5554 = vxor.u32 %v5115, 2147483648
    %v5555 = vxor.u32 %v4824, 2147483648
    %v5556 = vxor.u32 %v4922, 2147483648
    %v5557 = vxor.u32 %v5020, 2147483648
    %v5558 = vxor.u32 %v5118, 2147483648
    %v5559 = vxor.u32 %v4826, 2147483648
    %v5560 = vxor.u32 %v4924, 2147483648
    %v5561 = vxor.u32 %v5022, 2147483648
    %v5562 = vxor.u32 %v5120, 2147483648
    %v5563 = vxor.u32 %v4829, 2147483648
    %v5564 = vxor.u32 %v4927, 2147483648
    %v5565 = vxor.u32 %v5025, 2147483648
    %v5566 = vxor.u32 %v5123, 2147483648
    %v5567 = vxor.u32 %v4831, 2147483648
    %v5568 = vxor.u32 %v4929, 2147483648
    %v5569 = vxor.u32 %v5027, 2147483648
    %v5570 = vxor.u32 %v5125, 2147483648
    %v5571 = vxor.u32 %v4834, 2147483648
    %v5572 = vxor.u32 %v4932, 2147483648
    %v5573 = vxor.u32 %v5030, 2147483648
    %v5574 = vxor.u32 %v5128, 2147483648
    %v5575 = vxor.u32 %v4836, 2147483648
    %v5576 = vxor.u32 %v4934, 2147483648
    %v5577 = vxor.u32 %v5032, 2147483648
    %v5578 = vxor.u32 %v5130, 2147483648
    %v5579 = vxor.u32 %v4839, 2147483648
    %v5580 = vxor.u32 %v4937, 2147483648
    %v5581 = vxor.u32 %v5035, 2147483648
    %v5582 = vxor.u32 %v5133, 2147483648
    %v5583 = vxor.u32 %v4841, 2147483648
    %v5584 = vxor.u32 %v4939, 2147483648
    %v5585 = vxor.u32 %v5037, 2147483648
    %v5586 = vxor.u32 %v5135, 2147483648
    %v5587 = vxor.u32 %v4844, 2147483648
    %v5588 = vxor.u32 %v4942, 2147483648
    %v5589 = vxor.u32 %v5040, 2147483648
    %v5590 = vxor.u32 %v5138, 2147483648
    %v5591 = vxor.u32 %v4846, 2147483648
    %v5592 = vxor.u32 %v4944, 2147483648
    %v5593 = vxor.u32 %v5042, 2147483648
    %v5594 = vxor.u32 %v5140, 2147483648
    %v5595 = vxor.u32 %v4849, 2147483648
    %v5596 = vxor.u32 %v4947, 2147483648
    %v5597 = vxor.u32 %v5045, 2147483648
    %v5598 = vxor.u32 %v5143, 2147483648
    %v5599 = vxor.u32 %v4851, 2147483648
    %v5600 = vxor.u32 %v4949, 2147483648
    %v5601 = vxor.u32 %v5047, 2147483648
    %v5602 = vxor.u32 %v5145, 2147483648
    %v5603 = vmul.f32 %v5539, 1.442695
    %v5604 = vpow.pop %v5603
    %v5605 = vmul.f32 %v5540, 1.442695
    %v5606 = vpow.pop %v5605
    %v5607 = vmul.f32 %v5541, 1.442695
    %v5608 = vpow.pop %v5607
    %v5609 = vmul.f32 %v5542, 1.442695
    %v5610 = vpow.pop %v5609
    %v5611 = vmul.f32 %v5543, 1.442695
    %v5612 = vpow.pop %v5611
    %v5613 = vmul.f32 %v5544, 1.442695
    %v5614 = vpow.pop %v5613
    %v5615 = vmul.f32 %v5545, 1.442695
    %v5616 = vpow.pop %v5615
    %v5617 = vmul.f32 %v5546, 1.442695
    %v5618 = vpow.pop %v5617
    %v5619 = vmul.f32 %v5547, 1.442695
    %v5620 = vpow.pop %v5619
    %v5621 = vmul.f32 %v5548, 1.442695
    %v5622 = vpow.pop %v5621
    %v5623 = vmul.f32 %v5549, 1.442695
    %v5624 = vpow.pop %v5623
    %v5625 = vmul.f32 %v5550, 1.442695
    %v5626 = vpow.pop %v5625
    %v5627 = vmul.f32 %v5551, 1.442695
    %v5628 = vpow.pop %v5627
    %v5629 = vmul.f32 %v5552, 1.442695
    %v5630 = vpow.pop %v5629
    %v5631 = vmul.f32 %v5553, 1.442695
    %v5632 = vpow.pop %v5631
    %v5633 = vmul.f32 %v5554, 1.442695
    %v5634 = vpow.pop %v5633
    %v5635 = vmul.f32 %v5555, 1.442695
    %v5636 = vpow.pop %v5635
    %v5637 = vmul.f32 %v5556, 1.442695
    %v5638 = vpow.pop %v5637
    %v5639 = vmul.f32 %v5557, 1.442695
    %v5640 = vpow.pop %v5639
    %v5641 = vmul.f32 %v5558, 1.442695
    %v5642 = vpow.pop %v5641
    %v5643 = vmul.f32 %v5559, 1.442695
    %v5644 = vpow.pop %v5643
    %v5645 = vmul.f32 %v5560, 1.442695
    %v5646 = vpow.pop %v5645
    %v5647 = vmul.f32 %v5561, 1.442695
    %v5648 = vpow.pop %v5647
    %v5649 = vmul.f32 %v5562, 1.442695
    %v5650 = vpow.pop %v5649
    %v5651 = vmul.f32 %v5563, 1.442695
    %v5652 = vpow.pop %v5651
    %v5653 = vmul.f32 %v5564, 1.442695
    %v5654 = vpow.pop %v5653
    %v5655 = vmul.f32 %v5565, 1.442695
    %v5656 = vpow.pop %v5655
    %v5657 = vmul.f32 %v5566, 1.442695
    %v5658 = vpow.pop %v5657
    %v5659 = vmul.f32 %v5567, 1.442695
    %v5660 = vpow.pop %v5659
    %v5661 = vmul.f32 %v5568, 1.442695
    %v5662 = vpow.pop %v5661
    %v5663 = vmul.f32 %v5569, 1.442695
    %v5664 = vpow.pop %v5663
    %v5665 = vmul.f32 %v5570, 1.442695
    %v5666 = vpow.pop %v5665
    %v5667 = vmul.f32 %v5571, 1.442695
    %v5668 = vpow.pop %v5667
    %v5669 = vmul.f32 %v5572, 1.442695
    %v5670 = vpow.pop %v5669
    %v5671 = vmul.f32 %v5573, 1.442695
    %v5672 = vpow.pop %v5671
    %v5673 = vmul.f32 %v5574, 1.442695
    %v5674 = vpow.pop %v5673
    %v5675 = vmul.f32 %v5575, 1.442695
    %v5676 = vpow.pop %v5675
    %v5677 = vmul.f32 %v5576, 1.442695
    %v5678 = vpow.pop %v5677
    %v5679 = vmul.f32 %v5577, 1.442695
    %v5680 = vpow.pop %v5679
    %v5681 = vmul.f32 %v5578, 1.442695
    %v5682 = vpow.pop %v5681
    %v5683 = vmul.f32 %v5579, 1.442695
    %v5684 = vpow.pop %v5683
    %v5685 = vmul.f32 %v5580, 1.442695
    %v5686 = vpow.pop %v5685
    %v5687 = vmul.f32 %v5581, 1.442695
    %v5688 = vpow.pop %v5687
    %v5689 = vmul.f32 %v5582, 1.442695
    %v5690 = vpow.pop %v5689
    %v5691 = vmul.f32 %v5583, 1.442695
    %v5692 = vpow.pop %v5691
    %v5693 = vmul.f32 %v5584, 1.442695
    %v5694 = vpow.pop %v5693
    %v5695 = vmul.f32 %v5585, 1.442695
    %v5696 = vpow.pop %v5695
    %v5697 = vmul.f32 %v5586, 1.442695
    %v5698 = vpow.pop %v5697
    %v5699 = vmul.f32 %v5587, 1.442695
    %v5700 = vpow.pop %v5699
    %v5701 = vmul.f32 %v5588, 1.442695
    %v5702 = vpow.pop %v5701
    %v5703 = vmul.f32 %v5589, 1.442695
    %v5704 = vpow.pop %v5703
    %v5705 = vmul.f32 %v5590, 1.442695
    %v5706 = vpow.pop %v5705
    %v5707 = vmul.f32 %v5591, 1.442695
    %v5708 = vpow.pop %v5707
    %v5709 = vmul.f32 %v5592, 1.442695
    %v5710 = vpow.pop %v5709
    %v5711 = vmul.f32 %v5593, 1.442695
    %v5712 = vpow.pop %v5711
    %v5713 = vmul.f32 %v5594, 1.442695
    %v5714 = vpow.pop %v5713
    %v5715 = vmul.f32 %v5595, 1.442695
    %v5716 = vpow.pop %v5715
    %v5717 = vmul.f32 %v5596, 1.442695
    %v5718 = vpow.pop %v5717
    %v5719 = vmul.f32 %v5597, 1.442695
    %v5720 = vpow.pop %v5719
    %v5721 = vmul.f32 %v5598, 1.442695
    %v5722 = vpow.pop %v5721
    %v5723 = vmul.f32 %v5599, 1.442695
    %v5724 = vpow.pop %v5723
    %v5725 = vmul.f32 %v5600, 1.442695
    %v5726 = vpow.pop %v5725
    %v5727 = vmul.f32 %v5601, 1.442695
    %v5728 = vpow.pop %v5727
    %v5729 = vmul.f32 %v5602, 1.442695
    %v5730 = vpow.pop %v5729
    %v5731 = vadd.f32 %v5604, 1.0
    %v5732 = vadd.f32 %v5606, 1.0
    %v5733 = vadd.f32 %v5608, 1.0
    %v5734 = vadd.f32 %v5610, 1.0
    %v5735 = vadd.f32 %v5612, 1.0
    %v5736 = vadd.f32 %v5614, 1.0
    %v5737 = vadd.f32 %v5616, 1.0
    %v5738 = vadd.f32 %v5618, 1.0
    %v5739 = vadd.f32 %v5620, 1.0
    %v5740 = vadd.f32 %v5622, 1.0
    %v5741 = vadd.f32 %v5624, 1.0
    %v5742 = vadd.f32 %v5626, 1.0
    %v5743 = vadd.f32 %v5628, 1.0
    %v5744 = vadd.f32 %v5630, 1.0
    %v5745 = vadd.f32 %v5632, 1.0
    %v5746 = vadd.f32 %v5634, 1.0
    %v5747 = vadd.f32 %v5636, 1.0
    %v5748 = vadd.f32 %v5638, 1.0
    %v5749 = vadd.f32 %v5640, 1.0
    %v5750 = vadd.f32 %v5642, 1.0
    %v5751 = vadd.f32 %v5644, 1.0
    %v5752 = vadd.f32 %v5646, 1.0
    %v5753 = vadd.f32 %v5648, 1.0
    %v5754 = vadd.f32 %v5650, 1.0
    %v5755 = vadd.f32 %v5652, 1.0
    %v5756 = vadd.f32 %v5654, 1.0
    %v5757 = vadd.f32 %v5656, 1.0
    %v5758 = vadd.f32 %v5658, 1.0
    %v5759 = vadd.f32 %v5660, 1.0
    %v5760 = vadd.f32 %v5662, 1.0
    %v5761 = vadd.f32 %v5664, 1.0
    %v5762 = vadd.f32 %v5666, 1.0
    %v5763 = vadd.f32 %v5668, 1.0
    %v5764 = vadd.f32 %v5670, 1.0
    %v5765 = vadd.f32 %v5672, 1.0
    %v5766 = vadd.f32 %v5674, 1.0
    %v5767 = vadd.f32 %v5676, 1.0
    %v5768 = vadd.f32 %v5678, 1.0
    %v5769 = vadd.f32 %v5680, 1.0
    %v5770 = vadd.f32 %v5682, 1.0
    %v5771 = vadd.f32 %v5684, 1.0
    %v5772 = vadd.f32 %v5686, 1.0
    %v5773 = vadd.f32 %v5688, 1.0
    %v5774 = vadd.f32 %v5690, 1.0
    %v5775 = vadd.f32 %v5692, 1.0
    %v5776 = vadd.f32 %v5694, 1.0
    %v5777 = vadd.f32 %v5696, 1.0
    %v5778 = vadd.f32 %v5698, 1.0
    %v5779 = vadd.f32 %v5700, 1.0
    %v5780 = vadd.f32 %v5702, 1.0
    %v5781 = vadd.f32 %v5704, 1.0
    %v5782 = vadd.f32 %v5706, 1.0
    %v5783 = vadd.f32 %v5708, 1.0
    %v5784 = vadd.f32 %v5710, 1.0
    %v5785 = vadd.f32 %v5712, 1.0
    %v5786 = vadd.f32 %v5714, 1.0
    %v5787 = vadd.f32 %v5716, 1.0
    %v5788 = vadd.f32 %v5718, 1.0
    %v5789 = vadd.f32 %v5720, 1.0
    %v5790 = vadd.f32 %v5722, 1.0
    %v5791 = vadd.f32 %v5724, 1.0
    %v5792 = vadd.f32 %v5726, 1.0
    %v5793 = vadd.f32 %v5728, 1.0
    %v5794 = vadd.f32 %v5730, 1.0
    %v5795 = vrcp.pop %v5731
    %v5796 = vmul.f32 %v5731, %v5795
    %v5797 = vsub.f32 1.0, %v5796
    %v5798 = vmul.f32 %v5795, %v5797
    %v5799 = vadd.f32 %v5795, %v5798
    %vm5800 = vweird.f32 %v5731
    %vm5801 = vweird.f32 %v5795
    %vm5802 = vmor %vm5800, %vm5801
    %v5803 = vsel %vm5802, %v5795, %v5799
    %v5804 = vand.u32 2147483647, %v5731
    %vm5805 = vcmp.eq.f32.partialorder %v5804, 8.507059e+37
    %v5806 = vand.u32 %v5731, 2147483648
    %v5807 = vor.u32 1.1754944e-38, %v5806
    %v5808 = vsel %vm5805, %v5807, %v5803
    %v5809 = vmul.f32 1.0, %v5808
    %v5810 = vrcp.pop %v5732
    %v5811 = vmul.f32 %v5732, %v5810
    %v5812 = vsub.f32 1.0, %v5811
    %v5813 = vmul.f32 %v5810, %v5812
    %v5814 = vadd.f32 %v5810, %v5813
    %vm5815 = vweird.f32 %v5732
    %vm5816 = vweird.f32 %v5810
    %vm5817 = vmor %vm5815, %vm5816
    %v5818 = vsel %vm5817, %v5810, %v5814
    %v5819 = vand.u32 2147483647, %v5732
    %vm5820 = vcmp.eq.f32.partialorder %v5819, 8.507059e+37
    %v5821 = vand.u32 %v5732, 2147483648
    %v5822 = vor.u32 1.1754944e-38, %v5821
    %v5823 = vsel %vm5820, %v5822, %v5818
    %v5824 = vmul.f32 1.0, %v5823
    %v5825 = vrcp.pop %v5733
    %v5826 = vmul.f32 %v5733, %v5825
    %v5827 = vsub.f32 1.0, %v5826
    %v5828 = vmul.f32 %v5825, %v5827
    %v5829 = vadd.f32 %v5825, %v5828
    %vm5830 = vweird.f32 %v5733
    %vm5831 = vweird.f32 %v5825
    %vm5832 = vmor %vm5830, %vm5831
    %v5833 = vsel %vm5832, %v5825, %v5829
    %v5834 = vand.u32 2147483647, %v5733
    %vm5835 = vcmp.eq.f32.partialorder %v5834, 8.507059e+37
    %v5836 = vand.u32 %v5733, 2147483648
    %v5837 = vor.u32 1.1754944e-38, %v5836
    %v5838 = vsel %vm5835, %v5837, %v5833
    %v5839 = vmul.f32 1.0, %v5838
    %v5840 = vrcp.pop %v5734
    %v5841 = vmul.f32 %v5734, %v5840
    %v5842 = vsub.f32 1.0, %v5841
    %v5843 = vmul.f32 %v5840, %v5842
    %v5844 = vadd.f32 %v5840, %v5843
    %vm5845 = vweird.f32 %v5734
    %vm5846 = vweird.f32 %v5840
    %vm5847 = vmor %vm5845, %vm5846
    %v5848 = vsel %vm5847, %v5840, %v5844
    %v5849 = vand.u32 2147483647, %v5734
    %vm5850 = vcmp.eq.f32.partialorder %v5849, 8.507059e+37
    %v5851 = vand.u32 %v5734, 2147483648
    %v5852 = vor.u32 1.1754944e-38, %v5851
    %v5853 = vsel %vm5850, %v5852, %v5848
    %v5854 = vmul.f32 1.0, %v5853
    %v5855 = vrcp.pop %v5735
    %v5856 = vmul.f32 %v5735, %v5855
    %v5857 = vsub.f32 1.0, %v5856
    %v5858 = vmul.f32 %v5855, %v5857
    %v5859 = vadd.f32 %v5855, %v5858
    %vm5860 = vweird.f32 %v5735
    %vm5861 = vweird.f32 %v5855
    %vm5862 = vmor %vm5860, %vm5861
    %v5863 = vsel %vm5862, %v5855, %v5859
    %v5864 = vand.u32 2147483647, %v5735
    %vm5865 = vcmp.eq.f32.partialorder %v5864, 8.507059e+37
    %v5866 = vand.u32 %v5735, 2147483648
    %v5867 = vor.u32 1.1754944e-38, %v5866
    %v5868 = vsel %vm5865, %v5867, %v5863
    %v5869 = vmul.f32 1.0, %v5868
    %v5870 = vrcp.pop %v5736
    %v5871 = vmul.f32 %v5736, %v5870
    %v5872 = vsub.f32 1.0, %v5871
    %v5873 = vmul.f32 %v5870, %v5872
    %v5874 = vadd.f32 %v5870, %v5873
    %vm5875 = vweird.f32 %v5736
    %vm5876 = vweird.f32 %v5870
    %vm5877 = vmor %vm5875, %vm5876
    %v5878 = vsel %vm5877, %v5870, %v5874
    %v5879 = vand.u32 2147483647, %v5736
    %vm5880 = vcmp.eq.f32.partialorder %v5879, 8.507059e+37
    %v5881 = vand.u32 %v5736, 2147483648
    %v5882 = vor.u32 1.1754944e-38, %v5881
    %v5883 = vsel %vm5880, %v5882, %v5878
    %v5884 = vmul.f32 1.0, %v5883
    %v5885 = vrcp.pop %v5737
    %v5886 = vmul.f32 %v5737, %v5885
    %v5887 = vsub.f32 1.0, %v5886
    %v5888 = vmul.f32 %v5885, %v5887
    %v5889 = vadd.f32 %v5885, %v5888
    %vm5890 = vweird.f32 %v5737
    %vm5891 = vweird.f32 %v5885
    %vm5892 = vmor %vm5890, %vm5891
    %v5893 = vsel %vm5892, %v5885, %v5889
    %v5894 = vand.u32 2147483647, %v5737
    %vm5895 = vcmp.eq.f32.partialorder %v5894, 8.507059e+37
    %v5896 = vand.u32 %v5737, 2147483648
    %v5897 = vor.u32 1.1754944e-38, %v5896
    %v5898 = vsel %vm5895, %v5897, %v5893
    %v5899 = vmul.f32 1.0, %v5898
    %v5900 = vrcp.pop %v5738
    %v5901 = vmul.f32 %v5738, %v5900
    %v5902 = vsub.f32 1.0, %v5901
    %v5903 = vmul.f32 %v5900, %v5902
    %v5904 = vadd.f32 %v5900, %v5903
    %vm5905 = vweird.f32 %v5738
    %vm5906 = vweird.f32 %v5900
    %vm5907 = vmor %vm5905, %vm5906
    %v5908 = vsel %vm5907, %v5900, %v5904
    %v5909 = vand.u32 2147483647, %v5738
    %vm5910 = vcmp.eq.f32.partialorder %v5909, 8.507059e+37
    %v5911 = vand.u32 %v5738, 2147483648
    %v5912 = vor.u32 1.1754944e-38, %v5911
    %v5913 = vsel %vm5910, %v5912, %v5908
    %v5914 = vmul.f32 1.0, %v5913
    %v5915 = vrcp.pop %v5739
    %v5916 = vmul.f32 %v5739, %v5915
    %v5917 = vsub.f32 1.0, %v5916
    %v5918 = vmul.f32 %v5915, %v5917
    %v5919 = vadd.f32 %v5915, %v5918
    %vm5920 = vweird.f32 %v5739
    %vm5921 = vweird.f32 %v5915
    %vm5922 = vmor %vm5920, %vm5921
    %v5923 = vsel %vm5922, %v5915, %v5919
    %v5924 = vand.u32 2147483647, %v5739
    %vm5925 = vcmp.eq.f32.partialorder %v5924, 8.507059e+37
    %v5926 = vand.u32 %v5739, 2147483648
    %v5927 = vor.u32 1.1754944e-38, %v5926
    %v5928 = vsel %vm5925, %v5927, %v5923
    %v5929 = vmul.f32 1.0, %v5928
    %v5930 = vrcp.pop %v5740
    %v5931 = vmul.f32 %v5740, %v5930
    %v5932 = vsub.f32 1.0, %v5931
    %v5933 = vmul.f32 %v5930, %v5932
    %v5934 = vadd.f32 %v5930, %v5933
    %vm5935 = vweird.f32 %v5740
    %vm5936 = vweird.f32 %v5930
    %vm5937 = vmor %vm5935, %vm5936
    %v5938 = vsel %vm5937, %v5930, %v5934
    %v5939 = vand.u32 2147483647, %v5740
    %vm5940 = vcmp.eq.f32.partialorder %v5939, 8.507059e+37
    %v5941 = vand.u32 %v5740, 2147483648
    %v5942 = vor.u32 1.1754944e-38, %v5941
    %v5943 = vsel %vm5940, %v5942, %v5938
    %v5944 = vmul.f32 1.0, %v5943
    %v5945 = vrcp.pop %v5741
    %v5946 = vmul.f32 %v5741, %v5945
    %v5947 = vsub.f32 1.0, %v5946
    %v5948 = vmul.f32 %v5945, %v5947
    %v5949 = vadd.f32 %v5945, %v5948
    %vm5950 = vweird.f32 %v5741
    %vm5951 = vweird.f32 %v5945
    %vm5952 = vmor %vm5950, %vm5951
    %v5953 = vsel %vm5952, %v5945, %v5949
    %v5954 = vand.u32 2147483647, %v5741
    %vm5955 = vcmp.eq.f32.partialorder %v5954, 8.507059e+37
    %v5956 = vand.u32 %v5741, 2147483648
    %v5957 = vor.u32 1.1754944e-38, %v5956
    %v5958 = vsel %vm5955, %v5957, %v5953
    %v5959 = vmul.f32 1.0, %v5958
    %v5960 = vrcp.pop %v5742
    %v5961 = vmul.f32 %v5742, %v5960
    %v5962 = vsub.f32 1.0, %v5961
    %v5963 = vmul.f32 %v5960, %v5962
    %v5964 = vadd.f32 %v5960, %v5963
    %vm5965 = vweird.f32 %v5742
    %vm5966 = vweird.f32 %v5960
    %vm5967 = vmor %vm5965, %vm5966
    %v5968 = vsel %vm5967, %v5960, %v5964
    %v5969 = vand.u32 2147483647, %v5742
    %vm5970 = vcmp.eq.f32.partialorder %v5969, 8.507059e+37
    %v5971 = vand.u32 %v5742, 2147483648
    %v5972 = vor.u32 1.1754944e-38, %v5971
    %v5973 = vsel %vm5970, %v5972, %v5968
    %v5974 = vmul.f32 1.0, %v5973
    %v5975 = vrcp.pop %v5743
    %v5976 = vmul.f32 %v5743, %v5975
    %v5977 = vsub.f32 1.0, %v5976
    %v5978 = vmul.f32 %v5975, %v5977
    %v5979 = vadd.f32 %v5975, %v5978
    %vm5980 = vweird.f32 %v5743
    %vm5981 = vweird.f32 %v5975
    %vm5982 = vmor %vm5980, %vm5981
    %v5983 = vsel %vm5982, %v5975, %v5979
    %v5984 = vand.u32 2147483647, %v5743
    %vm5985 = vcmp.eq.f32.partialorder %v5984, 8.507059e+37
    %v5986 = vand.u32 %v5743, 2147483648
    %v5987 = vor.u32 1.1754944e-38, %v5986
    %v5988 = vsel %vm5985, %v5987, %v5983
    %v5989 = vmul.f32 1.0, %v5988
    %v5990 = vrcp.pop %v5744
    %v5991 = vmul.f32 %v5744, %v5990
    %v5992 = vsub.f32 1.0, %v5991
    %v5993 = vmul.f32 %v5990, %v5992
    %v5994 = vadd.f32 %v5990, %v5993
    %vm5995 = vweird.f32 %v5744
    %vm5996 = vweird.f32 %v5990
    %vm5997 = vmor %vm5995, %vm5996
    %v5998 = vsel %vm5997, %v5990, %v5994
    %v5999 = vand.u32 2147483647, %v5744
    %vm6000 = vcmp.eq.f32.partialorder %v5999, 8.507059e+37
    %v6001 = vand.u32 %v5744, 2147483648
    %v6002 = vor.u32 1.1754944e-38, %v6001
    %v6003 = vsel %vm6000, %v6002, %v5998
    %v6004 = vmul.f32 1.0, %v6003
    %v6005 = vrcp.pop %v5745
    %v6006 = vmul.f32 %v5745, %v6005
    %v6007 = vsub.f32 1.0, %v6006
    %v6008 = vmul.f32 %v6005, %v6007
    %v6009 = vadd.f32 %v6005, %v6008
    %vm6010 = vweird.f32 %v5745
    %vm6011 = vweird.f32 %v6005
    %vm6012 = vmor %vm6010, %vm6011
    %v6013 = vsel %vm6012, %v6005, %v6009
    %v6014 = vand.u32 2147483647, %v5745
    %vm6015 = vcmp.eq.f32.partialorder %v6014, 8.507059e+37
    %v6016 = vand.u32 %v5745, 2147483648
    %v6017 = vor.u32 1.1754944e-38, %v6016
    %v6018 = vsel %vm6015, %v6017, %v6013
    %v6019 = vmul.f32 1.0, %v6018
    %v6020 = vrcp.pop %v5746
    %v6021 = vmul.f32 %v5746, %v6020
    %v6022 = vsub.f32 1.0, %v6021
    %v6023 = vmul.f32 %v6020, %v6022
    %v6024 = vadd.f32 %v6020, %v6023
    %vm6025 = vweird.f32 %v5746
    %vm6026 = vweird.f32 %v6020
    %vm6027 = vmor %vm6025, %vm6026
    %v6028 = vsel %vm6027, %v6020, %v6024
    %v6029 = vand.u32 2147483647, %v5746
    %vm6030 = vcmp.eq.f32.partialorder %v6029, 8.507059e+37
    %v6031 = vand.u32 %v5746, 2147483648
    %v6032 = vor.u32 1.1754944e-38, %v6031
    %v6033 = vsel %vm6030, %v6032, %v6028
    %v6034 = vmul.f32 1.0, %v6033
    %v6035 = vrcp.pop %v5747
    %v6036 = vmul.f32 %v5747, %v6035
    %v6037 = vsub.f32 1.0, %v6036
    %v6038 = vmul.f32 %v6035, %v6037
    %v6039 = vadd.f32 %v6035, %v6038
    %vm6040 = vweird.f32 %v5747
    %vm6041 = vweird.f32 %v6035
    %vm6042 = vmor %vm6040, %vm6041
    %v6043 = vsel %vm6042, %v6035, %v6039
    %v6044 = vand.u32 2147483647, %v5747
    %vm6045 = vcmp.eq.f32.partialorder %v6044, 8.507059e+37
    %v6046 = vand.u32 %v5747, 2147483648
    %v6047 = vor.u32 1.1754944e-38, %v6046
    %v6048 = vsel %vm6045, %v6047, %v6043
    %v6049 = vmul.f32 1.0, %v6048
    %v6050 = vrcp.pop %v5748
    %v6051 = vmul.f32 %v5748, %v6050
    %v6052 = vsub.f32 1.0, %v6051
    %v6053 = vmul.f32 %v6050, %v6052
    %v6054 = vadd.f32 %v6050, %v6053
    %vm6055 = vweird.f32 %v5748
    %vm6056 = vweird.f32 %v6050
    %vm6057 = vmor %vm6055, %vm6056
    %v6058 = vsel %vm6057, %v6050, %v6054
    %v6059 = vand.u32 2147483647, %v5748
    %vm6060 = vcmp.eq.f32.partialorder %v6059, 8.507059e+37
    %v6061 = vand.u32 %v5748, 2147483648
    %v6062 = vor.u32 1.1754944e-38, %v6061
    %v6063 = vsel %vm6060, %v6062, %v6058
    %v6064 = vmul.f32 1.0, %v6063
    %v6065 = vrcp.pop %v5749
    %v6066 = vmul.f32 %v5749, %v6065
    %v6067 = vsub.f32 1.0, %v6066
    %v6068 = vmul.f32 %v6065, %v6067
    %v6069 = vadd.f32 %v6065, %v6068
    %vm6070 = vweird.f32 %v5749
    %vm6071 = vweird.f32 %v6065
    %vm6072 = vmor %vm6070, %vm6071
    %v6073 = vsel %vm6072, %v6065, %v6069
    %v6074 = vand.u32 2147483647, %v5749
    %vm6075 = vcmp.eq.f32.partialorder %v6074, 8.507059e+37
    %v6076 = vand.u32 %v5749, 2147483648
    %v6077 = vor.u32 1.1754944e-38, %v6076
    %v6078 = vsel %vm6075, %v6077, %v6073
    %v6079 = vmul.f32 1.0, %v6078
    %v6080 = vrcp.pop %v5750
    %v6081 = vmul.f32 %v5750, %v6080
    %v6082 = vsub.f32 1.0, %v6081
    %v6083 = vmul.f32 %v6080, %v6082
    %v6084 = vadd.f32 %v6080, %v6083
    %vm6085 = vweird.f32 %v5750
    %vm6086 = vweird.f32 %v6080
    %vm6087 = vmor %vm6085, %vm6086
    %v6088 = vsel %vm6087, %v6080, %v6084
    %v6089 = vand.u32 2147483647, %v5750
    %vm6090 = vcmp.eq.f32.partialorder %v6089, 8.507059e+37
    %v6091 = vand.u32 %v5750, 2147483648
    %v6092 = vor.u32 1.1754944e-38, %v6091
    %v6093 = vsel %vm6090, %v6092, %v6088
    %v6094 = vmul.f32 1.0, %v6093
    %v6095 = vrcp.pop %v5751
    %v6096 = vmul.f32 %v5751, %v6095
    %v6097 = vsub.f32 1.0, %v6096
    %v6098 = vmul.f32 %v6095, %v6097
    %v6099 = vadd.f32 %v6095, %v6098
    %vm6100 = vweird.f32 %v5751
    %vm6101 = vweird.f32 %v6095
    %vm6102 = vmor %vm6100, %vm6101
    %v6103 = vsel %vm6102, %v6095, %v6099
    %v6104 = vand.u32 2147483647, %v5751
    %vm6105 = vcmp.eq.f32.partialorder %v6104, 8.507059e+37
    %v6106 = vand.u32 %v5751, 2147483648
    %v6107 = vor.u32 1.1754944e-38, %v6106
    %v6108 = vsel %vm6105, %v6107, %v6103
    %v6109 = vmul.f32 1.0, %v6108
    %v6110 = vrcp.pop %v5752
    %v6111 = vmul.f32 %v5752, %v6110
    %v6112 = vsub.f32 1.0, %v6111
    %v6113 = vmul.f32 %v6110, %v6112
    %v6114 = vadd.f32 %v6110, %v6113
    %vm6115 = vweird.f32 %v5752
    %vm6116 = vweird.f32 %v6110
    %vm6117 = vmor %vm6115, %vm6116
    %v6118 = vsel %vm6117, %v6110, %v6114
    %v6119 = vand.u32 2147483647, %v5752
    %vm6120 = vcmp.eq.f32.partialorder %v6119, 8.507059e+37
    %v6121 = vand.u32 %v5752, 2147483648
    %v6122 = vor.u32 1.1754944e-38, %v6121
    %v6123 = vsel %vm6120, %v6122, %v6118
    %v6124 = vmul.f32 1.0, %v6123
    %v6125 = vrcp.pop %v5753
    %v6126 = vmul.f32 %v5753, %v6125
    %v6127 = vsub.f32 1.0, %v6126
    %v6128 = vmul.f32 %v6125, %v6127
    %v6129 = vadd.f32 %v6125, %v6128
    %vm6130 = vweird.f32 %v5753
    %vm6131 = vweird.f32 %v6125
    %vm6132 = vmor %vm6130, %vm6131
    %v6133 = vsel %vm6132, %v6125, %v6129
    %v6134 = vand.u32 2147483647, %v5753
    %vm6135 = vcmp.eq.f32.partialorder %v6134, 8.507059e+37
    %v6136 = vand.u32 %v5753, 2147483648
    %v6137 = vor.u32 1.1754944e-38, %v6136
    %v6138 = vsel %vm6135, %v6137, %v6133
    %v6139 = vmul.f32 1.0, %v6138
    %v6140 = vrcp.pop %v5754
    %v6141 = vmul.f32 %v5754, %v6140
    %v6142 = vsub.f32 1.0, %v6141
    %v6143 = vmul.f32 %v6140, %v6142
    %v6144 = vadd.f32 %v6140, %v6143
    %vm6145 = vweird.f32 %v5754
    %vm6146 = vweird.f32 %v6140
    %vm6147 = vmor %vm6145, %vm6146
    %v6148 = vsel %vm6147, %v6140, %v6144
    %v6149 = vand.u32 2147483647, %v5754
    %vm6150 = vcmp.eq.f32.partialorder %v6149, 8.507059e+37
    %v6151 = vand.u32 %v5754, 2147483648
    %v6152 = vor.u32 1.1754944e-38, %v6151
    %v6153 = vsel %vm6150, %v6152, %v6148
    %v6154 = vmul.f32 1.0, %v6153
    %v6155 = vrcp.pop %v5755
    %v6156 = vmul.f32 %v5755, %v6155
    %v6157 = vsub.f32 1.0, %v6156
    %v6158 = vmul.f32 %v6155, %v6157
    %v6159 = vadd.f32 %v6155, %v6158
    %vm6160 = vweird.f32 %v5755
    %vm6161 = vweird.f32 %v6155
    %vm6162 = vmor %vm6160, %vm6161
    %v6163 = vsel %vm6162, %v6155, %v6159
    %v6164 = vand.u32 2147483647, %v5755
    %vm6165 = vcmp.eq.f32.partialorder %v6164, 8.507059e+37
    %v6166 = vand.u32 %v5755, 2147483648
    %v6167 = vor.u32 1.1754944e-38, %v6166
    %v6168 = vsel %vm6165, %v6167, %v6163
    %v6169 = vmul.f32 1.0, %v6168
    %v6170 = vrcp.pop %v5756
    %v6171 = vmul.f32 %v5756, %v6170
    %v6172 = vsub.f32 1.0, %v6171
    %v6173 = vmul.f32 %v6170, %v6172
    %v6174 = vadd.f32 %v6170, %v6173
    %vm6175 = vweird.f32 %v5756
    %vm6176 = vweird.f32 %v6170
    %vm6177 = vmor %vm6175, %vm6176
    %v6178 = vsel %vm6177, %v6170, %v6174
    %v6179 = vand.u32 2147483647, %v5756
    %vm6180 = vcmp.eq.f32.partialorder %v6179, 8.507059e+37
    %v6181 = vand.u32 %v5756, 2147483648
    %v6182 = vor.u32 1.1754944e-38, %v6181
    %v6183 = vsel %vm6180, %v6182, %v6178
    %v6184 = vmul.f32 1.0, %v6183
    %v6185 = vrcp.pop %v5757
    %v6186 = vmul.f32 %v5757, %v6185
    %v6187 = vsub.f32 1.0, %v6186
    %v6188 = vmul.f32 %v6185, %v6187
    %v6189 = vadd.f32 %v6185, %v6188
    %vm6190 = vweird.f32 %v5757
    %vm6191 = vweird.f32 %v6185
    %vm6192 = vmor %vm6190, %vm6191
    %v6193 = vsel %vm6192, %v6185, %v6189
    %v6194 = vand.u32 2147483647, %v5757
    %vm6195 = vcmp.eq.f32.partialorder %v6194, 8.507059e+37
    %v6196 = vand.u32 %v5757, 2147483648
    %v6197 = vor.u32 1.1754944e-38, %v6196
    %v6198 = vsel %vm6195, %v6197, %v6193
    %v6199 = vmul.f32 1.0, %v6198
    %v6200 = vrcp.pop %v5758
    %v6201 = vmul.f32 %v5758, %v6200
    %v6202 = vsub.f32 1.0, %v6201
    %v6203 = vmul.f32 %v6200, %v6202
    %v6204 = vadd.f32 %v6200, %v6203
    %vm6205 = vweird.f32 %v5758
    %vm6206 = vweird.f32 %v6200
    %vm6207 = vmor %vm6205, %vm6206
    %v6208 = vsel %vm6207, %v6200, %v6204
    %v6209 = vand.u32 2147483647, %v5758
    %vm6210 = vcmp.eq.f32.partialorder %v6209, 8.507059e+37
    %v6211 = vand.u32 %v5758, 2147483648
    %v6212 = vor.u32 1.1754944e-38, %v6211
    %v6213 = vsel %vm6210, %v6212, %v6208
    %v6214 = vmul.f32 1.0, %v6213
    %v6215 = vrcp.pop %v5759
    %v6216 = vmul.f32 %v5759, %v6215
    %v6217 = vsub.f32 1.0, %v6216
    %v6218 = vmul.f32 %v6215, %v6217
    %v6219 = vadd.f32 %v6215, %v6218
    %vm6220 = vweird.f32 %v5759
    %vm6221 = vweird.f32 %v6215
    %vm6222 = vmor %vm6220, %vm6221
    %v6223 = vsel %vm6222, %v6215, %v6219
    %v6224 = vand.u32 2147483647, %v5759
    %vm6225 = vcmp.eq.f32.partialorder %v6224, 8.507059e+37
    %v6226 = vand.u32 %v5759, 2147483648
    %v6227 = vor.u32 1.1754944e-38, %v6226
    %v6228 = vsel %vm6225, %v6227, %v6223
    %v6229 = vmul.f32 1.0, %v6228
    %v6230 = vrcp.pop %v5760
    %v6231 = vmul.f32 %v5760, %v6230
    %v6232 = vsub.f32 1.0, %v6231
    %v6233 = vmul.f32 %v6230, %v6232
    %v6234 = vadd.f32 %v6230, %v6233
    %vm6235 = vweird.f32 %v5760
    %vm6236 = vweird.f32 %v6230
    %vm6237 = vmor %vm6235, %vm6236
    %v6238 = vsel %vm6237, %v6230, %v6234
    %v6239 = vand.u32 2147483647, %v5760
    %vm6240 = vcmp.eq.f32.partialorder %v6239, 8.507059e+37
    %v6241 = vand.u32 %v5760, 2147483648
    %v6242 = vor.u32 1.1754944e-38, %v6241
    %v6243 = vsel %vm6240, %v6242, %v6238
    %v6244 = vmul.f32 1.0, %v6243
    %v6245 = vrcp.pop %v5761
    %v6246 = vmul.f32 %v5761, %v6245
    %v6247 = vsub.f32 1.0, %v6246
    %v6248 = vmul.f32 %v6245, %v6247
    %v6249 = vadd.f32 %v6245, %v6248
    %vm6250 = vweird.f32 %v5761
    %vm6251 = vweird.f32 %v6245
    %vm6252 = vmor %vm6250, %vm6251
    %v6253 = vsel %vm6252, %v6245, %v6249
    %v6254 = vand.u32 2147483647, %v5761
    %vm6255 = vcmp.eq.f32.partialorder %v6254, 8.507059e+37
    %v6256 = vand.u32 %v5761, 2147483648
    %v6257 = vor.u32 1.1754944e-38, %v6256
    %v6258 = vsel %vm6255, %v6257, %v6253
    %v6259 = vmul.f32 1.0, %v6258
    %v6260 = vrcp.pop %v5762
    %v6261 = vmul.f32 %v5762, %v6260
    %v6262 = vsub.f32 1.0, %v6261
    %v6263 = vmul.f32 %v6260, %v6262
    %v6264 = vadd.f32 %v6260, %v6263
    %vm6265 = vweird.f32 %v5762
    %vm6266 = vweird.f32 %v6260
    %vm6267 = vmor %vm6265, %vm6266
    %v6268 = vsel %vm6267, %v6260, %v6264
    %v6269 = vand.u32 2147483647, %v5762
    %vm6270 = vcmp.eq.f32.partialorder %v6269, 8.507059e+37
    %v6271 = vand.u32 %v5762, 2147483648
    %v6272 = vor.u32 1.1754944e-38, %v6271
    %v6273 = vsel %vm6270, %v6272, %v6268
    %v6274 = vmul.f32 1.0, %v6273
    %v6275 = vrcp.pop %v5763
    %v6276 = vmul.f32 %v5763, %v6275
    %v6277 = vsub.f32 1.0, %v6276
    %v6278 = vmul.f32 %v6275, %v6277
    %v6279 = vadd.f32 %v6275, %v6278
    %vm6280 = vweird.f32 %v5763
    %vm6281 = vweird.f32 %v6275
    %vm6282 = vmor %vm6280, %vm6281
    %v6283 = vsel %vm6282, %v6275, %v6279
    %v6284 = vand.u32 2147483647, %v5763
    %vm6285 = vcmp.eq.f32.partialorder %v6284, 8.507059e+37
    %v6286 = vand.u32 %v5763, 2147483648
    %v6287 = vor.u32 1.1754944e-38, %v6286
    %v6288 = vsel %vm6285, %v6287, %v6283
    %v6289 = vmul.f32 1.0, %v6288
    %v6290 = vrcp.pop %v5764
    %v6291 = vmul.f32 %v5764, %v6290
    %v6292 = vsub.f32 1.0, %v6291
    %v6293 = vmul.f32 %v6290, %v6292
    %v6294 = vadd.f32 %v6290, %v6293
    %vm6295 = vweird.f32 %v5764
    %vm6296 = vweird.f32 %v6290
    %vm6297 = vmor %vm6295, %vm6296
    %v6298 = vsel %vm6297, %v6290, %v6294
    %v6299 = vand.u32 2147483647, %v5764
    %vm6300 = vcmp.eq.f32.partialorder %v6299, 8.507059e+37
    %v6301 = vand.u32 %v5764, 2147483648
    %v6302 = vor.u32 1.1754944e-38, %v6301
    %v6303 = vsel %vm6300, %v6302, %v6298
    %v6304 = vmul.f32 1.0, %v6303
    %v6305 = vrcp.pop %v5765
    %v6306 = vmul.f32 %v5765, %v6305
    %v6307 = vsub.f32 1.0, %v6306
    %v6308 = vmul.f32 %v6305, %v6307
    %v6309 = vadd.f32 %v6305, %v6308
    %vm6310 = vweird.f32 %v5765
    %vm6311 = vweird.f32 %v6305
    %vm6312 = vmor %vm6310, %vm6311
    %v6313 = vsel %vm6312, %v6305, %v6309
    %v6314 = vand.u32 2147483647, %v5765
    %vm6315 = vcmp.eq.f32.partialorder %v6314, 8.507059e+37
    %v6316 = vand.u32 %v5765, 2147483648
    %v6317 = vor.u32 1.1754944e-38, %v6316
    %v6318 = vsel %vm6315, %v6317, %v6313
    %v6319 = vmul.f32 1.0, %v6318
    %v6320 = vrcp.pop %v5766
    %v6321 = vmul.f32 %v5766, %v6320
    %v6322 = vsub.f32 1.0, %v6321
    %v6323 = vmul.f32 %v6320, %v6322
    %v6324 = vadd.f32 %v6320, %v6323
    %vm6325 = vweird.f32 %v5766
    %vm6326 = vweird.f32 %v6320
    %vm6327 = vmor %vm6325, %vm6326
    %v6328 = vsel %vm6327, %v6320, %v6324
    %v6329 = vand.u32 2147483647, %v5766
    %vm6330 = vcmp.eq.f32.partialorder %v6329, 8.507059e+37
    %v6331 = vand.u32 %v5766, 2147483648
    %v6332 = vor.u32 1.1754944e-38, %v6331
    %v6333 = vsel %vm6330, %v6332, %v6328
    %v6334 = vmul.f32 1.0, %v6333
    %v6335 = vrcp.pop %v5767
    %v6336 = vmul.f32 %v5767, %v6335
    %v6337 = vsub.f32 1.0, %v6336
    %v6338 = vmul.f32 %v6335, %v6337
    %v6339 = vadd.f32 %v6335, %v6338
    %vm6340 = vweird.f32 %v5767
    %vm6341 = vweird.f32 %v6335
    %vm6342 = vmor %vm6340, %vm6341
    %v6343 = vsel %vm6342, %v6335, %v6339
    %v6344 = vand.u32 2147483647, %v5767
    %vm6345 = vcmp.eq.f32.partialorder %v6344, 8.507059e+37
    %v6346 = vand.u32 %v5767, 2147483648
    %v6347 = vor.u32 1.1754944e-38, %v6346
    %v6348 = vsel %vm6345, %v6347, %v6343
    %v6349 = vmul.f32 1.0, %v6348
    %v6350 = vrcp.pop %v5768
    %v6351 = vmul.f32 %v5768, %v6350
    %v6352 = vsub.f32 1.0, %v6351
    %v6353 = vmul.f32 %v6350, %v6352
    %v6354 = vadd.f32 %v6350, %v6353
    %vm6355 = vweird.f32 %v5768
    %vm6356 = vweird.f32 %v6350
    %vm6357 = vmor %vm6355, %vm6356
    %v6358 = vsel %vm6357, %v6350, %v6354
    %v6359 = vand.u32 2147483647, %v5768
    %vm6360 = vcmp.eq.f32.partialorder %v6359, 8.507059e+37
    %v6361 = vand.u32 %v5768, 2147483648
    %v6362 = vor.u32 1.1754944e-38, %v6361
    %v6363 = vsel %vm6360, %v6362, %v6358
    %v6364 = vmul.f32 1.0, %v6363
    %v6365 = vrcp.pop %v5769
    %v6366 = vmul.f32 %v5769, %v6365
    %v6367 = vsub.f32 1.0, %v6366
    %v6368 = vmul.f32 %v6365, %v6367
    %v6369 = vadd.f32 %v6365, %v6368
    %vm6370 = vweird.f32 %v5769
    %vm6371 = vweird.f32 %v6365
    %vm6372 = vmor %vm6370, %vm6371
    %v6373 = vsel %vm6372, %v6365, %v6369
    %v6374 = vand.u32 2147483647, %v5769
    %vm6375 = vcmp.eq.f32.partialorder %v6374, 8.507059e+37
    %v6376 = vand.u32 %v5769, 2147483648
    %v6377 = vor.u32 1.1754944e-38, %v6376
    %v6378 = vsel %vm6375, %v6377, %v6373
    %v6379 = vmul.f32 1.0, %v6378
    %v6380 = vrcp.pop %v5770
    %v6381 = vmul.f32 %v5770, %v6380
    %v6382 = vsub.f32 1.0, %v6381
    %v6383 = vmul.f32 %v6380, %v6382
    %v6384 = vadd.f32 %v6380, %v6383
    %vm6385 = vweird.f32 %v5770
    %vm6386 = vweird.f32 %v6380
    %vm6387 = vmor %vm6385, %vm6386
    %v6388 = vsel %vm6387, %v6380, %v6384
    %v6389 = vand.u32 2147483647, %v5770
    %vm6390 = vcmp.eq.f32.partialorder %v6389, 8.507059e+37
    %v6391 = vand.u32 %v5770, 2147483648
    %v6392 = vor.u32 1.1754944e-38, %v6391
    %v6393 = vsel %vm6390, %v6392, %v6388
    %v6394 = vmul.f32 1.0, %v6393
    %v6395 = vrcp.pop %v5771
    %v6396 = vmul.f32 %v5771, %v6395
    %v6397 = vsub.f32 1.0, %v6396
    %v6398 = vmul.f32 %v6395, %v6397
    %v6399 = vadd.f32 %v6395, %v6398
    %vm6400 = vweird.f32 %v5771
    %vm6401 = vweird.f32 %v6395
    %vm6402 = vmor %vm6400, %vm6401
    %v6403 = vsel %vm6402, %v6395, %v6399
    %v6404 = vand.u32 2147483647, %v5771
    %vm6405 = vcmp.eq.f32.partialorder %v6404, 8.507059e+37
    %v6406 = vand.u32 %v5771, 2147483648
    %v6407 = vor.u32 1.1754944e-38, %v6406
    %v6408 = vsel %vm6405, %v6407, %v6403
    %v6409 = vmul.f32 1.0, %v6408
    %v6410 = vrcp.pop %v5772
    %v6411 = vmul.f32 %v5772, %v6410
    %v6412 = vsub.f32 1.0, %v6411
    %v6413 = vmul.f32 %v6410, %v6412
    %v6414 = vadd.f32 %v6410, %v6413
    %vm6415 = vweird.f32 %v5772
    %vm6416 = vweird.f32 %v6410
    %vm6417 = vmor %vm6415, %vm6416
    %v6418 = vsel %vm6417, %v6410, %v6414
    %v6419 = vand.u32 2147483647, %v5772
    %vm6420 = vcmp.eq.f32.partialorder %v6419, 8.507059e+37
    %v6421 = vand.u32 %v5772, 2147483648
    %v6422 = vor.u32 1.1754944e-38, %v6421
    %v6423 = vsel %vm6420, %v6422, %v6418
    %v6424 = vmul.f32 1.0, %v6423
    %v6425 = vrcp.pop %v5773
    %v6426 = vmul.f32 %v5773, %v6425
    %v6427 = vsub.f32 1.0, %v6426
    %v6428 = vmul.f32 %v6425, %v6427
    %v6429 = vadd.f32 %v6425, %v6428
    %vm6430 = vweird.f32 %v5773
    %vm6431 = vweird.f32 %v6425
    %vm6432 = vmor %vm6430, %vm6431
    %v6433 = vsel %vm6432, %v6425, %v6429
    %v6434 = vand.u32 2147483647, %v5773
    %vm6435 = vcmp.eq.f32.partialorder %v6434, 8.507059e+37
    %v6436 = vand.u32 %v5773, 2147483648
    %v6437 = vor.u32 1.1754944e-38, %v6436
    %v6438 = vsel %vm6435, %v6437, %v6433
    %v6439 = vmul.f32 1.0, %v6438
    %v6440 = vrcp.pop %v5774
    %v6441 = vmul.f32 %v5774, %v6440
    %v6442 = vsub.f32 1.0, %v6441
    %v6443 = vmul.f32 %v6440, %v6442
    %v6444 = vadd.f32 %v6440, %v6443
    %vm6445 = vweird.f32 %v5774
    %vm6446 = vweird.f32 %v6440
    %vm6447 = vmor %vm6445, %vm6446
    %v6448 = vsel %vm6447, %v6440, %v6444
    %v6449 = vand.u32 2147483647, %v5774
    %vm6450 = vcmp.eq.f32.partialorder %v6449, 8.507059e+37
    %v6451 = vand.u32 %v5774, 2147483648
    %v6452 = vor.u32 1.1754944e-38, %v6451
    %v6453 = vsel %vm6450, %v6452, %v6448
    %v6454 = vmul.f32 1.0, %v6453
    %v6455 = vrcp.pop %v5775
    %v6456 = vmul.f32 %v5775, %v6455
    %v6457 = vsub.f32 1.0, %v6456
    %v6458 = vmul.f32 %v6455, %v6457
    %v6459 = vadd.f32 %v6455, %v6458
    %vm6460 = vweird.f32 %v5775
    %vm6461 = vweird.f32 %v6455
    %vm6462 = vmor %vm6460, %vm6461
    %v6463 = vsel %vm6462, %v6455, %v6459
    %v6464 = vand.u32 2147483647, %v5775
    %vm6465 = vcmp.eq.f32.partialorder %v6464, 8.507059e+37
    %v6466 = vand.u32 %v5775, 2147483648
    %v6467 = vor.u32 1.1754944e-38, %v6466
    %v6468 = vsel %vm6465, %v6467, %v6463
    %v6469 = vmul.f32 1.0, %v6468
    %v6470 = vrcp.pop %v5776
    %v6471 = vmul.f32 %v5776, %v6470
    %v6472 = vsub.f32 1.0, %v6471
    %v6473 = vmul.f32 %v6470, %v6472
    %v6474 = vadd.f32 %v6470, %v6473
    %vm6475 = vweird.f32 %v5776
    %vm6476 = vweird.f32 %v6470
    %vm6477 = vmor %vm6475, %vm6476
    %v6478 = vsel %vm6477, %v6470, %v6474
    %v6479 = vand.u32 2147483647, %v5776
    %vm6480 = vcmp.eq.f32.partialorder %v6479, 8.507059e+37
    %v6481 = vand.u32 %v5776, 2147483648
    %v6482 = vor.u32 1.1754944e-38, %v6481
    %v6483 = vsel %vm6480, %v6482, %v6478
    %v6484 = vmul.f32 1.0, %v6483
    %v6485 = vrcp.pop %v5777
    %v6486 = vmul.f32 %v5777, %v6485
    %v6487 = vsub.f32 1.0, %v6486
    %v6488 = vmul.f32 %v6485, %v6487
    %v6489 = vadd.f32 %v6485, %v6488
    %vm6490 = vweird.f32 %v5777
    %vm6491 = vweird.f32 %v6485
    %vm6492 = vmor %vm6490, %vm6491
    %v6493 = vsel %vm6492, %v6485, %v6489
    %v6494 = vand.u32 2147483647, %v5777
    %vm6495 = vcmp.eq.f32.partialorder %v6494, 8.507059e+37
    %v6496 = vand.u32 %v5777, 2147483648
    %v6497 = vor.u32 1.1754944e-38, %v6496
    %v6498 = vsel %vm6495, %v6497, %v6493
    %v6499 = vmul.f32 1.0, %v6498
    %v6500 = vrcp.pop %v5778
    %v6501 = vmul.f32 %v5778, %v6500
    %v6502 = vsub.f32 1.0, %v6501
    %v6503 = vmul.f32 %v6500, %v6502
    %v6504 = vadd.f32 %v6500, %v6503
    %vm6505 = vweird.f32 %v5778
    %vm6506 = vweird.f32 %v6500
    %vm6507 = vmor %vm6505, %vm6506
    %v6508 = vsel %vm6507, %v6500, %v6504
    %v6509 = vand.u32 2147483647, %v5778
    %vm6510 = vcmp.eq.f32.partialorder %v6509, 8.507059e+37
    %v6511 = vand.u32 %v5778, 2147483648
    %v6512 = vor.u32 1.1754944e-38, %v6511
    %v6513 = vsel %vm6510, %v6512, %v6508
    %v6514 = vmul.f32 1.0, %v6513
    %v6515 = vrcp.pop %v5779
    %v6516 = vmul.f32 %v5779, %v6515
    %v6517 = vsub.f32 1.0, %v6516
    %v6518 = vmul.f32 %v6515, %v6517
    %v6519 = vadd.f32 %v6515, %v6518
    %vm6520 = vweird.f32 %v5779
    %vm6521 = vweird.f32 %v6515
    %vm6522 = vmor %vm6520, %vm6521
    %v6523 = vsel %vm6522, %v6515, %v6519
    %v6524 = vand.u32 2147483647, %v5779
    %vm6525 = vcmp.eq.f32.partialorder %v6524, 8.507059e+37
    %v6526 = vand.u32 %v5779, 2147483648
    %v6527 = vor.u32 1.1754944e-38, %v6526
    %v6528 = vsel %vm6525, %v6527, %v6523
    %v6529 = vmul.f32 1.0, %v6528
    %v6530 = vrcp.pop %v5780
    %v6531 = vmul.f32 %v5780, %v6530
    %v6532 = vsub.f32 1.0, %v6531
    %v6533 = vmul.f32 %v6530, %v6532
    %v6534 = vadd.f32 %v6530, %v6533
    %vm6535 = vweird.f32 %v5780
    %vm6536 = vweird.f32 %v6530
    %vm6537 = vmor %vm6535, %vm6536
    %v6538 = vsel %vm6537, %v6530, %v6534
    %v6539 = vand.u32 2147483647, %v5780
    %vm6540 = vcmp.eq.f32.partialorder %v6539, 8.507059e+37
    %v6541 = vand.u32 %v5780, 2147483648
    %v6542 = vor.u32 1.1754944e-38, %v6541
    %v6543 = vsel %vm6540, %v6542, %v6538
    %v6544 = vmul.f32 1.0, %v6543
    %v6545 = vrcp.pop %v5781
    %v6546 = vmul.f32 %v5781, %v6545
    %v6547 = vsub.f32 1.0, %v6546
    %v6548 = vmul.f32 %v6545, %v6547
    %v6549 = vadd.f32 %v6545, %v6548
    %vm6550 = vweird.f32 %v5781
    %vm6551 = vweird.f32 %v6545
    %vm6552 = vmor %vm6550, %vm6551
    %v6553 = vsel %vm6552, %v6545, %v6549
    %v6554 = vand.u32 2147483647, %v5781
    %vm6555 = vcmp.eq.f32.partialorder %v6554, 8.507059e+37
    %v6556 = vand.u32 %v5781, 2147483648
    %v6557 = vor.u32 1.1754944e-38, %v6556
    %v6558 = vsel %vm6555, %v6557, %v6553
    %v6559 = vmul.f32 1.0, %v6558
    %v6560 = vrcp.pop %v5782
    %v6561 = vmul.f32 %v5782, %v6560
    %v6562 = vsub.f32 1.0, %v6561
    %v6563 = vmul.f32 %v6560, %v6562
    %v6564 = vadd.f32 %v6560, %v6563
    %vm6565 = vweird.f32 %v5782
    %vm6566 = vweird.f32 %v6560
    %vm6567 = vmor %vm6565, %vm6566
    %v6568 = vsel %vm6567, %v6560, %v6564
    %v6569 = vand.u32 2147483647, %v5782
    %vm6570 = vcmp.eq.f32.partialorder %v6569, 8.507059e+37
    %v6571 = vand.u32 %v5782, 2147483648
    %v6572 = vor.u32 1.1754944e-38, %v6571
    %v6573 = vsel %vm6570, %v6572, %v6568
    %v6574 = vmul.f32 1.0, %v6573
    %v6575 = vrcp.pop %v5783
    %v6576 = vmul.f32 %v5783, %v6575
    %v6577 = vsub.f32 1.0, %v6576
    %v6578 = vmul.f32 %v6575, %v6577
    %v6579 = vadd.f32 %v6575, %v6578
    %vm6580 = vweird.f32 %v5783
    %vm6581 = vweird.f32 %v6575
    %vm6582 = vmor %vm6580, %vm6581
    %v6583 = vsel %vm6582, %v6575, %v6579
    %v6584 = vand.u32 2147483647, %v5783
    %vm6585 = vcmp.eq.f32.partialorder %v6584, 8.507059e+37
    %v6586 = vand.u32 %v5783, 2147483648
    %v6587 = vor.u32 1.1754944e-38, %v6586
    %v6588 = vsel %vm6585, %v6587, %v6583
    %v6589 = vmul.f32 1.0, %v6588
    %v6590 = vrcp.pop %v5784
    %v6591 = vmul.f32 %v5784, %v6590
    %v6592 = vsub.f32 1.0, %v6591
    %v6593 = vmul.f32 %v6590, %v6592
    %v6594 = vadd.f32 %v6590, %v6593
    %vm6595 = vweird.f32 %v5784
    %vm6596 = vweird.f32 %v6590
    %vm6597 = vmor %vm6595, %vm6596
    %v6598 = vsel %vm6597, %v6590, %v6594
    %v6599 = vand.u32 2147483647, %v5784
    %vm6600 = vcmp.eq.f32.partialorder %v6599, 8.507059e+37
    %v6601 = vand.u32 %v5784, 2147483648
    %v6602 = vor.u32 1.1754944e-38, %v6601
    %v6603 = vsel %vm6600, %v6602, %v6598
    %v6604 = vmul.f32 1.0, %v6603
    %v6605 = vrcp.pop %v5785
    %v6606 = vmul.f32 %v5785, %v6605
    %v6607 = vsub.f32 1.0, %v6606
    %v6608 = vmul.f32 %v6605, %v6607
    %v6609 = vadd.f32 %v6605, %v6608
    %vm6610 = vweird.f32 %v5785
    %vm6611 = vweird.f32 %v6605
    %vm6612 = vmor %vm6610, %vm6611
    %v6613 = vsel %vm6612, %v6605, %v6609
    %v6614 = vand.u32 2147483647, %v5785
    %vm6615 = vcmp.eq.f32.partialorder %v6614, 8.507059e+37
    %v6616 = vand.u32 %v5785, 2147483648
    %v6617 = vor.u32 1.1754944e-38, %v6616
    %v6618 = vsel %vm6615, %v6617, %v6613
    %v6619 = vmul.f32 1.0, %v6618
    %v6620 = vrcp.pop %v5786
    %v6621 = vmul.f32 %v5786, %v6620
    %v6622 = vsub.f32 1.0, %v6621
    %v6623 = vmul.f32 %v6620, %v6622
    %v6624 = vadd.f32 %v6620, %v6623
    %vm6625 = vweird.f32 %v5786
    %vm6626 = vweird.f32 %v6620
    %vm6627 = vmor %vm6625, %vm6626
    %v6628 = vsel %vm6627, %v6620, %v6624
    %v6629 = vand.u32 2147483647, %v5786
    %vm6630 = vcmp.eq.f32.partialorder %v6629, 8.507059e+37
    %v6631 = vand.u32 %v5786, 2147483648
    %v6632 = vor.u32 1.1754944e-38, %v6631
    %v6633 = vsel %vm6630, %v6632, %v6628
    %v6634 = vmul.f32 1.0, %v6633
    %v6635 = vrcp.pop %v5787
    %v6636 = vmul.f32 %v5787, %v6635
    %v6637 = vsub.f32 1.0, %v6636
    %v6638 = vmul.f32 %v6635, %v6637
    %v6639 = vadd.f32 %v6635, %v6638
    %vm6640 = vweird.f32 %v5787
    %vm6641 = vweird.f32 %v6635
    %vm6642 = vmor %vm6640, %vm6641
    %v6643 = vsel %vm6642, %v6635, %v6639
    %v6644 = vand.u32 2147483647, %v5787
    %vm6645 = vcmp.eq.f32.partialorder %v6644, 8.507059e+37
    %v6646 = vand.u32 %v5787, 2147483648
    %v6647 = vor.u32 1.1754944e-38, %v6646
    %v6648 = vsel %vm6645, %v6647, %v6643
    %v6649 = vmul.f32 1.0, %v6648
    %v6650 = vrcp.pop %v5788
    %v6651 = vmul.f32 %v5788, %v6650
    %v6652 = vsub.f32 1.0, %v6651
    %v6653 = vmul.f32 %v6650, %v6652
    %v6654 = vadd.f32 %v6650, %v6653
    %vm6655 = vweird.f32 %v5788
    %vm6656 = vweird.f32 %v6650
    %vm6657 = vmor %vm6655, %vm6656
    %v6658 = vsel %vm6657, %v6650, %v6654
    %v6659 = vand.u32 2147483647, %v5788
    %vm6660 = vcmp.eq.f32.partialorder %v6659, 8.507059e+37
    %v6661 = vand.u32 %v5788, 2147483648
    %v6662 = vor.u32 1.1754944e-38, %v6661
    %v6663 = vsel %vm6660, %v6662, %v6658
    %v6664 = vmul.f32 1.0, %v6663
    %v6665 = vrcp.pop %v5789
    %v6666 = vmul.f32 %v5789, %v6665
    %v6667 = vsub.f32 1.0, %v6666
    %v6668 = vmul.f32 %v6665, %v6667
    %v6669 = vadd.f32 %v6665, %v6668
    %vm6670 = vweird.f32 %v5789
    %vm6671 = vweird.f32 %v6665
    %vm6672 = vmor %vm6670, %vm6671
    %v6673 = vsel %vm6672, %v6665, %v6669
    %v6674 = vand.u32 2147483647, %v5789
    %vm6675 = vcmp.eq.f32.partialorder %v6674, 8.507059e+37
    %v6676 = vand.u32 %v5789, 2147483648
    %v6677 = vor.u32 1.1754944e-38, %v6676
    %v6678 = vsel %vm6675, %v6677, %v6673
    %v6679 = vmul.f32 1.0, %v6678
    %v6680 = vrcp.pop %v5790
    %v6681 = vmul.f32 %v5790, %v6680
    %v6682 = vsub.f32 1.0, %v6681
    %v6683 = vmul.f32 %v6680, %v6682
    %v6684 = vadd.f32 %v6680, %v6683
    %vm6685 = vweird.f32 %v5790
    %vm6686 = vweird.f32 %v6680
    %vm6687 = vmor %vm6685, %vm6686
    %v6688 = vsel %vm6687, %v6680, %v6684
    %v6689 = vand.u32 2147483647, %v5790
    %vm6690 = vcmp.eq.f32.partialorder %v6689, 8.507059e+37
    %v6691 = vand.u32 %v5790, 2147483648
    %v6692 = vor.u32 1.1754944e-38, %v6691
    %v6693 = vsel %vm6690, %v6692, %v6688
    %v6694 = vmul.f32 1.0, %v6693
    %v6695 = vrcp.pop %v5791
    %v6696 = vmul.f32 %v5791, %v6695
    %v6697 = vsub.f32 1.0, %v6696
    %v6698 = vmul.f32 %v6695, %v6697
    %v6699 = vadd.f32 %v6695, %v6698
    %vm6700 = vweird.f32 %v5791
    %vm6701 = vweird.f32 %v6695
    %vm6702 = vmor %vm6700, %vm6701
    %v6703 = vsel %vm6702, %v6695, %v6699
    %v6704 = vand.u32 2147483647, %v5791
    %vm6705 = vcmp.eq.f32.partialorder %v6704, 8.507059e+37
    %v6706 = vand.u32 %v5791, 2147483648
    %v6707 = vor.u32 1.1754944e-38, %v6706
    %v6708 = vsel %vm6705, %v6707, %v6703
    %v6709 = vmul.f32 1.0, %v6708
    %v6710 = vrcp.pop %v5792
    %v6711 = vmul.f32 %v5792, %v6710
    %v6712 = vsub.f32 1.0, %v6711
    %v6713 = vmul.f32 %v6710, %v6712
    %v6714 = vadd.f32 %v6710, %v6713
    %vm6715 = vweird.f32 %v5792
    %vm6716 = vweird.f32 %v6710
    %vm6717 = vmor %vm6715, %vm6716
    %v6718 = vsel %vm6717, %v6710, %v6714
    %v6719 = vand.u32 2147483647, %v5792
    %vm6720 = vcmp.eq.f32.partialorder %v6719, 8.507059e+37
    %v6721 = vand.u32 %v5792, 2147483648
    %v6722 = vor.u32 1.1754944e-38, %v6721
    %v6723 = vsel %vm6720, %v6722, %v6718
    %v6724 = vmul.f32 1.0, %v6723
    %v6725 = vrcp.pop %v5793
    %v6726 = vmul.f32 %v5793, %v6725
    %v6727 = vsub.f32 1.0, %v6726
    %v6728 = vmul.f32 %v6725, %v6727
    %v6729 = vadd.f32 %v6725, %v6728
    %vm6730 = vweird.f32 %v5793
    %vm6731 = vweird.f32 %v6725
    %vm6732 = vmor %vm6730, %vm6731
    %v6733 = vsel %vm6732, %v6725, %v6729
    %v6734 = vand.u32 2147483647, %v5793
    %vm6735 = vcmp.eq.f32.partialorder %v6734, 8.507059e+37
    %v6736 = vand.u32 %v5793, 2147483648
    %v6737 = vor.u32 1.1754944e-38, %v6736
    %v6738 = vsel %vm6735, %v6737, %v6733
    %v6739 = vmul.f32 1.0, %v6738
    %v6740 = vrcp.pop %v5794
    %v6741 = vmul.f32 %v5794, %v6740
    %v6742 = vsub.f32 1.0, %v6741
    %v6743 = vmul.f32 %v6740, %v6742
    %v6744 = vadd.f32 %v6740, %v6743
    %vm6745 = vweird.f32 %v5794
    %vm6746 = vweird.f32 %v6740
    %vm6747 = vmor %vm6745, %vm6746
    %v6748 = vsel %vm6747, %v6740, %v6744
    %v6749 = vand.u32 2147483647, %v5794
    %vm6750 = vcmp.eq.f32.partialorder %v6749, 8.507059e+37
    %v6751 = vand.u32 %v5794, 2147483648
    %v6752 = vor.u32 1.1754944e-38, %v6751
    %v6753 = vsel %vm6750, %v6752, %v6748
    %v6754 = vmul.f32 1.0, %v6753
    %v6755 = vmul.f32 %v4814, %v5809
    %v6756 = vmul.f32 %v4912, %v5824
    %v6757 = vmul.f32 %v5010, %v5839
    %v6758 = vmul.f32 %v5108, %v5854
    %v6759 = vmul.f32 %v4816, %v5869
    %v6760 = vmul.f32 %v4914, %v5884
    %v6761 = vmul.f32 %v5012, %v5899
    %v6762 = vmul.f32 %v5110, %v5914
    %v6763 = vmul.f32 %v4819, %v5929
    %v6764 = vmul.f32 %v4917, %v5944
    %v6765 = vmul.f32 %v5015, %v5959
    %v6766 = vmul.f32 %v5113, %v5974
    %v6767 = vmul.f32 %v4821, %v5989
    %v6768 = vmul.f32 %v4919, %v6004
    %v6769 = vmul.f32 %v5017, %v6019
    %v6770 = vmul.f32 %v5115, %v6034
    %v6771 = vmul.f32 %v4824, %v6049
    %v6772 = vmul.f32 %v4922, %v6064
    %v6773 = vmul.f32 %v5020, %v6079
    %v6774 = vmul.f32 %v5118, %v6094
    %v6775 = vmul.f32 %v4826, %v6109
    %v6776 = vmul.f32 %v4924, %v6124
    %v6777 = vmul.f32 %v5022, %v6139
    %v6778 = vmul.f32 %v5120, %v6154
    %v6779 = vmul.f32 %v4829, %v6169
    %v6780 = vmul.f32 %v4927, %v6184
    %v6781 = vmul.f32 %v5025, %v6199
    %v6782 = vmul.f32 %v5123, %v6214
    %v6783 = vmul.f32 %v4831, %v6229
    %v6784 = vmul.f32 %v4929, %v6244
    %v6785 = vmul.f32 %v5027, %v6259
    %v6786 = vmul.f32 %v5125, %v6274
    %v6787 = vmul.f32 %v4834, %v6289
    %v6788 = vmul.f32 %v4932, %v6304
    %v6789 = vmul.f32 %v5030, %v6319
    %v6790 = vmul.f32 %v5128, %v6334
    %v6791 = vmul.f32 %v4836, %v6349
    %v6792 = vmul.f32 %v4934, %v6364
    %v6793 = vmul.f32 %v5032, %v6379
    %v6794 = vmul.f32 %v5130, %v6394
    %v6795 = vmul.f32 %v4839, %v6409
    %v6796 = vmul.f32 %v4937, %v6424
    %v6797 = vmul.f32 %v5035, %v6439
    %v6798 = vmul.f32 %v5133, %v6454
    %v6799 = vmul.f32 %v4841, %v6469
    %v6800 = vmul.f32 %v4939, %v6484
    %v6801 = vmul.f32 %v5037, %v6499
    %v6802 = vmul.f32 %v5135, %v6514
    %v6803 = vmul.f32 %v4844, %v6529
    %v6804 = vmul.f32 %v4942, %v6544
    %v6805 = vmul.f32 %v5040, %v6559
    %v6806 = vmul.f32 %v5138, %v6574
    %v6807 = vmul.f32 %v4846, %v6589
    %v6808 = vmul.f32 %v4944, %v6604
    %v6809 = vmul.f32 %v5042, %v6619
    %v6810 = vmul.f32 %v5140, %v6634
    %v6811 = vmul.f32 %v4849, %v6649
    %v6812 = vmul.f32 %v4947, %v6664
    %v6813 = vmul.f32 %v5045, %v6679
    %v6814 = vmul.f32 %v5143, %v6694
    %v6815 = vmul.f32 %v4851, %v6709
    %v6816 = vmul.f32 %v4949, %v6724
    %v6817 = vmul.f32 %v5047, %v6739
    %v6818 = vmul.f32 %v5145, %v6754
    %v6819 = vmul.f32 %v6755, %v5206
    %v6820 = vmul.f32 %v6756, %v5304
    %v6821 = vmul.f32 %v6757, %v5402
    %v6822 = vmul.f32 %v6758, %v5500
    %v6823 = vmul.f32 %v6759, %v5208
    %v6824 = vmul.f32 %v6760, %v5306
    %v6825 = vmul.f32 %v6761, %v5404
    %v6826 = vmul.f32 %v6762, %v5502
    %v6827 = vmul.f32 %v6763, %v5211
    %v6828 = vmul.f32 %v6764, %v5309
    %v6829 = vmul.f32 %v6765, %v5407
    %v6830 = vmul.f32 %v6766, %v5505
    %v6831 = vmul.f32 %v6767, %v5213
    %v6832 = vmul.f32 %v6768, %v5311
    %v6833 = vmul.f32 %v6769, %v5409
    %v6834 = vmul.f32 %v6770, %v5507
    %v6835 = vmul.f32 %v6771, %v5216
    %v6836 = vmul.f32 %v6772, %v5314
    %v6837 = vmul.f32 %v6773, %v5412
    %v6838 = vmul.f32 %v6774, %v5510
    %v6839 = vmul.f32 %v6775, %v5218
    %v6840 = vmul.f32 %v6776, %v5316
    %v6841 = vmul.f32 %v6777, %v5414
    %v6842 = vmul.f32 %v6778, %v5512
    %v6843 = vmul.f32 %v6779, %v5221
    %v6844 = vmul.f32 %v6780, %v5319
    %v6845 = vmul.f32 %v6781, %v5417
    %v6846 = vmul.f32 %v6782, %v5515
    %v6847 = vmul.f32 %v6783, %v5223
    %v6848 = vmul.f32 %v6784, %v5321
    %v6849 = vmul.f32 %v6785, %v5419
    %v6850 = vmul.f32 %v6786, %v5517
    %v6851 = vmul.f32 %v6787, %v5226
    %v6852 = vmul.f32 %v6788, %v5324
    %v6853 = vmul.f32 %v6789, %v5422
    %v6854 = vmul.f32 %v6790, %v5520
    %v6855 = vmul.f32 %v6791, %v5228
    %v6856 = vmul.f32 %v6792, %v5326
    %v6857 = vmul.f32 %v6793, %v5424
    %v6858 = vmul.f32 %v6794, %v5522
    %v6859 = vmul.f32 %v6795, %v5231
    %v6860 = vmul.f32 %v6796, %v5329
    %v6861 = vmul.f32 %v6797, %v5427
    %v6862 = vmul.f32 %v6798, %v5525
    %v6863 = vmul.f32 %v6799, %v5233
    %v6864 = vmul.f32 %v6800, %v5331
    %v6865 = vmul.f32 %v6801, %v5429
    %v6866 = vmul.f32 %v6802, %v5527
    %v6867 = vmul.f32 %v6803, %v5236
    %v6868 = vmul.f32 %v6804, %v5334
    %v6869 = vmul.f32 %v6805, %v5432
    %v6870 = vmul.f32 %v6806, %v5530
    %v6871 = vmul.f32 %v6807, %v5238
    %v6872 = vmul.f32 %v6808, %v5336
    %v6873 = vmul.f32 %v6809, %v5434
    %v6874 = vmul.f32 %v6810, %v5532
    %v6875 = vmul.f32 %v6811, %v5241
    %v6876 = vmul.f32 %v6812, %v5339
    %v6877 = vmul.f32 %v6813, %v5437
    %v6878 = vmul.f32 %v6814, %v5535
    %v6879 = vmul.f32 %v6815, %v5243
    %v6880 = vmul.f32 %v6816, %v5341
    %v6881 = vmul.f32 %v6817, %v5439
    %v6882 = vmul.f32 %v6818, %v5537
    %v6883 = vpack.c.bf16 %v6823, %v6819
    %v6884 = vpack.c.bf16 %v6824, %v6820
    %v6885 = vpack.c.bf16 %v6825, %v6821
    %v6886 = vpack.c.bf16 %v6826, %v6822
    %v6887 = vpack.c.bf16 %v6831, %v6827
    %v6888 = vpack.c.bf16 %v6832, %v6828
    %v6889 = vpack.c.bf16 %v6833, %v6829
    %v6890 = vpack.c.bf16 %v6834, %v6830
    %v6891 = vpack.c.bf16 %v6839, %v6835
    %v6892 = vpack.c.bf16 %v6840, %v6836
    %v6893 = vpack.c.bf16 %v6841, %v6837
    %v6894 = vpack.c.bf16 %v6842, %v6838
    %v6895 = vpack.c.bf16 %v6847, %v6843
    %v6896 = vpack.c.bf16 %v6848, %v6844
    %v6897 = vpack.c.bf16 %v6849, %v6845
    %v6898 = vpack.c.bf16 %v6850, %v6846
    %v6899 = vpack.c.bf16 %v6855, %v6851
    %v6900 = vpack.c.bf16 %v6856, %v6852
    %v6901 = vpack.c.bf16 %v6857, %v6853
    %v6902 = vpack.c.bf16 %v6858, %v6854
    %v6903 = vpack.c.bf16 %v6863, %v6859
    %v6904 = vpack.c.bf16 %v6864, %v6860
    %v6905 = vpack.c.bf16 %v6865, %v6861
    %v6906 = vpack.c.bf16 %v6866, %v6862
    %v6907 = vpack.c.bf16 %v6871, %v6867
    %v6908 = vpack.c.bf16 %v6872, %v6868
    %v6909 = vpack.c.bf16 %v6873, %v6869
    %v6910 = vpack.c.bf16 %v6874, %v6870
    %v6911 = vpack.c.bf16 %v6879, %v6875
    %v6912 = vpack.c.bf16 %v6880, %v6876
    %v6913 = vpack.c.bf16 %v6881, %v6877
    %v6914 = vpack.c.bf16 %v6882, %v6878
    %v6915 = vld [vmem:[#allocation14] sm:$0xff]
    %v6916 = vld [vmem:[#allocation14 + $0x8] sm:$0xff]
    %v6917 = vld [vmem:[#allocation14 + $0x10] sm:$0xff]
    %v6918 = vld [vmem:[#allocation14 + $0x18] sm:$0xff]
    %v6919 = vld [vmem:[#allocation14 + $0x20] sm:$0xff]
    %v6920 = vld [vmem:[#allocation14 + $0x28] sm:$0xff]
    %v6921 = vld [vmem:[#allocation14 + $0x30] sm:$0xff]
    %v6922 = vld [vmem:[#allocation14 + $0x38] sm:$0xff]
    %v6923 = vld [vmem:[#allocation14 + $0x40] sm:$0xff]
    %v6924 = vld [vmem:[#allocation14 + $0x48] sm:$0xff]
    %v6925 = vld [vmem:[#allocation14 + $0x50] sm:$0xff]
    %v6926 = vld [vmem:[#allocation14 + $0x58] sm:$0xff]
    %v6927 = vld [vmem:[#allocation14 + $0x60] sm:$0xff]
    %v6928 = vld [vmem:[#allocation14 + $0x68] sm:$0xff]
    %v6929 = vld [vmem:[#allocation14 + $0x70] sm:$0xff]
    %v6930 = vld [vmem:[#allocation14 + $0x78] sm:$0xff]
    %v6931 = vld [vmem:[#allocation14 + $0x80] sm:$0xff]
    %v6932 = vld [vmem:[#allocation14 + $0x88] sm:$0xff]
    %v6933 = vld [vmem:[#allocation14 + $0x90] sm:$0xff]
    %v6934 = vld [vmem:[#allocation14 + $0x98] sm:$0xff]
    %v6935 = vld [vmem:[#allocation14 + $0xa0] sm:$0xff]
    %v6936 = vld [vmem:[#allocation14 + $0xa8] sm:$0xff]
    %v6937 = vld [vmem:[#allocation14 + $0xb0] sm:$0xff]
    %v6938 = vld [vmem:[#allocation14 + $0xb8] sm:$0xff]
    %v6939 = vld [vmem:[#allocation14 + $0xc0] sm:$0xff]
    %v6940 = vld [vmem:[#allocation14 + $0xc8] sm:$0xff]
    %v6941 = vld [vmem:[#allocation14 + $0xd0] sm:$0xff]
    %v6942 = vld [vmem:[#allocation14 + $0xd8] sm:$0xff]
    %v6943 = vld [vmem:[#allocation14 + $0xe0] sm:$0xff]
    %v6944 = vld [vmem:[#allocation14 + $0xe8] sm:$0xff]
    %v6945 = vld [vmem:[#allocation14 + $0xf0] sm:$0xff]
    %v6946 = vld [vmem:[#allocation14 + $0xf8] sm:$0xff]
    %v6947 = vld [vmem:[#allocation14 + $0x100] sm:$0xff]
    %v6948 = vld [vmem:[#allocation14 + $0x108] sm:$0xff]
    %v6949 = vld [vmem:[#allocation14 + $0x110] sm:$0xff]
    %v6950 = vld [vmem:[#allocation14 + $0x118] sm:$0xff]
    %v6951 = vld [vmem:[#allocation14 + $0x120] sm:$0xff]
    %v6952 = vld [vmem:[#allocation14 + $0x128] sm:$0xff]
    %v6953 = vld [vmem:[#allocation14 + $0x130] sm:$0xff]
    %v6954 = vld [vmem:[#allocation14 + $0x138] sm:$0xff]
    %v6955 = vld [vmem:[#allocation14 + $0x140] sm:$0xff]
    %v6956 = vld [vmem:[#allocation14 + $0x148] sm:$0xff]
    %v6957 = vld [vmem:[#allocation14 + $0x150] sm:$0xff]
    %v6958 = vld [vmem:[#allocation14 + $0x158] sm:$0xff]
    %v6959 = vld [vmem:[#allocation14 + $0x160] sm:$0xff]
    %v6960 = vld [vmem:[#allocation14 + $0x168] sm:$0xff]
    %v6961 = vld [vmem:[#allocation14 + $0x170] sm:$0xff]
    %v6962 = vld [vmem:[#allocation14 + $0x178] sm:$0xff]
    %v6963 = vld [vmem:[#allocation14 + $0x180] sm:$0xff]
    %v6964 = vld [vmem:[#allocation14 + $0x188] sm:$0xff]
    %v6965 = vld [vmem:[#allocation14 + $0x190] sm:$0xff]
    %v6966 = vld [vmem:[#allocation14 + $0x198] sm:$0xff]
    %v6967 = vld [vmem:[#allocation14 + $0x1a0] sm:$0xff]
    %v6968 = vld [vmem:[#allocation14 + $0x1a8] sm:$0xff]
    %v6969 = vld [vmem:[#allocation14 + $0x1b0] sm:$0xff]
    %v6970 = vld [vmem:[#allocation14 + $0x1b8] sm:$0xff]
    %v6971 = vld [vmem:[#allocation14 + $0x1c0] sm:$0xff]
    %v6972 = vld [vmem:[#allocation14 + $0x1c8] sm:$0xff]
    %v6973 = vld [vmem:[#allocation14 + $0x1d0] sm:$0xff]
    %v6974 = vld [vmem:[#allocation14 + $0x1d8] sm:$0xff]
    %v6975 = vld [vmem:[#allocation14 + $0x1e0] sm:$0xff]
    %v6976 = vld [vmem:[#allocation14 + $0x1e8] sm:$0xff]
    %v6977 = vld [vmem:[#allocation14 + $0x1f0] sm:$0xff]
    %v6978 = vld [vmem:[#allocation14 + $0x1f8] sm:$0xff]
    %v7043 = vunpack.c.l.b16 %v6915
    %v7044 = vunpack.c.h.b16 %v6915
    %v7045 = vunpack.c.l.b16 %v6916
    %v7046 = vunpack.c.h.b16 %v6916
    %v7047 = vunpack.c.l.b16 %v6917
    %v7048 = vunpack.c.h.b16 %v6917
    %v7049 = vunpack.c.l.b16 %v6918
    %v7050 = vunpack.c.h.b16 %v6918
    %v7051 = vunpack.c.l.b16 %v6919
    %v7052 = vunpack.c.h.b16 %v6919
    %v7053 = vunpack.c.l.b16 %v6920
    %v7054 = vunpack.c.h.b16 %v6920
    %v7055 = vunpack.c.l.b16 %v6921
    %v7056 = vunpack.c.h.b16 %v6921
    %v7057 = vunpack.c.l.b16 %v6922
    %v7058 = vunpack.c.h.b16 %v6922
    %v7059 = vunpack.c.l.b16 %v6923
    %v7060 = vunpack.c.h.b16 %v6923
    %v7061 = vunpack.c.l.b16 %v6924
    %v7062 = vunpack.c.h.b16 %v6924
    %v7063 = vunpack.c.l.b16 %v6925
    %v7064 = vunpack.c.h.b16 %v6925
    %v7065 = vunpack.c.l.b16 %v6926
    %v7066 = vunpack.c.h.b16 %v6926
    %v7067 = vunpack.c.l.b16 %v6927
    %v7068 = vunpack.c.h.b16 %v6927
    %v7069 = vunpack.c.l.b16 %v6928
    %v7070 = vunpack.c.h.b16 %v6928
    %v7071 = vunpack.c.l.b16 %v6929
    %v7072 = vunpack.c.h.b16 %v6929
    %v7073 = vunpack.c.l.b16 %v6930
    %v7074 = vunpack.c.h.b16 %v6930
    %v7075 = vunpack.c.l.b16 %v6931
    %v7076 = vunpack.c.h.b16 %v6931
    %v7077 = vunpack.c.l.b16 %v6932
    %v7078 = vunpack.c.h.b16 %v6932
    %v7079 = vunpack.c.l.b16 %v6933
    %v7080 = vunpack.c.h.b16 %v6933
    %v7081 = vunpack.c.l.b16 %v6934
    %v7082 = vunpack.c.h.b16 %v6934
    %v7083 = vunpack.c.l.b16 %v6935
    %v7084 = vunpack.c.h.b16 %v6935
    %v7085 = vunpack.c.l.b16 %v6936
    %v7086 = vunpack.c.h.b16 %v6936
    %v7087 = vunpack.c.l.b16 %v6937
    %v7088 = vunpack.c.h.b16 %v6937
    %v7089 = vunpack.c.l.b16 %v6938
    %v7090 = vunpack.c.h.b16 %v6938
    %v7091 = vunpack.c.l.b16 %v6939
    %v7092 = vunpack.c.h.b16 %v6939
    %v7093 = vunpack.c.l.b16 %v6940
    %v7094 = vunpack.c.h.b16 %v6940
    %v7095 = vunpack.c.l.b16 %v6941
    %v7096 = vunpack.c.h.b16 %v6941
    %v7097 = vunpack.c.l.b16 %v6942
    %v7098 = vunpack.c.h.b16 %v6942
    %v7099 = vunpack.c.l.b16 %v6943
    %v7100 = vunpack.c.h.b16 %v6943
    %v7101 = vunpack.c.l.b16 %v6944
    %v7102 = vunpack.c.h.b16 %v6944
    %v7103 = vunpack.c.l.b16 %v6945
    %v7104 = vunpack.c.h.b16 %v6945
    %v7105 = vunpack.c.l.b16 %v6946
    %v7106 = vunpack.c.h.b16 %v6946
    %v7107 = vunpack.c.l.b16 %v6947
    %v7108 = vunpack.c.h.b16 %v6947
    %v7109 = vunpack.c.l.b16 %v6948
    %v7110 = vunpack.c.h.b16 %v6948
    %v7111 = vunpack.c.l.b16 %v6949
    %v7112 = vunpack.c.h.b16 %v6949
    %v7113 = vunpack.c.l.b16 %v6950
    %v7114 = vunpack.c.h.b16 %v6950
    %v7115 = vunpack.c.l.b16 %v6951
    %v7116 = vunpack.c.h.b16 %v6951
    %v7117 = vunpack.c.l.b16 %v6952
    %v7118 = vunpack.c.h.b16 %v6952
    %v7119 = vunpack.c.l.b16 %v6953
    %v7120 = vunpack.c.h.b16 %v6953
    %v7121 = vunpack.c.l.b16 %v6954
    %v7122 = vunpack.c.h.b16 %v6954
    %v7123 = vunpack.c.l.b16 %v6955
    %v7124 = vunpack.c.h.b16 %v6955
    %v7125 = vunpack.c.l.b16 %v6956
    %v7126 = vunpack.c.h.b16 %v6956
    %v7127 = vunpack.c.l.b16 %v6957
    %v7128 = vunpack.c.h.b16 %v6957
    %v7129 = vunpack.c.l.b16 %v6958
    %v7130 = vunpack.c.h.b16 %v6958
    %v7131 = vunpack.c.l.b16 %v6959
    %v7132 = vunpack.c.h.b16 %v6959
    %v7133 = vunpack.c.l.b16 %v6960
    %v7134 = vunpack.c.h.b16 %v6960
    %v7135 = vunpack.c.l.b16 %v6961
    %v7136 = vunpack.c.h.b16 %v6961
    %v7137 = vunpack.c.l.b16 %v6962
    %v7138 = vunpack.c.h.b16 %v6962
    %v7139 = vunpack.c.l.b16 %v6963
    %v7140 = vunpack.c.h.b16 %v6963
    %v7141 = vunpack.c.l.b16 %v6964
    %v7142 = vunpack.c.h.b16 %v6964
    %v7143 = vunpack.c.l.b16 %v6965
    %v7144 = vunpack.c.h.b16 %v6965
    %v7145 = vunpack.c.l.b16 %v6966
    %v7146 = vunpack.c.h.b16 %v6966
    %v7147 = vunpack.c.l.b16 %v6967
    %v7148 = vunpack.c.h.b16 %v6967
    %v7149 = vunpack.c.l.b16 %v6968
    %v7150 = vunpack.c.h.b16 %v6968
    %v7151 = vunpack.c.l.b16 %v6969
    %v7152 = vunpack.c.h.b16 %v6969
    %v7153 = vunpack.c.l.b16 %v6970
    %v7154 = vunpack.c.h.b16 %v6970
    %v7155 = vunpack.c.l.b16 %v6971
    %v7156 = vunpack.c.h.b16 %v6971
    %v7157 = vunpack.c.l.b16 %v6972
    %v7158 = vunpack.c.h.b16 %v6972
    %v7159 = vunpack.c.l.b16 %v6973
    %v7160 = vunpack.c.h.b16 %v6973
    %v7161 = vunpack.c.l.b16 %v6974
    %v7162 = vunpack.c.h.b16 %v6974
    %v7163 = vunpack.c.l.b16 %v6975
    %v7164 = vunpack.c.h.b16 %v6975
    %v7165 = vunpack.c.l.b16 %v6976
    %v7166 = vunpack.c.h.b16 %v6976
    %v7167 = vunpack.c.l.b16 %v6977
    %v7168 = vunpack.c.h.b16 %v6977
    %v7169 = vunpack.c.l.b16 %v6978
    %v7170 = vunpack.c.h.b16 %v6978
    %v7171 = vpack.c.b16 %v7045, %v7043
    %v7172 = vpack.c.b16 %v7046, %v7044
    %v7173 = vpack.c.b16 %v7049, %v7047
    %v7174 = vpack.c.b16 %v7050, %v7048
    %v7175 = vpack.c.b16 %v7053, %v7051
    %v7176 = vpack.c.b16 %v7054, %v7052
    %v7177 = vpack.c.b16 %v7057, %v7055
    %v7178 = vpack.c.b16 %v7058, %v7056
    %v7179 = vpack.c.b16 %v7061, %v7059
    %v7180 = vpack.c.b16 %v7062, %v7060
    %v7181 = vpack.c.b16 %v7065, %v7063
    %v7182 = vpack.c.b16 %v7066, %v7064
    %v7183 = vpack.c.b16 %v7069, %v7067
    %v7184 = vpack.c.b16 %v7070, %v7068
    %v7185 = vpack.c.b16 %v7073, %v7071
    %v7186 = vpack.c.b16 %v7074, %v7072
    %v7187 = vpack.c.b16 %v7077, %v7075
    %v7188 = vpack.c.b16 %v7078, %v7076
    %v7189 = vpack.c.b16 %v7081, %v7079
    %v7190 = vpack.c.b16 %v7082, %v7080
    %v7191 = vpack.c.b16 %v7085, %v7083
    %v7192 = vpack.c.b16 %v7086, %v7084
    %v7193 = vpack.c.b16 %v7089, %v7087
    %v7194 = vpack.c.b16 %v7090, %v7088
    %v7195 = vpack.c.b16 %v7093, %v7091
    %v7196 = vpack.c.b16 %v7094, %v7092
    %v7197 = vpack.c.b16 %v7097, %v7095
    %v7198 = vpack.c.b16 %v7098, %v7096
    %v7199 = vpack.c.b16 %v7101, %v7099
    %v7200 = vpack.c.b16 %v7102, %v7100
    %v7201 = vpack.c.b16 %v7105, %v7103
    %v7202 = vpack.c.b16 %v7106, %v7104
    %v7203 = vpack.c.b16 %v7109, %v7107
    %v7204 = vpack.c.b16 %v7110, %v7108
    %v7205 = vpack.c.b16 %v7113, %v7111
    %v7206 = vpack.c.b16 %v7114, %v7112
    %v7207 = vpack.c.b16 %v7117, %v7115
    %v7208 = vpack.c.b16 %v7118, %v7116
    %v7209 = vpack.c.b16 %v7121, %v7119
    %v7210 = vpack.c.b16 %v7122, %v7120
    %v7211 = vpack.c.b16 %v7125, %v7123
    %v7212 = vpack.c.b16 %v7126, %v7124
    %v7213 = vpack.c.b16 %v7129, %v7127
    %v7214 = vpack.c.b16 %v7130, %v7128
    %v7215 = vpack.c.b16 %v7133, %v7131
    %v7216 = vpack.c.b16 %v7134, %v7132
    %v7217 = vpack.c.b16 %v7137, %v7135
    %v7218 = vpack.c.b16 %v7138, %v7136
    %v7219 = vpack.c.b16 %v7141, %v7139
    %v7220 = vpack.c.b16 %v7142, %v7140
    %v7221 = vpack.c.b16 %v7145, %v7143
    %v7222 = vpack.c.b16 %v7146, %v7144
    %v7223 = vpack.c.b16 %v7149, %v7147
    %v7224 = vpack.c.b16 %v7150, %v7148
    %v7225 = vpack.c.b16 %v7153, %v7151
    %v7226 = vpack.c.b16 %v7154, %v7152
    %v7227 = vpack.c.b16 %v7157, %v7155
    %v7228 = vpack.c.b16 %v7158, %v7156
    %v7229 = vpack.c.b16 %v7161, %v7159
    %v7230 = vpack.c.b16 %v7162, %v7160
    %v7231 = vpack.c.b16 %v7165, %v7163
    %v7232 = vpack.c.b16 %v7166, %v7164
    %v7233 = vpack.c.b16 %v7169, %v7167
    %v7234 = vpack.c.b16 %v7170, %v7168
    %7299 = vmatpush.bf16.msra.mxu0 %v7185
    %7300 = vmatpush.bf16.msra.mxu0 %v7183
    %7301 = vmatpush.bf16.msra.mxu0 %v7181
    %7302 = vmatpush.bf16.msra.mxu0 %v7179
    %7303 = vmatpush.bf16.msra.mxu0 %v7177
    %7304 = vmatpush.bf16.msra.mxu0 %v7175
    %7305 = vmatpush.bf16.msra.mxu0 %v7173
    %7306 = vmatpush.bf16.msra.mxu0 %v7171
    %7307 = vmatmul.bf16.gmra.mxu0 %v6883
    %v7308 = vpop.f32.mrf.mxu0
    %v7309 = vadd.f32 0.0, %v7308
    %v7310 = vpop.f32.mrf.mxu0
    %v7311 = vadd.f32 0.0, %v7310
    %7312 = vmatmul.bf16.gmra.mxu0 %v6887
    %v7313 = vpop.f32.mrf.mxu0
    %v7314 = vadd.f32 0.0, %v7313
    %v7315 = vpop.f32.mrf.mxu0
    %v7316 = vadd.f32 0.0, %v7315
    %7317 = vmatmul.bf16.gmra.mxu0 %v6891
    %v7318 = vpop.f32.mrf.mxu0
    %v7319 = vadd.f32 0.0, %v7318
    %v7320 = vpop.f32.mrf.mxu0
    %v7321 = vadd.f32 0.0, %v7320
    %7322 = vmatmul.bf16.gmra.mxu0 %v6895
    %v7323 = vpop.f32.mrf.mxu0
    %v7324 = vadd.f32 0.0, %v7323
    %v7325 = vpop.f32.mrf.mxu0
    %v7326 = vadd.f32 0.0, %v7325
    %7327 = vmatmul.bf16.gmra.mxu0 %v6899
    %v7328 = vpop.f32.mrf.mxu0
    %v7329 = vadd.f32 0.0, %v7328
    %v7330 = vpop.f32.mrf.mxu0
    %v7331 = vadd.f32 0.0, %v7330
    %7332 = vmatmul.bf16.gmra.mxu0 %v6903
    %v7333 = vpop.f32.mrf.mxu0
    %v7334 = vadd.f32 0.0, %v7333
    %v7335 = vpop.f32.mrf.mxu0
    %v7336 = vadd.f32 0.0, %v7335
    %7337 = vmatmul.bf16.gmra.mxu0 %v6907
    %v7338 = vpop.f32.mrf.mxu0
    %v7339 = vadd.f32 0.0, %v7338
    %v7340 = vpop.f32.mrf.mxu0
    %v7341 = vadd.f32 0.0, %v7340
    %7342 = vmatmul.bf16.gmra.mxu0 %v6911
    %v7343 = vpop.f32.mrf.mxu0
    %v7344 = vadd.f32 0.0, %v7343
    %v7345 = vpop.f32.mrf.mxu0
    %v7346 = vadd.f32 0.0, %v7345
    %7347 = vdwg.mxu0
    %7348 = vmatpush.bf16.msra.mxu0 %v7201
    %7349 = vmatpush.bf16.msra.mxu0 %v7199
    %7350 = vmatpush.bf16.msra.mxu0 %v7197
    %7351 = vmatpush.bf16.msra.mxu0 %v7195
    %7352 = vmatpush.bf16.msra.mxu0 %v7193
    %7353 = vmatpush.bf16.msra.mxu0 %v7191
    %7354 = vmatpush.bf16.msra.mxu0 %v7189
    %7355 = vmatpush.bf16.msra.mxu0 %v7187
    %7356 = vmatmul.bf16.gmra.mxu0 %v6884
    %v7357 = vpop.f32.mrf.mxu0
    %v7358 = vadd.f32 %v7309, %v7357
    %v7359 = vpop.f32.mrf.mxu0
    %v7360 = vadd.f32 %v7311, %v7359
    %7361 = vmatmul.bf16.gmra.mxu0 %v6888
    %v7362 = vpop.f32.mrf.mxu0
    %v7363 = vadd.f32 %v7314, %v7362
    %v7364 = vpop.f32.mrf.mxu0
    %v7365 = vadd.f32 %v7316, %v7364
    %7366 = vmatmul.bf16.gmra.mxu0 %v6892
    %v7367 = vpop.f32.mrf.mxu0
    %v7368 = vadd.f32 %v7319, %v7367
    %v7369 = vpop.f32.mrf.mxu0
    %v7370 = vadd.f32 %v7321, %v7369
    %7371 = vmatmul.bf16.gmra.mxu0 %v6896
    %v7372 = vpop.f32.mrf.mxu0
    %v7373 = vadd.f32 %v7324, %v7372
    %v7374 = vpop.f32.mrf.mxu0
    %v7375 = vadd.f32 %v7326, %v7374
    %7376 = vmatmul.bf16.gmra.mxu0 %v6900
    %v7377 = vpop.f32.mrf.mxu0
    %v7378 = vadd.f32 %v7329, %v7377
    %v7379 = vpop.f32.mrf.mxu0
    %v7380 = vadd.f32 %v7331, %v7379
    %7381 = vmatmul.bf16.gmra.mxu0 %v6904
    %v7382 = vpop.f32.mrf.mxu0
    %v7383 = vadd.f32 %v7334, %v7382
    %v7384 = vpop.f32.mrf.mxu0
    %v7385 = vadd.f32 %v7336, %v7384
    %7386 = vmatmul.bf16.gmra.mxu0 %v6908
    %v7387 = vpop.f32.mrf.mxu0
    %v7388 = vadd.f32 %v7339, %v7387
    %v7389 = vpop.f32.mrf.mxu0
    %v7390 = vadd.f32 %v7341, %v7389
    %7391 = vmatmul.bf16.gmra.mxu0 %v6912
    %v7392 = vpop.f32.mrf.mxu0
    %v7393 = vadd.f32 %v7344, %v7392
    %v7394 = vpop.f32.mrf.mxu0
    %v7395 = vadd.f32 %v7346, %v7394
    %7396 = vdwg.mxu0
    %7397 = vmatpush.bf16.msra.mxu0 %v7217
    %7398 = vmatpush.bf16.msra.mxu0 %v7215
    %7399 = vmatpush.bf16.msra.mxu0 %v7213
    %7400 = vmatpush.bf16.msra.mxu0 %v7211
    %7401 = vmatpush.bf16.msra.mxu0 %v7209
    %7402 = vmatpush.bf16.msra.mxu0 %v7207
    %7403 = vmatpush.bf16.msra.mxu0 %v7205
    %7404 = vmatpush.bf16.msra.mxu0 %v7203
    %7405 = vmatmul.bf16.gmra.mxu0 %v6885
    %v7406 = vpop.f32.mrf.mxu0
    %v7407 = vadd.f32 %v7358, %v7406
    %v7408 = vpop.f32.mrf.mxu0
    %v7409 = vadd.f32 %v7360, %v7408
    %7410 = vmatmul.bf16.gmra.mxu0 %v6889
    %v7411 = vpop.f32.mrf.mxu0
    %v7412 = vadd.f32 %v7363, %v7411
    %v7413 = vpop.f32.mrf.mxu0
    %v7414 = vadd.f32 %v7365, %v7413
    %7415 = vmatmul.bf16.gmra.mxu0 %v6893
    %v7416 = vpop.f32.mrf.mxu0
    %v7417 = vadd.f32 %v7368, %v7416
    %v7418 = vpop.f32.mrf.mxu0
    %v7419 = vadd.f32 %v7370, %v7418
    %7420 = vmatmul.bf16.gmra.mxu0 %v6897
    %v7421 = vpop.f32.mrf.mxu0
    %v7422 = vadd.f32 %v7373, %v7421
    %v7423 = vpop.f32.mrf.mxu0
    %v7424 = vadd.f32 %v7375, %v7423
    %7425 = vmatmul.bf16.gmra.mxu0 %v6901
    %v7426 = vpop.f32.mrf.mxu0
    %v7427 = vadd.f32 %v7378, %v7426
    %v7428 = vpop.f32.mrf.mxu0
    %v7429 = vadd.f32 %v7380, %v7428
    %7430 = vmatmul.bf16.gmra.mxu0 %v6905
    %v7431 = vpop.f32.mrf.mxu0
    %v7432 = vadd.f32 %v7383, %v7431
    %v7433 = vpop.f32.mrf.mxu0
    %v7434 = vadd.f32 %v7385, %v7433
    %7435 = vmatmul.bf16.gmra.mxu0 %v6909
    %v7436 = vpop.f32.mrf.mxu0
    %v7437 = vadd.f32 %v7388, %v7436
    %v7438 = vpop.f32.mrf.mxu0
    %v7439 = vadd.f32 %v7390, %v7438
    %7440 = vmatmul.bf16.gmra.mxu0 %v6913
    %v7441 = vpop.f32.mrf.mxu0
    %v7442 = vadd.f32 %v7393, %v7441
    %v7443 = vpop.f32.mrf.mxu0
    %v7444 = vadd.f32 %v7395, %v7443
    %7445 = vdwg.mxu0
    %7446 = vmatpush.bf16.msra.mxu0 %v7233
    %7447 = vmatpush.bf16.msra.mxu0 %v7231
    %7448 = vmatpush.bf16.msra.mxu0 %v7229
    %7449 = vmatpush.bf16.msra.mxu0 %v7227
    %7450 = vmatpush.bf16.msra.mxu0 %v7225
    %7451 = vmatpush.bf16.msra.mxu0 %v7223
    %7452 = vmatpush.bf16.msra.mxu0 %v7221
    %7453 = vmatpush.bf16.msra.mxu0 %v7219
    %7454 = vmatmul.bf16.gmra.mxu0 %v6886
    %v7455 = vpop.f32.mrf.mxu0
    %v7456 = vadd.f32 %v7407, %v7455
    %v7457 = vpop.f32.mrf.mxu0
    %v7458 = vadd.f32 %v7409, %v7457
    %7459 = vmatmul.bf16.gmra.mxu0 %v6890
    %v7460 = vpop.f32.mrf.mxu0
    %v7461 = vadd.f32 %v7412, %v7460
    %v7462 = vpop.f32.mrf.mxu0
    %v7463 = vadd.f32 %v7414, %v7462
    %7464 = vmatmul.bf16.gmra.mxu0 %v6894
    %v7465 = vpop.f32.mrf.mxu0
    %v7466 = vadd.f32 %v7417, %v7465
    %v7467 = vpop.f32.mrf.mxu0
    %v7468 = vadd.f32 %v7419, %v7467
    %7469 = vmatmul.bf16.gmra.mxu0 %v6898
    %v7470 = vpop.f32.mrf.mxu0
    %v7471 = vadd.f32 %v7422, %v7470
    %v7472 = vpop.f32.mrf.mxu0
    %v7473 = vadd.f32 %v7424, %v7472
    %7474 = vmatmul.bf16.gmra.mxu0 %v6902
    %v7475 = vpop.f32.mrf.mxu0
    %v7476 = vadd.f32 %v7427, %v7475
    %v7477 = vpop.f32.mrf.mxu0
    %v7478 = vadd.f32 %v7429, %v7477
    %7479 = vmatmul.bf16.gmra.mxu0 %v6906
    %v7480 = vpop.f32.mrf.mxu0
    %v7481 = vadd.f32 %v7432, %v7480
    %v7482 = vpop.f32.mrf.mxu0
    %v7483 = vadd.f32 %v7434, %v7482
    %7484 = vmatmul.bf16.gmra.mxu0 %v6910
    %v7485 = vpop.f32.mrf.mxu0
    %v7486 = vadd.f32 %v7437, %v7485
    %v7487 = vpop.f32.mrf.mxu0
    %v7488 = vadd.f32 %v7439, %v7487
    %7489 = vmatmul.bf16.gmra.mxu0 %v6914
    %v7490 = vpop.f32.mrf.mxu0
    %v7491 = vadd.f32 %v7442, %v7490
    %v7492 = vpop.f32.mrf.mxu0
    %v7493 = vadd.f32 %v7444, %v7492
    %7494 = vdwg.mxu0
    %7495 = vmatpush.bf16.msra.mxu0 %v7186
    %7496 = vmatpush.bf16.msra.mxu0 %v7184
    %7497 = vmatpush.bf16.msra.mxu0 %v7182
    %7498 = vmatpush.bf16.msra.mxu0 %v7180
    %7499 = vmatpush.bf16.msra.mxu0 %v7178
    %7500 = vmatpush.bf16.msra.mxu0 %v7176
    %7501 = vmatpush.bf16.msra.mxu0 %v7174
    %7502 = vmatpush.bf16.msra.mxu0 %v7172
    %7503 = vmatmul.bf16.gmra.mxu0 %v6883
    %v7504 = vpop.f32.mrf.mxu0
    %v7505 = vadd.f32 0.0, %v7504
    %v7506 = vpop.f32.mrf.mxu0
    %v7507 = vadd.f32 0.0, %v7506
    %7508 = vmatmul.bf16.gmra.mxu0 %v6887
    %v7509 = vpop.f32.mrf.mxu0
    %v7510 = vadd.f32 0.0, %v7509
    %v7511 = vpop.f32.mrf.mxu0
    %v7512 = vadd.f32 0.0, %v7511
    %7513 = vmatmul.bf16.gmra.mxu0 %v6891
    %v7514 = vpop.f32.mrf.mxu0
    %v7515 = vadd.f32 0.0, %v7514
    %v7516 = vpop.f32.mrf.mxu0
    %v7517 = vadd.f32 0.0, %v7516
    %7518 = vmatmul.bf16.gmra.mxu0 %v6895
    %v7519 = vpop.f32.mrf.mxu0
    %v7520 = vadd.f32 0.0, %v7519
    %v7521 = vpop.f32.mrf.mxu0
    %v7522 = vadd.f32 0.0, %v7521
    %7523 = vmatmul.bf16.gmra.mxu0 %v6899
    %v7524 = vpop.f32.mrf.mxu0
    %v7525 = vadd.f32 0.0, %v7524
    %v7526 = vpop.f32.mrf.mxu0
    %v7527 = vadd.f32 0.0, %v7526
    %7528 = vmatmul.bf16.gmra.mxu0 %v6903
    %v7529 = vpop.f32.mrf.mxu0
    %v7530 = vadd.f32 0.0, %v7529
    %v7531 = vpop.f32.mrf.mxu0
    %v7532 = vadd.f32 0.0, %v7531
    %7533 = vmatmul.bf16.gmra.mxu0 %v6907
    %v7534 = vpop.f32.mrf.mxu0
    %v7535 = vadd.f32 0.0, %v7534
    %v7536 = vpop.f32.mrf.mxu0
    %v7537 = vadd.f32 0.0, %v7536
    %7538 = vmatmul.bf16.gmra.mxu0 %v6911
    %v7539 = vpop.f32.mrf.mxu0
    %v7540 = vadd.f32 0.0, %v7539
    %v7541 = vpop.f32.mrf.mxu0
    %v7542 = vadd.f32 0.0, %v7541
    %7543 = vdwg.mxu0
    %7544 = vmatpush.bf16.msra.mxu0 %v7202
    %7545 = vmatpush.bf16.msra.mxu0 %v7200
    %7546 = vmatpush.bf16.msra.mxu0 %v7198
    %7547 = vmatpush.bf16.msra.mxu0 %v7196
    %7548 = vmatpush.bf16.msra.mxu0 %v7194
    %7549 = vmatpush.bf16.msra.mxu0 %v7192
    %7550 = vmatpush.bf16.msra.mxu0 %v7190
    %7551 = vmatpush.bf16.msra.mxu0 %v7188
    %7552 = vmatmul.bf16.gmra.mxu0 %v6884
    %v7553 = vpop.f32.mrf.mxu0
    %v7554 = vadd.f32 %v7505, %v7553
    %v7555 = vpop.f32.mrf.mxu0
    %v7556 = vadd.f32 %v7507, %v7555
    %7557 = vmatmul.bf16.gmra.mxu0 %v6888
    %v7558 = vpop.f32.mrf.mxu0
    %v7559 = vadd.f32 %v7510, %v7558
    %v7560 = vpop.f32.mrf.mxu0
    %v7561 = vadd.f32 %v7512, %v7560
    %7562 = vmatmul.bf16.gmra.mxu0 %v6892
    %v7563 = vpop.f32.mrf.mxu0
    %v7564 = vadd.f32 %v7515, %v7563
    %v7565 = vpop.f32.mrf.mxu0
    %v7566 = vadd.f32 %v7517, %v7565
    %7567 = vmatmul.bf16.gmra.mxu0 %v6896
    %v7568 = vpop.f32.mrf.mxu0
    %v7569 = vadd.f32 %v7520, %v7568
    %v7570 = vpop.f32.mrf.mxu0
    %v7571 = vadd.f32 %v7522, %v7570
    %7572 = vmatmul.bf16.gmra.mxu0 %v6900
    %v7573 = vpop.f32.mrf.mxu0
    %v7574 = vadd.f32 %v7525, %v7573
    %v7575 = vpop.f32.mrf.mxu0
    %v7576 = vadd.f32 %v7527, %v7575
    %7577 = vmatmul.bf16.gmra.mxu0 %v6904
    %v7578 = vpop.f32.mrf.mxu0
    %v7579 = vadd.f32 %v7530, %v7578
    %v7580 = vpop.f32.mrf.mxu0
    %v7581 = vadd.f32 %v7532, %v7580
    %7582 = vmatmul.bf16.gmra.mxu0 %v6908
    %v7583 = vpop.f32.mrf.mxu0
    %v7584 = vadd.f32 %v7535, %v7583
    %v7585 = vpop.f32.mrf.mxu0
    %v7586 = vadd.f32 %v7537, %v7585
    %7587 = vmatmul.bf16.gmra.mxu0 %v6912
    %v7588 = vpop.f32.mrf.mxu0
    %v7589 = vadd.f32 %v7540, %v7588
    %v7590 = vpop.f32.mrf.mxu0
    %v7591 = vadd.f32 %v7542, %v7590
    %7592 = vdwg.mxu0
    %7593 = vmatpush.bf16.msra.mxu0 %v7218
    %7594 = vmatpush.bf16.msra.mxu0 %v7216
    %7595 = vmatpush.bf16.msra.mxu0 %v7214
    %7596 = vmatpush.bf16.msra.mxu0 %v7212
    %7597 = vmatpush.bf16.msra.mxu0 %v7210
    %7598 = vmatpush.bf16.msra.mxu0 %v7208
    %7599 = vmatpush.bf16.msra.mxu0 %v7206
    %7600 = vmatpush.bf16.msra.mxu0 %v7204
    %7601 = vmatmul.bf16.gmra.mxu0 %v6885
    %v7602 = vpop.f32.mrf.mxu0
    %v7603 = vadd.f32 %v7554, %v7602
    %v7604 = vpop.f32.mrf.mxu0
    %v7605 = vadd.f32 %v7556, %v7604
    %7606 = vmatmul.bf16.gmra.mxu0 %v6889
    %v7607 = vpop.f32.mrf.mxu0
    %v7608 = vadd.f32 %v7559, %v7607
    %v7609 = vpop.f32.mrf.mxu0
    %v7610 = vadd.f32 %v7561, %v7609
    %7611 = vmatmul.bf16.gmra.mxu0 %v6893
    %v7612 = vpop.f32.mrf.mxu0
    %v7613 = vadd.f32 %v7564, %v7612
    %v7614 = vpop.f32.mrf.mxu0
    %v7615 = vadd.f32 %v7566, %v7614
    %7616 = vmatmul.bf16.gmra.mxu0 %v6897
    %v7617 = vpop.f32.mrf.mxu0
    %v7618 = vadd.f32 %v7569, %v7617
    %v7619 = vpop.f32.mrf.mxu0
    %v7620 = vadd.f32 %v7571, %v7619
    %7621 = vmatmul.bf16.gmra.mxu0 %v6901
    %v7622 = vpop.f32.mrf.mxu0
    %v7623 = vadd.f32 %v7574, %v7622
    %v7624 = vpop.f32.mrf.mxu0
    %v7625 = vadd.f32 %v7576, %v7624
    %7626 = vmatmul.bf16.gmra.mxu0 %v6905
    %v7627 = vpop.f32.mrf.mxu0
    %v7628 = vadd.f32 %v7579, %v7627
    %v7629 = vpop.f32.mrf.mxu0
    %v7630 = vadd.f32 %v7581, %v7629
    %7631 = vmatmul.bf16.gmra.mxu0 %v6909
    %v7632 = vpop.f32.mrf.mxu0
    %v7633 = vadd.f32 %v7584, %v7632
    %v7634 = vpop.f32.mrf.mxu0
    %v7635 = vadd.f32 %v7586, %v7634
    %7636 = vmatmul.bf16.gmra.mxu0 %v6913
    %v7637 = vpop.f32.mrf.mxu0
    %v7638 = vadd.f32 %v7589, %v7637
    %v7639 = vpop.f32.mrf.mxu0
    %v7640 = vadd.f32 %v7591, %v7639
    %7641 = vdwg.mxu0
    %7642 = vmatpush.bf16.msra.mxu0 %v7234
    %7643 = vmatpush.bf16.msra.mxu0 %v7232
    %7644 = vmatpush.bf16.msra.mxu0 %v7230
    %7645 = vmatpush.bf16.msra.mxu0 %v7228
    %7646 = vmatpush.bf16.msra.mxu0 %v7226
    %7647 = vmatpush.bf16.msra.mxu0 %v7224
    %7648 = vmatpush.bf16.msra.mxu0 %v7222
    %7649 = vmatpush.bf16.msra.mxu0 %v7220
    %7650 = vmatmul.bf16.gmra.mxu0 %v6886
    %v7651 = vpop.f32.mrf.mxu0
    %v7652 = vadd.f32 %v7603, %v7651
    %v7653 = vpop.f32.mrf.mxu0
    %v7654 = vadd.f32 %v7605, %v7653
    %7655 = vmatmul.bf16.gmra.mxu0 %v6890
    %v7656 = vpop.f32.mrf.mxu0
    %v7657 = vadd.f32 %v7608, %v7656
    %v7658 = vpop.f32.mrf.mxu0
    %v7659 = vadd.f32 %v7610, %v7658
    %7660 = vmatmul.bf16.gmra.mxu0 %v6894
    %v7661 = vpop.f32.mrf.mxu0
    %v7662 = vadd.f32 %v7613, %v7661
    %v7663 = vpop.f32.mrf.mxu0
    %v7664 = vadd.f32 %v7615, %v7663
    %7665 = vmatmul.bf16.gmra.mxu0 %v6898
    %v7666 = vpop.f32.mrf.mxu0
    %v7667 = vadd.f32 %v7618, %v7666
    %v7668 = vpop.f32.mrf.mxu0
    %v7669 = vadd.f32 %v7620, %v7668
    %7670 = vmatmul.bf16.gmra.mxu0 %v6902
    %v7671 = vpop.f32.mrf.mxu0
    %v7672 = vadd.f32 %v7623, %v7671
    %v7673 = vpop.f32.mrf.mxu0
    %v7674 = vadd.f32 %v7625, %v7673
    %7675 = vmatmul.bf16.gmra.mxu0 %v6906
    %v7676 = vpop.f32.mrf.mxu0
    %v7677 = vadd.f32 %v7628, %v7676
    %v7678 = vpop.f32.mrf.mxu0
    %v7679 = vadd.f32 %v7630, %v7678
    %7680 = vmatmul.bf16.gmra.mxu0 %v6910
    %v7681 = vpop.f32.mrf.mxu0
    %v7682 = vadd.f32 %v7633, %v7681
    %v7683 = vpop.f32.mrf.mxu0
    %v7684 = vadd.f32 %v7635, %v7683
    %7685 = vmatmul.bf16.gmra.mxu0 %v6914
    %v7686 = vpop.f32.mrf.mxu0
    %v7687 = vadd.f32 %v7638, %v7686
    %v7688 = vpop.f32.mrf.mxu0
    %v7689 = vadd.f32 %v7640, %v7688
    %7690 = vdwg.mxu0
    %v7691 = vadd.f32 %v3463, %v7456
    %v7692 = vadd.f32 %v3464, %v7652
    %v7693 = vadd.f32 %v3465, %v7458
    %v7694 = vadd.f32 %v3466, %v7654
    %v7695 = vadd.f32 %v3467, %v7461
    %v7696 = vadd.f32 %v3468, %v7657
    %v7697 = vadd.f32 %v3469, %v7463
    %v7698 = vadd.f32 %v3470, %v7659
    %v7699 = vadd.f32 %v3471, %v7466
    %v7700 = vadd.f32 %v3472, %v7662
    %v7701 = vadd.f32 %v3473, %v7468
    %v7702 = vadd.f32 %v3474, %v7664
    %v7703 = vadd.f32 %v3475, %v7471
    %v7704 = vadd.f32 %v3476, %v7667
    %v7705 = vadd.f32 %v3477, %v7473
    %v7706 = vadd.f32 %v3478, %v7669
    %v7707 = vadd.f32 %v3479, %v7476
    %v7708 = vadd.f32 %v3480, %v7672
    %v7709 = vadd.f32 %v3481, %v7478
    %v7710 = vadd.f32 %v3482, %v7674
    %v7711 = vadd.f32 %v3483, %v7481
    %v7712 = vadd.f32 %v3484, %v7677
    %v7713 = vadd.f32 %v3485, %v7483
    %v7714 = vadd.f32 %v3486, %v7679
    %v7715 = vadd.f32 %v3487, %v7486
    %v7716 = vadd.f32 %v3488, %v7682
    %v7717 = vadd.f32 %v3489, %v7488
    %v7718 = vadd.f32 %v3490, %v7684
    %v7719 = vadd.f32 %v3491, %v7491
    %v7720 = vadd.f32 %v3492, %v7687
    %v7721 = vadd.f32 %v3493, %v7493
    %v7722 = vadd.f32 %v3494, %v7689
    %7723 = vst [vmem:[#allocation15] sm:$0xff] %v7691
    %7724 = vst [vmem:[#allocation15 + $0x8] sm:$0xff] %v7692
    %7725 = vst [vmem:[#allocation15 + $0x10] sm:$0xff] %v7693
    %7726 = vst [vmem:[#allocation15 + $0x18] sm:$0xff] %v7694
    %7727 = vst [vmem:[#allocation15 + $0x20] sm:$0xff] %v7695
    %7728 = vst [vmem:[#allocation15 + $0x28] sm:$0xff] %v7696
    %7729 = vst [vmem:[#allocation15 + $0x30] sm:$0xff] %v7697
    %7730 = vst [vmem:[#allocation15 + $0x38] sm:$0xff] %v7698
    %7731 = vst [vmem:[#allocation15 + $0x40] sm:$0xff] %v7699
    %7732 = vst [vmem:[#allocation15 + $0x48] sm:$0xff] %v7700
    %7733 = vst [vmem:[#allocation15 + $0x50] sm:$0xff] %v7701
    %7734 = vst [vmem:[#allocation15 + $0x58] sm:$0xff] %v7702
    %7735 = vst [vmem:[#allocation15 + $0x60] sm:$0xff] %v7703
    %7736 = vst [vmem:[#allocation15 + $0x68] sm:$0xff] %v7704
    %7737 = vst [vmem:[#allocation15 + $0x70] sm:$0xff] %v7705
    %7738 = vst [vmem:[#allocation15 + $0x78] sm:$0xff] %v7706
    %7739 = vst [vmem:[#allocation15 + $0x80] sm:$0xff] %v7707
    %7740 = vst [vmem:[#allocation15 + $0x88] sm:$0xff] %v7708
    %7741 = vst [vmem:[#allocation15 + $0x90] sm:$0xff] %v7709
    %7742 = vst [vmem:[#allocation15 + $0x98] sm:$0xff] %v7710
    %7743 = vst [vmem:[#allocation15 + $0xa0] sm:$0xff] %v7711
    %7744 = vst [vmem:[#allocation15 + $0xa8] sm:$0xff] %v7712
    %7745 = vst [vmem:[#allocation15 + $0xb0] sm:$0xff] %v7713
    %7746 = vst [vmem:[#allocation15 + $0xb8] sm:$0xff] %v7714
    %7747 = vst [vmem:[#allocation15 + $0xc0] sm:$0xff] %v7715
    %7748 = vst [vmem:[#allocation15 + $0xc8] sm:$0xff] %v7716
    %7749 = vst [vmem:[#allocation15 + $0xd0] sm:$0xff] %v7717
    %7750 = vst [vmem:[#allocation15 + $0xd8] sm:$0xff] %v7718
    %7751 = vst [vmem:[#allocation15 + $0xe0] sm:$0xff] %v7719
    %7752 = vst [vmem:[#allocation15 + $0xe8] sm:$0xff] %v7720
    %7753 = vst [vmem:[#allocation15 + $0xf0] sm:$0xff] %v7721
    %7754 = vst [vmem:[#allocation15 + $0xf8] sm:$0xff] %v7722
    // Predicated region
    $region66: #{tpu_custom_call.1} parent=1 // pred_check
      _
    $region67: #{tpu_custom_call.1} parent=1 // pred_check_branch
      %7756 = sbr.rel (0) target = $region69
    $region68: #{tpu_custom_call.1} parent=1 // pred_region
      %7758 = vsyncadd [#allocation5], 0
      %s7759 = sshll.u32 [#allocation15], 4
      %s7760 = int_to_ptr.vmem [resolvable:$true] %s7759
      %s7761 = sshll.u32 %s9, 4
      %s7762 = int_to_ptr.hbm [resolvable:$true] %s7761
      %7767 = dma.vmem_to_hbm [thread:$0]  %s7760, 4096, %s7762, [#allocation5], 256, 256, 16
    $region69: #{tpu_custom_call.1} parent=1 // pred_fallthru
      _
    // Predicated region
    $region70: #{tpu_custom_call.1} parent=1 // pred_check
      _
    $region71: #{tpu_custom_call.1} parent=1 // pred_check_branch
      %7769 = sbr.rel (0) target = $region73
    $region72: #{tpu_custom_call.1} parent=1 // pred_region
      %7771 = dma.done [#allocation5], 4096
    $region73: #{tpu_custom_call.1} parent=1 // pred_fallthru
      _
    %7772 = vsyncpa [#allocation4], 1
    %7773 = vsyncpa [#allocation7], 1
    %7774 = vsyncpa [#allocation10], 1
    %7775 = vsyncpa [#allocation13], 1
    %7776 = vsyncpa [#allocation5], 1

</llo_original>
